<compile_context>
chip_gen: v5e
topology: v5e:2x2
jax: 0.10.0
libtpu: 0.0.40
codegen_flags: <defaults>
</compile_context>

<pallas_src>
import numpy as np

import jax
import jax.numpy as jnp
from jax.experimental import pallas as pl
from jax.experimental.pallas import tpu as pltpu

_BF16 = jnp.bfloat16
_F32 = jnp.float32
_LEAKY = 0.01
_BN_EPS = 1e-5

_PHASES = ((0, 0), (0, 1), (1, 0), (1, 1))   # (dr, dc): ee, eo, oe, oo


# ----------------------------------------------------------------------------
# Host-side constant builders (exact 0/1 gather/scatter matrices, built once at
# parameter-preparation time; never at runtime).
# ----------------------------------------------------------------------------
def _phase_pack_deconv_weight(w):
    """torch ConvTranspose2d weight (Cin, Cout, 3, 3) -> (4*Cin, 4*Cout).

    Row blocks: operands [x(r,c), x(r,c+1), x(r+1,c), x(r+1,c+1)]; column
    blocks: output phases [(2r,2c), (2r,2c+1), (2r+1,2c), (2r+1,2c+1)]
    (kernel 3, stride 2, padding 1, output_padding 1)."""
    cin, cout = w.shape[0], w.shape[1]
    z = jnp.zeros((cin, cout), _F32)
    row_x0 = jnp.concatenate([w[:, :, 1, 1], w[:, :, 1, 2],
                              w[:, :, 2, 1], w[:, :, 2, 2]], axis=1)
    row_xr = jnp.concatenate([z, w[:, :, 1, 0], z, w[:, :, 2, 0]], axis=1)
    row_xd = jnp.concatenate([z, z, w[:, :, 0, 1], w[:, :, 0, 2]], axis=1)
    row_xrd = jnp.concatenate([z, z, z, w[:, :, 0, 0]], axis=1)
    return jnp.concatenate([row_x0, row_xr, row_xd, row_xrd], axis=0)


def _build_gather(n, h, w):
    """G[q*4+p] (M', M): 0/1.  The producing layer has coarse spatial (h, w) and
    phase-packed output rows j = nn*h*w + r*w + c; the consuming layer's input
    spatial is (2h, 2w) with rows i = nn*2h*2w + R*2w + C.  Operand block q of
    the consuming layer's im2col equals sum_p G[q*4+p] @ Y[:, p-block]."""
    h2, w2 = 2 * h, 2 * w
    mp, m = n * h2 * w2, n * h * w
    g = np.zeros((16, mp, m), np.float32)
    for nn in range(n):
        for big_r in range(h2):
            for big_c in range(w2):
                i = nn * h2 * w2 + big_r * w2 + big_c
                for q, (dr, dc) in enumerate(_PHASES):
                    rs, cs = big_r + dr, big_c + dc
                    if rs >= h2 or cs >= w2:        # out-of-image operand
                        continue
                    p = (rs % 2) * 2 + (cs % 2)
                    j = nn * h * w + (rs // 2) * w + (cs // 2)
                    g[q * 4 + p, i, j] = 1.0
    return g


def _build_scatter_t(n, h, w):
    """S2T[p] (M, M'): 0/1 transposed de-interleave; fine position i of the
    (2h, 2w) image belongs to coarse j and phase p."""
    h2, w2 = 2 * h, 2 * w
    m, mp = n * h * w, n * h2 * w2
    s = np.zeros((4, m, mp), np.float32)
    for nn in range(n):
        for big_r in range(h2):
            for big_c in range(w2):
                i = nn * h2 * w2 + big_r * w2 + big_c
                p = (big_r % 2) * 2 + (big_c % 2)
                j = nn * h * w + (big_r // 2) * w + (big_c // 2)
                s[p, j, i] = 1.0
    return s


def _build_conv_masks(n, h, w):
    """(9, n*h*w) 0/1 validity masks for the 3x3 same-padding conv taps."""
    m = np.zeros((9, n * h * w), np.float32)
    for nn in range(n):
        for big_r in range(h):
            for big_c in range(w):
                i = nn * h * w + big_r * w + big_c
                for kh in range(3):
                    for kw in range(3):
                        if 0 <= big_r + kh - 1 < h and 0 <= big_c + kw - 1 < w:
                            m[kh * 3 + kw, i] = 1.0
    return m


# ----------------------------------------------------------------------------
# Synthetic parameters in torch layouts
# ----------------------------------------------------------------------------
def init_torch_params(key, stroke_hidden_dims, traj_hidden_dim, latent_dim):
    dims = list(stroke_hidden_dims)[::-1]          # the module reverses in place
    ks = iter(jax.random.split(key, 64))

    def nrm(shape, scale=0.1):
        return scale * jax.random.normal(next(ks), shape, dtype=_F32)

    fc_out = 2 * 2 * dims[0] + traj_hidden_dim
    return {
        "fc_w": nrm((latent_dim, fc_out)),
        "fc_b": nrm((fc_out,)),
        # ConvTranspose2d biases omitted: a per-channel pre-BN bias is exactly
        # cancelled by batch-statistics BatchNorm, so outputs are unchanged.
        "deconvs": [dict(w=nrm((dims[i], dims[i + 1], 3, 3)),
                         gamma=1.0 + nrm((dims[i + 1],)),
                         beta=nrm((dims[i + 1],)))
                    for i in range(len(dims) - 1)],
        "final_deconv": dict(w=nrm((dims[-1], dims[-1], 3, 3)),
                             gamma=1.0 + nrm((dims[-1],)),
                             beta=nrm((dims[-1],))),
        "final_conv_w": nrm((1, dims[-1], 3, 3)),   # Conv2d (Cout, Cin, kH, kW)
        "final_conv_b": nrm((1,)),
        "traj_w": nrm((traj_hidden_dim, 24)),
        "traj_b": nrm((24,)),
    }


def prepare_params(tp, batch, stroke_hidden_dims, traj_hidden_dim):
    del traj_hidden_dim  # implied by shapes
    dims = list(stroke_hidden_dims)[::-1]
    # The module hard-codes view(-1, 128, 2, 2) and has exactly 3 deconv stages.
    assert len(dims) == 3 and dims[0] == 128, dims
    stroke_cols = 4 * dims[0]

    wd0 = _phase_pack_deconv_weight(tp["deconvs"][0]["w"])      # (512, 4*dims[1])
    wd1 = _phase_pack_deconv_weight(tp["deconvs"][1]["w"])      # (4*d1, 4*d2)
    wd2 = _phase_pack_deconv_weight(tp["final_deconv"]["w"])    # (4*d2, 4*d2)

    # Fold decoder_fc (stroke half) + torch NCHW view + deconv-0 phase gather +
    # deconv-0 weight into one matmul weight (exact algebra, done once on host).
    fc_w, fc_b = tp["fc_w"], tp["fc_b"]
    a_blocks, b_blocks = [], []
    for s in range(4):                      # spatial position (r, c) of 2x2 grid
        r, c = divmod(s, 2)
        q = np.zeros((stroke_cols, stroke_cols), np.float32)
        for op, (dr, dc) in enumerate(_PHASES):
            rr, cc = r + dr, c + dc
            if rr >= 2 or cc >= 2:          # out-of-image operand stays zero
                continue
            src = rr * 2 + cc
            for ch in range(dims[0]):
                q[ch * 4 + src, op * dims[0] + ch] = 1.0
        qw = jnp.asarray(q) @ wd0                                # (512, 4*dims[1])
        a_blocks.append(fc_w[:, :stroke_cols] @ qw)
        b_blocks.append(fc_b[:stroke_cols] @ qw)
    fcw = jnp.concatenate(a_blocks + [fc_w[:, stroke_cols:]], axis=1)
    fcb = jnp.concatenate(b_blocks + [fc_b[stroke_cols:]], axis=0).reshape(1, -1)

    def gb(blk):
        g4 = jnp.tile(blk["gamma"].reshape(1, -1), (1, 4))
        b4 = jnp.tile(blk["beta"].reshape(1, -1), (1, 4))
        return jnp.concatenate([g4, b4], axis=0).astype(_F32)    # (2, 4*C)

    hw = 16                                  # image side: 2 -> 4 -> 8 -> 16
    return {
        "fcw": fcw.astype(_BF16),
        "fcb": fcb.astype(_F32),
        "gb0": gb(tp["deconvs"][0]),
        "g01": jnp.asarray(_build_gather(batch, 2, 2), dtype=_BF16),
        "wd1": wd1.astype(_BF16),
        "gb1": gb(tp["deconvs"][1]),
        "g12": jnp.asarray(_build_gather(batch, 4, 4), dtype=_BF16),
        "wd2": wd2.astype(_BF16),
        "gb2": gb(tp["final_deconv"]),
        "s2t": jnp.asarray(_build_scatter_t(batch, 8, 8), dtype=_BF16),
        "cmask": jnp.asarray(_build_conv_masks(batch, hw, hw), dtype=_F32),
        "wconv": jnp.transpose(tp["final_conv_w"][0], (1, 2, 0))
                 .reshape(1, -1).astype(_BF16),                  # (1, 9*Cin)
        "bconv": jnp.full((1, batch * hw * hw), tp["final_conv_b"][0],
                          dtype=_F32),
        "trajw": tp["traj_w"].astype(_BF16),
        "trajb": jnp.concatenate(
            [tp["traj_b"].reshape(1, 24),
             jnp.tile(jnp.array([0.5, 1.0, 0.5], _F32), 8).reshape(1, 24),
             jnp.tile(jnp.array([0.5, 0.0, 0.5], _F32), 8).reshape(1, 24)],
            axis=0),                                             # (3, 24)
    }


# ----------------------------------------------------------------------------
# The fused kernel
# ----------------------------------------------------------------------------
def _decoder_kernel(x_ref, fcw_ref, fcb_ref, gb0_ref, g01_ref,
                    wd1_ref, gb1_ref, g12_ref, wd2_ref, gb2_ref,
                    s2t_ref, cmask_ref, wconv_ref, bconv_ref,
                    trajw_ref, trajb_ref,
                    img_ref, traj_ref):
    batch = x_ref.shape[0]
    c4_0 = gb0_ref.shape[1]                 # 4 * Cout of deconv block 0
    c4_1 = gb1_ref.shape[1]
    c4_2 = gb2_ref.shape[1]
    traj_dim = trajw_ref.shape[0]
    mimg = s2t_ref.shape[2]                 # batch * 16 * 16
    img_w = int(round((mimg // batch) ** 0.5))

    def leaky(v):
        return jnp.where(v > 0, v, _LEAKY * v)

    def phase_fold(row, c):
        # (1, 4C) -> per-channel sum over the 4 phase blocks, broadcast back.
        tot = (row[:, 0:c] + row[:, c:2 * c] +
               row[:, 2 * c:3 * c] + row[:, 3 * c:4 * c])
        return jnp.concatenate([tot, tot, tot, tot], axis=1)

    def bn_leaky(y, gbv, c):
        # Batch-statistics BN over all rows and all 4 phases, biased variance.
        inv_n = 1.0 / (4.0 * y.shape[0])
        mean = phase_fold(jnp.sum(y, axis=0, keepdims=True), c) * inv_n
        cen = y - mean
        var = phase_fold(jnp.sum(cen * cen, axis=0, keepdims=True), c) * inv_n
        z = cen * (gbv[0:1, :] * jax.lax.rsqrt(var + _BN_EPS)) + gbv[1:2, :]
        return leaky(z)

    def deconv(a_prev, g_ref, wd_ref, cin):
        # a_prev (M, 4*cin) bf16 phase-packed; returns pre-BN (M', 4*cout) f32.
        # Phase gather = 0/1 matmuls (exact); operand blocks never leave VMEM.
        y = None
        for q in range(4):
            xq = None
            for p in range(4):
                t = jnp.dot(g_ref[q * 4 + p],
                            a_prev[:, p * cin:(p + 1) * cin],
                            preferred_element_type=_F32)
                xq = t if xq is None else xq + t
            t = jnp.dot(xq.astype(_BF16), wd_ref[q * cin:(q + 1) * cin, :],
                        preferred_element_type=_F32)
            y = t if y is None else y + t
        return y

    # ---- decoder_fc (deconv-0's layout shuffle / gather / weight pre-folded) --
    h = jnp.dot(x_ref[...].astype(_BF16), fcw_ref[...],
                preferred_element_type=_F32) + fcb_ref[...]       # (B, 4*c4_0+T)

    # ---- trajectory head: leaky_relu -> Linear -> tanh -> scale/shift --------
    xt = leaky(h[:, 4 * c4_0:4 * c4_0 + traj_dim])
    tr = jnp.dot(xt.astype(_BF16), trajw_ref[...],
                 preferred_element_type=_F32) + trajb_ref[0:1, :]
    traj_ref[...] = jnp.tanh(tr) * trajb_ref[1:2, :] + trajb_ref[2:3, :]

    # ---- deconv block 0: rows re-grouped into NHWC (n, r, c) order -----------
    y0 = jnp.concatenate(
        [h[n:n + 1, s * c4_0:(s + 1) * c4_0]
         for n in range(batch) for s in range(4)], axis=0)        # (4B, c4_0)
    a0 = bn_leaky(y0, gb0_ref[...], c4_0 // 4).astype(_BF16)

    # ---- deconv block 1 and final deconv block --------------------------------
    a1 = bn_leaky(deconv(a0, g01_ref, wd1_ref, c4_0 // 4),
                  gb1_ref[...], c4_1 // 4).astype(_BF16)
    a2 = bn_leaky(deconv(a1, g12_ref, wd2_ref, c4_1 // 4),
                  gb2_ref[...], c4_2 // 4)                        # (m2, c4_2) f32

    # ---- final 3x3 conv (Cout=1) + tanh, computed transposed (lane-dense) ----
    cout2 = c4_2 // 4
    a2t = a2.T.astype(_BF16)                                      # (c4_2, m2)
    x3t = None                                                    # (cout2, mimg)
    for p in range(4):
        t = jnp.dot(a2t[p * cout2:(p + 1) * cout2, :], s2t_ref[p],
                    preferred_element_type=_F32)
        x3t = t if x3t is None else x3t + t

    cm = cmask_ref[...]                                           # (9, mimg) f32
    taps = []
    for kh in range(3):
        for kw in range(3):
            delta = (kh - 1) * img_w + (kw - 1)
            src = x3t if delta == 0 else pltpu.roll(
                x3t, shift=(-delta) % mimg, axis=1)
            tap = src * cm[3 * kh + kw:3 * kh + kw + 1, :]
            taps.append(tap.astype(_BF16))
    cols_t = jnp.concatenate(taps, axis=0)                        # (9*cout2, mimg)
    out = jnp.dot(wconv_ref[...], cols_t,
                  preferred_element_type=_F32) + bconv_ref[...]
    img_ref[...] = jnp.tanh(out)                                  # (1, mimg)


def _spec(a):
    nd = a.ndim
    return pl.BlockSpec(a.shape, lambda i, _n=nd: (0,) * _n)


@jax.jit
def decoder_forward(params, x):
    B = x.shape[0]
    mimg = params["s2t"].shape[2]
    hw = int(round((mimg // B) ** 0.5))

    args = (x, params["fcw"], params["fcb"], params["gb0"], params["g01"],
            params["wd1"], params["gb1"], params["g12"], params["wd2"],
            params["gb2"], params["s2t"], params["cmask"], params["wconv"],
            params["bconv"], params["trajw"], params["trajb"])

    img, traj = pl.pallas_call(
        _decoder_kernel,
        out_shape=(jax.ShapeDtypeStruct((1, mimg), _F32),
                   jax.ShapeDtypeStruct((B, 24), _F32)),
        grid=(1,),
        in_specs=[_spec(a) for a in args],
        out_specs=(pl.BlockSpec((1, mimg), lambda i: (0, 0)),
                   pl.BlockSpec((B, 24), lambda i: (0, 0))),
        compiler_params=pltpu.CompilerParams(
            dimension_semantics=("arbitrary",),
            vmem_limit_bytes=32 * 1024 * 1024),
    )(*args)

    return img.reshape(B, 1, hw, hw), traj.reshape(B, 8, 3)


# ----------------------------------------------------------------------------
if __name__ == "__main__":
    # Config consistent with the module: forward hard-codes view(-1, 128, 2, 2),
    # so stroke_hidden_dims[-1] (pre-reverse) must be 128.
    stroke_hidden_dims = [32, 64, 128]
    traj_hidden_dim = 32
    latent_dim = 16
    batch = 2

    key = jax.random.PRNGKey(0)
    pkey, xkey = jax.random.split(key)
    torch_params = init_torch_params(pkey, stroke_hidden_dims, traj_hidden_dim,
                                     latent_dim)
    params = prepare_params(torch_params, batch, stroke_hidden_dims,
                            traj_hidden_dim)
    x = jax.random.normal(xkey, (batch, latent_dim), dtype=_F32)

    x1, x2 = decoder_forward(params, x)
    jax.block_until_ready((x1, x2))

    assert x1.shape == (batch, 1, 16, 16), x1.shape
    assert x2.shape == (batch, 8, 3), x2.shape
    assert bool(jnp.all(jnp.isfinite(x1))) and bool(jnp.all(jnp.isfinite(x2)))
    print("KERNEL_OK")
</pallas_src>

<mosaic_0001>
module attributes {stable_mosaic.version = 11 : i64} {
  func.func @_decoder_kernel(%arg0: i32, %arg1: memref<2x16xf32, #tpu.memory_space<vmem>>, %arg2: memref<16x1056xbf16, #tpu.memory_space<vmem>>, %arg3: memref<1x1056xf32, #tpu.memory_space<vmem>>, %arg4: memref<2x256xf32, #tpu.memory_space<vmem>>, %arg5: memref<16x32x8xbf16, #tpu.memory_space<vmem>>, %arg6: memref<256x128xbf16, #tpu.memory_space<vmem>>, %arg7: memref<2x128xf32, #tpu.memory_space<vmem>>, %arg8: memref<16x128x32xbf16, #tpu.memory_space<vmem>>, %arg9: memref<128x128xbf16, #tpu.memory_space<vmem>>, %arg10: memref<2x128xf32, #tpu.memory_space<vmem>>, %arg11: memref<4x128x512xbf16, #tpu.memory_space<vmem>>, %arg12: memref<9x512xf32, #tpu.memory_space<vmem>>, %arg13: memref<1x288xbf16, #tpu.memory_space<vmem>>, %arg14: memref<1x512xf32, #tpu.memory_space<vmem>>, %arg15: memref<32x24xbf16, #tpu.memory_space<vmem>>, %arg16: memref<3x24xf32, #tpu.memory_space<vmem>>, %arg17: memref<1x512xf32, #tpu.memory_space<vmem>>, %arg18: memref<2x24xf32, #tpu.memory_space<vmem>>) attributes {dimension_semantics = [#tpu.dimension_semantics<arbitrary>], iteration_bounds = array<i64: 1>, scalar_prefetch = 0 : i64, scratch_operands = 0 : i64, tpu.core_type = #tpu.core_type<tc>, window_params = [{pipeline_mode = #tpu.pipeline_mode<synchronous>, transform_indices = @transform_0, window_bounds = array<i64: 2, 16>}, {pipeline_mode = #tpu.pipeline_mode<synchronous>, transform_indices = @transform_1, window_bounds = array<i64: 16, 1056>}, {pipeline_mode = #tpu.pipeline_mode<synchronous>, transform_indices = @transform_2, window_bounds = array<i64: 1, 1056>}, {pipeline_mode = #tpu.pipeline_mode<synchronous>, transform_indices = @transform_3, window_bounds = array<i64: 2, 256>}, {pipeline_mode = #tpu.pipeline_mode<synchronous>, transform_indices = @transform_4, window_bounds = array<i64: 16, 32, 8>}, {pipeline_mode = #tpu.pipeline_mode<synchronous>, transform_indices = @transform_5, window_bounds = array<i64: 256, 128>}, {pipeline_mode = #tpu.pipeline_mode<synchronous>, transform_indices = @transform_6, window_bounds = array<i64: 2, 128>}, {pipeline_mode = #tpu.pipeline_mode<synchronous>, transform_indices = @transform_7, window_bounds = array<i64: 16, 128, 32>}, {pipeline_mode = #tpu.pipeline_mode<synchronous>, transform_indices = @transform_8, window_bounds = array<i64: 128, 128>}, {pipeline_mode = #tpu.pipeline_mode<synchronous>, transform_indices = @transform_9, window_bounds = array<i64: 2, 128>}, {pipeline_mode = #tpu.pipeline_mode<synchronous>, transform_indices = @transform_10, window_bounds = array<i64: 4, 128, 512>}, {pipeline_mode = #tpu.pipeline_mode<synchronous>, transform_indices = @transform_11, window_bounds = array<i64: 9, 512>}, {pipeline_mode = #tpu.pipeline_mode<synchronous>, transform_indices = @transform_12, window_bounds = array<i64: 1, 288>}, {pipeline_mode = #tpu.pipeline_mode<synchronous>, transform_indices = @transform_13, window_bounds = array<i64: 1, 512>}, {pipeline_mode = #tpu.pipeline_mode<synchronous>, transform_indices = @transform_14, window_bounds = array<i64: 32, 24>}, {pipeline_mode = #tpu.pipeline_mode<synchronous>, transform_indices = @transform_15, window_bounds = array<i64: 3, 24>}, {pipeline_mode = #tpu.pipeline_mode<synchronous>, transform_indices = @transform_16, window_bounds = array<i64: 1, 512>}, {pipeline_mode = #tpu.pipeline_mode<synchronous>, transform_indices = @transform_17, window_bounds = array<i64: 2, 24>}]} {
    %c0 = arith.constant 0 : index
    %c0_0 = arith.constant 0 : index
    %0 = vector.load %arg1[%c0, %c0_0] : memref<2x16xf32, #tpu.memory_space<vmem>>, vector<2x16xf32>
    %1 = arith.truncf %0 : vector<2x16xf32> to vector<2x16xbf16>
    %c0_1 = arith.constant 0 : index
    %c0_2 = arith.constant 0 : index
    %2 = vector.load %arg2[%c0_1, %c0_2] : memref<16x1056xbf16, #tpu.memory_space<vmem>>, vector<16x1056xbf16>
    %cst = arith.constant dense<0.000000e+00> : vector<2x1056xf32>
    %3 = tpu.matmul %1, %2, %cst {dimension_numbers = #tpu.dot_dimension_numbers<[1], [0], [0], [1], [0, 0, 1, 1], [], []>} : vector<2x16xbf16>, vector<16x1056xbf16>, vector<2x1056xf32> -> vector<2x1056xf32>
    %c0_3 = arith.constant 0 : index
    %c0_4 = arith.constant 0 : index
    %4 = vector.load %arg3[%c0_3, %c0_4] : memref<1x1056xf32, #tpu.memory_space<vmem>>, vector<1x1056xf32>
    %5 = vector.broadcast %4 : vector<1x1056xf32> to vector<2x1056xf32>
    %6 = arith.addf %3, %5 : vector<2x1056xf32>
    %7 = vector.extract_strided_slice %6 {offsets = [0, 1024], sizes = [2, 32], strides = [1, 1]} : vector<2x1056xf32> to vector<2x32xf32>
    %cst_5 = arith.constant 0.000000e+00 : f32
    %8 = vector.broadcast %cst_5 : f32 to vector<2x32xf32>
    %9 = arith.cmpf ogt, %7, %8 : vector<2x32xf32>
    %cst_6 = arith.constant 0.00999999977 : f32
    %10 = vector.broadcast %cst_6 : f32 to vector<2x32xf32>
    %11 = arith.mulf %10, %7 : vector<2x32xf32>
    %12 = arith.select %9, %7, %11 : vector<2x32xi1>, vector<2x32xf32>
    %13 = arith.truncf %12 : vector<2x32xf32> to vector<2x32xbf16>
    %c0_7 = arith.constant 0 : index
    %c0_8 = arith.constant 0 : index
    %14 = vector.load %arg15[%c0_7, %c0_8] : memref<32x24xbf16, #tpu.memory_space<vmem>>, vector<32x24xbf16>
    %cst_9 = arith.constant dense<0.000000e+00> : vector<2x24xf32>
    %15 = tpu.matmul %13, %14, %cst_9 {dimension_numbers = #tpu.dot_dimension_numbers<[1], [0], [0], [1], [0, 0, 1, 1], [], []>} : vector<2x32xbf16>, vector<32x24xbf16>, vector<2x24xf32> -> vector<2x24xf32>
    %c0_10 = arith.constant 0 : index
    %c0_11 = arith.constant 0 : index
    %16 = vector.load %arg16[%c0_10, %c0_11] : memref<3x24xf32, #tpu.memory_space<vmem>>, vector<1x24xf32>
    %17 = vector.broadcast %16 : vector<1x24xf32> to vector<2x24xf32>
    %18 = arith.addf %15, %17 : vector<2x24xf32>
    %19 = math.tanh %18 : vector<2x24xf32>
    %c1 = arith.constant 1 : index
    %c0_12 = arith.constant 0 : index
    %20 = vector.load %arg16[%c1, %c0_12] : memref<3x24xf32, #tpu.memory_space<vmem>>, vector<1x24xf32>
    %21 = vector.broadcast %20 : vector<1x24xf32> to vector<2x24xf32>
    %22 = arith.mulf %19, %21 : vector<2x24xf32>
    %c2 = arith.constant 2 : index
    %c0_13 = arith.constant 0 : index
    %23 = vector.load %arg16[%c2, %c0_13] : memref<3x24xf32, #tpu.memory_space<vmem>>, vector<1x24xf32>
    %24 = vector.broadcast %23 : vector<1x24xf32> to vector<2x24xf32>
    %25 = arith.addf %22, %24 : vector<2x24xf32>
    %c0_14 = arith.constant 0 : index
    %c0_15 = arith.constant 0 : index
    %26 = vector.load %arg18[%c0_14, %c0_15] : memref<2x24xf32, #tpu.memory_space<vmem>>, vector<2x24xf32>
    tpu.vector_store %arg18[%c0_14, %c0_15], %25 {strides = array<i32>} : memref<2x24xf32, #tpu.memory_space<vmem>>, vector<2x24xf32>,
    %27 = vector.extract_strided_slice %6 {offsets = [0, 0], sizes = [1, 256], strides = [1, 1]} : vector<2x1056xf32> to vector<1x256xf32>
    %28 = vector.extract_strided_slice %6 {offsets = [0, 256], sizes = [1, 256], strides = [1, 1]} : vector<2x1056xf32> to vector<1x256xf32>
    %29 = vector.extract_strided_slice %6 {offsets = [0, 512], sizes = [1, 256], strides = [1, 1]} : vector<2x1056xf32> to vector<1x256xf32>
    %30 = vector.extract_strided_slice %6 {offsets = [0, 768], sizes = [1, 256], strides = [1, 1]} : vector<2x1056xf32> to vector<1x256xf32>
    %31 = vector.extract_strided_slice %6 {offsets = [1, 0], sizes = [1, 256], strides = [1, 1]} : vector<2x1056xf32> to vector<1x256xf32>
    %32 = vector.extract_strided_slice %6 {offsets = [1, 256], sizes = [1, 256], strides = [1, 1]} : vector<2x1056xf32> to vector<1x256xf32>
    %33 = vector.extract_strided_slice %6 {offsets = [1, 512], sizes = [1, 256], strides = [1, 1]} : vector<2x1056xf32> to vector<1x256xf32>
    %34 = vector.extract_strided_slice %6 {offsets = [1, 768], sizes = [1, 256], strides = [1, 1]} : vector<2x1056xf32> to vector<1x256xf32>
    %35 = tpu.concatenate %27, %28, %29, %30, %31, %32, %33, %34 in 0 : vector<1x256xf32>, vector<1x256xf32>, vector<1x256xf32>, vector<1x256xf32>, vector<1x256xf32>, vector<1x256xf32>, vector<1x256xf32>, vector<1x256xf32> -> vector<8x256xf32>
    %c0_16 = arith.constant 0 : index
    %c0_17 = arith.constant 0 : index
    %36 = vector.load %arg4[%c0_16, %c0_17] : memref<2x256xf32, #tpu.memory_space<vmem>>, vector<2x256xf32>
    %cst_18 = arith.constant dense<0.000000e+00> : vector<256xf32>
    %37 = vector.multi_reduction <add>, %35, %cst_18 [0] : vector<8x256xf32> to vector<256xf32>
    %38 = vector.shape_cast %37 : vector<256xf32> to vector<1x256xf32>
    %39 = vector.extract_strided_slice %38 {offsets = [0, 0], sizes = [1, 64], strides = [1, 1]} : vector<1x256xf32> to vector<1x64xf32>
    %40 = vector.extract_strided_slice %38 {offsets = [0, 64], sizes = [1, 64], strides = [1, 1]} : vector<1x256xf32> to vector<1x64xf32>
    %41 = arith.addf %39, %40 : vector<1x64xf32>
    %42 = vector.extract_strided_slice %38 {offsets = [0, 128], sizes = [1, 64], strides = [1, 1]} : vector<1x256xf32> to vector<1x64xf32>
    %43 = arith.addf %41, %42 : vector<1x64xf32>
    %44 = vector.extract_strided_slice %38 {offsets = [0, 192], sizes = [1, 64], strides = [1, 1]} : vector<1x256xf32> to vector<1x64xf32>
    %45 = arith.addf %43, %44 : vector<1x64xf32>
    %46 = tpu.concatenate %45, %45, %45, %45 in 1 : vector<1x64xf32>, vector<1x64xf32>, vector<1x64xf32>, vector<1x64xf32> -> vector<1x256xf32>
    %cst_19 = arith.constant 3.125000e-02 : f32
    %47 = vector.broadcast %cst_19 : f32 to vector<1x256xf32>
    %48 = arith.mulf %46, %47 : vector<1x256xf32>
    %49 = vector.broadcast %48 : vector<1x256xf32> to vector<8x256xf32>
    %50 = arith.subf %35, %49 : vector<8x256xf32>
    %51 = arith.mulf %50, %50 : vector<8x256xf32>
    %cst_20 = arith.constant dense<0.000000e+00> : vector<256xf32>
    %52 = vector.multi_reduction <add>, %51, %cst_20 [0] : vector<8x256xf32> to vector<256xf32>
    %53 = vector.shape_cast %52 : vector<256xf32> to vector<1x256xf32>
    %54 = vector.extract_strided_slice %53 {offsets = [0, 0], sizes = [1, 64], strides = [1, 1]} : vector<1x256xf32> to vector<1x64xf32>
    %55 = vector.extract_strided_slice %53 {offsets = [0, 64], sizes = [1, 64], strides = [1, 1]} : vector<1x256xf32> to vector<1x64xf32>
    %56 = arith.addf %54, %55 : vector<1x64xf32>
    %57 = vector.extract_strided_slice %53 {offsets = [0, 128], sizes = [1, 64], strides = [1, 1]} : vector<1x256xf32> to vector<1x64xf32>
    %58 = arith.addf %56, %57 : vector<1x64xf32>
    %59 = vector.extract_strided_slice %53 {offsets = [0, 192], sizes = [1, 64], strides = [1, 1]} : vector<1x256xf32> to vector<1x64xf32>
    %60 = arith.addf %58, %59 : vector<1x64xf32>
    %61 = tpu.concatenate %60, %60, %60, %60 in 1 : vector<1x64xf32>, vector<1x64xf32>, vector<1x64xf32>, vector<1x64xf32> -> vector<1x256xf32>
    %cst_21 = arith.constant 3.125000e-02 : f32
    %62 = vector.broadcast %cst_21 : f32 to vector<1x256xf32>
    %63 = arith.mulf %61, %62 : vector<1x256xf32>
    %64 = vector.extract_strided_slice %36 {offsets = [0, 0], sizes = [1, 256], strides = [1, 1]} : vector<2x256xf32> to vector<1x256xf32>
    %cst_22 = arith.constant 9.99999974E-6 : f32
    %65 = vector.broadcast %cst_22 : f32 to vector<1x256xf32>
    %66 = arith.addf %63, %65 : vector<1x256xf32>
    %67 = math.rsqrt %66 : vector<1x256xf32>
    %68 = arith.mulf %64, %67 : vector<1x256xf32>
    %69 = vector.broadcast %68 : vector<1x256xf32> to vector<8x256xf32>
    %70 = arith.mulf %50, %69 : vector<8x256xf32>
    %71 = vector.extract_strided_slice %36 {offsets = [1, 0], sizes = [1, 256], strides = [1, 1]} : vector<2x256xf32> to vector<1x256xf32>
    %72 = vector.broadcast %71 : vector<1x256xf32> to vector<8x256xf32>
    %73 = arith.addf %70, %72 : vector<8x256xf32>
    %cst_23 = arith.constant 0.000000e+00 : f32
    %74 = vector.broadcast %cst_23 : f32 to vector<8x256xf32>
    %75 = arith.cmpf ogt, %73, %74 : vector<8x256xf32>
    %cst_24 = arith.constant 0.00999999977 : f32
    %76 = vector.broadcast %cst_24 : f32 to vector<8x256xf32>
    %77 = arith.mulf %76, %73 : vector<8x256xf32>
    %78 = arith.select %75, %73, %77 : vector<8x256xi1>, vector<8x256xf32>
    %79 = arith.truncf %78 : vector<8x256xf32> to vector<8x256xbf16>
    %c0_25 = arith.constant 0 : index
    %c0_26 = arith.constant 0 : index
    %c0_27 = arith.constant 0 : index
    %80 = vector.load %arg5[%c0_25, %c0_26, %c0_27] : memref<16x32x8xbf16, #tpu.memory_space<vmem>>, vector<1x32x8xbf16>
    %81 = vector.shape_cast %80 : vector<1x32x8xbf16> to vector<32x8xbf16>
    %82 = vector.extract_strided_slice %79 {offsets = [0, 0], sizes = [8, 64], strides = [1, 1]} : vector<8x256xbf16> to vector<8x64xbf16>
    %cst_28 = arith.constant dense<0.000000e+00> : vector<32x64xf32>
    %83 = tpu.matmul %81, %82, %cst_28 {dimension_numbers = #tpu.dot_dimension_numbers<[1], [0], [0], [1], [0, 0, 1, 1], [], []>} : vector<32x8xbf16>, vector<8x64xbf16>, vector<32x64xf32> -> vector<32x64xf32>
    %c1_29 = arith.constant 1 : index
    %c0_30 = arith.constant 0 : index
    %c0_31 = arith.constant 0 : index
    %84 = vector.load %arg5[%c1_29, %c0_30, %c0_31] : memref<16x32x8xbf16, #tpu.memory_space<vmem>>, vector<1x32x8xbf16>
    %85 = vector.shape_cast %84 : vector<1x32x8xbf16> to vector<32x8xbf16>
    %86 = vector.extract_strided_slice %79 {offsets = [0, 64], sizes = [8, 64], strides = [1, 1]} : vector<8x256xbf16> to vector<8x64xbf16>
    %cst_32 = arith.constant dense<0.000000e+00> : vector<32x64xf32>
    %87 = tpu.matmul %85, %86, %cst_32 {dimension_numbers = #tpu.dot_dimension_numbers<[1], [0], [0], [1], [0, 0, 1, 1], [], []>} : vector<32x8xbf16>, vector<8x64xbf16>, vector<32x64xf32> -> vector<32x64xf32>
    %88 = arith.addf %83, %87 : vector<32x64xf32>
    %c2_33 = arith.constant 2 : index
    %c0_34 = arith.constant 0 : index
    %c0_35 = arith.constant 0 : index
    %89 = vector.load %arg5[%c2_33, %c0_34, %c0_35] : memref<16x32x8xbf16, #tpu.memory_space<vmem>>, vector<1x32x8xbf16>
    %90 = vector.shape_cast %89 : vector<1x32x8xbf16> to vector<32x8xbf16>
    %91 = vector.extract_strided_slice %79 {offsets = [0, 128], sizes = [8, 64], strides = [1, 1]} : vector<8x256xbf16> to vector<8x64xbf16>
    %cst_36 = arith.constant dense<0.000000e+00> : vector<32x64xf32>
    %92 = tpu.matmul %90, %91, %cst_36 {dimension_numbers = #tpu.dot_dimension_numbers<[1], [0], [0], [1], [0, 0, 1, 1], [], []>} : vector<32x8xbf16>, vector<8x64xbf16>, vector<32x64xf32> -> vector<32x64xf32>
    %93 = arith.addf %88, %92 : vector<32x64xf32>
    %c3 = arith.constant 3 : index
    %c0_37 = arith.constant 0 : index
    %c0_38 = arith.constant 0 : index
    %94 = vector.load %arg5[%c3, %c0_37, %c0_38] : memref<16x32x8xbf16, #tpu.memory_space<vmem>>, vector<1x32x8xbf16>
    %95 = vector.shape_cast %94 : vector<1x32x8xbf16> to vector<32x8xbf16>
    %96 = vector.extract_strided_slice %79 {offsets = [0, 192], sizes = [8, 64], strides = [1, 1]} : vector<8x256xbf16> to vector<8x64xbf16>
    %cst_39 = arith.constant dense<0.000000e+00> : vector<32x64xf32>
    %97 = tpu.matmul %95, %96, %cst_39 {dimension_numbers = #tpu.dot_dimension_numbers<[1], [0], [0], [1], [0, 0, 1, 1], [], []>} : vector<32x8xbf16>, vector<8x64xbf16>, vector<32x64xf32> -> vector<32x64xf32>
    %98 = arith.addf %93, %97 : vector<32x64xf32>
    %99 = arith.truncf %98 : vector<32x64xf32> to vector<32x64xbf16>
    %c0_40 = arith.constant 0 : index
    %c0_41 = arith.constant 0 : index
    %100 = vector.load %arg6[%c0_40, %c0_41] : memref<256x128xbf16, #tpu.memory_space<vmem>>, vector<64x128xbf16>
    %cst_42 = arith.constant dense<0.000000e+00> : vector<32x128xf32>
    %101 = tpu.matmul %99, %100, %cst_42 {dimension_numbers = #tpu.dot_dimension_numbers<[1], [0], [0], [1], [0, 0, 1, 1], [], []>} : vector<32x64xbf16>, vector<64x128xbf16>, vector<32x128xf32> -> vector<32x128xf32>
    %c4 = arith.constant 4 : index
    %c0_43 = arith.constant 0 : index
    %c0_44 = arith.constant 0 : index
    %102 = vector.load %arg5[%c4, %c0_43, %c0_44] : memref<16x32x8xbf16, #tpu.memory_space<vmem>>, vector<1x32x8xbf16>
    %103 = vector.shape_cast %102 : vector<1x32x8xbf16> to vector<32x8xbf16>
    %104 = vector.extract_strided_slice %79 {offsets = [0, 0], sizes = [8, 64], strides = [1, 1]} : vector<8x256xbf16> to vector<8x64xbf16>
    %cst_45 = arith.constant dense<0.000000e+00> : vector<32x64xf32>
    %105 = tpu.matmul %103, %104, %cst_45 {dimension_numbers = #tpu.dot_dimension_numbers<[1], [0], [0], [1], [0, 0, 1, 1], [], []>} : vector<32x8xbf16>, vector<8x64xbf16>, vector<32x64xf32> -> vector<32x64xf32>
    %c5 = arith.constant 5 : index
    %c0_46 = arith.constant 0 : index
    %c0_47 = arith.constant 0 : index
    %106 = vector.load %arg5[%c5, %c0_46, %c0_47] : memref<16x32x8xbf16, #tpu.memory_space<vmem>>, vector<1x32x8xbf16>
    %107 = vector.shape_cast %106 : vector<1x32x8xbf16> to vector<32x8xbf16>
    %108 = vector.extract_strided_slice %79 {offsets = [0, 64], sizes = [8, 64], strides = [1, 1]} : vector<8x256xbf16> to vector<8x64xbf16>
    %cst_48 = arith.constant dense<0.000000e+00> : vector<32x64xf32>
    %109 = tpu.matmul %107, %108, %cst_48 {dimension_numbers = #tpu.dot_dimension_numbers<[1], [0], [0], [1], [0, 0, 1, 1], [], []>} : vector<32x8xbf16>, vector<8x64xbf16>, vector<32x64xf32> -> vector<32x64xf32>
    %110 = arith.addf %105, %109 : vector<32x64xf32>
    %c6 = arith.constant 6 : index
    %c0_49 = arith.constant 0 : index
    %c0_50 = arith.constant 0 : index
    %111 = vector.load %arg5[%c6, %c0_49, %c0_50] : memref<16x32x8xbf16, #tpu.memory_space<vmem>>, vector<1x32x8xbf16>
    %112 = vector.shape_cast %111 : vector<1x32x8xbf16> to vector<32x8xbf16>
    %113 = vector.extract_strided_slice %79 {offsets = [0, 128], sizes = [8, 64], strides = [1, 1]} : vector<8x256xbf16> to vector<8x64xbf16>
    %cst_51 = arith.constant dense<0.000000e+00> : vector<32x64xf32>
    %114 = tpu.matmul %112, %113, %cst_51 {dimension_numbers = #tpu.dot_dimension_numbers<[1], [0], [0], [1], [0, 0, 1, 1], [], []>} : vector<32x8xbf16>, vector<8x64xbf16>, vector<32x64xf32> -> vector<32x64xf32>
    %115 = arith.addf %110, %114 : vector<32x64xf32>
    %c7 = arith.constant 7 : index
    %c0_52 = arith.constant 0 : index
    %c0_53 = arith.constant 0 : index
    %116 = vector.load %arg5[%c7, %c0_52, %c0_53] : memref<16x32x8xbf16, #tpu.memory_space<vmem>>, vector<1x32x8xbf16>
    %117 = vector.shape_cast %116 : vector<1x32x8xbf16> to vector<32x8xbf16>
    %118 = vector.extract_strided_slice %79 {offsets = [0, 192], sizes = [8, 64], strides = [1, 1]} : vector<8x256xbf16> to vector<8x64xbf16>
    %cst_54 = arith.constant dense<0.000000e+00> : vector<32x64xf32>
    %119 = tpu.matmul %117, %118, %cst_54 {dimension_numbers = #tpu.dot_dimension_numbers<[1], [0], [0], [1], [0, 0, 1, 1], [], []>} : vector<32x8xbf16>, vector<8x64xbf16>, vector<32x64xf32> -> vector<32x64xf32>
    %120 = arith.addf %115, %119 : vector<32x64xf32>
    %121 = arith.truncf %120 : vector<32x64xf32> to vector<32x64xbf16>
    %c64 = arith.constant 64 : index
    %c0_55 = arith.constant 0 : index
    %122 = vector.load %arg6[%c64, %c0_55] : memref<256x128xbf16, #tpu.memory_space<vmem>>, vector<64x128xbf16>
    %cst_56 = arith.constant dense<0.000000e+00> : vector<32x128xf32>
    %123 = tpu.matmul %121, %122, %cst_56 {dimension_numbers = #tpu.dot_dimension_numbers<[1], [0], [0], [1], [0, 0, 1, 1], [], []>} : vector<32x64xbf16>, vector<64x128xbf16>, vector<32x128xf32> -> vector<32x128xf32>
    %124 = arith.addf %101, %123 : vector<32x128xf32>
    %c8 = arith.constant 8 : index
    %c0_57 = arith.constant 0 : index
    %c0_58 = arith.constant 0 : index
    %125 = vector.load %arg5[%c8, %c0_57, %c0_58] : memref<16x32x8xbf16, #tpu.memory_space<vmem>>, vector<1x32x8xbf16>
    %126 = vector.shape_cast %125 : vector<1x32x8xbf16> to vector<32x8xbf16>
    %127 = vector.extract_strided_slice %79 {offsets = [0, 0], sizes = [8, 64], strides = [1, 1]} : vector<8x256xbf16> to vector<8x64xbf16>
    %cst_59 = arith.constant dense<0.000000e+00> : vector<32x64xf32>
    %128 = tpu.matmul %126, %127, %cst_59 {dimension_numbers = #tpu.dot_dimension_numbers<[1], [0], [0], [1], [0, 0, 1, 1], [], []>} : vector<32x8xbf16>, vector<8x64xbf16>, vector<32x64xf32> -> vector<32x64xf32>
    %c9 = arith.constant 9 : index
    %c0_60 = arith.constant 0 : index
    %c0_61 = arith.constant 0 : index
    %129 = vector.load %arg5[%c9, %c0_60, %c0_61] : memref<16x32x8xbf16, #tpu.memory_space<vmem>>, vector<1x32x8xbf16>
    %130 = vector.shape_cast %129 : vector<1x32x8xbf16> to vector<32x8xbf16>
    %131 = vector.extract_strided_slice %79 {offsets = [0, 64], sizes = [8, 64], strides = [1, 1]} : vector<8x256xbf16> to vector<8x64xbf16>
    %cst_62 = arith.constant dense<0.000000e+00> : vector<32x64xf32>
    %132 = tpu.matmul %130, %131, %cst_62 {dimension_numbers = #tpu.dot_dimension_numbers<[1], [0], [0], [1], [0, 0, 1, 1], [], []>} : vector<32x8xbf16>, vector<8x64xbf16>, vector<32x64xf32> -> vector<32x64xf32>
    %133 = arith.addf %128, %132 : vector<32x64xf32>
    %c10 = arith.constant 10 : index
    %c0_63 = arith.constant 0 : index
    %c0_64 = arith.constant 0 : index
    %134 = vector.load %arg5[%c10, %c0_63, %c0_64] : memref<16x32x8xbf16, #tpu.memory_space<vmem>>, vector<1x32x8xbf16>
    %135 = vector.shape_cast %134 : vector<1x32x8xbf16> to vector<32x8xbf16>
    %136 = vector.extract_strided_slice %79 {offsets = [0, 128], sizes = [8, 64], strides = [1, 1]} : vector<8x256xbf16> to vector<8x64xbf16>
    %cst_65 = arith.constant dense<0.000000e+00> : vector<32x64xf32>
    %137 = tpu.matmul %135, %136, %cst_65 {dimension_numbers = #tpu.dot_dimension_numbers<[1], [0], [0], [1], [0, 0, 1, 1], [], []>} : vector<32x8xbf16>, vector<8x64xbf16>, vector<32x64xf32> -> vector<32x64xf32>
    %138 = arith.addf %133, %137 : vector<32x64xf32>
    %c11 = arith.constant 11 : index
    %c0_66 = arith.constant 0 : index
    %c0_67 = arith.constant 0 : index
    %139 = vector.load %arg5[%c11, %c0_66, %c0_67] : memref<16x32x8xbf16, #tpu.memory_space<vmem>>, vector<1x32x8xbf16>
    %140 = vector.shape_cast %139 : vector<1x32x8xbf16> to vector<32x8xbf16>
    %141 = vector.extract_strided_slice %79 {offsets = [0, 192], sizes = [8, 64], strides = [1, 1]} : vector<8x256xbf16> to vector<8x64xbf16>
    %cst_68 = arith.constant dense<0.000000e+00> : vector<32x64xf32>
    %142 = tpu.matmul %140, %141, %cst_68 {dimension_numbers = #tpu.dot_dimension_numbers<[1], [0], [0], [1], [0, 0, 1, 1], [], []>} : vector<32x8xbf16>, vector<8x64xbf16>, vector<32x64xf32> -> vector<32x64xf32>
    %143 = arith.addf %138, %142 : vector<32x64xf32>
    %144 = arith.truncf %143 : vector<32x64xf32> to vector<32x64xbf16>
    %c128 = arith.constant 128 : index
    %c0_69 = arith.constant 0 : index
    %145 = vector.load %arg6[%c128, %c0_69] : memref<256x128xbf16, #tpu.memory_space<vmem>>, vector<64x128xbf16>
    %cst_70 = arith.constant dense<0.000000e+00> : vector<32x128xf32>
    %146 = tpu.matmul %144, %145, %cst_70 {dimension_numbers = #tpu.dot_dimension_numbers<[1], [0], [0], [1], [0, 0, 1, 1], [], []>} : vector<32x64xbf16>, vector<64x128xbf16>, vector<32x128xf32> -> vector<32x128xf32>
    %147 = arith.addf %124, %146 : vector<32x128xf32>
    %c12 = arith.constant 12 : index
    %c0_71 = arith.constant 0 : index
    %c0_72 = arith.constant 0 : index
    %148 = vector.load %arg5[%c12, %c0_71, %c0_72] : memref<16x32x8xbf16, #tpu.memory_space<vmem>>, vector<1x32x8xbf16>
    %149 = vector.shape_cast %148 : vector<1x32x8xbf16> to vector<32x8xbf16>
    %150 = vector.extract_strided_slice %79 {offsets = [0, 0], sizes = [8, 64], strides = [1, 1]} : vector<8x256xbf16> to vector<8x64xbf16>
    %cst_73 = arith.constant dense<0.000000e+00> : vector<32x64xf32>
    %151 = tpu.matmul %149, %150, %cst_73 {dimension_numbers = #tpu.dot_dimension_numbers<[1], [0], [0], [1], [0, 0, 1, 1], [], []>} : vector<32x8xbf16>, vector<8x64xbf16>, vector<32x64xf32> -> vector<32x64xf32>
    %c13 = arith.constant 13 : index
    %c0_74 = arith.constant 0 : index
    %c0_75 = arith.constant 0 : index
    %152 = vector.load %arg5[%c13, %c0_74, %c0_75] : memref<16x32x8xbf16, #tpu.memory_space<vmem>>, vector<1x32x8xbf16>
    %153 = vector.shape_cast %152 : vector<1x32x8xbf16> to vector<32x8xbf16>
    %154 = vector.extract_strided_slice %79 {offsets = [0, 64], sizes = [8, 64], strides = [1, 1]} : vector<8x256xbf16> to vector<8x64xbf16>
    %cst_76 = arith.constant dense<0.000000e+00> : vector<32x64xf32>
    %155 = tpu.matmul %153, %154, %cst_76 {dimension_numbers = #tpu.dot_dimension_numbers<[1], [0], [0], [1], [0, 0, 1, 1], [], []>} : vector<32x8xbf16>, vector<8x64xbf16>, vector<32x64xf32> -> vector<32x64xf32>
    %156 = arith.addf %151, %155 : vector<32x64xf32>
    %c14 = arith.constant 14 : index
    %c0_77 = arith.constant 0 : index
    %c0_78 = arith.constant 0 : index
    %157 = vector.load %arg5[%c14, %c0_77, %c0_78] : memref<16x32x8xbf16, #tpu.memory_space<vmem>>, vector<1x32x8xbf16>
    %158 = vector.shape_cast %157 : vector<1x32x8xbf16> to vector<32x8xbf16>
    %159 = vector.extract_strided_slice %79 {offsets = [0, 128], sizes = [8, 64], strides = [1, 1]} : vector<8x256xbf16> to vector<8x64xbf16>
    %cst_79 = arith.constant dense<0.000000e+00> : vector<32x64xf32>
    %160 = tpu.matmul %158, %159, %cst_79 {dimension_numbers = #tpu.dot_dimension_numbers<[1], [0], [0], [1], [0, 0, 1, 1], [], []>} : vector<32x8xbf16>, vector<8x64xbf16>, vector<32x64xf32> -> vector<32x64xf32>
    %161 = arith.addf %156, %160 : vector<32x64xf32>
    %c15 = arith.constant 15 : index
    %c0_80 = arith.constant 0 : index
    %c0_81 = arith.constant 0 : index
    %162 = vector.load %arg5[%c15, %c0_80, %c0_81] : memref<16x32x8xbf16, #tpu.memory_space<vmem>>, vector<1x32x8xbf16>
    %163 = vector.shape_cast %162 : vector<1x32x8xbf16> to vector<32x8xbf16>
    %164 = vector.extract_strided_slice %79 {offsets = [0, 192], sizes = [8, 64], strides = [1, 1]} : vector<8x256xbf16> to vector<8x64xbf16>
    %cst_82 = arith.constant dense<0.000000e+00> : vector<32x64xf32>
    %165 = tpu.matmul %163, %164, %cst_82 {dimension_numbers = #tpu.dot_dimension_numbers<[1], [0], [0], [1], [0, 0, 1, 1], [], []>} : vector<32x8xbf16>, vector<8x64xbf16>, vector<32x64xf32> -> vector<32x64xf32>
    %166 = arith.addf %161, %165 : vector<32x64xf32>
    %167 = arith.truncf %166 : vector<32x64xf32> to vector<32x64xbf16>
    %c192 = arith.constant 192 : index
    %c0_83 = arith.constant 0 : index
    %168 = vector.load %arg6[%c192, %c0_83] : memref<256x128xbf16, #tpu.memory_space<vmem>>, vector<64x128xbf16>
    %cst_84 = arith.constant dense<0.000000e+00> : vector<32x128xf32>
    %169 = tpu.matmul %167, %168, %cst_84 {dimension_numbers = #tpu.dot_dimension_numbers<[1], [0], [0], [1], [0, 0, 1, 1], [], []>} : vector<32x64xbf16>, vector<64x128xbf16>, vector<32x128xf32> -> vector<32x128xf32>
    %170 = arith.addf %147, %169 : vector<32x128xf32>
    %c0_85 = arith.constant 0 : index
    %c0_86 = arith.constant 0 : index
    %171 = vector.load %arg7[%c0_85, %c0_86] : memref<2x128xf32, #tpu.memory_space<vmem>>, vector<2x128xf32>
    %cst_87 = arith.constant dense<0.000000e+00> : vector<128xf32>
    %172 = vector.multi_reduction <add>, %170, %cst_87 [0] : vector<32x128xf32> to vector<128xf32>
    %173 = vector.shape_cast %172 : vector<128xf32> to vector<1x128xf32>
    %174 = vector.extract_strided_slice %173 {offsets = [0, 0], sizes = [1, 32], strides = [1, 1]} : vector<1x128xf32> to vector<1x32xf32>
    %175 = vector.extract_strided_slice %173 {offsets = [0, 32], sizes = [1, 32], strides = [1, 1]} : vector<1x128xf32> to vector<1x32xf32>
    %176 = arith.addf %174, %175 : vector<1x32xf32>
    %177 = vector.extract_strided_slice %173 {offsets = [0, 64], sizes = [1, 32], strides = [1, 1]} : vector<1x128xf32> to vector<1x32xf32>
    %178 = arith.addf %176, %177 : vector<1x32xf32>
    %179 = vector.extract_strided_slice %173 {offsets = [0, 96], sizes = [1, 32], strides = [1, 1]} : vector<1x128xf32> to vector<1x32xf32>
    %180 = arith.addf %178, %179 : vector<1x32xf32>
    %181 = tpu.concatenate %180, %180, %180, %180 in 1 : vector<1x32xf32>, vector<1x32xf32>, vector<1x32xf32>, vector<1x32xf32> -> vector<1x128xf32>
    %cst_88 = arith.constant 7.812500e-03 : f32
    %182 = vector.broadcast %cst_88 : f32 to vector<1x128xf32>
    %183 = arith.mulf %181, %182 : vector<1x128xf32>
    %184 = vector.broadcast %183 : vector<1x128xf32> to vector<32x128xf32>
    %185 = arith.subf %170, %184 : vector<32x128xf32>
    %186 = arith.mulf %185, %185 : vector<32x128xf32>
    %cst_89 = arith.constant dense<0.000000e+00> : vector<128xf32>
    %187 = vector.multi_reduction <add>, %186, %cst_89 [0] : vector<32x128xf32> to vector<128xf32>
    %188 = vector.shape_cast %187 : vector<128xf32> to vector<1x128xf32>
    %189 = vector.extract_strided_slice %188 {offsets = [0, 0], sizes = [1, 32], strides = [1, 1]} : vector<1x128xf32> to vector<1x32xf32>
    %190 = vector.extract_strided_slice %188 {offsets = [0, 32], sizes = [1, 32], strides = [1, 1]} : vector<1x128xf32> to vector<1x32xf32>
    %191 = arith.addf %189, %190 : vector<1x32xf32>
    %192 = vector.extract_strided_slice %188 {offsets = [0, 64], sizes = [1, 32], strides = [1, 1]} : vector<1x128xf32> to vector<1x32xf32>
    %193 = arith.addf %191, %192 : vector<1x32xf32>
    %194 = vector.extract_strided_slice %188 {offsets = [0, 96], sizes = [1, 32], strides = [1, 1]} : vector<1x128xf32> to vector<1x32xf32>
    %195 = arith.addf %193, %194 : vector<1x32xf32>
    %196 = tpu.concatenate %195, %195, %195, %195 in 1 : vector<1x32xf32>, vector<1x32xf32>, vector<1x32xf32>, vector<1x32xf32> -> vector<1x128xf32>
    %cst_90 = arith.constant 7.812500e-03 : f32
    %197 = vector.broadcast %cst_90 : f32 to vector<1x128xf32>
    %198 = arith.mulf %196, %197 : vector<1x128xf32>
    %199 = vector.extract_strided_slice %171 {offsets = [0, 0], sizes = [1, 128], strides = [1, 1]} : vector<2x128xf32> to vector<1x128xf32>
    %cst_91 = arith.constant 9.99999974E-6 : f32
    %200 = vector.broadcast %cst_91 : f32 to vector<1x128xf32>
    %201 = arith.addf %198, %200 : vector<1x128xf32>
    %202 = math.rsqrt %201 : vector<1x128xf32>
    %203 = arith.mulf %199, %202 : vector<1x128xf32>
    %204 = vector.broadcast %203 : vector<1x128xf32> to vector<32x128xf32>
    %205 = arith.mulf %185, %204 : vector<32x128xf32>
    %206 = vector.extract_strided_slice %171 {offsets = [1, 0], sizes = [1, 128], strides = [1, 1]} : vector<2x128xf32> to vector<1x128xf32>
    %207 = vector.broadcast %206 : vector<1x128xf32> to vector<32x128xf32>
    %208 = arith.addf %205, %207 : vector<32x128xf32>
    %cst_92 = arith.constant 0.000000e+00 : f32
    %209 = vector.broadcast %cst_92 : f32 to vector<32x128xf32>
    %210 = arith.cmpf ogt, %208, %209 : vector<32x128xf32>
    %cst_93 = arith.constant 0.00999999977 : f32
    %211 = vector.broadcast %cst_93 : f32 to vector<32x128xf32>
    %212 = arith.mulf %211, %208 : vector<32x128xf32>
    %213 = arith.select %210, %208, %212 : vector<32x128xi1>, vector<32x128xf32>
    %214 = arith.truncf %213 : vector<32x128xf32> to vector<32x128xbf16>
    %c0_94 = arith.constant 0 : index
    %c0_95 = arith.constant 0 : index
    %c0_96 = arith.constant 0 : index
    %215 = vector.load %arg8[%c0_94, %c0_95, %c0_96] : memref<16x128x32xbf16, #tpu.memory_space<vmem>>, vector<1x128x32xbf16>
    %216 = vector.shape_cast %215 : vector<1x128x32xbf16> to vector<128x32xbf16>
    %217 = vector.extract_strided_slice %214 {offsets = [0, 0], sizes = [32, 32], strides = [1, 1]} : vector<32x128xbf16> to vector<32x32xbf16>
    %cst_97 = arith.constant dense<0.000000e+00> : vector<128x32xf32>
    %218 = tpu.matmul %216, %217, %cst_97 {dimension_numbers = #tpu.dot_dimension_numbers<[1], [0], [0], [1], [0, 0, 1, 1], [], []>} : vector<128x32xbf16>, vector<32x32xbf16>, vector<128x32xf32> -> vector<128x32xf32>
    %c1_98 = arith.constant 1 : index
    %c0_99 = arith.constant 0 : index
    %c0_100 = arith.constant 0 : index
    %219 = vector.load %arg8[%c1_98, %c0_99, %c0_100] : memref<16x128x32xbf16, #tpu.memory_space<vmem>>, vector<1x128x32xbf16>
    %220 = vector.shape_cast %219 : vector<1x128x32xbf16> to vector<128x32xbf16>
    %221 = vector.extract_strided_slice %214 {offsets = [0, 32], sizes = [32, 32], strides = [1, 1]} : vector<32x128xbf16> to vector<32x32xbf16>
    %cst_101 = arith.constant dense<0.000000e+00> : vector<128x32xf32>
    %222 = tpu.matmul %220, %221, %cst_101 {dimension_numbers = #tpu.dot_dimension_numbers<[1], [0], [0], [1], [0, 0, 1, 1], [], []>} : vector<128x32xbf16>, vector<32x32xbf16>, vector<128x32xf32> -> vector<128x32xf32>
    %223 = arith.addf %218, %222 : vector<128x32xf32>
    %c2_102 = arith.constant 2 : index
    %c0_103 = arith.constant 0 : index
    %c0_104 = arith.constant 0 : index
    %224 = vector.load %arg8[%c2_102, %c0_103, %c0_104] : memref<16x128x32xbf16, #tpu.memory_space<vmem>>, vector<1x128x32xbf16>
    %225 = vector.shape_cast %224 : vector<1x128x32xbf16> to vector<128x32xbf16>
    %226 = vector.extract_strided_slice %214 {offsets = [0, 64], sizes = [32, 32], strides = [1, 1]} : vector<32x128xbf16> to vector<32x32xbf16>
    %cst_105 = arith.constant dense<0.000000e+00> : vector<128x32xf32>
    %227 = tpu.matmul %225, %226, %cst_105 {dimension_numbers = #tpu.dot_dimension_numbers<[1], [0], [0], [1], [0, 0, 1, 1], [], []>} : vector<128x32xbf16>, vector<32x32xbf16>, vector<128x32xf32> -> vector<128x32xf32>
    %228 = arith.addf %223, %227 : vector<128x32xf32>
    %c3_106 = arith.constant 3 : index
    %c0_107 = arith.constant 0 : index
    %c0_108 = arith.constant 0 : index
    %229 = vector.load %arg8[%c3_106, %c0_107, %c0_108] : memref<16x128x32xbf16, #tpu.memory_space<vmem>>, vector<1x128x32xbf16>
    %230 = vector.shape_cast %229 : vector<1x128x32xbf16> to vector<128x32xbf16>
    %231 = vector.extract_strided_slice %214 {offsets = [0, 96], sizes = [32, 32], strides = [1, 1]} : vector<32x128xbf16> to vector<32x32xbf16>
    %cst_109 = arith.constant dense<0.000000e+00> : vector<128x32xf32>
    %232 = tpu.matmul %230, %231, %cst_109 {dimension_numbers = #tpu.dot_dimension_numbers<[1], [0], [0], [1], [0, 0, 1, 1], [], []>} : vector<128x32xbf16>, vector<32x32xbf16>, vector<128x32xf32> -> vector<128x32xf32>
    %233 = arith.addf %228, %232 : vector<128x32xf32>
    %234 = arith.truncf %233 : vector<128x32xf32> to vector<128x32xbf16>
    %c0_110 = arith.constant 0 : index
    %c0_111 = arith.constant 0 : index
    %235 = vector.load %arg9[%c0_110, %c0_111] : memref<128x128xbf16, #tpu.memory_space<vmem>>, vector<32x128xbf16>
    %cst_112 = arith.constant dense<0.000000e+00> : vector<128x128xf32>
    %236 = tpu.matmul %234, %235, %cst_112 {dimension_numbers = #tpu.dot_dimension_numbers<[1], [0], [0], [1], [0, 0, 1, 1], [], []>} : vector<128x32xbf16>, vector<32x128xbf16>, vector<128x128xf32> -> vector<128x128xf32>
    %c4_113 = arith.constant 4 : index
    %c0_114 = arith.constant 0 : index
    %c0_115 = arith.constant 0 : index
    %237 = vector.load %arg8[%c4_113, %c0_114, %c0_115] : memref<16x128x32xbf16, #tpu.memory_space<vmem>>, vector<1x128x32xbf16>
    %238 = vector.shape_cast %237 : vector<1x128x32xbf16> to vector<128x32xbf16>
    %239 = vector.extract_strided_slice %214 {offsets = [0, 0], sizes = [32, 32], strides = [1, 1]} : vector<32x128xbf16> to vector<32x32xbf16>
    %cst_116 = arith.constant dense<0.000000e+00> : vector<128x32xf32>
    %240 = tpu.matmul %238, %239, %cst_116 {dimension_numbers = #tpu.dot_dimension_numbers<[1], [0], [0], [1], [0, 0, 1, 1], [], []>} : vector<128x32xbf16>, vector<32x32xbf16>, vector<128x32xf32> -> vector<128x32xf32>
    %c5_117 = arith.constant 5 : index
    %c0_118 = arith.constant 0 : index
    %c0_119 = arith.constant 0 : index
    %241 = vector.load %arg8[%c5_117, %c0_118, %c0_119] : memref<16x128x32xbf16, #tpu.memory_space<vmem>>, vector<1x128x32xbf16>
    %242 = vector.shape_cast %241 : vector<1x128x32xbf16> to vector<128x32xbf16>
    %243 = vector.extract_strided_slice %214 {offsets = [0, 32], sizes = [32, 32], strides = [1, 1]} : vector<32x128xbf16> to vector<32x32xbf16>
    %cst_120 = arith.constant dense<0.000000e+00> : vector<128x32xf32>
    %244 = tpu.matmul %242, %243, %cst_120 {dimension_numbers = #tpu.dot_dimension_numbers<[1], [0], [0], [1], [0, 0, 1, 1], [], []>} : vector<128x32xbf16>, vector<32x32xbf16>, vector<128x32xf32> -> vector<128x32xf32>
    %245 = arith.addf %240, %244 : vector<128x32xf32>
    %c6_121 = arith.constant 6 : index
    %c0_122 = arith.constant 0 : index
    %c0_123 = arith.constant 0 : index
    %246 = vector.load %arg8[%c6_121, %c0_122, %c0_123] : memref<16x128x32xbf16, #tpu.memory_space<vmem>>, vector<1x128x32xbf16>
    %247 = vector.shape_cast %246 : vector<1x128x32xbf16> to vector<128x32xbf16>
    %248 = vector.extract_strided_slice %214 {offsets = [0, 64], sizes = [32, 32], strides = [1, 1]} : vector<32x128xbf16> to vector<32x32xbf16>
    %cst_124 = arith.constant dense<0.000000e+00> : vector<128x32xf32>
    %249 = tpu.matmul %247, %248, %cst_124 {dimension_numbers = #tpu.dot_dimension_numbers<[1], [0], [0], [1], [0, 0, 1, 1], [], []>} : vector<128x32xbf16>, vector<32x32xbf16>, vector<128x32xf32> -> vector<128x32xf32>
    %250 = arith.addf %245, %249 : vector<128x32xf32>
    %c7_125 = arith.constant 7 : index
    %c0_126 = arith.constant 0 : index
    %c0_127 = arith.constant 0 : index
    %251 = vector.load %arg8[%c7_125, %c0_126, %c0_127] : memref<16x128x32xbf16, #tpu.memory_space<vmem>>, vector<1x128x32xbf16>
    %252 = vector.shape_cast %251 : vector<1x128x32xbf16> to vector<128x32xbf16>
    %253 = vector.extract_strided_slice %214 {offsets = [0, 96], sizes = [32, 32], strides = [1, 1]} : vector<32x128xbf16> to vector<32x32xbf16>
    %cst_128 = arith.constant dense<0.000000e+00> : vector<128x32xf32>
    %254 = tpu.matmul %252, %253, %cst_128 {dimension_numbers = #tpu.dot_dimension_numbers<[1], [0], [0], [1], [0, 0, 1, 1], [], []>} : vector<128x32xbf16>, vector<32x32xbf16>, vector<128x32xf32> -> vector<128x32xf32>
    %255 = arith.addf %250, %254 : vector<128x32xf32>
    %256 = arith.truncf %255 : vector<128x32xf32> to vector<128x32xbf16>
    %c32 = arith.constant 32 : index
    %c0_129 = arith.constant 0 : index
    %257 = vector.load %arg9[%c32, %c0_129] : memref<128x128xbf16, #tpu.memory_space<vmem>>, vector<32x128xbf16>
    %cst_130 = arith.constant dense<0.000000e+00> : vector<128x128xf32>
    %258 = tpu.matmul %256, %257, %cst_130 {dimension_numbers = #tpu.dot_dimension_numbers<[1], [0], [0], [1], [0, 0, 1, 1], [], []>} : vector<128x32xbf16>, vector<32x128xbf16>, vector<128x128xf32> -> vector<128x128xf32>
    %259 = arith.addf %236, %258 : vector<128x128xf32>
    %c8_131 = arith.constant 8 : index
    %c0_132 = arith.constant 0 : index
    %c0_133 = arith.constant 0 : index
    %260 = vector.load %arg8[%c8_131, %c0_132, %c0_133] : memref<16x128x32xbf16, #tpu.memory_space<vmem>>, vector<1x128x32xbf16>
    %261 = vector.shape_cast %260 : vector<1x128x32xbf16> to vector<128x32xbf16>
    %262 = vector.extract_strided_slice %214 {offsets = [0, 0], sizes = [32, 32], strides = [1, 1]} : vector<32x128xbf16> to vector<32x32xbf16>
    %cst_134 = arith.constant dense<0.000000e+00> : vector<128x32xf32>
    %263 = tpu.matmul %261, %262, %cst_134 {dimension_numbers = #tpu.dot_dimension_numbers<[1], [0], [0], [1], [0, 0, 1, 1], [], []>} : vector<128x32xbf16>, vector<32x32xbf16>, vector<128x32xf32> -> vector<128x32xf32>
    %c9_135 = arith.constant 9 : index
    %c0_136 = arith.constant 0 : index
    %c0_137 = arith.constant 0 : index
    %264 = vector.load %arg8[%c9_135, %c0_136, %c0_137] : memref<16x128x32xbf16, #tpu.memory_space<vmem>>, vector<1x128x32xbf16>
    %265 = vector.shape_cast %264 : vector<1x128x32xbf16> to vector<128x32xbf16>
    %266 = vector.extract_strided_slice %214 {offsets = [0, 32], sizes = [32, 32], strides = [1, 1]} : vector<32x128xbf16> to vector<32x32xbf16>
    %cst_138 = arith.constant dense<0.000000e+00> : vector<128x32xf32>
    %267 = tpu.matmul %265, %266, %cst_138 {dimension_numbers = #tpu.dot_dimension_numbers<[1], [0], [0], [1], [0, 0, 1, 1], [], []>} : vector<128x32xbf16>, vector<32x32xbf16>, vector<128x32xf32> -> vector<128x32xf32>
    %268 = arith.addf %263, %267 : vector<128x32xf32>
    %c10_139 = arith.constant 10 : index
    %c0_140 = arith.constant 0 : index
    %c0_141 = arith.constant 0 : index
    %269 = vector.load %arg8[%c10_139, %c0_140, %c0_141] : memref<16x128x32xbf16, #tpu.memory_space<vmem>>, vector<1x128x32xbf16>
    %270 = vector.shape_cast %269 : vector<1x128x32xbf16> to vector<128x32xbf16>
    %271 = vector.extract_strided_slice %214 {offsets = [0, 64], sizes = [32, 32], strides = [1, 1]} : vector<32x128xbf16> to vector<32x32xbf16>
    %cst_142 = arith.constant dense<0.000000e+00> : vector<128x32xf32>
    %272 = tpu.matmul %270, %271, %cst_142 {dimension_numbers = #tpu.dot_dimension_numbers<[1], [0], [0], [1], [0, 0, 1, 1], [], []>} : vector<128x32xbf16>, vector<32x32xbf16>, vector<128x32xf32> -> vector<128x32xf32>
    %273 = arith.addf %268, %272 : vector<128x32xf32>
    %c11_143 = arith.constant 11 : index
    %c0_144 = arith.constant 0 : index
    %c0_145 = arith.constant 0 : index
    %274 = vector.load %arg8[%c11_143, %c0_144, %c0_145] : memref<16x128x32xbf16, #tpu.memory_space<vmem>>, vector<1x128x32xbf16>
    %275 = vector.shape_cast %274 : vector<1x128x32xbf16> to vector<128x32xbf16>
    %276 = vector.extract_strided_slice %214 {offsets = [0, 96], sizes = [32, 32], strides = [1, 1]} : vector<32x128xbf16> to vector<32x32xbf16>
    %cst_146 = arith.constant dense<0.000000e+00> : vector<128x32xf32>
    %277 = tpu.matmul %275, %276, %cst_146 {dimension_numbers = #tpu.dot_dimension_numbers<[1], [0], [0], [1], [0, 0, 1, 1], [], []>} : vector<128x32xbf16>, vector<32x32xbf16>, vector<128x32xf32> -> vector<128x32xf32>
    %278 = arith.addf %273, %277 : vector<128x32xf32>
    %279 = arith.truncf %278 : vector<128x32xf32> to vector<128x32xbf16>
    %c64_147 = arith.constant 64 : index
    %c0_148 = arith.constant 0 : index
    %280 = vector.load %arg9[%c64_147, %c0_148] : memref<128x128xbf16, #tpu.memory_space<vmem>>, vector<32x128xbf16>
    %cst_149 = arith.constant dense<0.000000e+00> : vector<128x128xf32>
    %281 = tpu.matmul %279, %280, %cst_149 {dimension_numbers = #tpu.dot_dimension_numbers<[1], [0], [0], [1], [0, 0, 1, 1], [], []>} : vector<128x32xbf16>, vector<32x128xbf16>, vector<128x128xf32> -> vector<128x128xf32>
    %282 = arith.addf %259, %281 : vector<128x128xf32>
    %c12_150 = arith.constant 12 : index
    %c0_151 = arith.constant 0 : index
    %c0_152 = arith.constant 0 : index
    %283 = vector.load %arg8[%c12_150, %c0_151, %c0_152] : memref<16x128x32xbf16, #tpu.memory_space<vmem>>, vector<1x128x32xbf16>
    %284 = vector.shape_cast %283 : vector<1x128x32xbf16> to vector<128x32xbf16>
    %285 = vector.extract_strided_slice %214 {offsets = [0, 0], sizes = [32, 32], strides = [1, 1]} : vector<32x128xbf16> to vector<32x32xbf16>
    %cst_153 = arith.constant dense<0.000000e+00> : vector<128x32xf32>
    %286 = tpu.matmul %284, %285, %cst_153 {dimension_numbers = #tpu.dot_dimension_numbers<[1], [0], [0], [1], [0, 0, 1, 1], [], []>} : vector<128x32xbf16>, vector<32x32xbf16>, vector<128x32xf32> -> vector<128x32xf32>
    %c13_154 = arith.constant 13 : index
    %c0_155 = arith.constant 0 : index
    %c0_156 = arith.constant 0 : index
    %287 = vector.load %arg8[%c13_154, %c0_155, %c0_156] : memref<16x128x32xbf16, #tpu.memory_space<vmem>>, vector<1x128x32xbf16>
    %288 = vector.shape_cast %287 : vector<1x128x32xbf16> to vector<128x32xbf16>
    %289 = vector.extract_strided_slice %214 {offsets = [0, 32], sizes = [32, 32], strides = [1, 1]} : vector<32x128xbf16> to vector<32x32xbf16>
    %cst_157 = arith.constant dense<0.000000e+00> : vector<128x32xf32>
    %290 = tpu.matmul %288, %289, %cst_157 {dimension_numbers = #tpu.dot_dimension_numbers<[1], [0], [0], [1], [0, 0, 1, 1], [], []>} : vector<128x32xbf16>, vector<32x32xbf16>, vector<128x32xf32> -> vector<128x32xf32>
    %291 = arith.addf %286, %290 : vector<128x32xf32>
    %c14_158 = arith.constant 14 : index
    %c0_159 = arith.constant 0 : index
    %c0_160 = arith.constant 0 : index
    %292 = vector.load %arg8[%c14_158, %c0_159, %c0_160] : memref<16x128x32xbf16, #tpu.memory_space<vmem>>, vector<1x128x32xbf16>
    %293 = vector.shape_cast %292 : vector<1x128x32xbf16> to vector<128x32xbf16>
    %294 = vector.extract_strided_slice %214 {offsets = [0, 64], sizes = [32, 32], strides = [1, 1]} : vector<32x128xbf16> to vector<32x32xbf16>
    %cst_161 = arith.constant dense<0.000000e+00> : vector<128x32xf32>
    %295 = tpu.matmul %293, %294, %cst_161 {dimension_numbers = #tpu.dot_dimension_numbers<[1], [0], [0], [1], [0, 0, 1, 1], [], []>} : vector<128x32xbf16>, vector<32x32xbf16>, vector<128x32xf32> -> vector<128x32xf32>
    %296 = arith.addf %291, %295 : vector<128x32xf32>
    %c15_162 = arith.constant 15 : index
    %c0_163 = arith.constant 0 : index
    %c0_164 = arith.constant 0 : index
    %297 = vector.load %arg8[%c15_162, %c0_163, %c0_164] : memref<16x128x32xbf16, #tpu.memory_space<vmem>>, vector<1x128x32xbf16>
    %298 = vector.shape_cast %297 : vector<1x128x32xbf16> to vector<128x32xbf16>
    %299 = vector.extract_strided_slice %214 {offsets = [0, 96], sizes = [32, 32], strides = [1, 1]} : vector<32x128xbf16> to vector<32x32xbf16>
    %cst_165 = arith.constant dense<0.000000e+00> : vector<128x32xf32>
    %300 = tpu.matmul %298, %299, %cst_165 {dimension_numbers = #tpu.dot_dimension_numbers<[1], [0], [0], [1], [0, 0, 1, 1], [], []>} : vector<128x32xbf16>, vector<32x32xbf16>, vector<128x32xf32> -> vector<128x32xf32>
    %301 = arith.addf %296, %300 : vector<128x32xf32>
    %302 = arith.truncf %301 : vector<128x32xf32> to vector<128x32xbf16>
    %c96 = arith.constant 96 : index
    %c0_166 = arith.constant 0 : index
    %303 = vector.load %arg9[%c96, %c0_166] : memref<128x128xbf16, #tpu.memory_space<vmem>>, vector<32x128xbf16>
    %cst_167 = arith.constant dense<0.000000e+00> : vector<128x128xf32>
    %304 = tpu.matmul %302, %303, %cst_167 {dimension_numbers = #tpu.dot_dimension_numbers<[1], [0], [0], [1], [0, 0, 1, 1], [], []>} : vector<128x32xbf16>, vector<32x128xbf16>, vector<128x128xf32> -> vector<128x128xf32>
    %305 = arith.addf %282, %304 : vector<128x128xf32>
    %c0_168 = arith.constant 0 : index
    %c0_169 = arith.constant 0 : index
    %306 = vector.load %arg10[%c0_168, %c0_169] : memref<2x128xf32, #tpu.memory_space<vmem>>, vector<2x128xf32>
    %cst_170 = arith.constant dense<0.000000e+00> : vector<128xf32>
    %307 = vector.multi_reduction <add>, %305, %cst_170 [0] : vector<128x128xf32> to vector<128xf32>
    %308 = vector.shape_cast %307 : vector<128xf32> to vector<1x128xf32>
    %309 = vector.extract_strided_slice %308 {offsets = [0, 0], sizes = [1, 32], strides = [1, 1]} : vector<1x128xf32> to vector<1x32xf32>
    %310 = vector.extract_strided_slice %308 {offsets = [0, 32], sizes = [1, 32], strides = [1, 1]} : vector<1x128xf32> to vector<1x32xf32>
    %311 = arith.addf %309, %310 : vector<1x32xf32>
    %312 = vector.extract_strided_slice %308 {offsets = [0, 64], sizes = [1, 32], strides = [1, 1]} : vector<1x128xf32> to vector<1x32xf32>
    %313 = arith.addf %311, %312 : vector<1x32xf32>
    %314 = vector.extract_strided_slice %308 {offsets = [0, 96], sizes = [1, 32], strides = [1, 1]} : vector<1x128xf32> to vector<1x32xf32>
    %315 = arith.addf %313, %314 : vector<1x32xf32>
    %316 = tpu.concatenate %315, %315, %315, %315 in 1 : vector<1x32xf32>, vector<1x32xf32>, vector<1x32xf32>, vector<1x32xf32> -> vector<1x128xf32>
    %cst_171 = arith.constant 0.001953125 : f32
    %317 = vector.broadcast %cst_171 : f32 to vector<1x128xf32>
    %318 = arith.mulf %316, %317 : vector<1x128xf32>
    %319 = vector.broadcast %318 : vector<1x128xf32> to vector<128x128xf32>
    %320 = arith.subf %305, %319 : vector<128x128xf32>
    %321 = arith.mulf %320, %320 : vector<128x128xf32>
    %cst_172 = arith.constant dense<0.000000e+00> : vector<128xf32>
    %322 = vector.multi_reduction <add>, %321, %cst_172 [0] : vector<128x128xf32> to vector<128xf32>
    %323 = vector.shape_cast %322 : vector<128xf32> to vector<1x128xf32>
    %324 = vector.extract_strided_slice %323 {offsets = [0, 0], sizes = [1, 32], strides = [1, 1]} : vector<1x128xf32> to vector<1x32xf32>
    %325 = vector.extract_strided_slice %323 {offsets = [0, 32], sizes = [1, 32], strides = [1, 1]} : vector<1x128xf32> to vector<1x32xf32>
    %326 = arith.addf %324, %325 : vector<1x32xf32>
    %327 = vector.extract_strided_slice %323 {offsets = [0, 64], sizes = [1, 32], strides = [1, 1]} : vector<1x128xf32> to vector<1x32xf32>
    %328 = arith.addf %326, %327 : vector<1x32xf32>
    %329 = vector.extract_strided_slice %323 {offsets = [0, 96], sizes = [1, 32], strides = [1, 1]} : vector<1x128xf32> to vector<1x32xf32>
    %330 = arith.addf %328, %329 : vector<1x32xf32>
    %331 = tpu.concatenate %330, %330, %330, %330 in 1 : vector<1x32xf32>, vector<1x32xf32>, vector<1x32xf32>, vector<1x32xf32> -> vector<1x128xf32>
    %cst_173 = arith.constant 0.001953125 : f32
    %332 = vector.broadcast %cst_173 : f32 to vector<1x128xf32>
    %333 = arith.mulf %331, %332 : vector<1x128xf32>
    %334 = vector.extract_strided_slice %306 {offsets = [0, 0], sizes = [1, 128], strides = [1, 1]} : vector<2x128xf32> to vector<1x128xf32>
    %cst_174 = arith.constant 9.99999974E-6 : f32
    %335 = vector.broadcast %cst_174 : f32 to vector<1x128xf32>
    %336 = arith.addf %333, %335 : vector<1x128xf32>
    %337 = math.rsqrt %336 : vector<1x128xf32>
    %338 = arith.mulf %334, %337 : vector<1x128xf32>
    %339 = vector.broadcast %338 : vector<1x128xf32> to vector<128x128xf32>
    %340 = arith.mulf %320, %339 : vector<128x128xf32>
    %341 = vector.extract_strided_slice %306 {offsets = [1, 0], sizes = [1, 128], strides = [1, 1]} : vector<2x128xf32> to vector<1x128xf32>
    %342 = vector.broadcast %341 : vector<1x128xf32> to vector<128x128xf32>
    %343 = arith.addf %340, %342 : vector<128x128xf32>
    %cst_175 = arith.constant 0.000000e+00 : f32
    %344 = vector.broadcast %cst_175 : f32 to vector<128x128xf32>
    %345 = arith.cmpf ogt, %343, %344 : vector<128x128xf32>
    %cst_176 = arith.constant 0.00999999977 : f32
    %346 = vector.broadcast %cst_176 : f32 to vector<128x128xf32>
    %347 = arith.mulf %346, %343 : vector<128x128xf32>
    %348 = arith.select %345, %343, %347 : vector<128x128xi1>, vector<128x128xf32>
    %349 = tpu.transpose %348, [1, 0] : vector<128x128xf32> -> vector<128x128xf32>
    %350 = arith.truncf %349 : vector<128x128xf32> to vector<128x128xbf16>
    %351 = vector.extract_strided_slice %350 {offsets = [0, 0], sizes = [32, 128], strides = [1, 1]} : vector<128x128xbf16> to vector<32x128xbf16>
    %c0_177 = arith.constant 0 : index
    %c0_178 = arith.constant 0 : index
    %c0_179 = arith.constant 0 : index
    %352 = vector.load %arg11[%c0_177, %c0_178, %c0_179] : memref<4x128x512xbf16, #tpu.memory_space<vmem>>, vector<1x128x512xbf16>
    %353 = vector.shape_cast %352 : vector<1x128x512xbf16> to vector<128x512xbf16>
    %cst_180 = arith.constant dense<0.000000e+00> : vector<32x512xf32>
    %354 = tpu.matmul %351, %353, %cst_180 {dimension_numbers = #tpu.dot_dimension_numbers<[1], [0], [0], [1], [0, 0, 1, 1], [], []>} : vector<32x128xbf16>, vector<128x512xbf16>, vector<32x512xf32> -> vector<32x512xf32>
    %355 = vector.extract_strided_slice %350 {offsets = [32, 0], sizes = [32, 128], strides = [1, 1]} : vector<128x128xbf16> to vector<32x128xbf16>
    %c1_181 = arith.constant 1 : index
    %c0_182 = arith.constant 0 : index
    %c0_183 = arith.constant 0 : index
    %356 = vector.load %arg11[%c1_181, %c0_182, %c0_183] : memref<4x128x512xbf16, #tpu.memory_space<vmem>>, vector<1x128x512xbf16>
    %357 = vector.shape_cast %356 : vector<1x128x512xbf16> to vector<128x512xbf16>
    %cst_184 = arith.constant dense<0.000000e+00> : vector<32x512xf32>
    %358 = tpu.matmul %355, %357, %cst_184 {dimension_numbers = #tpu.dot_dimension_numbers<[1], [0], [0], [1], [0, 0, 1, 1], [], []>} : vector<32x128xbf16>, vector<128x512xbf16>, vector<32x512xf32> -> vector<32x512xf32>
    %359 = arith.addf %354, %358 : vector<32x512xf32>
    %360 = vector.extract_strided_slice %350 {offsets = [64, 0], sizes = [32, 128], strides = [1, 1]} : vector<128x128xbf16> to vector<32x128xbf16>
    %c2_185 = arith.constant 2 : index
    %c0_186 = arith.constant 0 : index
    %c0_187 = arith.constant 0 : index
    %361 = vector.load %arg11[%c2_185, %c0_186, %c0_187] : memref<4x128x512xbf16, #tpu.memory_space<vmem>>, vector<1x128x512xbf16>
    %362 = vector.shape_cast %361 : vector<1x128x512xbf16> to vector<128x512xbf16>
    %cst_188 = arith.constant dense<0.000000e+00> : vector<32x512xf32>
    %363 = tpu.matmul %360, %362, %cst_188 {dimension_numbers = #tpu.dot_dimension_numbers<[1], [0], [0], [1], [0, 0, 1, 1], [], []>} : vector<32x128xbf16>, vector<128x512xbf16>, vector<32x512xf32> -> vector<32x512xf32>
    %364 = arith.addf %359, %363 : vector<32x512xf32>
    %365 = vector.extract_strided_slice %350 {offsets = [96, 0], sizes = [32, 128], strides = [1, 1]} : vector<128x128xbf16> to vector<32x128xbf16>
    %c3_189 = arith.constant 3 : index
    %c0_190 = arith.constant 0 : index
    %c0_191 = arith.constant 0 : index
    %366 = vector.load %arg11[%c3_189, %c0_190, %c0_191] : memref<4x128x512xbf16, #tpu.memory_space<vmem>>, vector<1x128x512xbf16>
    %367 = vector.shape_cast %366 : vector<1x128x512xbf16> to vector<128x512xbf16>
    %cst_192 = arith.constant dense<0.000000e+00> : vector<32x512xf32>
    %368 = tpu.matmul %365, %367, %cst_192 {dimension_numbers = #tpu.dot_dimension_numbers<[1], [0], [0], [1], [0, 0, 1, 1], [], []>} : vector<32x128xbf16>, vector<128x512xbf16>, vector<32x512xf32> -> vector<32x512xf32>
    %369 = arith.addf %364, %368 : vector<32x512xf32>
    %c0_193 = arith.constant 0 : index
    %c0_194 = arith.constant 0 : index
    %370 = vector.load %arg12[%c0_193, %c0_194] : memref<9x512xf32, #tpu.memory_space<vmem>>, vector<9x512xf32>
    %c17_i32 = arith.constant 17 : i32
    %371 = tpu.dynamic_rotate %369 by %c17_i32 dim 1 : vector<32x512xf32>, i32 -> vector<32x512xf32>
    %372 = vector.extract_strided_slice %370 {offsets = [0, 0], sizes = [1, 512], strides = [1, 1]} : vector<9x512xf32> to vector<1x512xf32>
    %373 = vector.broadcast %372 : vector<1x512xf32> to vector<32x512xf32>
    %374 = arith.mulf %371, %373 : vector<32x512xf32>
    %375 = arith.truncf %374 : vector<32x512xf32> to vector<32x512xbf16>
    %c16_i32 = arith.constant 16 : i32
    %376 = tpu.dynamic_rotate %369 by %c16_i32 dim 1 : vector<32x512xf32>, i32 -> vector<32x512xf32>
    %377 = vector.extract_strided_slice %370 {offsets = [1, 0], sizes = [1, 512], strides = [1, 1]} : vector<9x512xf32> to vector<1x512xf32>
    %378 = vector.broadcast %377 : vector<1x512xf32> to vector<32x512xf32>
    %379 = arith.mulf %376, %378 : vector<32x512xf32>
    %380 = arith.truncf %379 : vector<32x512xf32> to vector<32x512xbf16>
    %c15_i32 = arith.constant 15 : i32
    %381 = tpu.dynamic_rotate %369 by %c15_i32 dim 1 : vector<32x512xf32>, i32 -> vector<32x512xf32>
    %382 = vector.extract_strided_slice %370 {offsets = [2, 0], sizes = [1, 512], strides = [1, 1]} : vector<9x512xf32> to vector<1x512xf32>
    %383 = vector.broadcast %382 : vector<1x512xf32> to vector<32x512xf32>
    %384 = arith.mulf %381, %383 : vector<32x512xf32>
    %385 = arith.truncf %384 : vector<32x512xf32> to vector<32x512xbf16>
    %c1_i32 = arith.constant 1 : i32
    %386 = tpu.dynamic_rotate %369 by %c1_i32 dim 1 : vector<32x512xf32>, i32 -> vector<32x512xf32>
    %387 = vector.extract_strided_slice %370 {offsets = [3, 0], sizes = [1, 512], strides = [1, 1]} : vector<9x512xf32> to vector<1x512xf32>
    %388 = vector.broadcast %387 : vector<1x512xf32> to vector<32x512xf32>
    %389 = arith.mulf %386, %388 : vector<32x512xf32>
    %390 = arith.truncf %389 : vector<32x512xf32> to vector<32x512xbf16>
    %391 = vector.extract_strided_slice %370 {offsets = [4, 0], sizes = [1, 512], strides = [1, 1]} : vector<9x512xf32> to vector<1x512xf32>
    %392 = vector.broadcast %391 : vector<1x512xf32> to vector<32x512xf32>
    %393 = arith.mulf %369, %392 : vector<32x512xf32>
    %394 = arith.truncf %393 : vector<32x512xf32> to vector<32x512xbf16>
    %c511_i32 = arith.constant 511 : i32
    %395 = tpu.dynamic_rotate %369 by %c511_i32 dim 1 : vector<32x512xf32>, i32 -> vector<32x512xf32>
    %396 = vector.extract_strided_slice %370 {offsets = [5, 0], sizes = [1, 512], strides = [1, 1]} : vector<9x512xf32> to vector<1x512xf32>
    %397 = vector.broadcast %396 : vector<1x512xf32> to vector<32x512xf32>
    %398 = arith.mulf %395, %397 : vector<32x512xf32>
    %399 = arith.truncf %398 : vector<32x512xf32> to vector<32x512xbf16>
    %c497_i32 = arith.constant 497 : i32
    %400 = tpu.dynamic_rotate %369 by %c497_i32 dim 1 : vector<32x512xf32>, i32 -> vector<32x512xf32>
    %401 = vector.extract_strided_slice %370 {offsets = [6, 0], sizes = [1, 512], strides = [1, 1]} : vector<9x512xf32> to vector<1x512xf32>
    %402 = vector.broadcast %401 : vector<1x512xf32> to vector<32x512xf32>
    %403 = arith.mulf %400, %402 : vector<32x512xf32>
    %404 = arith.truncf %403 : vector<32x512xf32> to vector<32x512xbf16>
    %c496_i32 = arith.constant 496 : i32
    %405 = tpu.dynamic_rotate %369 by %c496_i32 dim 1 : vector<32x512xf32>, i32 -> vector<32x512xf32>
    %406 = vector.extract_strided_slice %370 {offsets = [7, 0], sizes = [1, 512], strides = [1, 1]} : vector<9x512xf32> to vector<1x512xf32>
    %407 = vector.broadcast %406 : vector<1x512xf32> to vector<32x512xf32>
    %408 = arith.mulf %405, %407 : vector<32x512xf32>
    %409 = arith.truncf %408 : vector<32x512xf32> to vector<32x512xbf16>
    %c495_i32 = arith.constant 495 : i32
    %410 = tpu.dynamic_rotate %369 by %c495_i32 dim 1 : vector<32x512xf32>, i32 -> vector<32x512xf32>
    %411 = vector.extract_strided_slice %370 {offsets = [8, 0], sizes = [1, 512], strides = [1, 1]} : vector<9x512xf32> to vector<1x512xf32>
    %412 = vector.broadcast %411 : vector<1x512xf32> to vector<32x512xf32>
    %413 = arith.mulf %410, %412 : vector<32x512xf32>
    %414 = arith.truncf %413 : vector<32x512xf32> to vector<32x512xbf16>
    %415 = tpu.concatenate %375, %380, %385, %390, %394, %399, %404, %409, %414 in 0 : vector<32x512xbf16>, vector<32x512xbf16>, vector<32x512xbf16>, vector<32x512xbf16>, vector<32x512xbf16>, vector<32x512xbf16>, vector<32x512xbf16>, vector<32x512xbf16>, vector<32x512xbf16> -> vector<288x512xbf16>
    %c0_195 = arith.constant 0 : index
    %c0_196 = arith.constant 0 : index
    %416 = vector.load %arg13[%c0_195, %c0_196] : memref<1x288xbf16, #tpu.memory_space<vmem>>, vector<1x288xbf16>
    %cst_197 = arith.constant dense<0.000000e+00> : vector<1x512xf32>
    %417 = tpu.matmul %416, %415, %cst_197 {dimension_numbers = #tpu.dot_dimension_numbers<[1], [0], [0], [1], [0, 0, 1, 1], [], []>} : vector<1x288xbf16>, vector<288x512xbf16>, vector<1x512xf32> -> vector<1x512xf32>
    %c0_198 = arith.constant 0 : index
    %c0_199 = arith.constant 0 : index
    %418 = vector.load %arg14[%c0_198, %c0_199] : memref<1x512xf32, #tpu.memory_space<vmem>>, vector<1x512xf32>
    %419 = arith.addf %417, %418 : vector<1x512xf32>
    %420 = math.tanh %419 : vector<1x512xf32>
    %c0_200 = arith.constant 0 : index
    %c0_201 = arith.constant 0 : index
    %421 = vector.load %arg17[%c0_200, %c0_201] : memref<1x512xf32, #tpu.memory_space<vmem>>, vector<1x512xf32>
    tpu.vector_store %arg17[%c0_200, %c0_201], %420 {strides = array<i32>} : memref<1x512xf32, #tpu.memory_space<vmem>>, vector<1x512xf32>,
    return
  }
  func.func @transform_0(%arg0: i32) -> (i32, i32) {
    %c0_i32 = arith.constant 0 : i32
    %c0_i32_0 = arith.constant 0 : i32
    %c0_i32_1 = arith.constant 0 : i32
    return %c0_i32, %c0_i32_0 : i32, i32
  }
  func.func @transform_1(%arg0: i32) -> (i32, i32) {
    %c0_i32 = arith.constant 0 : i32
    %c0_i32_0 = arith.constant 0 : i32
    %c0_i32_1 = arith.constant 0 : i32
    return %c0_i32, %c0_i32_0 : i32, i32
  }
  func.func @transform_2(%arg0: i32) -> (i32, i32) {
    %c0_i32 = arith.constant 0 : i32
    %c0_i32_0 = arith.constant 0 : i32
    %c0_i32_1 = arith.constant 0 : i32
    return %c0_i32, %c0_i32_0 : i32, i32
  }
  func.func @transform_3(%arg0: i32) -> (i32, i32) {
    %c0_i32 = arith.constant 0 : i32
    %c0_i32_0 = arith.constant 0 : i32
    %c0_i32_1 = arith.constant 0 : i32
    return %c0_i32, %c0_i32_0 : i32, i32
  }
  func.func @transform_4(%arg0: i32) -> (i32, i32, i32) {
    %c0_i32 = arith.constant 0 : i32
    %c0_i32_0 = arith.constant 0 : i32
    %c0_i32_1 = arith.constant 0 : i32
    %c0_i32_2 = arith.constant 0 : i32
    return %c0_i32, %c0_i32_0, %c0_i32_1 : i32, i32, i32
  }
  func.func @transform_5(%arg0: i32) -> (i32, i32) {
    %c0_i32 = arith.constant 0 : i32
    %c0_i32_0 = arith.constant 0 : i32
    %c0_i32_1 = arith.constant 0 : i32
    return %c0_i32, %c0_i32_0 : i32, i32
  }
  func.func @transform_6(%arg0: i32) -> (i32, i32) {
    %c0_i32 = arith.constant 0 : i32
    %c0_i32_0 = arith.constant 0 : i32
    %c0_i32_1 = arith.constant 0 : i32
    return %c0_i32, %c0_i32_0 : i32, i32
  }
  func.func @transform_7(%arg0: i32) -> (i32, i32, i32) {
    %c0_i32 = arith.constant 0 : i32
    %c0_i32_0 = arith.constant 0 : i32
    %c0_i32_1 = arith.constant 0 : i32
    %c0_i32_2 = arith.constant 0 : i32
    return %c0_i32, %c0_i32_0, %c0_i32_1 : i32, i32, i32
  }
  func.func @transform_8(%arg0: i32) -> (i32, i32) {
    %c0_i32 = arith.constant 0 : i32
    %c0_i32_0 = arith.constant 0 : i32
    %c0_i32_1 = arith.constant 0 : i32
    return %c0_i32, %c0_i32_0 : i32, i32
  }
  func.func @transform_9(%arg0: i32) -> (i32, i32) {
    %c0_i32 = arith.constant 0 : i32
    %c0_i32_0 = arith.constant 0 : i32
    %c0_i32_1 = arith.constant 0 : i32
    return %c0_i32, %c0_i32_0 : i32, i32
  }
  func.func @transform_10(%arg0: i32) -> (i32, i32, i32) {
    %c0_i32 = arith.constant 0 : i32
    %c0_i32_0 = arith.constant 0 : i32
    %c0_i32_1 = arith.constant 0 : i32
    %c0_i32_2 = arith.constant 0 : i32
    return %c0_i32, %c0_i32_0, %c0_i32_1 : i32, i32, i32
  }
  func.func @transform_11(%arg0: i32) -> (i32, i32) {
    %c0_i32 = arith.constant 0 : i32
    %c0_i32_0 = arith.constant 0 : i32
    %c0_i32_1 = arith.constant 0 : i32
    return %c0_i32, %c0_i32_0 : i32, i32
  }
  func.func @transform_12(%arg0: i32) -> (i32, i32) {
    %c0_i32 = arith.constant 0 : i32
    %c0_i32_0 = arith.constant 0 : i32
    %c0_i32_1 = arith.constant 0 : i32
    return %c0_i32, %c0_i32_0 : i32, i32
  }
  func.func @transform_13(%arg0: i32) -> (i32, i32) {
    %c0_i32 = arith.constant 0 : i32
    %c0_i32_0 = arith.constant 0 : i32
    %c0_i32_1 = arith.constant 0 : i32
    return %c0_i32, %c0_i32_0 : i32, i32
  }
  func.func @transform_14(%arg0: i32) -> (i32, i32) {
    %c0_i32 = arith.constant 0 : i32
    %c0_i32_0 = arith.constant 0 : i32
    %c0_i32_1 = arith.constant 0 : i32
    return %c0_i32, %c0_i32_0 : i32, i32
  }
  func.func @transform_15(%arg0: i32) -> (i32, i32) {
    %c0_i32 = arith.constant 0 : i32
    %c0_i32_0 = arith.constant 0 : i32
    %c0_i32_1 = arith.constant 0 : i32
    return %c0_i32, %c0_i32_0 : i32, i32
  }
  func.func @transform_16(%arg0: i32) -> (i32, i32) {
    %c0_i32 = arith.constant 0 : i32
    %c0_i32_0 = arith.constant 0 : i32
    %c0_i32_1 = arith.constant 0 : i32
    return %c0_i32, %c0_i32_0 : i32, i32
  }
  func.func @transform_17(%arg0: i32) -> (i32, i32) {
    %c0_i32 = arith.constant 0 : i32
    %c0_i32_0 = arith.constant 0 : i32
    %c0_i32_1 = arith.constant 0 : i32
    return %c0_i32, %c0_i32_0 : i32, i32
  }
}

</mosaic_0001>

<llo_original>
// kernel: decoder_forward.1
$region0: #{decoder_forward.1}
  #allocation0 [shape = 'u32[]', space=smem, size = 0x4, offset = 0x4, fixed_abs, tag = 'smem constant byte address 0x4 - core index']
  #allocation1 [shape = 'u32[72,128]{1,0:T(1,128)}', space=vmem, size = 0x9000, scoped, tag = 'internal scratch']
  %s0 = inlined_call_operand.vmem [shape: f32[2,16], index: 0, kind: input, shape index: {}]
  %s1 = inlined_call_operand.vmem [shape: bf16[16,1056], index: 1, kind: input, shape index: {}]
  %s2 = inlined_call_operand.vmem [shape: f32[1,1056], index: 2, kind: input, shape index: {}]
  %s3 = inlined_call_operand.vmem [shape: f32[2,256], index: 3, kind: input, shape index: {}]
  %s4 = inlined_call_operand.vmem [shape: bf16[16,32,8], index: 4, kind: input, shape index: {}]
  %s5 = inlined_call_operand.vmem [shape: bf16[256,128], index: 5, kind: input, shape index: {}]
  %s6 = inlined_call_operand.vmem [shape: f32[2,128], index: 6, kind: input, shape index: {}]
  %s7 = inlined_call_operand.vmem [shape: bf16[16,128,32], index: 7, kind: input, shape index: {}]
  %s8 = inlined_call_operand.vmem [shape: bf16[128,128], index: 8, kind: input, shape index: {}]
  %s9 = inlined_call_operand.vmem [shape: f32[2,128], index: 9, kind: input, shape index: {}]
  %s10 = inlined_call_operand.vmem [shape: bf16[4,128,512], index: 10, kind: input, shape index: {}]
  %s11 = inlined_call_operand.vmem [shape: f32[9,512], index: 11, kind: input, shape index: {}]
  %s12 = inlined_call_operand.vmem [shape: bf16[1,288], index: 12, kind: input, shape index: {}]
  %s13 = inlined_call_operand.vmem [shape: f32[1,512], index: 13, kind: input, shape index: {}]
  %s14 = inlined_call_operand.vmem [shape: bf16[32,24], index: 14, kind: input, shape index: {}]
  %s15 = inlined_call_operand.vmem [shape: f32[3,24], index: 15, kind: input, shape index: {}]
  %s16 = inlined_call_operand.vmem [shape: f32[1,512], index: 16, kind: output, shape index: {0}]
  %s17 = inlined_call_operand.vmem [shape: f32[2,24], index: 17, kind: output, shape index: {1}]
  %18 = xla_tuple %s16, %s17
  %s19 = sld [smem:[#allocation0]]
  $region82: #{decoder_forward.1} parent=0
    _
  %s21 = ssub.s32 1, %s19
  %s22 = scalar_select 0, %s21, %s19
  // Predicated region
  $region2: #{decoder_forward.1} parent=0 // pred_check
    _
  $region3: #{decoder_forward.1} parent=0 // pred_check_branch
    %24 = sbr.rel (0) target = $region5
  $region4: #{decoder_forward.1} parent=0 // pred_region
    _
  $region5: #{decoder_forward.1} parent=0 // pred_fallthru
    _
  // Predicated region
  $region6: #{decoder_forward.1} parent=0 // pred_check
    _
  $region7: #{decoder_forward.1} parent=0 // pred_check_branch
    %26 = sbr.rel (0) target = $region9
  $region8: #{decoder_forward.1} parent=0 // pred_region
    _
  $region9: #{decoder_forward.1} parent=0 // pred_fallthru
    _
  // Predicated region
  $region10: #{decoder_forward.1} parent=0 // pred_check
    _
  $region11: #{decoder_forward.1} parent=0 // pred_check_branch
    %28 = sbr.rel (0) target = $region13
  $region12: #{decoder_forward.1} parent=0 // pred_region
    _
  $region13: #{decoder_forward.1} parent=0 // pred_fallthru
    _
  // Predicated region
  $region14: #{decoder_forward.1} parent=0 // pred_check
    _
  $region15: #{decoder_forward.1} parent=0 // pred_check_branch
    %30 = sbr.rel (0) target = $region17
  $region16: #{decoder_forward.1} parent=0 // pred_region
    _
  $region17: #{decoder_forward.1} parent=0 // pred_fallthru
    _
  // Predicated region
  $region18: #{decoder_forward.1} parent=0 // pred_check
    _
  $region19: #{decoder_forward.1} parent=0 // pred_check_branch
    %32 = sbr.rel (0) target = $region21
  $region20: #{decoder_forward.1} parent=0 // pred_region
    _
  $region21: #{decoder_forward.1} parent=0 // pred_fallthru
    _
  // Predicated region
  $region22: #{decoder_forward.1} parent=0 // pred_check
    _
  $region23: #{decoder_forward.1} parent=0 // pred_check_branch
    %34 = sbr.rel (0) target = $region25
  $region24: #{decoder_forward.1} parent=0 // pred_region
    _
  $region25: #{decoder_forward.1} parent=0 // pred_fallthru
    _
  // Predicated region
  $region26: #{decoder_forward.1} parent=0 // pred_check
    _
  $region27: #{decoder_forward.1} parent=0 // pred_check_branch
    %36 = sbr.rel (0) target = $region29
  $region28: #{decoder_forward.1} parent=0 // pred_region
    _
  $region29: #{decoder_forward.1} parent=0 // pred_fallthru
    _
  // Predicated region
  $region30: #{decoder_forward.1} parent=0 // pred_check
    _
  $region31: #{decoder_forward.1} parent=0 // pred_check_branch
    %38 = sbr.rel (0) target = $region33
  $region32: #{decoder_forward.1} parent=0 // pred_region
    _
  $region33: #{decoder_forward.1} parent=0 // pred_fallthru
    _
  // Predicated region
  $region34: #{decoder_forward.1} parent=0 // pred_check
    _
  $region35: #{decoder_forward.1} parent=0 // pred_check_branch
    %40 = sbr.rel (0) target = $region37
  $region36: #{decoder_forward.1} parent=0 // pred_region
    _
  $region37: #{decoder_forward.1} parent=0 // pred_fallthru
    _
  // Predicated region
  $region38: #{decoder_forward.1} parent=0 // pred_check
    _
  $region39: #{decoder_forward.1} parent=0 // pred_check_branch
    %42 = sbr.rel (0) target = $region41
  $region40: #{decoder_forward.1} parent=0 // pred_region
    _
  $region41: #{decoder_forward.1} parent=0 // pred_fallthru
    _
  // Predicated region
  $region42: #{decoder_forward.1} parent=0 // pred_check
    _
  $region43: #{decoder_forward.1} parent=0 // pred_check_branch
    %44 = sbr.rel (0) target = $region45
  $region44: #{decoder_forward.1} parent=0 // pred_region
    _
  $region45: #{decoder_forward.1} parent=0 // pred_fallthru
    _
  // Predicated region
  $region46: #{decoder_forward.1} parent=0 // pred_check
    _
  $region47: #{decoder_forward.1} parent=0 // pred_check_branch
    %46 = sbr.rel (0) target = $region49
  $region48: #{decoder_forward.1} parent=0 // pred_region
    _
  $region49: #{decoder_forward.1} parent=0 // pred_fallthru
    _
  // Predicated region
  $region50: #{decoder_forward.1} parent=0 // pred_check
    _
  $region51: #{decoder_forward.1} parent=0 // pred_check_branch
    %48 = sbr.rel (0) target = $region53
  $region52: #{decoder_forward.1} parent=0 // pred_region
    _
  $region53: #{decoder_forward.1} parent=0 // pred_fallthru
    _
  // Predicated region
  $region54: #{decoder_forward.1} parent=0 // pred_check
    _
  $region55: #{decoder_forward.1} parent=0 // pred_check_branch
    %50 = sbr.rel (0) target = $region57
  $region56: #{decoder_forward.1} parent=0 // pred_region
    _
  $region57: #{decoder_forward.1} parent=0 // pred_fallthru
    _
  // Predicated region
  $region58: #{decoder_forward.1} parent=0 // pred_check
    _
  $region59: #{decoder_forward.1} parent=0 // pred_check_branch
    %52 = sbr.rel (0) target = $region61
  $region60: #{decoder_forward.1} parent=0 // pred_region
    _
  $region61: #{decoder_forward.1} parent=0 // pred_fallthru
    _
  // Predicated region
  $region62: #{decoder_forward.1} parent=0 // pred_check
    _
  $region63: #{decoder_forward.1} parent=0 // pred_check_branch
    %54 = sbr.rel (0) target = $region65
  $region64: #{decoder_forward.1} parent=0 // pred_region
    _
  $region65: #{decoder_forward.1} parent=0 // pred_fallthru
    _
  %v56 = vld [vmem:[%s0] sm:$0x3]
  %v57 = vpack.c.bf16 %v56, %v56
  %v58 = vld [vmem:[%s1] sm:$0xff]
  %v59 = vld [vmem:[%s1 + $0x8] sm:$0xff]
  %v60 = vld [vmem:[%s1 + $0x10] sm:$0xff]
  %v61 = vld [vmem:[%s1 + $0x18] sm:$0xff]
  %v62 = vld [vmem:[%s1 + $0x20] sm:$0xf]
  %v63 = vld [vmem:[%s1 + $0x24] sm:$0xff]
  %v64 = vld [vmem:[%s1 + $0x2c] sm:$0xff]
  %v65 = vld [vmem:[%s1 + $0x34] sm:$0xff]
  %v66 = vld [vmem:[%s1 + $0x3c] sm:$0xff]
  %v67 = vld [vmem:[%s1 + $0x44] sm:$0xf]
  %v68 = vld [vmem:[%s2] sm:$0xff]
  %v69 = vld [vmem:[%s2 + $0x8] sm:$0x1]
  %v72 = vperm.slane %v68, 0
  %v73 = vperm.slane %v68, 1
  %v74 = vperm.slane %v68, 2
  %v75 = vperm.slane %v68, 3
  %v76 = vperm.slane %v68, 4
  %v77 = vperm.slane %v68, 5
  %v78 = vperm.slane %v68, 6
  %v79 = vperm.slane %v68, 7
  %v80 = vperm.slane %v69, 0
  %v100 = vunpack.c.l.b16 %v58
  %v101 = vunpack.c.h.b16 %v58
  %v102 = vunpack.c.l.b16 %v59
  %v103 = vunpack.c.h.b16 %v59
  %v104 = vunpack.c.l.b16 %v60
  %v105 = vunpack.c.h.b16 %v60
  %v106 = vunpack.c.l.b16 %v61
  %v107 = vunpack.c.h.b16 %v61
  %v108 = vunpack.c.l.b16 %v62
  %v109 = vunpack.c.l.b16 %v63
  %v110 = vunpack.c.h.b16 %v63
  %v111 = vunpack.c.l.b16 %v64
  %v112 = vunpack.c.h.b16 %v64
  %v113 = vunpack.c.l.b16 %v65
  %v114 = vunpack.c.h.b16 %v65
  %v115 = vunpack.c.l.b16 %v66
  %v116 = vunpack.c.h.b16 %v66
  %v117 = vunpack.c.l.b16 %v67
  %v118 = vpack.c.b16 %v109, %v100
  %v119 = vpack.c.b16 %v110, %v101
  %v120 = vpack.c.b16 %v111, %v102
  %v121 = vpack.c.b16 %v112, %v103
  %v122 = vpack.c.b16 %v113, %v104
  %v123 = vpack.c.b16 %v114, %v105
  %v124 = vpack.c.b16 %v115, %v106
  %v125 = vpack.c.b16 %v116, %v107
  %v126 = vpack.c.b16 %v117, %v108
  %vm136 = vcmask 130048
  %v138 = vsel %vm136, %v57, 0
  %140 = vmatpush.bf16.msra.mxu0 0
  %141 = vmatpush.bf16.msra.mxu0 0
  %142 = vmatpush.bf16.msra.mxu0 0
  %143 = vmatpush.bf16.msra.mxu0 0
  %144 = vmatpush.bf16.msra.mxu0 0
  %145 = vmatpush.bf16.msra.mxu0 0
  %146 = vmatpush.bf16.msra.mxu0 0
  %147 = vmatpush.bf16.msra.mxu0 %v118
  %148 = vmatmul.bf16.gmra.mxu0 %v138
  %v149 = vpop.f32.mrf.mxu0
  %v150 = vadd.f32 %v72, %v149
  %v151 = vpop.f32.mrf.mxu0
  %152 = vdwg.mxu0
  %153 = vmatpush.bf16.msra.mxu0 0
  %154 = vmatpush.bf16.msra.mxu0 0
  %155 = vmatpush.bf16.msra.mxu0 0
  %156 = vmatpush.bf16.msra.mxu0 0
  %157 = vmatpush.bf16.msra.mxu0 0
  %158 = vmatpush.bf16.msra.mxu0 0
  %159 = vmatpush.bf16.msra.mxu0 0
  %160 = vmatpush.bf16.msra.mxu0 %v119
  %161 = vmatmul.bf16.gmra.mxu0 %v138
  %v162 = vpop.f32.mrf.mxu0
  %v163 = vadd.f32 %v73, %v162
  %v164 = vpop.f32.mrf.mxu0
  %165 = vdwg.mxu0
  %166 = vmatpush.bf16.msra.mxu0 0
  %167 = vmatpush.bf16.msra.mxu0 0
  %168 = vmatpush.bf16.msra.mxu0 0
  %169 = vmatpush.bf16.msra.mxu0 0
  %170 = vmatpush.bf16.msra.mxu0 0
  %171 = vmatpush.bf16.msra.mxu0 0
  %172 = vmatpush.bf16.msra.mxu0 0
  %173 = vmatpush.bf16.msra.mxu0 %v120
  %174 = vmatmul.bf16.gmra.mxu0 %v138
  %v175 = vpop.f32.mrf.mxu0
  %v176 = vadd.f32 %v74, %v175
  %v177 = vpop.f32.mrf.mxu0
  %178 = vdwg.mxu0
  %179 = vmatpush.bf16.msra.mxu0 0
  %180 = vmatpush.bf16.msra.mxu0 0
  %181 = vmatpush.bf16.msra.mxu0 0
  %182 = vmatpush.bf16.msra.mxu0 0
  %183 = vmatpush.bf16.msra.mxu0 0
  %184 = vmatpush.bf16.msra.mxu0 0
  %185 = vmatpush.bf16.msra.mxu0 0
  %186 = vmatpush.bf16.msra.mxu0 %v121
  %187 = vmatmul.bf16.gmra.mxu0 %v138
  %v188 = vpop.f32.mrf.mxu0
  %v189 = vadd.f32 %v75, %v188
  %v190 = vpop.f32.mrf.mxu0
  %191 = vdwg.mxu0
  %192 = vmatpush.bf16.msra.mxu0 0
  %193 = vmatpush.bf16.msra.mxu0 0
  %194 = vmatpush.bf16.msra.mxu0 0
  %195 = vmatpush.bf16.msra.mxu0 0
  %196 = vmatpush.bf16.msra.mxu0 0
  %197 = vmatpush.bf16.msra.mxu0 0
  %198 = vmatpush.bf16.msra.mxu0 0
  %199 = vmatpush.bf16.msra.mxu0 %v122
  %200 = vmatmul.bf16.gmra.mxu0 %v138
  %v201 = vpop.f32.mrf.mxu0
  %v202 = vadd.f32 %v76, %v201
  %v203 = vpop.f32.mrf.mxu0
  %204 = vdwg.mxu0
  %205 = vmatpush.bf16.msra.mxu0 0
  %206 = vmatpush.bf16.msra.mxu0 0
  %207 = vmatpush.bf16.msra.mxu0 0
  %208 = vmatpush.bf16.msra.mxu0 0
  %209 = vmatpush.bf16.msra.mxu0 0
  %210 = vmatpush.bf16.msra.mxu0 0
  %211 = vmatpush.bf16.msra.mxu0 0
  %212 = vmatpush.bf16.msra.mxu0 %v123
  %213 = vmatmul.bf16.gmra.mxu0 %v138
  %v214 = vpop.f32.mrf.mxu0
  %v215 = vadd.f32 %v77, %v214
  %v216 = vpop.f32.mrf.mxu0
  %217 = vdwg.mxu0
  %218 = vmatpush.bf16.msra.mxu0 0
  %219 = vmatpush.bf16.msra.mxu0 0
  %220 = vmatpush.bf16.msra.mxu0 0
  %221 = vmatpush.bf16.msra.mxu0 0
  %222 = vmatpush.bf16.msra.mxu0 0
  %223 = vmatpush.bf16.msra.mxu0 0
  %224 = vmatpush.bf16.msra.mxu0 0
  %225 = vmatpush.bf16.msra.mxu0 %v124
  %226 = vmatmul.bf16.gmra.mxu0 %v138
  %v227 = vpop.f32.mrf.mxu0
  %v228 = vadd.f32 %v78, %v227
  %v229 = vpop.f32.mrf.mxu0
  %230 = vdwg.mxu0
  %231 = vmatpush.bf16.msra.mxu0 0
  %232 = vmatpush.bf16.msra.mxu0 0
  %233 = vmatpush.bf16.msra.mxu0 0
  %234 = vmatpush.bf16.msra.mxu0 0
  %235 = vmatpush.bf16.msra.mxu0 0
  %236 = vmatpush.bf16.msra.mxu0 0
  %237 = vmatpush.bf16.msra.mxu0 0
  %238 = vmatpush.bf16.msra.mxu0 %v125
  %239 = vmatmul.bf16.gmra.mxu0 %v138
  %v240 = vpop.f32.mrf.mxu0
  %v241 = vadd.f32 %v79, %v240
  %v242 = vpop.f32.mrf.mxu0
  %243 = vdwg.mxu0
  %244 = vmatpush.bf16.msra.mxu0 0
  %245 = vmatpush.bf16.msra.mxu0 0
  %246 = vmatpush.bf16.msra.mxu0 0
  %247 = vmatpush.bf16.msra.mxu0 0
  %248 = vmatpush.bf16.msra.mxu0 0
  %249 = vmatpush.bf16.msra.mxu0 0
  %250 = vmatpush.bf16.msra.mxu0 0
  %251 = vmatpush.bf16.msra.mxu0 %v126
  %252 = vmatmul.bf16.gmra.mxu0 %v138
  %v253 = vpop.f32.mrf.mxu0
  %v254 = vadd.f32 %v80, %v253
  %v255 = vpop.f32.mrf.mxu0
  %256 = vdwg.mxu0
  %vm257 = vcmp.gt.f32.partialorder %v254, 0.0
  %v258 = vmul.f32 %v254, 0.01
  %v259 = vsel %vm257, %v254, %v258
  %v260 = vpack.c.bf16 %v259, %v259
  %v261 = vld [vmem:[%s14] sm:$0xf]
  %v262 = vld [vmem:[%s14 + $0x4] sm:$0xf]
  %v263 = vld [vmem:[%s14 + $0x8] sm:$0xf]
  %v264 = vld [vmem:[%s14 + $0xc] sm:$0xf]
  %v265 = vld [vmem:[%s15] sm:$0x1]
  %v266 = vperm.slane %v265, 0
  %v271 = vunpack.c.l.b16 %v261
  %v272 = vunpack.c.l.b16 %v262
  %v273 = vunpack.c.l.b16 %v263
  %v274 = vunpack.c.l.b16 %v264
  %v275 = vpack.c.b16 %v272, %v271
  %v276 = vpack.c.b16 %v274, %v273
  %vm279 = vcmask 261120
  %v281 = vsel %vm279, %v260, 0
  %283 = vmatpush.bf16.msra.mxu0 0
  %284 = vmatpush.bf16.msra.mxu0 0
  %285 = vmatpush.bf16.msra.mxu0 0
  %286 = vmatpush.bf16.msra.mxu0 0
  %287 = vmatpush.bf16.msra.mxu0 0
  %288 = vmatpush.bf16.msra.mxu0 0
  %289 = vmatpush.bf16.msra.mxu0 %v276
  %290 = vmatpush.bf16.msra.mxu0 %v275
  %291 = vmatmul.bf16.gmra.mxu0 %v281
  %v292 = vpop.f32.mrf.mxu0
  %v293 = vadd.f32 %v266, %v292
  %v294 = vpop.f32.mrf.mxu0
  %295 = vdwg.mxu0
  %v296 = vtanh.pop %v293
  %v297 = vld [vmem:[%s15 + $0x1] sm:$0x1]
  %v298 = vperm.slane %v297, 0
  %v299 = vmul.f32 %v296, %v298
  %v300 = vld [vmem:[%s15 + $0x2] sm:$0x1]
  %v301 = vperm.slane %v300, 0
  %v302 = vadd.f32 %v299, %v301
  %vm303 = vcmask 189440
  %304 = vst.msk [vmem:[%s17] sm:$0x3] %vm303, %v302
  %v307 = vrot.slane %v176, 7
  %v308 = vrot.slane %v189, 7
  %v313 = vrot.slane %v202, 6
  %v314 = vrot.slane %v215, 6
  %v319 = vrot.slane %v228, 5
  %v320 = vrot.slane %v241, 5
  %v325 = vrot.slane %v150, 5
  %v326 = vrot.slane %v163, 5
  %v329 = vrot.slane %v176, 4
  %v330 = vrot.slane %v189, 4
  %v333 = vrot.slane %v202, 3
  %v334 = vrot.slane %v215, 3
  %v337 = vrot.slane %v228, 2
  %v338 = vrot.slane %v241, 2
  %vm341 = vcmask 1040384
  %v342 = vsel %vm341, %v150, %v307
  %v343 = vsel %vm341, %v163, %v308
  %vm344 = vcmask 1041408
  %v345 = vsel %vm344, %v342, %v313
  %v346 = vsel %vm344, %v343, %v314
  %vm347 = vcmask 1042432
  %v348 = vsel %vm347, %v345, %v319
  %v349 = vsel %vm347, %v346, %v320
  %vm350 = vcmask 1043456
  %v351 = vsel %vm350, %v348, %v325
  %v352 = vsel %vm350, %v349, %v326
  %vm353 = vcmask 1044480
  %v354 = vsel %vm353, %v351, %v329
  %v355 = vsel %vm353, %v352, %v330
  %vm356 = vcmask 1045504
  %v357 = vsel %vm356, %v354, %v333
  %v358 = vsel %vm356, %v355, %v334
  %vm359 = vcmask 1046528
  %v360 = vsel %vm359, %v357, %v337
  %v361 = vsel %vm359, %v358, %v338
  %v362 = vld [vmem:[%s3] sm:$0xf]
  %v363 = vrot.slane %v360, 4
  %v364 = vadd.f32 %v360, %v363
  %v365 = vrot.slane %v364, 2
  %v366 = vadd.f32 %v364, %v365
  %v367 = vrot.slane %v366, 1
  %v368 = vadd.f32 %v366, %v367
  %v369 = vrot.slane %v361, 4
  %v370 = vadd.f32 %v361, %v369
  %v371 = vrot.slane %v370, 2
  %v372 = vadd.f32 %v370, %v371
  %v373 = vrot.slane %v372, 1
  %v374 = vadd.f32 %v372, %v373
  %376 = vrot.lane.b32.xlu0 %v368, 64
  %v377 = vpop.permute.xlu0 %376
  %v379 = vadd.f32 %v368, %v377
  %v380 = vadd.f32 %v379, %v374
  %382 = vrot.lane.b32.xlu0 %v374, 64
  %v383 = vpop.permute.xlu0 %382
  %v385 = vadd.f32 %v380, %v383
  %387 = vrot.lane.b32.xlu0 %v385, 64
  %v388 = vpop.permute.xlu0 %387
  %vm390 = vcmask 523264
  %v391 = vsel %vm390, %v385, %v388
  %v392 = vmul.f32 %v391, 0.03125
  %v393 = vperm.slane %v392, 0
  %v394 = vsub.f32 %v360, %v393
  %v395 = vsub.f32 %v361, %v393
  %v396 = vmul.f32 %v394, %v394
  %v397 = vmul.f32 %v395, %v395
  %v398 = vrot.slane %v396, 4
  %v399 = vadd.f32 %v396, %v398
  %v400 = vrot.slane %v399, 2
  %v401 = vadd.f32 %v399, %v400
  %v402 = vrot.slane %v401, 1
  %v403 = vadd.f32 %v401, %v402
  %v404 = vrot.slane %v397, 4
  %v405 = vadd.f32 %v397, %v404
  %v406 = vrot.slane %v405, 2
  %v407 = vadd.f32 %v405, %v406
  %v408 = vrot.slane %v407, 1
  %v409 = vadd.f32 %v407, %v408
  %411 = vrot.lane.b32.xlu0 %v403, 64
  %v412 = vpop.permute.xlu0 %411
  %v414 = vadd.f32 %v403, %v412
  %v415 = vadd.f32 %v414, %v409
  %417 = vrot.lane.b32.xlu0 %v409, 64
  %v418 = vpop.permute.xlu0 %417
  %v420 = vadd.f32 %v415, %v418
  %422 = vrot.lane.b32.xlu0 %v420, 64
  %v423 = vpop.permute.xlu0 %422
  %v425 = vsel %vm390, %v420, %v423
  %v426 = vmul.f32 %v425, 0.03125
  %v427 = vadd.f32 %v426, 1e-05
  %v428 = vrsqrt.pop %v427
  %v429 = vmul.f32 %v428, %v427
  %v430 = vmul.f32 %v429, %v428
  %v431 = vmul.f32 0.5, %v430
  %v432 = vsub.f32 1.5, %v431
  %v433 = vmul.f32 %v428, %v432
  %vm434 = vweird.f32 %v427
  %vm435 = vweird.f32 %v428
  %vm436 = vmor %vm434, %vm435
  %v437 = vsel %vm436, %v428, %v433
  %v439 = vrot.slane %v437, 6
  %v440 = vsel %vm344, %v437, %v439
  %v442 = vmul.f32 %v362, %v440
  %v444 = vperm.slane %v442, 0
  %v445 = vperm.slane %v442, 2
  %v448 = vperm.slane %v444, 0
  %v449 = vperm.slane %v445, 0
  %v450 = vmul.f32 %v394, %v448
  %v451 = vmul.f32 %v395, %v449
  %v453 = vperm.slane %v362, 1
  %v454 = vperm.slane %v362, 3
  %v457 = vperm.slane %v453, 1
  %v458 = vperm.slane %v454, 1
  %v459 = vadd.f32 %v450, %v457
  %v460 = vadd.f32 %v451, %v458
  %vm461 = vcmp.gt.f32.partialorder %v459, 0.0
  %vm462 = vcmp.gt.f32.partialorder %v460, 0.0
  %v463 = vmul.f32 %v459, 0.01
  %v464 = vmul.f32 %v460, 0.01
  %v465 = vsel %vm461, %v459, %v463
  %v466 = vsel %vm462, %v460, %v464
  %v467 = vpack.c.bf16 %v466, %v465
  %v468 = vld [vmem:[%s4] sm:$0xf]
  %v469 = vld [vmem:[%s4 + $0x4] sm:$0xf]
  %v470 = vld [vmem:[%s4 + $0x8] sm:$0xf]
  %v471 = vld [vmem:[%s4 + $0xc] sm:$0xf]
  %s472 = scalar_lea.vmem %s4, 16
  %v473 = vld [vmem:[%s472] sm:$0xf]
  %v474 = vld [vmem:[%s472 + $0x4] sm:$0xf]
  %v475 = vld [vmem:[%s472 + $0x8] sm:$0xf]
  %v476 = vld [vmem:[%s472 + $0xc] sm:$0xf]
  %v481 = vunpack.c.l.b16 %v473
  %v482 = vunpack.c.l.b16 %v474
  %v483 = vunpack.c.l.b16 %v475
  %v484 = vunpack.c.l.b16 %v476
  %v485 = vpack.c.b16 %v482, %v481
  %v486 = vpack.c.b16 %v484, %v483
  %v488 = vunpack.c.l.b16 %v467
  %v489 = vpack.c.b16 %v488, %v488
  %490 = vrot.lane.b32.xlu0 %v489, 64
  %v491 = vpop.permute.xlu0 %490
  %vm492 = vcmask 64512
  %v494 = vsel %vm492, %v485, 0
  %v497 = vsel %vm492, %v486, 0
  %v500 = vsel %vm350, %v491, 0
  %502 = vmatpush.bf16.msra.mxu0 0
  %503 = vmatpush.bf16.msra.mxu0 0
  %504 = vmatpush.bf16.msra.mxu0 0
  %505 = vmatpush.bf16.msra.mxu0 0
  %506 = vmatpush.bf16.msra.mxu0 0
  %507 = vmatpush.bf16.msra.mxu0 0
  %508 = vmatpush.bf16.msra.mxu0 0
  %509 = vmatpush.bf16.msra.mxu0 %v500
  %510 = vmatmul.bf16.gmra.mxu0 %v494
  %v511 = vpop.f32.mrf.mxu0
  %v512 = vadd.f32 0.0, %v511
  %v513 = vpop.f32.mrf.mxu0
  %v514 = vadd.f32 0.0, %v513
  %515 = vmatmul.bf16.gmra.mxu0 %v497
  %v516 = vpop.f32.mrf.mxu0
  %v517 = vadd.f32 0.0, %v516
  %v518 = vpop.f32.mrf.mxu0
  %v519 = vadd.f32 0.0, %v518
  %520 = vdwg.mxu0
  %v525 = vunpack.c.l.b16 %v468
  %v526 = vunpack.c.l.b16 %v469
  %v527 = vunpack.c.l.b16 %v470
  %v528 = vunpack.c.l.b16 %v471
  %v529 = vpack.c.b16 %v526, %v525
  %v530 = vpack.c.b16 %v528, %v527
  %v532 = vsel %vm492, %v529, 0
  %v535 = vsel %vm492, %v530, 0
  %v538 = vsel %vm350, %v467, 0
  %540 = vmatpush.bf16.msra.mxu0 0
  %541 = vmatpush.bf16.msra.mxu0 0
  %542 = vmatpush.bf16.msra.mxu0 0
  %543 = vmatpush.bf16.msra.mxu0 0
  %544 = vmatpush.bf16.msra.mxu0 0
  %545 = vmatpush.bf16.msra.mxu0 0
  %546 = vmatpush.bf16.msra.mxu0 0
  %547 = vmatpush.bf16.msra.mxu0 %v538
  %548 = vmatmul.bf16.gmra.mxu0 %v532
  %v549 = vpop.f32.mrf.mxu0
  %v550 = vadd.f32 %v512, %v549
  %v551 = vpop.f32.mrf.mxu0
  %v552 = vadd.f32 %v514, %v551
  %553 = vmatmul.bf16.gmra.mxu0 %v535
  %v554 = vpop.f32.mrf.mxu0
  %v555 = vadd.f32 %v517, %v554
  %v556 = vpop.f32.mrf.mxu0
  %v557 = vadd.f32 %v519, %v556
  %558 = vdwg.mxu0
  %s559 = scalar_lea.vmem %s4, 32
  %v560 = vld [vmem:[%s559] sm:$0xf]
  %v561 = vld [vmem:[%s559 + $0x4] sm:$0xf]
  %v562 = vld [vmem:[%s559 + $0x8] sm:$0xf]
  %v563 = vld [vmem:[%s559 + $0xc] sm:$0xf]
  %v568 = vunpack.c.l.b16 %v560
  %v569 = vunpack.c.l.b16 %v561
  %v570 = vunpack.c.l.b16 %v562
  %v571 = vunpack.c.l.b16 %v563
  %v572 = vpack.c.b16 %v569, %v568
  %v573 = vpack.c.b16 %v571, %v570
  %v574 = vunpack.c.h.b16 %v467
  %v575 = vpack.c.b16 %v574, %v574
  %v577 = vsel %vm492, %v572, 0
  %v580 = vsel %vm492, %v573, 0
  %v583 = vsel %vm350, %v575, 0
  %585 = vmatpush.bf16.msra.mxu0 0
  %586 = vmatpush.bf16.msra.mxu0 0
  %587 = vmatpush.bf16.msra.mxu0 0
  %588 = vmatpush.bf16.msra.mxu0 0
  %589 = vmatpush.bf16.msra.mxu0 0
  %590 = vmatpush.bf16.msra.mxu0 0
  %591 = vmatpush.bf16.msra.mxu0 0
  %592 = vmatpush.bf16.msra.mxu0 %v583
  %593 = vmatmul.bf16.gmra.mxu0 %v577
  %v594 = vpop.f32.mrf.mxu0
  %v595 = vadd.f32 0.0, %v594
  %v596 = vpop.f32.mrf.mxu0
  %v597 = vadd.f32 0.0, %v596
  %598 = vmatmul.bf16.gmra.mxu0 %v580
  %v599 = vpop.f32.mrf.mxu0
  %v600 = vadd.f32 0.0, %v599
  %v601 = vpop.f32.mrf.mxu0
  %v602 = vadd.f32 0.0, %v601
  %603 = vdwg.mxu0
  %v604 = vadd.f32 %v550, %v595
  %v605 = vadd.f32 %v552, %v597
  %v606 = vadd.f32 %v555, %v600
  %v607 = vadd.f32 %v557, %v602
  %s608 = scalar_lea.vmem %s4, 48
  %v609 = vld [vmem:[%s608] sm:$0xf]
  %v610 = vld [vmem:[%s608 + $0x4] sm:$0xf]
  %v611 = vld [vmem:[%s608 + $0x8] sm:$0xf]
  %v612 = vld [vmem:[%s608 + $0xc] sm:$0xf]
  %v617 = vunpack.c.l.b16 %v609
  %v618 = vunpack.c.l.b16 %v610
  %v619 = vunpack.c.l.b16 %v611
  %v620 = vunpack.c.l.b16 %v612
  %v621 = vpack.c.b16 %v618, %v617
  %v622 = vpack.c.b16 %v620, %v619
  %623 = vrot.lane.b32.xlu0 %v575, 64
  %v624 = vpop.permute.xlu0 %623
  %v626 = vsel %vm492, %v621, 0
  %v629 = vsel %vm492, %v622, 0
  %v632 = vsel %vm350, %v624, 0
  %634 = vmatpush.bf16.msra.mxu0 0
  %635 = vmatpush.bf16.msra.mxu0 0
  %636 = vmatpush.bf16.msra.mxu0 0
  %637 = vmatpush.bf16.msra.mxu0 0
  %638 = vmatpush.bf16.msra.mxu0 0
  %639 = vmatpush.bf16.msra.mxu0 0
  %640 = vmatpush.bf16.msra.mxu0 0
  %641 = vmatpush.bf16.msra.mxu0 %v632
  %642 = vmatmul.bf16.gmra.mxu0 %v626
  %v643 = vpop.f32.mrf.mxu0
  %v644 = vadd.f32 0.0, %v643
  %v645 = vpop.f32.mrf.mxu0
  %v646 = vadd.f32 0.0, %v645
  %647 = vmatmul.bf16.gmra.mxu0 %v629
  %v648 = vpop.f32.mrf.mxu0
  %v649 = vadd.f32 0.0, %v648
  %v650 = vpop.f32.mrf.mxu0
  %v651 = vadd.f32 0.0, %v650
  %652 = vdwg.mxu0
  %v653 = vadd.f32 %v604, %v644
  %v654 = vadd.f32 %v605, %v646
  %v655 = vadd.f32 %v606, %v649
  %v656 = vadd.f32 %v607, %v651
  %v657 = vpack.c.bf16 %v654, %v653
  %v658 = vpack.c.bf16 %v656, %v655
  %v659 = vld [vmem:[%s5] sm:$0xf]
  %v660 = vld [vmem:[%s5 + $0x4] sm:$0xf]
  %v661 = vld [vmem:[%s5 + $0x8] sm:$0xf]
  %v662 = vld [vmem:[%s5 + $0xc] sm:$0xf]
  %v663 = vld [vmem:[%s5 + $0x10] sm:$0xf]
  %v664 = vld [vmem:[%s5 + $0x14] sm:$0xf]
  %v665 = vld [vmem:[%s5 + $0x18] sm:$0xf]
  %v666 = vld [vmem:[%s5 + $0x1c] sm:$0xf]
  %s667 = scalar_lea.vmem %s4, 64
  %v668 = vld [vmem:[%s667] sm:$0xf]
  %v669 = vld [vmem:[%s667 + $0x4] sm:$0xf]
  %v670 = vld [vmem:[%s667 + $0x8] sm:$0xf]
  %v671 = vld [vmem:[%s667 + $0xc] sm:$0xf]
  %s672 = scalar_lea.vmem %s4, 80
  %v673 = vld [vmem:[%s672] sm:$0xf]
  %v674 = vld [vmem:[%s672 + $0x4] sm:$0xf]
  %v675 = vld [vmem:[%s672 + $0x8] sm:$0xf]
  %v676 = vld [vmem:[%s672 + $0xc] sm:$0xf]
  %v681 = vunpack.c.l.b16 %v673
  %v682 = vunpack.c.l.b16 %v674
  %v683 = vunpack.c.l.b16 %v675
  %v684 = vunpack.c.l.b16 %v676
  %v685 = vpack.c.b16 %v682, %v681
  %v686 = vpack.c.b16 %v684, %v683
  %v688 = vsel %vm492, %v685, 0
  %v691 = vsel %vm492, %v686, 0
  %693 = vmatpush.bf16.msra.mxu0 0
  %694 = vmatpush.bf16.msra.mxu0 0
  %695 = vmatpush.bf16.msra.mxu0 0
  %696 = vmatpush.bf16.msra.mxu0 0
  %697 = vmatpush.bf16.msra.mxu0 0
  %698 = vmatpush.bf16.msra.mxu0 0
  %699 = vmatpush.bf16.msra.mxu0 0
  %700 = vmatpush.bf16.msra.mxu0 %v500
  %701 = vmatmul.bf16.gmra.mxu0 %v688
  %v702 = vpop.f32.mrf.mxu0
  %v703 = vadd.f32 0.0, %v702
  %v704 = vpop.f32.mrf.mxu0
  %v705 = vadd.f32 0.0, %v704
  %706 = vmatmul.bf16.gmra.mxu0 %v691
  %v707 = vpop.f32.mrf.mxu0
  %v708 = vadd.f32 0.0, %v707
  %v709 = vpop.f32.mrf.mxu0
  %v710 = vadd.f32 0.0, %v709
  %711 = vdwg.mxu0
  %v716 = vunpack.c.l.b16 %v668
  %v717 = vunpack.c.l.b16 %v669
  %v718 = vunpack.c.l.b16 %v670
  %v719 = vunpack.c.l.b16 %v671
  %v720 = vpack.c.b16 %v717, %v716
  %v721 = vpack.c.b16 %v719, %v718
  %v723 = vsel %vm492, %v720, 0
  %v726 = vsel %vm492, %v721, 0
  %728 = vmatpush.bf16.msra.mxu0 0
  %729 = vmatpush.bf16.msra.mxu0 0
  %730 = vmatpush.bf16.msra.mxu0 0
  %731 = vmatpush.bf16.msra.mxu0 0
  %732 = vmatpush.bf16.msra.mxu0 0
  %733 = vmatpush.bf16.msra.mxu0 0
  %734 = vmatpush.bf16.msra.mxu0 0
  %735 = vmatpush.bf16.msra.mxu0 %v538
  %736 = vmatmul.bf16.gmra.mxu0 %v723
  %v737 = vpop.f32.mrf.mxu0
  %v738 = vadd.f32 %v703, %v737
  %v739 = vpop.f32.mrf.mxu0
  %v740 = vadd.f32 %v705, %v739
  %741 = vmatmul.bf16.gmra.mxu0 %v726
  %v742 = vpop.f32.mrf.mxu0
  %v743 = vadd.f32 %v708, %v742
  %v744 = vpop.f32.mrf.mxu0
  %v745 = vadd.f32 %v710, %v744
  %746 = vdwg.mxu0
  %s747 = scalar_lea.vmem %s4, 96
  %v748 = vld [vmem:[%s747] sm:$0xf]
  %v749 = vld [vmem:[%s747 + $0x4] sm:$0xf]
  %v750 = vld [vmem:[%s747 + $0x8] sm:$0xf]
  %v751 = vld [vmem:[%s747 + $0xc] sm:$0xf]
  %v756 = vunpack.c.l.b16 %v748
  %v757 = vunpack.c.l.b16 %v749
  %v758 = vunpack.c.l.b16 %v750
  %v759 = vunpack.c.l.b16 %v751
  %v760 = vpack.c.b16 %v757, %v756
  %v761 = vpack.c.b16 %v759, %v758
  %v763 = vsel %vm492, %v760, 0
  %v766 = vsel %vm492, %v761, 0
  %768 = vmatpush.bf16.msra.mxu0 0
  %769 = vmatpush.bf16.msra.mxu0 0
  %770 = vmatpush.bf16.msra.mxu0 0
  %771 = vmatpush.bf16.msra.mxu0 0
  %772 = vmatpush.bf16.msra.mxu0 0
  %773 = vmatpush.bf16.msra.mxu0 0
  %774 = vmatpush.bf16.msra.mxu0 0
  %775 = vmatpush.bf16.msra.mxu0 %v583
  %776 = vmatmul.bf16.gmra.mxu0 %v763
  %v777 = vpop.f32.mrf.mxu0
  %v778 = vadd.f32 0.0, %v777
  %v779 = vpop.f32.mrf.mxu0
  %v780 = vadd.f32 0.0, %v779
  %781 = vmatmul.bf16.gmra.mxu0 %v766
  %v782 = vpop.f32.mrf.mxu0
  %v783 = vadd.f32 0.0, %v782
  %v784 = vpop.f32.mrf.mxu0
  %v785 = vadd.f32 0.0, %v784
  %786 = vdwg.mxu0
  %v787 = vadd.f32 %v738, %v778
  %v788 = vadd.f32 %v740, %v780
  %v789 = vadd.f32 %v743, %v783
  %v790 = vadd.f32 %v745, %v785
  %s791 = scalar_lea.vmem %s4, 112
  %v792 = vld [vmem:[%s791] sm:$0xf]
  %v793 = vld [vmem:[%s791 + $0x4] sm:$0xf]
  %v794 = vld [vmem:[%s791 + $0x8] sm:$0xf]
  %v795 = vld [vmem:[%s791 + $0xc] sm:$0xf]
  %v800 = vunpack.c.l.b16 %v792
  %v801 = vunpack.c.l.b16 %v793
  %v802 = vunpack.c.l.b16 %v794
  %v803 = vunpack.c.l.b16 %v795
  %v804 = vpack.c.b16 %v801, %v800
  %v805 = vpack.c.b16 %v803, %v802
  %v807 = vsel %vm492, %v804, 0
  %v810 = vsel %vm492, %v805, 0
  %812 = vmatpush.bf16.msra.mxu0 0
  %813 = vmatpush.bf16.msra.mxu0 0
  %814 = vmatpush.bf16.msra.mxu0 0
  %815 = vmatpush.bf16.msra.mxu0 0
  %816 = vmatpush.bf16.msra.mxu0 0
  %817 = vmatpush.bf16.msra.mxu0 0
  %818 = vmatpush.bf16.msra.mxu0 0
  %819 = vmatpush.bf16.msra.mxu0 %v632
  %820 = vmatmul.bf16.gmra.mxu0 %v807
  %v821 = vpop.f32.mrf.mxu0
  %v822 = vadd.f32 0.0, %v821
  %v823 = vpop.f32.mrf.mxu0
  %v824 = vadd.f32 0.0, %v823
  %825 = vmatmul.bf16.gmra.mxu0 %v810
  %v826 = vpop.f32.mrf.mxu0
  %v827 = vadd.f32 0.0, %v826
  %v828 = vpop.f32.mrf.mxu0
  %v829 = vadd.f32 0.0, %v828
  %830 = vdwg.mxu0
  %v831 = vadd.f32 %v787, %v822
  %v832 = vadd.f32 %v788, %v824
  %v833 = vadd.f32 %v789, %v827
  %v834 = vadd.f32 %v790, %v829
  %v835 = vpack.c.bf16 %v832, %v831
  %v836 = vpack.c.bf16 %v834, %v833
  %v837 = vld [vmem:[%s5 + $0x20] sm:$0xf]
  %v838 = vld [vmem:[%s5 + $0x24] sm:$0xf]
  %v839 = vld [vmem:[%s5 + $0x28] sm:$0xf]
  %v840 = vld [vmem:[%s5 + $0x2c] sm:$0xf]
  %v841 = vld [vmem:[%s5 + $0x30] sm:$0xf]
  %v842 = vld [vmem:[%s5 + $0x34] sm:$0xf]
  %v843 = vld [vmem:[%s5 + $0x38] sm:$0xf]
  %v844 = vld [vmem:[%s5 + $0x3c] sm:$0xf]
  %v853 = vunpack.c.l.b16 %v837
  %v854 = vunpack.c.l.b16 %v838
  %v855 = vunpack.c.l.b16 %v839
  %v856 = vunpack.c.l.b16 %v840
  %v857 = vunpack.c.l.b16 %v841
  %v858 = vunpack.c.l.b16 %v842
  %v859 = vunpack.c.l.b16 %v843
  %v860 = vunpack.c.l.b16 %v844
  %v861 = vpack.c.b16 %v854, %v853
  %v862 = vpack.c.b16 %v856, %v855
  %v863 = vpack.c.b16 %v858, %v857
  %v864 = vpack.c.b16 %v860, %v859
  %v870 = vsel %vm390, %v835, 0
  %v873 = vsel %vm390, %v836, 0
  %875 = vmatpush.bf16.msra.mxu0 0
  %876 = vmatpush.bf16.msra.mxu0 0
  %877 = vmatpush.bf16.msra.mxu0 0
  %878 = vmatpush.bf16.msra.mxu0 0
  %879 = vmatpush.bf16.msra.mxu0 %v864
  %880 = vmatpush.bf16.msra.mxu0 %v863
  %881 = vmatpush.bf16.msra.mxu0 %v862
  %882 = vmatpush.bf16.msra.mxu0 %v861
  %883 = vmatmul.bf16.gmra.mxu0 %v870
  %v884 = vpop.f32.mrf.mxu0
  %v885 = vadd.f32 0.0, %v884
  %v886 = vpop.f32.mrf.mxu0
  %v887 = vadd.f32 0.0, %v886
  %888 = vmatmul.bf16.gmra.mxu0 %v873
  %v889 = vpop.f32.mrf.mxu0
  %v890 = vadd.f32 0.0, %v889
  %v891 = vpop.f32.mrf.mxu0
  %v892 = vadd.f32 0.0, %v891
  %893 = vdwg.mxu0
  %v902 = vunpack.c.l.b16 %v659
  %v903 = vunpack.c.l.b16 %v660
  %v904 = vunpack.c.l.b16 %v661
  %v905 = vunpack.c.l.b16 %v662
  %v906 = vunpack.c.l.b16 %v663
  %v907 = vunpack.c.l.b16 %v664
  %v908 = vunpack.c.l.b16 %v665
  %v909 = vunpack.c.l.b16 %v666
  %v910 = vpack.c.b16 %v903, %v902
  %v911 = vpack.c.b16 %v905, %v904
  %v912 = vpack.c.b16 %v907, %v906
  %v913 = vpack.c.b16 %v909, %v908
  %v919 = vsel %vm390, %v657, 0
  %v922 = vsel %vm390, %v658, 0
  %924 = vmatpush.bf16.msra.mxu0 0
  %925 = vmatpush.bf16.msra.mxu0 0
  %926 = vmatpush.bf16.msra.mxu0 0
  %927 = vmatpush.bf16.msra.mxu0 0
  %928 = vmatpush.bf16.msra.mxu0 %v913
  %929 = vmatpush.bf16.msra.mxu0 %v912
  %930 = vmatpush.bf16.msra.mxu0 %v911
  %931 = vmatpush.bf16.msra.mxu0 %v910
  %932 = vmatmul.bf16.gmra.mxu0 %v919
  %v933 = vpop.f32.mrf.mxu0
  %v934 = vadd.f32 %v885, %v933
  %v935 = vpop.f32.mrf.mxu0
  %v936 = vadd.f32 %v887, %v935
  %937 = vmatmul.bf16.gmra.mxu0 %v922
  %v938 = vpop.f32.mrf.mxu0
  %v939 = vadd.f32 %v890, %v938
  %v940 = vpop.f32.mrf.mxu0
  %v941 = vadd.f32 %v892, %v940
  %942 = vdwg.mxu0
  %s943 = scalar_lea.vmem %s4, 128
  %v944 = vld [vmem:[%s943] sm:$0xf]
  %v945 = vld [vmem:[%s943 + $0x4] sm:$0xf]
  %v946 = vld [vmem:[%s943 + $0x8] sm:$0xf]
  %v947 = vld [vmem:[%s943 + $0xc] sm:$0xf]
  %s948 = scalar_lea.vmem %s4, 144
  %v949 = vld [vmem:[%s948] sm:$0xf]
  %v950 = vld [vmem:[%s948 + $0x4] sm:$0xf]
  %v951 = vld [vmem:[%s948 + $0x8] sm:$0xf]
  %v952 = vld [vmem:[%s948 + $0xc] sm:$0xf]
  %v957 = vunpack.c.l.b16 %v949
  %v958 = vunpack.c.l.b16 %v950
  %v959 = vunpack.c.l.b16 %v951
  %v960 = vunpack.c.l.b16 %v952
  %v961 = vpack.c.b16 %v958, %v957
  %v962 = vpack.c.b16 %v960, %v959
  %v964 = vsel %vm492, %v961, 0
  %v967 = vsel %vm492, %v962, 0
  %969 = vmatpush.bf16.msra.mxu0 0
  %970 = vmatpush.bf16.msra.mxu0 0
  %971 = vmatpush.bf16.msra.mxu0 0
  %972 = vmatpush.bf16.msra.mxu0 0
  %973 = vmatpush.bf16.msra.mxu0 0
  %974 = vmatpush.bf16.msra.mxu0 0
  %975 = vmatpush.bf16.msra.mxu0 0
  %976 = vmatpush.bf16.msra.mxu0 %v500
  %977 = vmatmul.bf16.gmra.mxu0 %v964
  %v978 = vpop.f32.mrf.mxu0
  %v979 = vadd.f32 0.0, %v978
  %v980 = vpop.f32.mrf.mxu0
  %v981 = vadd.f32 0.0, %v980
  %982 = vmatmul.bf16.gmra.mxu0 %v967
  %v983 = vpop.f32.mrf.mxu0
  %v984 = vadd.f32 0.0, %v983
  %v985 = vpop.f32.mrf.mxu0
  %v986 = vadd.f32 0.0, %v985
  %987 = vdwg.mxu0
  %v992 = vunpack.c.l.b16 %v944
  %v993 = vunpack.c.l.b16 %v945
  %v994 = vunpack.c.l.b16 %v946
  %v995 = vunpack.c.l.b16 %v947
  %v996 = vpack.c.b16 %v993, %v992
  %v997 = vpack.c.b16 %v995, %v994
  %v999 = vsel %vm492, %v996, 0
  %v1002 = vsel %vm492, %v997, 0
  %1004 = vmatpush.bf16.msra.mxu0 0
  %1005 = vmatpush.bf16.msra.mxu0 0
  %1006 = vmatpush.bf16.msra.mxu0 0
  %1007 = vmatpush.bf16.msra.mxu0 0
  %1008 = vmatpush.bf16.msra.mxu0 0
  %1009 = vmatpush.bf16.msra.mxu0 0
  %1010 = vmatpush.bf16.msra.mxu0 0
  %1011 = vmatpush.bf16.msra.mxu0 %v538
  %1012 = vmatmul.bf16.gmra.mxu0 %v999
  %v1013 = vpop.f32.mrf.mxu0
  %v1014 = vadd.f32 %v979, %v1013
  %v1015 = vpop.f32.mrf.mxu0
  %v1016 = vadd.f32 %v981, %v1015
  %1017 = vmatmul.bf16.gmra.mxu0 %v1002
  %v1018 = vpop.f32.mrf.mxu0
  %v1019 = vadd.f32 %v984, %v1018
  %v1020 = vpop.f32.mrf.mxu0
  %v1021 = vadd.f32 %v986, %v1020
  %1022 = vdwg.mxu0
  %s1023 = scalar_lea.vmem %s4, 160
  %v1024 = vld [vmem:[%s1023] sm:$0xf]
  %v1025 = vld [vmem:[%s1023 + $0x4] sm:$0xf]
  %v1026 = vld [vmem:[%s1023 + $0x8] sm:$0xf]
  %v1027 = vld [vmem:[%s1023 + $0xc] sm:$0xf]
  %v1032 = vunpack.c.l.b16 %v1024
  %v1033 = vunpack.c.l.b16 %v1025
  %v1034 = vunpack.c.l.b16 %v1026
  %v1035 = vunpack.c.l.b16 %v1027
  %v1036 = vpack.c.b16 %v1033, %v1032
  %v1037 = vpack.c.b16 %v1035, %v1034
  %v1039 = vsel %vm492, %v1036, 0
  %v1042 = vsel %vm492, %v1037, 0
  %1044 = vmatpush.bf16.msra.mxu0 0
  %1045 = vmatpush.bf16.msra.mxu0 0
  %1046 = vmatpush.bf16.msra.mxu0 0
  %1047 = vmatpush.bf16.msra.mxu0 0
  %1048 = vmatpush.bf16.msra.mxu0 0
  %1049 = vmatpush.bf16.msra.mxu0 0
  %1050 = vmatpush.bf16.msra.mxu0 0
  %1051 = vmatpush.bf16.msra.mxu0 %v583
  %1052 = vmatmul.bf16.gmra.mxu0 %v1039
  %v1053 = vpop.f32.mrf.mxu0
  %v1054 = vadd.f32 0.0, %v1053
  %v1055 = vpop.f32.mrf.mxu0
  %v1056 = vadd.f32 0.0, %v1055
  %1057 = vmatmul.bf16.gmra.mxu0 %v1042
  %v1058 = vpop.f32.mrf.mxu0
  %v1059 = vadd.f32 0.0, %v1058
  %v1060 = vpop.f32.mrf.mxu0
  %v1061 = vadd.f32 0.0, %v1060
  %1062 = vdwg.mxu0
  %v1063 = vadd.f32 %v1014, %v1054
  %v1064 = vadd.f32 %v1016, %v1056
  %v1065 = vadd.f32 %v1019, %v1059
  %v1066 = vadd.f32 %v1021, %v1061
  %s1067 = scalar_lea.vmem %s4, 176
  %v1068 = vld [vmem:[%s1067] sm:$0xf]
  %v1069 = vld [vmem:[%s1067 + $0x4] sm:$0xf]
  %v1070 = vld [vmem:[%s1067 + $0x8] sm:$0xf]
  %v1071 = vld [vmem:[%s1067 + $0xc] sm:$0xf]
  %v1076 = vunpack.c.l.b16 %v1068
  %v1077 = vunpack.c.l.b16 %v1069
  %v1078 = vunpack.c.l.b16 %v1070
  %v1079 = vunpack.c.l.b16 %v1071
  %v1080 = vpack.c.b16 %v1077, %v1076
  %v1081 = vpack.c.b16 %v1079, %v1078
  %v1083 = vsel %vm492, %v1080, 0
  %v1086 = vsel %vm492, %v1081, 0
  %1088 = vmatpush.bf16.msra.mxu0 0
  %1089 = vmatpush.bf16.msra.mxu0 0
  %1090 = vmatpush.bf16.msra.mxu0 0
  %1091 = vmatpush.bf16.msra.mxu0 0
  %1092 = vmatpush.bf16.msra.mxu0 0
  %1093 = vmatpush.bf16.msra.mxu0 0
  %1094 = vmatpush.bf16.msra.mxu0 0
  %1095 = vmatpush.bf16.msra.mxu0 %v632
  %1096 = vmatmul.bf16.gmra.mxu0 %v1083
  %v1097 = vpop.f32.mrf.mxu0
  %v1098 = vadd.f32 0.0, %v1097
  %v1099 = vpop.f32.mrf.mxu0
  %v1100 = vadd.f32 0.0, %v1099
  %1101 = vmatmul.bf16.gmra.mxu0 %v1086
  %v1102 = vpop.f32.mrf.mxu0
  %v1103 = vadd.f32 0.0, %v1102
  %v1104 = vpop.f32.mrf.mxu0
  %v1105 = vadd.f32 0.0, %v1104
  %1106 = vdwg.mxu0
  %v1107 = vadd.f32 %v1063, %v1098
  %v1108 = vadd.f32 %v1064, %v1100
  %v1109 = vadd.f32 %v1065, %v1103
  %v1110 = vadd.f32 %v1066, %v1105
  %v1111 = vpack.c.bf16 %v1108, %v1107
  %v1112 = vpack.c.bf16 %v1110, %v1109
  %v1113 = vld [vmem:[%s5 + $0x40] sm:$0xf]
  %v1114 = vld [vmem:[%s5 + $0x44] sm:$0xf]
  %v1115 = vld [vmem:[%s5 + $0x48] sm:$0xf]
  %v1116 = vld [vmem:[%s5 + $0x4c] sm:$0xf]
  %v1117 = vld [vmem:[%s5 + $0x50] sm:$0xf]
  %v1118 = vld [vmem:[%s5 + $0x54] sm:$0xf]
  %v1119 = vld [vmem:[%s5 + $0x58] sm:$0xf]
  %v1120 = vld [vmem:[%s5 + $0x5c] sm:$0xf]
  %v1129 = vunpack.c.l.b16 %v1113
  %v1130 = vunpack.c.l.b16 %v1114
  %v1131 = vunpack.c.l.b16 %v1115
  %v1132 = vunpack.c.l.b16 %v1116
  %v1133 = vunpack.c.l.b16 %v1117
  %v1134 = vunpack.c.l.b16 %v1118
  %v1135 = vunpack.c.l.b16 %v1119
  %v1136 = vunpack.c.l.b16 %v1120
  %v1137 = vpack.c.b16 %v1130, %v1129
  %v1138 = vpack.c.b16 %v1132, %v1131
  %v1139 = vpack.c.b16 %v1134, %v1133
  %v1140 = vpack.c.b16 %v1136, %v1135
  %v1146 = vsel %vm390, %v1111, 0
  %v1149 = vsel %vm390, %v1112, 0
  %1151 = vmatpush.bf16.msra.mxu0 0
  %1152 = vmatpush.bf16.msra.mxu0 0
  %1153 = vmatpush.bf16.msra.mxu0 0
  %1154 = vmatpush.bf16.msra.mxu0 0
  %1155 = vmatpush.bf16.msra.mxu0 %v1140
  %1156 = vmatpush.bf16.msra.mxu0 %v1139
  %1157 = vmatpush.bf16.msra.mxu0 %v1138
  %1158 = vmatpush.bf16.msra.mxu0 %v1137
  %1159 = vmatmul.bf16.gmra.mxu0 %v1146
  %v1160 = vpop.f32.mrf.mxu0
  %v1161 = vadd.f32 0.0, %v1160
  %v1162 = vpop.f32.mrf.mxu0
  %v1163 = vadd.f32 0.0, %v1162
  %1164 = vmatmul.bf16.gmra.mxu0 %v1149
  %v1165 = vpop.f32.mrf.mxu0
  %v1166 = vadd.f32 0.0, %v1165
  %v1167 = vpop.f32.mrf.mxu0
  %v1168 = vadd.f32 0.0, %v1167
  %1169 = vdwg.mxu0
  %v1170 = vadd.f32 %v934, %v1161
  %v1171 = vadd.f32 %v936, %v1163
  %v1172 = vadd.f32 %v939, %v1166
  %v1173 = vadd.f32 %v941, %v1168
  %s1174 = scalar_lea.vmem %s4, 192
  %v1175 = vld [vmem:[%s1174] sm:$0xf]
  %v1176 = vld [vmem:[%s1174 + $0x4] sm:$0xf]
  %v1177 = vld [vmem:[%s1174 + $0x8] sm:$0xf]
  %v1178 = vld [vmem:[%s1174 + $0xc] sm:$0xf]
  %s1179 = scalar_lea.vmem %s4, 208
  %v1180 = vld [vmem:[%s1179] sm:$0xf]
  %v1181 = vld [vmem:[%s1179 + $0x4] sm:$0xf]
  %v1182 = vld [vmem:[%s1179 + $0x8] sm:$0xf]
  %v1183 = vld [vmem:[%s1179 + $0xc] sm:$0xf]
  %v1188 = vunpack.c.l.b16 %v1180
  %v1189 = vunpack.c.l.b16 %v1181
  %v1190 = vunpack.c.l.b16 %v1182
  %v1191 = vunpack.c.l.b16 %v1183
  %v1192 = vpack.c.b16 %v1189, %v1188
  %v1193 = vpack.c.b16 %v1191, %v1190
  %v1195 = vsel %vm492, %v1192, 0
  %v1198 = vsel %vm492, %v1193, 0
  %1200 = vmatpush.bf16.msra.mxu0 0
  %1201 = vmatpush.bf16.msra.mxu0 0
  %1202 = vmatpush.bf16.msra.mxu0 0
  %1203 = vmatpush.bf16.msra.mxu0 0
  %1204 = vmatpush.bf16.msra.mxu0 0
  %1205 = vmatpush.bf16.msra.mxu0 0
  %1206 = vmatpush.bf16.msra.mxu0 0
  %1207 = vmatpush.bf16.msra.mxu0 %v500
  %1208 = vmatmul.bf16.gmra.mxu0 %v1195
  %v1209 = vpop.f32.mrf.mxu0
  %v1210 = vadd.f32 0.0, %v1209
  %v1211 = vpop.f32.mrf.mxu0
  %v1212 = vadd.f32 0.0, %v1211
  %1213 = vmatmul.bf16.gmra.mxu0 %v1198
  %v1214 = vpop.f32.mrf.mxu0
  %v1215 = vadd.f32 0.0, %v1214
  %v1216 = vpop.f32.mrf.mxu0
  %v1217 = vadd.f32 0.0, %v1216
  %1218 = vdwg.mxu0
  %v1223 = vunpack.c.l.b16 %v1175
  %v1224 = vunpack.c.l.b16 %v1176
  %v1225 = vunpack.c.l.b16 %v1177
  %v1226 = vunpack.c.l.b16 %v1178
  %v1227 = vpack.c.b16 %v1224, %v1223
  %v1228 = vpack.c.b16 %v1226, %v1225
  %v1230 = vsel %vm492, %v1227, 0
  %v1233 = vsel %vm492, %v1228, 0
  %1235 = vmatpush.bf16.msra.mxu0 0
  %1236 = vmatpush.bf16.msra.mxu0 0
  %1237 = vmatpush.bf16.msra.mxu0 0
  %1238 = vmatpush.bf16.msra.mxu0 0
  %1239 = vmatpush.bf16.msra.mxu0 0
  %1240 = vmatpush.bf16.msra.mxu0 0
  %1241 = vmatpush.bf16.msra.mxu0 0
  %1242 = vmatpush.bf16.msra.mxu0 %v538
  %1243 = vmatmul.bf16.gmra.mxu0 %v1230
  %v1244 = vpop.f32.mrf.mxu0
  %v1245 = vadd.f32 %v1210, %v1244
  %v1246 = vpop.f32.mrf.mxu0
  %v1247 = vadd.f32 %v1212, %v1246
  %1248 = vmatmul.bf16.gmra.mxu0 %v1233
  %v1249 = vpop.f32.mrf.mxu0
  %v1250 = vadd.f32 %v1215, %v1249
  %v1251 = vpop.f32.mrf.mxu0
  %v1252 = vadd.f32 %v1217, %v1251
  %1253 = vdwg.mxu0
  %s1254 = scalar_lea.vmem %s4, 224
  %v1255 = vld [vmem:[%s1254] sm:$0xf]
  %v1256 = vld [vmem:[%s1254 + $0x4] sm:$0xf]
  %v1257 = vld [vmem:[%s1254 + $0x8] sm:$0xf]
  %v1258 = vld [vmem:[%s1254 + $0xc] sm:$0xf]
  %v1263 = vunpack.c.l.b16 %v1255
  %v1264 = vunpack.c.l.b16 %v1256
  %v1265 = vunpack.c.l.b16 %v1257
  %v1266 = vunpack.c.l.b16 %v1258
  %v1267 = vpack.c.b16 %v1264, %v1263
  %v1268 = vpack.c.b16 %v1266, %v1265
  %v1270 = vsel %vm492, %v1267, 0
  %v1273 = vsel %vm492, %v1268, 0
  %1275 = vmatpush.bf16.msra.mxu0 0
  %1276 = vmatpush.bf16.msra.mxu0 0
  %1277 = vmatpush.bf16.msra.mxu0 0
  %1278 = vmatpush.bf16.msra.mxu0 0
  %1279 = vmatpush.bf16.msra.mxu0 0
  %1280 = vmatpush.bf16.msra.mxu0 0
  %1281 = vmatpush.bf16.msra.mxu0 0
  %1282 = vmatpush.bf16.msra.mxu0 %v583
  %1283 = vmatmul.bf16.gmra.mxu0 %v1270
  %v1284 = vpop.f32.mrf.mxu0
  %v1285 = vadd.f32 0.0, %v1284
  %v1286 = vpop.f32.mrf.mxu0
  %v1287 = vadd.f32 0.0, %v1286
  %1288 = vmatmul.bf16.gmra.mxu0 %v1273
  %v1289 = vpop.f32.mrf.mxu0
  %v1290 = vadd.f32 0.0, %v1289
  %v1291 = vpop.f32.mrf.mxu0
  %v1292 = vadd.f32 0.0, %v1291
  %1293 = vdwg.mxu0
  %v1294 = vadd.f32 %v1245, %v1285
  %v1295 = vadd.f32 %v1247, %v1287
  %v1296 = vadd.f32 %v1250, %v1290
  %v1297 = vadd.f32 %v1252, %v1292
  %s1298 = scalar_lea.vmem %s4, 240
  %v1299 = vld [vmem:[%s1298] sm:$0xf]
  %v1300 = vld [vmem:[%s1298 + $0x4] sm:$0xf]
  %v1301 = vld [vmem:[%s1298 + $0x8] sm:$0xf]
  %v1302 = vld [vmem:[%s1298 + $0xc] sm:$0xf]
  %v1307 = vunpack.c.l.b16 %v1299
  %v1308 = vunpack.c.l.b16 %v1300
  %v1309 = vunpack.c.l.b16 %v1301
  %v1310 = vunpack.c.l.b16 %v1302
  %v1311 = vpack.c.b16 %v1308, %v1307
  %v1312 = vpack.c.b16 %v1310, %v1309
  %v1314 = vsel %vm492, %v1311, 0
  %v1317 = vsel %vm492, %v1312, 0
  %1319 = vmatpush.bf16.msra.mxu0 0
  %1320 = vmatpush.bf16.msra.mxu0 0
  %1321 = vmatpush.bf16.msra.mxu0 0
  %1322 = vmatpush.bf16.msra.mxu0 0
  %1323 = vmatpush.bf16.msra.mxu0 0
  %1324 = vmatpush.bf16.msra.mxu0 0
  %1325 = vmatpush.bf16.msra.mxu0 0
  %1326 = vmatpush.bf16.msra.mxu0 %v632
  %1327 = vmatmul.bf16.gmra.mxu0 %v1314
  %v1328 = vpop.f32.mrf.mxu0
  %v1329 = vadd.f32 0.0, %v1328
  %v1330 = vpop.f32.mrf.mxu0
  %v1331 = vadd.f32 0.0, %v1330
  %1332 = vmatmul.bf16.gmra.mxu0 %v1317
  %v1333 = vpop.f32.mrf.mxu0
  %v1334 = vadd.f32 0.0, %v1333
  %v1335 = vpop.f32.mrf.mxu0
  %v1336 = vadd.f32 0.0, %v1335
  %1337 = vdwg.mxu0
  %v1338 = vadd.f32 %v1294, %v1329
  %v1339 = vadd.f32 %v1295, %v1331
  %v1340 = vadd.f32 %v1296, %v1334
  %v1341 = vadd.f32 %v1297, %v1336
  %v1342 = vpack.c.bf16 %v1339, %v1338
  %v1343 = vpack.c.bf16 %v1341, %v1340
  %v1344 = vld [vmem:[%s5 + $0x60] sm:$0xf]
  %v1345 = vld [vmem:[%s5 + $0x64] sm:$0xf]
  %v1346 = vld [vmem:[%s5 + $0x68] sm:$0xf]
  %v1347 = vld [vmem:[%s5 + $0x6c] sm:$0xf]
  %v1348 = vld [vmem:[%s5 + $0x70] sm:$0xf]
  %v1349 = vld [vmem:[%s5 + $0x74] sm:$0xf]
  %v1350 = vld [vmem:[%s5 + $0x78] sm:$0xf]
  %v1351 = vld [vmem:[%s5 + $0x7c] sm:$0xf]
  %v1360 = vunpack.c.l.b16 %v1344
  %v1361 = vunpack.c.l.b16 %v1345
  %v1362 = vunpack.c.l.b16 %v1346
  %v1363 = vunpack.c.l.b16 %v1347
  %v1364 = vunpack.c.l.b16 %v1348
  %v1365 = vunpack.c.l.b16 %v1349
  %v1366 = vunpack.c.l.b16 %v1350
  %v1367 = vunpack.c.l.b16 %v1351
  %v1368 = vpack.c.b16 %v1361, %v1360
  %v1369 = vpack.c.b16 %v1363, %v1362
  %v1370 = vpack.c.b16 %v1365, %v1364
  %v1371 = vpack.c.b16 %v1367, %v1366
  %v1377 = vsel %vm390, %v1342, 0
  %v1380 = vsel %vm390, %v1343, 0
  %1382 = vmatpush.bf16.msra.mxu0 0
  %1383 = vmatpush.bf16.msra.mxu0 0
  %1384 = vmatpush.bf16.msra.mxu0 0
  %1385 = vmatpush.bf16.msra.mxu0 0
  %1386 = vmatpush.bf16.msra.mxu0 %v1371
  %1387 = vmatpush.bf16.msra.mxu0 %v1370
  %1388 = vmatpush.bf16.msra.mxu0 %v1369
  %1389 = vmatpush.bf16.msra.mxu0 %v1368
  %1390 = vmatmul.bf16.gmra.mxu0 %v1377
  %v1391 = vpop.f32.mrf.mxu0
  %v1392 = vadd.f32 0.0, %v1391
  %v1393 = vpop.f32.mrf.mxu0
  %v1394 = vadd.f32 0.0, %v1393
  %1395 = vmatmul.bf16.gmra.mxu0 %v1380
  %v1396 = vpop.f32.mrf.mxu0
  %v1397 = vadd.f32 0.0, %v1396
  %v1398 = vpop.f32.mrf.mxu0
  %v1399 = vadd.f32 0.0, %v1398
  %1400 = vdwg.mxu0
  %v1401 = vadd.f32 %v1170, %v1392
  %v1402 = vadd.f32 %v1171, %v1394
  %v1403 = vadd.f32 %v1172, %v1397
  %v1404 = vadd.f32 %v1173, %v1399
  %v1405 = vld [vmem:[%s6] sm:$0x3]
  %v1406 = vadd.f32 %v1401, %v1402
  %v1407 = vadd.f32 %v1406, %v1403
  %v1408 = vadd.f32 %v1407, %v1404
  %v1409 = vrot.slane %v1408, 4
  %v1410 = vadd.f32 %v1408, %v1409
  %v1411 = vrot.slane %v1410, 2
  %v1412 = vadd.f32 %v1410, %v1411
  %v1413 = vrot.slane %v1412, 1
  %v1414 = vadd.f32 %v1412, %v1413
  %1416 = vrot.lane.b32.xlu0 %v1414, 96
  %v1417 = vpop.permute.xlu0 %1416
  %v1419 = vadd.f32 %v1414, %v1417
  %1420 = vrot.lane.b32.xlu0 %v1414, 64
  %v1421 = vpop.permute.xlu0 %1420
  %v1423 = vadd.f32 %v1419, %v1421
  %1424 = vrot.lane.b32.xlu0 %v1414, 32
  %v1425 = vpop.permute.xlu0 %1424
  %v1427 = vadd.f32 %v1423, %v1425
  %1429 = vrot.lane.b32.xlu0 %v1427, 32
  %v1430 = vpop.permute.xlu0 %1429
  %1432 = vrot.lane.b32.xlu0 %v1427, 64
  %v1433 = vpop.permute.xlu0 %1432
  %1435 = vrot.lane.b32.xlu0 %v1427, 96
  %v1436 = vpop.permute.xlu0 %1435
  %v1438 = vsel %vm279, %v1427, %v1430
  %v1439 = vsel %vm390, %v1438, %v1433
  %vm1440 = vcmask 785408
  %v1441 = vsel %vm1440, %v1439, %v1436
  %v1442 = vmul.f32 %v1441, 0.0078125
  %v1443 = vperm.slane %v1442, 0
  %v1444 = vsub.f32 %v1401, %v1443
  %v1445 = vsub.f32 %v1402, %v1443
  %v1446 = vsub.f32 %v1403, %v1443
  %v1447 = vsub.f32 %v1404, %v1443
  %v1448 = vmul.f32 %v1444, %v1444
  %v1449 = vmul.f32 %v1445, %v1445
  %v1450 = vmul.f32 %v1446, %v1446
  %v1451 = vmul.f32 %v1447, %v1447
  %v1452 = vadd.f32 %v1448, %v1449
  %v1453 = vadd.f32 %v1452, %v1450
  %v1454 = vadd.f32 %v1453, %v1451
  %v1455 = vrot.slane %v1454, 4
  %v1456 = vadd.f32 %v1454, %v1455
  %v1457 = vrot.slane %v1456, 2
  %v1458 = vadd.f32 %v1456, %v1457
  %v1459 = vrot.slane %v1458, 1
  %v1460 = vadd.f32 %v1458, %v1459
  %1462 = vrot.lane.b32.xlu0 %v1460, 96
  %v1463 = vpop.permute.xlu0 %1462
  %v1465 = vadd.f32 %v1460, %v1463
  %1466 = vrot.lane.b32.xlu0 %v1460, 64
  %v1467 = vpop.permute.xlu0 %1466
  %v1469 = vadd.f32 %v1465, %v1467
  %1470 = vrot.lane.b32.xlu0 %v1460, 32
  %v1471 = vpop.permute.xlu0 %1470
  %v1473 = vadd.f32 %v1469, %v1471
  %1475 = vrot.lane.b32.xlu0 %v1473, 32
  %v1476 = vpop.permute.xlu0 %1475
  %1478 = vrot.lane.b32.xlu0 %v1473, 64
  %v1479 = vpop.permute.xlu0 %1478
  %1481 = vrot.lane.b32.xlu0 %v1473, 96
  %v1482 = vpop.permute.xlu0 %1481
  %v1484 = vsel %vm279, %v1473, %v1476
  %v1485 = vsel %vm390, %v1484, %v1479
  %v1486 = vsel %vm1440, %v1485, %v1482
  %v1487 = vmul.f32 %v1486, 0.0078125
  %v1488 = vadd.f32 %v1487, 1e-05
  %v1489 = vrsqrt.pop %v1488
  %v1490 = vmul.f32 %v1489, %v1488
  %v1491 = vmul.f32 %v1490, %v1489
  %v1492 = vmul.f32 0.5, %v1491
  %v1493 = vsub.f32 1.5, %v1492
  %v1494 = vmul.f32 %v1489, %v1493
  %vm1495 = vweird.f32 %v1488
  %vm1496 = vweird.f32 %v1489
  %vm1497 = vmor %vm1495, %vm1496
  %v1498 = vsel %vm1497, %v1489, %v1494
  %v1499 = vmul.f32 %v1405, %v1498
  %v1500 = vperm.slane %v1499, 0
  %v1501 = vmul.f32 %v1444, %v1500
  %v1502 = vmul.f32 %v1445, %v1500
  %v1503 = vmul.f32 %v1446, %v1500
  %v1504 = vmul.f32 %v1447, %v1500
  %v1505 = vperm.slane %v1405, 1
  %v1506 = vadd.f32 %v1501, %v1505
  %v1507 = vadd.f32 %v1502, %v1505
  %v1508 = vadd.f32 %v1503, %v1505
  %v1509 = vadd.f32 %v1504, %v1505
  %vm1510 = vcmp.gt.f32.partialorder %v1506, 0.0
  %vm1511 = vcmp.gt.f32.partialorder %v1507, 0.0
  %vm1512 = vcmp.gt.f32.partialorder %v1508, 0.0
  %vm1513 = vcmp.gt.f32.partialorder %v1509, 0.0
  %v1514 = vmul.f32 %v1506, 0.01
  %v1515 = vmul.f32 %v1507, 0.01
  %v1516 = vmul.f32 %v1508, 0.01
  %v1517 = vmul.f32 %v1509, 0.01
  %v1518 = vsel %vm1510, %v1506, %v1514
  %v1519 = vsel %vm1511, %v1507, %v1515
  %v1520 = vsel %vm1512, %v1508, %v1516
  %v1521 = vsel %vm1513, %v1509, %v1517
  %v1522 = vpack.c.bf16 %v1518, %v1518
  %v1523 = vpack.c.bf16 %v1519, %v1519
  %v1524 = vpack.c.bf16 %v1520, %v1520
  %v1525 = vpack.c.bf16 %v1521, %v1521
  %v1526 = vld [vmem:[%s7] sm:$0xf]
  %v1527 = vld [vmem:[%s7 + $0x4] sm:$0xf]
  %v1528 = vld [vmem:[%s7 + $0x8] sm:$0xf]
  %v1529 = vld [vmem:[%s7 + $0xc] sm:$0xf]
  %v1530 = vld [vmem:[%s7 + $0x10] sm:$0xf]
  %v1531 = vld [vmem:[%s7 + $0x14] sm:$0xf]
  %v1532 = vld [vmem:[%s7 + $0x18] sm:$0xf]
  %v1533 = vld [vmem:[%s7 + $0x1c] sm:$0xf]
  %v1534 = vld [vmem:[%s7 + $0x20] sm:$0xf]
  %v1535 = vld [vmem:[%s7 + $0x24] sm:$0xf]
  %v1536 = vld [vmem:[%s7 + $0x28] sm:$0xf]
  %v1537 = vld [vmem:[%s7 + $0x2c] sm:$0xf]
  %v1538 = vld [vmem:[%s7 + $0x30] sm:$0xf]
  %v1539 = vld [vmem:[%s7 + $0x34] sm:$0xf]
  %v1540 = vld [vmem:[%s7 + $0x38] sm:$0xf]
  %v1541 = vld [vmem:[%s7 + $0x3c] sm:$0xf]
  %s1542 = scalar_lea.vmem %s7, 64
  %v1543 = vld [vmem:[%s1542] sm:$0xf]
  %v1544 = vld [vmem:[%s1542 + $0x4] sm:$0xf]
  %v1545 = vld [vmem:[%s1542 + $0x8] sm:$0xf]
  %v1546 = vld [vmem:[%s1542 + $0xc] sm:$0xf]
  %v1547 = vld [vmem:[%s1542 + $0x10] sm:$0xf]
  %v1548 = vld [vmem:[%s1542 + $0x14] sm:$0xf]
  %v1549 = vld [vmem:[%s1542 + $0x18] sm:$0xf]
  %v1550 = vld [vmem:[%s1542 + $0x1c] sm:$0xf]
  %v1551 = vld [vmem:[%s1542 + $0x20] sm:$0xf]
  %v1552 = vld [vmem:[%s1542 + $0x24] sm:$0xf]
  %v1553 = vld [vmem:[%s1542 + $0x28] sm:$0xf]
  %v1554 = vld [vmem:[%s1542 + $0x2c] sm:$0xf]
  %v1555 = vld [vmem:[%s1542 + $0x30] sm:$0xf]
  %v1556 = vld [vmem:[%s1542 + $0x34] sm:$0xf]
  %v1557 = vld [vmem:[%s1542 + $0x38] sm:$0xf]
  %v1558 = vld [vmem:[%s1542 + $0x3c] sm:$0xf]
  %v1575 = vunpack.c.l.b16 %v1543
  %v1576 = vunpack.c.l.b16 %v1544
  %v1577 = vunpack.c.l.b16 %v1545
  %v1578 = vunpack.c.l.b16 %v1546
  %v1579 = vunpack.c.l.b16 %v1547
  %v1580 = vunpack.c.l.b16 %v1548
  %v1581 = vunpack.c.l.b16 %v1549
  %v1582 = vunpack.c.l.b16 %v1550
  %v1583 = vunpack.c.l.b16 %v1551
  %v1584 = vunpack.c.l.b16 %v1552
  %v1585 = vunpack.c.l.b16 %v1553
  %v1586 = vunpack.c.l.b16 %v1554
  %v1587 = vunpack.c.l.b16 %v1555
  %v1588 = vunpack.c.l.b16 %v1556
  %v1589 = vunpack.c.l.b16 %v1557
  %v1590 = vunpack.c.l.b16 %v1558
  %v1591 = vpack.c.b16 %v1576, %v1575
  %v1592 = vpack.c.b16 %v1578, %v1577
  %v1593 = vpack.c.b16 %v1580, %v1579
  %v1594 = vpack.c.b16 %v1582, %v1581
  %v1595 = vpack.c.b16 %v1584, %v1583
  %v1596 = vpack.c.b16 %v1586, %v1585
  %v1597 = vpack.c.b16 %v1588, %v1587
  %v1598 = vpack.c.b16 %v1590, %v1589
  %v1603 = vunpack.c.l.b16 %v1522
  %v1604 = vunpack.c.l.b16 %v1523
  %v1605 = vunpack.c.l.b16 %v1524
  %v1606 = vunpack.c.l.b16 %v1525
  %v1607 = vpack.c.b16 %v1604, %v1603
  %v1608 = vpack.c.b16 %v1606, %v1605
  %1609 = vrot.lane.b32.xlu0 %v1607, 96
  %v1610 = vpop.permute.xlu0 %1609
  %1611 = vrot.lane.b32.xlu0 %v1608, 96
  %v1612 = vpop.permute.xlu0 %1611
  %v1616 = vsel %vm279, %v1591, 0
  %v1619 = vsel %vm279, %v1592, 0
  %v1622 = vsel %vm279, %v1593, 0
  %v1625 = vsel %vm279, %v1594, 0
  %v1628 = vsel %vm279, %v1595, 0
  %v1631 = vsel %vm279, %v1596, 0
  %v1634 = vsel %vm279, %v1597, 0
  %v1637 = vsel %vm279, %v1598, 0
  %1639 = vmatpush.bf16.msra.mxu0 0
  %1640 = vmatpush.bf16.msra.mxu0 0
  %1641 = vmatpush.bf16.msra.mxu0 0
  %1642 = vmatpush.bf16.msra.mxu0 0
  %1643 = vmatpush.bf16.msra.mxu0 0
  %1644 = vmatpush.bf16.msra.mxu0 0
  %1645 = vmatpush.bf16.msra.mxu0 %v1612
  %1646 = vmatpush.bf16.msra.mxu0 %v1610
  %1647 = vmatmul.bf16.gmra.mxu0 %v1616
  %v1648 = vpop.f32.mrf.mxu0
  %v1649 = vadd.f32 0.0, %v1648
  %v1650 = vpop.f32.mrf.mxu0
  %v1651 = vadd.f32 0.0, %v1650
  %1652 = vmatmul.bf16.gmra.mxu0 %v1619
  %v1653 = vpop.f32.mrf.mxu0
  %v1654 = vadd.f32 0.0, %v1653
  %v1655 = vpop.f32.mrf.mxu0
  %v1656 = vadd.f32 0.0, %v1655
  %1657 = vmatmul.bf16.gmra.mxu0 %v1622
  %v1658 = vpop.f32.mrf.mxu0
  %v1659 = vadd.f32 0.0, %v1658
  %v1660 = vpop.f32.mrf.mxu0
  %v1661 = vadd.f32 0.0, %v1660
  %1662 = vmatmul.bf16.gmra.mxu0 %v1625
  %v1663 = vpop.f32.mrf.mxu0
  %v1664 = vadd.f32 0.0, %v1663
  %v1665 = vpop.f32.mrf.mxu0
  %v1666 = vadd.f32 0.0, %v1665
  %1667 = vmatmul.bf16.gmra.mxu0 %v1628
  %v1668 = vpop.f32.mrf.mxu0
  %v1669 = vadd.f32 0.0, %v1668
  %v1670 = vpop.f32.mrf.mxu0
  %v1671 = vadd.f32 0.0, %v1670
  %1672 = vmatmul.bf16.gmra.mxu0 %v1631
  %v1673 = vpop.f32.mrf.mxu0
  %v1674 = vadd.f32 0.0, %v1673
  %v1675 = vpop.f32.mrf.mxu0
  %v1676 = vadd.f32 0.0, %v1675
  %1677 = vmatmul.bf16.gmra.mxu0 %v1634
  %v1678 = vpop.f32.mrf.mxu0
  %v1679 = vadd.f32 0.0, %v1678
  %v1680 = vpop.f32.mrf.mxu0
  %v1681 = vadd.f32 0.0, %v1680
  %1682 = vmatmul.bf16.gmra.mxu0 %v1637
  %v1683 = vpop.f32.mrf.mxu0
  %v1684 = vadd.f32 0.0, %v1683
  %v1685 = vpop.f32.mrf.mxu0
  %v1686 = vadd.f32 0.0, %v1685
  %1687 = vdwg.mxu0
  %v1704 = vunpack.c.l.b16 %v1526
  %v1705 = vunpack.c.l.b16 %v1527
  %v1706 = vunpack.c.l.b16 %v1528
  %v1707 = vunpack.c.l.b16 %v1529
  %v1708 = vunpack.c.l.b16 %v1530
  %v1709 = vunpack.c.l.b16 %v1531
  %v1710 = vunpack.c.l.b16 %v1532
  %v1711 = vunpack.c.l.b16 %v1533
  %v1712 = vunpack.c.l.b16 %v1534
  %v1713 = vunpack.c.l.b16 %v1535
  %v1714 = vunpack.c.l.b16 %v1536
  %v1715 = vunpack.c.l.b16 %v1537
  %v1716 = vunpack.c.l.b16 %v1538
  %v1717 = vunpack.c.l.b16 %v1539
  %v1718 = vunpack.c.l.b16 %v1540
  %v1719 = vunpack.c.l.b16 %v1541
  %v1720 = vpack.c.b16 %v1705, %v1704
  %v1721 = vpack.c.b16 %v1707, %v1706
  %v1722 = vpack.c.b16 %v1709, %v1708
  %v1723 = vpack.c.b16 %v1711, %v1710
  %v1724 = vpack.c.b16 %v1713, %v1712
  %v1725 = vpack.c.b16 %v1715, %v1714
  %v1726 = vpack.c.b16 %v1717, %v1716
  %v1727 = vpack.c.b16 %v1719, %v1718
  %v1731 = vsel %vm279, %v1720, 0
  %v1734 = vsel %vm279, %v1721, 0
  %v1737 = vsel %vm279, %v1722, 0
  %v1740 = vsel %vm279, %v1723, 0
  %v1743 = vsel %vm279, %v1724, 0
  %v1746 = vsel %vm279, %v1725, 0
  %v1749 = vsel %vm279, %v1726, 0
  %v1752 = vsel %vm279, %v1727, 0
  %1754 = vmatpush.bf16.msra.mxu0 0
  %1755 = vmatpush.bf16.msra.mxu0 0
  %1756 = vmatpush.bf16.msra.mxu0 0
  %1757 = vmatpush.bf16.msra.mxu0 0
  %1758 = vmatpush.bf16.msra.mxu0 0
  %1759 = vmatpush.bf16.msra.mxu0 0
  %1760 = vmatpush.bf16.msra.mxu0 %v1608
  %1761 = vmatpush.bf16.msra.mxu0 %v1607
  %1762 = vmatmul.bf16.gmra.mxu0 %v1731
  %v1763 = vpop.f32.mrf.mxu0
  %v1764 = vadd.f32 %v1649, %v1763
  %v1765 = vpop.f32.mrf.mxu0
  %v1766 = vadd.f32 %v1651, %v1765
  %1767 = vmatmul.bf16.gmra.mxu0 %v1734
  %v1768 = vpop.f32.mrf.mxu0
  %v1769 = vadd.f32 %v1654, %v1768
  %v1770 = vpop.f32.mrf.mxu0
  %v1771 = vadd.f32 %v1656, %v1770
  %1772 = vmatmul.bf16.gmra.mxu0 %v1737
  %v1773 = vpop.f32.mrf.mxu0
  %v1774 = vadd.f32 %v1659, %v1773
  %v1775 = vpop.f32.mrf.mxu0
  %v1776 = vadd.f32 %v1661, %v1775
  %1777 = vmatmul.bf16.gmra.mxu0 %v1740
  %v1778 = vpop.f32.mrf.mxu0
  %v1779 = vadd.f32 %v1664, %v1778
  %v1780 = vpop.f32.mrf.mxu0
  %v1781 = vadd.f32 %v1666, %v1780
  %1782 = vmatmul.bf16.gmra.mxu0 %v1743
  %v1783 = vpop.f32.mrf.mxu0
  %v1784 = vadd.f32 %v1669, %v1783
  %v1785 = vpop.f32.mrf.mxu0
  %v1786 = vadd.f32 %v1671, %v1785
  %1787 = vmatmul.bf16.gmra.mxu0 %v1746
  %v1788 = vpop.f32.mrf.mxu0
  %v1789 = vadd.f32 %v1674, %v1788
  %v1790 = vpop.f32.mrf.mxu0
  %v1791 = vadd.f32 %v1676, %v1790
  %1792 = vmatmul.bf16.gmra.mxu0 %v1749
  %v1793 = vpop.f32.mrf.mxu0
  %v1794 = vadd.f32 %v1679, %v1793
  %v1795 = vpop.f32.mrf.mxu0
  %v1796 = vadd.f32 %v1681, %v1795
  %1797 = vmatmul.bf16.gmra.mxu0 %v1752
  %v1798 = vpop.f32.mrf.mxu0
  %v1799 = vadd.f32 %v1684, %v1798
  %v1800 = vpop.f32.mrf.mxu0
  %v1801 = vadd.f32 %v1686, %v1800
  %1802 = vdwg.mxu0
  %s1803 = scalar_lea.vmem %s7, 128
  %v1804 = vld [vmem:[%s1803] sm:$0xf]
  %v1805 = vld [vmem:[%s1803 + $0x4] sm:$0xf]
  %v1806 = vld [vmem:[%s1803 + $0x8] sm:$0xf]
  %v1807 = vld [vmem:[%s1803 + $0xc] sm:$0xf]
  %v1808 = vld [vmem:[%s1803 + $0x10] sm:$0xf]
  %v1809 = vld [vmem:[%s1803 + $0x14] sm:$0xf]
  %v1810 = vld [vmem:[%s1803 + $0x18] sm:$0xf]
  %v1811 = vld [vmem:[%s1803 + $0x1c] sm:$0xf]
  %v1812 = vld [vmem:[%s1803 + $0x20] sm:$0xf]
  %v1813 = vld [vmem:[%s1803 + $0x24] sm:$0xf]
  %v1814 = vld [vmem:[%s1803 + $0x28] sm:$0xf]
  %v1815 = vld [vmem:[%s1803 + $0x2c] sm:$0xf]
  %v1816 = vld [vmem:[%s1803 + $0x30] sm:$0xf]
  %v1817 = vld [vmem:[%s1803 + $0x34] sm:$0xf]
  %v1818 = vld [vmem:[%s1803 + $0x38] sm:$0xf]
  %v1819 = vld [vmem:[%s1803 + $0x3c] sm:$0xf]
  %v1836 = vunpack.c.l.b16 %v1804
  %v1837 = vunpack.c.l.b16 %v1805
  %v1838 = vunpack.c.l.b16 %v1806
  %v1839 = vunpack.c.l.b16 %v1807
  %v1840 = vunpack.c.l.b16 %v1808
  %v1841 = vunpack.c.l.b16 %v1809
  %v1842 = vunpack.c.l.b16 %v1810
  %v1843 = vunpack.c.l.b16 %v1811
  %v1844 = vunpack.c.l.b16 %v1812
  %v1845 = vunpack.c.l.b16 %v1813
  %v1846 = vunpack.c.l.b16 %v1814
  %v1847 = vunpack.c.l.b16 %v1815
  %v1848 = vunpack.c.l.b16 %v1816
  %v1849 = vunpack.c.l.b16 %v1817
  %v1850 = vunpack.c.l.b16 %v1818
  %v1851 = vunpack.c.l.b16 %v1819
  %v1852 = vpack.c.b16 %v1837, %v1836
  %v1853 = vpack.c.b16 %v1839, %v1838
  %v1854 = vpack.c.b16 %v1841, %v1840
  %v1855 = vpack.c.b16 %v1843, %v1842
  %v1856 = vpack.c.b16 %v1845, %v1844
  %v1857 = vpack.c.b16 %v1847, %v1846
  %v1858 = vpack.c.b16 %v1849, %v1848
  %v1859 = vpack.c.b16 %v1851, %v1850
  %1860 = vrot.lane.b32.xlu0 %v1607, 64
  %v1861 = vpop.permute.xlu0 %1860
  %1862 = vrot.lane.b32.xlu0 %v1608, 64
  %v1863 = vpop.permute.xlu0 %1862
  %v1867 = vsel %vm279, %v1852, 0
  %v1870 = vsel %vm279, %v1853, 0
  %v1873 = vsel %vm279, %v1854, 0
  %v1876 = vsel %vm279, %v1855, 0
  %v1879 = vsel %vm279, %v1856, 0
  %v1882 = vsel %vm279, %v1857, 0
  %v1885 = vsel %vm279, %v1858, 0
  %v1888 = vsel %vm279, %v1859, 0
  %1890 = vmatpush.bf16.msra.mxu0 0
  %1891 = vmatpush.bf16.msra.mxu0 0
  %1892 = vmatpush.bf16.msra.mxu0 0
  %1893 = vmatpush.bf16.msra.mxu0 0
  %1894 = vmatpush.bf16.msra.mxu0 0
  %1895 = vmatpush.bf16.msra.mxu0 0
  %1896 = vmatpush.bf16.msra.mxu0 %v1863
  %1897 = vmatpush.bf16.msra.mxu0 %v1861
  %1898 = vmatmul.bf16.gmra.mxu0 %v1867
  %v1899 = vpop.f32.mrf.mxu0
  %v1900 = vadd.f32 0.0, %v1899
  %v1901 = vpop.f32.mrf.mxu0
  %v1902 = vadd.f32 0.0, %v1901
  %1903 = vmatmul.bf16.gmra.mxu0 %v1870
  %v1904 = vpop.f32.mrf.mxu0
  %v1905 = vadd.f32 0.0, %v1904
  %v1906 = vpop.f32.mrf.mxu0
  %v1907 = vadd.f32 0.0, %v1906
  %1908 = vmatmul.bf16.gmra.mxu0 %v1873
  %v1909 = vpop.f32.mrf.mxu0
  %v1910 = vadd.f32 0.0, %v1909
  %v1911 = vpop.f32.mrf.mxu0
  %v1912 = vadd.f32 0.0, %v1911
  %1913 = vmatmul.bf16.gmra.mxu0 %v1876
  %v1914 = vpop.f32.mrf.mxu0
  %v1915 = vadd.f32 0.0, %v1914
  %v1916 = vpop.f32.mrf.mxu0
  %v1917 = vadd.f32 0.0, %v1916
  %1918 = vmatmul.bf16.gmra.mxu0 %v1879
  %v1919 = vpop.f32.mrf.mxu0
  %v1920 = vadd.f32 0.0, %v1919
  %v1921 = vpop.f32.mrf.mxu0
  %v1922 = vadd.f32 0.0, %v1921
  %1923 = vmatmul.bf16.gmra.mxu0 %v1882
  %v1924 = vpop.f32.mrf.mxu0
  %v1925 = vadd.f32 0.0, %v1924
  %v1926 = vpop.f32.mrf.mxu0
  %v1927 = vadd.f32 0.0, %v1926
  %1928 = vmatmul.bf16.gmra.mxu0 %v1885
  %v1929 = vpop.f32.mrf.mxu0
  %v1930 = vadd.f32 0.0, %v1929
  %v1931 = vpop.f32.mrf.mxu0
  %v1932 = vadd.f32 0.0, %v1931
  %1933 = vmatmul.bf16.gmra.mxu0 %v1888
  %v1934 = vpop.f32.mrf.mxu0
  %v1935 = vadd.f32 0.0, %v1934
  %v1936 = vpop.f32.mrf.mxu0
  %v1937 = vadd.f32 0.0, %v1936
  %1938 = vdwg.mxu0
  %v1939 = vadd.f32 %v1764, %v1900
  %v1940 = vadd.f32 %v1766, %v1902
  %v1941 = vadd.f32 %v1769, %v1905
  %v1942 = vadd.f32 %v1771, %v1907
  %v1943 = vadd.f32 %v1774, %v1910
  %v1944 = vadd.f32 %v1776, %v1912
  %v1945 = vadd.f32 %v1779, %v1915
  %v1946 = vadd.f32 %v1781, %v1917
  %v1947 = vadd.f32 %v1784, %v1920
  %v1948 = vadd.f32 %v1786, %v1922
  %v1949 = vadd.f32 %v1789, %v1925
  %v1950 = vadd.f32 %v1791, %v1927
  %v1951 = vadd.f32 %v1794, %v1930
  %v1952 = vadd.f32 %v1796, %v1932
  %v1953 = vadd.f32 %v1799, %v1935
  %v1954 = vadd.f32 %v1801, %v1937
  %s1955 = scalar_lea.vmem %s7, 192
  %v1956 = vld [vmem:[%s1955] sm:$0xf]
  %v1957 = vld [vmem:[%s1955 + $0x4] sm:$0xf]
  %v1958 = vld [vmem:[%s1955 + $0x8] sm:$0xf]
  %v1959 = vld [vmem:[%s1955 + $0xc] sm:$0xf]
  %v1960 = vld [vmem:[%s1955 + $0x10] sm:$0xf]
  %v1961 = vld [vmem:[%s1955 + $0x14] sm:$0xf]
  %v1962 = vld [vmem:[%s1955 + $0x18] sm:$0xf]
  %v1963 = vld [vmem:[%s1955 + $0x1c] sm:$0xf]
  %v1964 = vld [vmem:[%s1955 + $0x20] sm:$0xf]
  %v1965 = vld [vmem:[%s1955 + $0x24] sm:$0xf]
  %v1966 = vld [vmem:[%s1955 + $0x28] sm:$0xf]
  %v1967 = vld [vmem:[%s1955 + $0x2c] sm:$0xf]
  %v1968 = vld [vmem:[%s1955 + $0x30] sm:$0xf]
  %v1969 = vld [vmem:[%s1955 + $0x34] sm:$0xf]
  %v1970 = vld [vmem:[%s1955 + $0x38] sm:$0xf]
  %v1971 = vld [vmem:[%s1955 + $0x3c] sm:$0xf]
  %v1988 = vunpack.c.l.b16 %v1956
  %v1989 = vunpack.c.l.b16 %v1957
  %v1990 = vunpack.c.l.b16 %v1958
  %v1991 = vunpack.c.l.b16 %v1959
  %v1992 = vunpack.c.l.b16 %v1960
  %v1993 = vunpack.c.l.b16 %v1961
  %v1994 = vunpack.c.l.b16 %v1962
  %v1995 = vunpack.c.l.b16 %v1963
  %v1996 = vunpack.c.l.b16 %v1964
  %v1997 = vunpack.c.l.b16 %v1965
  %v1998 = vunpack.c.l.b16 %v1966
  %v1999 = vunpack.c.l.b16 %v1967
  %v2000 = vunpack.c.l.b16 %v1968
  %v2001 = vunpack.c.l.b16 %v1969
  %v2002 = vunpack.c.l.b16 %v1970
  %v2003 = vunpack.c.l.b16 %v1971
  %v2004 = vpack.c.b16 %v1989, %v1988
  %v2005 = vpack.c.b16 %v1991, %v1990
  %v2006 = vpack.c.b16 %v1993, %v1992
  %v2007 = vpack.c.b16 %v1995, %v1994
  %v2008 = vpack.c.b16 %v1997, %v1996
  %v2009 = vpack.c.b16 %v1999, %v1998
  %v2010 = vpack.c.b16 %v2001, %v2000
  %v2011 = vpack.c.b16 %v2003, %v2002
  %2012 = vrot.lane.b32.xlu0 %v1607, 32
  %v2013 = vpop.permute.xlu0 %2012
  %2014 = vrot.lane.b32.xlu0 %v1608, 32
  %v2015 = vpop.permute.xlu0 %2014
  %v2019 = vsel %vm279, %v2004, 0
  %v2022 = vsel %vm279, %v2005, 0
  %v2025 = vsel %vm279, %v2006, 0
  %v2028 = vsel %vm279, %v2007, 0
  %v2031 = vsel %vm279, %v2008, 0
  %v2034 = vsel %vm279, %v2009, 0
  %v2037 = vsel %vm279, %v2010, 0
  %v2040 = vsel %vm279, %v2011, 0
  %2042 = vmatpush.bf16.msra.mxu0 0
  %2043 = vmatpush.bf16.msra.mxu0 0
  %2044 = vmatpush.bf16.msra.mxu0 0
  %2045 = vmatpush.bf16.msra.mxu0 0
  %2046 = vmatpush.bf16.msra.mxu0 0
  %2047 = vmatpush.bf16.msra.mxu0 0
  %2048 = vmatpush.bf16.msra.mxu0 %v2015
  %2049 = vmatpush.bf16.msra.mxu0 %v2013
  %2050 = vmatmul.bf16.gmra.mxu0 %v2019
  %v2051 = vpop.f32.mrf.mxu0
  %v2052 = vadd.f32 0.0, %v2051
  %v2053 = vpop.f32.mrf.mxu0
  %v2054 = vadd.f32 0.0, %v2053
  %2055 = vmatmul.bf16.gmra.mxu0 %v2022
  %v2056 = vpop.f32.mrf.mxu0
  %v2057 = vadd.f32 0.0, %v2056
  %v2058 = vpop.f32.mrf.mxu0
  %v2059 = vadd.f32 0.0, %v2058
  %2060 = vmatmul.bf16.gmra.mxu0 %v2025
  %v2061 = vpop.f32.mrf.mxu0
  %v2062 = vadd.f32 0.0, %v2061
  %v2063 = vpop.f32.mrf.mxu0
  %v2064 = vadd.f32 0.0, %v2063
  %2065 = vmatmul.bf16.gmra.mxu0 %v2028
  %v2066 = vpop.f32.mrf.mxu0
  %v2067 = vadd.f32 0.0, %v2066
  %v2068 = vpop.f32.mrf.mxu0
  %v2069 = vadd.f32 0.0, %v2068
  %2070 = vmatmul.bf16.gmra.mxu0 %v2031
  %v2071 = vpop.f32.mrf.mxu0
  %v2072 = vadd.f32 0.0, %v2071
  %v2073 = vpop.f32.mrf.mxu0
  %v2074 = vadd.f32 0.0, %v2073
  %2075 = vmatmul.bf16.gmra.mxu0 %v2034
  %v2076 = vpop.f32.mrf.mxu0
  %v2077 = vadd.f32 0.0, %v2076
  %v2078 = vpop.f32.mrf.mxu0
  %v2079 = vadd.f32 0.0, %v2078
  %2080 = vmatmul.bf16.gmra.mxu0 %v2037
  %v2081 = vpop.f32.mrf.mxu0
  %v2082 = vadd.f32 0.0, %v2081
  %v2083 = vpop.f32.mrf.mxu0
  %v2084 = vadd.f32 0.0, %v2083
  %2085 = vmatmul.bf16.gmra.mxu0 %v2040
  %v2086 = vpop.f32.mrf.mxu0
  %v2087 = vadd.f32 0.0, %v2086
  %v2088 = vpop.f32.mrf.mxu0
  %v2089 = vadd.f32 0.0, %v2088
  %2090 = vdwg.mxu0
  %v2091 = vadd.f32 %v1939, %v2052
  %v2092 = vadd.f32 %v1940, %v2054
  %v2093 = vadd.f32 %v1941, %v2057
  %v2094 = vadd.f32 %v1942, %v2059
  %v2095 = vadd.f32 %v1943, %v2062
  %v2096 = vadd.f32 %v1944, %v2064
  %v2097 = vadd.f32 %v1945, %v2067
  %v2098 = vadd.f32 %v1946, %v2069
  %v2099 = vadd.f32 %v1947, %v2072
  %v2100 = vadd.f32 %v1948, %v2074
  %v2101 = vadd.f32 %v1949, %v2077
  %v2102 = vadd.f32 %v1950, %v2079
  %v2103 = vadd.f32 %v1951, %v2082
  %v2104 = vadd.f32 %v1952, %v2084
  %v2105 = vadd.f32 %v1953, %v2087
  %v2106 = vadd.f32 %v1954, %v2089
  %v2107 = vpack.c.bf16 %v2092, %v2091
  %v2108 = vpack.c.bf16 %v2094, %v2093
  %v2109 = vpack.c.bf16 %v2096, %v2095
  %v2110 = vpack.c.bf16 %v2098, %v2097
  %v2111 = vpack.c.bf16 %v2100, %v2099
  %v2112 = vpack.c.bf16 %v2102, %v2101
  %v2113 = vpack.c.bf16 %v2104, %v2103
  %v2114 = vpack.c.bf16 %v2106, %v2105
  %v2115 = vld [vmem:[%s8] sm:$0xf]
  %v2116 = vld [vmem:[%s8 + $0x4] sm:$0xf]
  %v2117 = vld [vmem:[%s8 + $0x8] sm:$0xf]
  %v2118 = vld [vmem:[%s8 + $0xc] sm:$0xf]
  %s2119 = scalar_lea.vmem %s7, 256
  %v2120 = vld [vmem:[%s2119] sm:$0xf]
  %v2121 = vld [vmem:[%s2119 + $0x4] sm:$0xf]
  %v2122 = vld [vmem:[%s2119 + $0x8] sm:$0xf]
  %v2123 = vld [vmem:[%s2119 + $0xc] sm:$0xf]
  %v2124 = vld [vmem:[%s2119 + $0x10] sm:$0xf]
  %v2125 = vld [vmem:[%s2119 + $0x14] sm:$0xf]
  %v2126 = vld [vmem:[%s2119 + $0x18] sm:$0xf]
  %v2127 = vld [vmem:[%s2119 + $0x1c] sm:$0xf]
  %v2128 = vld [vmem:[%s2119 + $0x20] sm:$0xf]
  %v2129 = vld [vmem:[%s2119 + $0x24] sm:$0xf]
  %v2130 = vld [vmem:[%s2119 + $0x28] sm:$0xf]
  %v2131 = vld [vmem:[%s2119 + $0x2c] sm:$0xf]
  %v2132 = vld [vmem:[%s2119 + $0x30] sm:$0xf]
  %v2133 = vld [vmem:[%s2119 + $0x34] sm:$0xf]
  %v2134 = vld [vmem:[%s2119 + $0x38] sm:$0xf]
  %v2135 = vld [vmem:[%s2119 + $0x3c] sm:$0xf]
  %s2136 = scalar_lea.vmem %s7, 320
  %v2137 = vld [vmem:[%s2136] sm:$0xf]
  %v2138 = vld [vmem:[%s2136 + $0x4] sm:$0xf]
  %v2139 = vld [vmem:[%s2136 + $0x8] sm:$0xf]
  %v2140 = vld [vmem:[%s2136 + $0xc] sm:$0xf]
  %v2141 = vld [vmem:[%s2136 + $0x10] sm:$0xf]
  %v2142 = vld [vmem:[%s2136 + $0x14] sm:$0xf]
  %v2143 = vld [vmem:[%s2136 + $0x18] sm:$0xf]
  %v2144 = vld [vmem:[%s2136 + $0x1c] sm:$0xf]
  %v2145 = vld [vmem:[%s2136 + $0x20] sm:$0xf]
  %v2146 = vld [vmem:[%s2136 + $0x24] sm:$0xf]
  %v2147 = vld [vmem:[%s2136 + $0x28] sm:$0xf]
  %v2148 = vld [vmem:[%s2136 + $0x2c] sm:$0xf]
  %v2149 = vld [vmem:[%s2136 + $0x30] sm:$0xf]
  %v2150 = vld [vmem:[%s2136 + $0x34] sm:$0xf]
  %v2151 = vld [vmem:[%s2136 + $0x38] sm:$0xf]
  %v2152 = vld [vmem:[%s2136 + $0x3c] sm:$0xf]
  %v2169 = vunpack.c.l.b16 %v2137
  %v2170 = vunpack.c.l.b16 %v2138
  %v2171 = vunpack.c.l.b16 %v2139
  %v2172 = vunpack.c.l.b16 %v2140
  %v2173 = vunpack.c.l.b16 %v2141
  %v2174 = vunpack.c.l.b16 %v2142
  %v2175 = vunpack.c.l.b16 %v2143
  %v2176 = vunpack.c.l.b16 %v2144
  %v2177 = vunpack.c.l.b16 %v2145
  %v2178 = vunpack.c.l.b16 %v2146
  %v2179 = vunpack.c.l.b16 %v2147
  %v2180 = vunpack.c.l.b16 %v2148
  %v2181 = vunpack.c.l.b16 %v2149
  %v2182 = vunpack.c.l.b16 %v2150
  %v2183 = vunpack.c.l.b16 %v2151
  %v2184 = vunpack.c.l.b16 %v2152
  %v2185 = vpack.c.b16 %v2170, %v2169
  %v2186 = vpack.c.b16 %v2172, %v2171
  %v2187 = vpack.c.b16 %v2174, %v2173
  %v2188 = vpack.c.b16 %v2176, %v2175
  %v2189 = vpack.c.b16 %v2178, %v2177
  %v2190 = vpack.c.b16 %v2180, %v2179
  %v2191 = vpack.c.b16 %v2182, %v2181
  %v2192 = vpack.c.b16 %v2184, %v2183
  %v2194 = vsel %vm279, %v2185, 0
  %v2197 = vsel %vm279, %v2186, 0
  %v2200 = vsel %vm279, %v2187, 0
  %v2203 = vsel %vm279, %v2188, 0
  %v2206 = vsel %vm279, %v2189, 0
  %v2209 = vsel %vm279, %v2190, 0
  %v2212 = vsel %vm279, %v2191, 0
  %v2215 = vsel %vm279, %v2192, 0
  %2217 = vmatpush.bf16.msra.mxu0 0
  %2218 = vmatpush.bf16.msra.mxu0 0
  %2219 = vmatpush.bf16.msra.mxu0 0
  %2220 = vmatpush.bf16.msra.mxu0 0
  %2221 = vmatpush.bf16.msra.mxu0 0
  %2222 = vmatpush.bf16.msra.mxu0 0
  %2223 = vmatpush.bf16.msra.mxu0 %v1612
  %2224 = vmatpush.bf16.msra.mxu0 %v1610
  %2225 = vmatmul.bf16.gmra.mxu0 %v2194
  %v2226 = vpop.f32.mrf.mxu0
  %v2227 = vadd.f32 0.0, %v2226
  %v2228 = vpop.f32.mrf.mxu0
  %v2229 = vadd.f32 0.0, %v2228
  %2230 = vmatmul.bf16.gmra.mxu0 %v2197
  %v2231 = vpop.f32.mrf.mxu0
  %v2232 = vadd.f32 0.0, %v2231
  %v2233 = vpop.f32.mrf.mxu0
  %v2234 = vadd.f32 0.0, %v2233
  %2235 = vmatmul.bf16.gmra.mxu0 %v2200
  %v2236 = vpop.f32.mrf.mxu0
  %v2237 = vadd.f32 0.0, %v2236
  %v2238 = vpop.f32.mrf.mxu0
  %v2239 = vadd.f32 0.0, %v2238
  %2240 = vmatmul.bf16.gmra.mxu0 %v2203
  %v2241 = vpop.f32.mrf.mxu0
  %v2242 = vadd.f32 0.0, %v2241
  %v2243 = vpop.f32.mrf.mxu0
  %v2244 = vadd.f32 0.0, %v2243
  %2245 = vmatmul.bf16.gmra.mxu0 %v2206
  %v2246 = vpop.f32.mrf.mxu0
  %v2247 = vadd.f32 0.0, %v2246
  %v2248 = vpop.f32.mrf.mxu0
  %v2249 = vadd.f32 0.0, %v2248
  %2250 = vmatmul.bf16.gmra.mxu0 %v2209
  %v2251 = vpop.f32.mrf.mxu0
  %v2252 = vadd.f32 0.0, %v2251
  %v2253 = vpop.f32.mrf.mxu0
  %v2254 = vadd.f32 0.0, %v2253
  %2255 = vmatmul.bf16.gmra.mxu0 %v2212
  %v2256 = vpop.f32.mrf.mxu0
  %v2257 = vadd.f32 0.0, %v2256
  %v2258 = vpop.f32.mrf.mxu0
  %v2259 = vadd.f32 0.0, %v2258
  %2260 = vmatmul.bf16.gmra.mxu0 %v2215
  %v2261 = vpop.f32.mrf.mxu0
  %v2262 = vadd.f32 0.0, %v2261
  %v2263 = vpop.f32.mrf.mxu0
  %v2264 = vadd.f32 0.0, %v2263
  %2265 = vdwg.mxu0
  %v2282 = vunpack.c.l.b16 %v2120
  %v2283 = vunpack.c.l.b16 %v2121
  %v2284 = vunpack.c.l.b16 %v2122
  %v2285 = vunpack.c.l.b16 %v2123
  %v2286 = vunpack.c.l.b16 %v2124
  %v2287 = vunpack.c.l.b16 %v2125
  %v2288 = vunpack.c.l.b16 %v2126
  %v2289 = vunpack.c.l.b16 %v2127
  %v2290 = vunpack.c.l.b16 %v2128
  %v2291 = vunpack.c.l.b16 %v2129
  %v2292 = vunpack.c.l.b16 %v2130
  %v2293 = vunpack.c.l.b16 %v2131
  %v2294 = vunpack.c.l.b16 %v2132
  %v2295 = vunpack.c.l.b16 %v2133
  %v2296 = vunpack.c.l.b16 %v2134
  %v2297 = vunpack.c.l.b16 %v2135
  %v2298 = vpack.c.b16 %v2283, %v2282
  %v2299 = vpack.c.b16 %v2285, %v2284
  %v2300 = vpack.c.b16 %v2287, %v2286
  %v2301 = vpack.c.b16 %v2289, %v2288
  %v2302 = vpack.c.b16 %v2291, %v2290
  %v2303 = vpack.c.b16 %v2293, %v2292
  %v2304 = vpack.c.b16 %v2295, %v2294
  %v2305 = vpack.c.b16 %v2297, %v2296
  %v2307 = vsel %vm279, %v2298, 0
  %v2310 = vsel %vm279, %v2299, 0
  %v2313 = vsel %vm279, %v2300, 0
  %v2316 = vsel %vm279, %v2301, 0
  %v2319 = vsel %vm279, %v2302, 0
  %v2322 = vsel %vm279, %v2303, 0
  %v2325 = vsel %vm279, %v2304, 0
  %v2328 = vsel %vm279, %v2305, 0
  %2330 = vmatpush.bf16.msra.mxu0 0
  %2331 = vmatpush.bf16.msra.mxu0 0
  %2332 = vmatpush.bf16.msra.mxu0 0
  %2333 = vmatpush.bf16.msra.mxu0 0
  %2334 = vmatpush.bf16.msra.mxu0 0
  %2335 = vmatpush.bf16.msra.mxu0 0
  %2336 = vmatpush.bf16.msra.mxu0 %v1608
  %2337 = vmatpush.bf16.msra.mxu0 %v1607
  %2338 = vmatmul.bf16.gmra.mxu0 %v2307
  %v2339 = vpop.f32.mrf.mxu0
  %v2340 = vadd.f32 %v2227, %v2339
  %v2341 = vpop.f32.mrf.mxu0
  %v2342 = vadd.f32 %v2229, %v2341
  %2343 = vmatmul.bf16.gmra.mxu0 %v2310
  %v2344 = vpop.f32.mrf.mxu0
  %v2345 = vadd.f32 %v2232, %v2344
  %v2346 = vpop.f32.mrf.mxu0
  %v2347 = vadd.f32 %v2234, %v2346
  %2348 = vmatmul.bf16.gmra.mxu0 %v2313
  %v2349 = vpop.f32.mrf.mxu0
  %v2350 = vadd.f32 %v2237, %v2349
  %v2351 = vpop.f32.mrf.mxu0
  %v2352 = vadd.f32 %v2239, %v2351
  %2353 = vmatmul.bf16.gmra.mxu0 %v2316
  %v2354 = vpop.f32.mrf.mxu0
  %v2355 = vadd.f32 %v2242, %v2354
  %v2356 = vpop.f32.mrf.mxu0
  %v2357 = vadd.f32 %v2244, %v2356
  %2358 = vmatmul.bf16.gmra.mxu0 %v2319
  %v2359 = vpop.f32.mrf.mxu0
  %v2360 = vadd.f32 %v2247, %v2359
  %v2361 = vpop.f32.mrf.mxu0
  %v2362 = vadd.f32 %v2249, %v2361
  %2363 = vmatmul.bf16.gmra.mxu0 %v2322
  %v2364 = vpop.f32.mrf.mxu0
  %v2365 = vadd.f32 %v2252, %v2364
  %v2366 = vpop.f32.mrf.mxu0
  %v2367 = vadd.f32 %v2254, %v2366
  %2368 = vmatmul.bf16.gmra.mxu0 %v2325
  %v2369 = vpop.f32.mrf.mxu0
  %v2370 = vadd.f32 %v2257, %v2369
  %v2371 = vpop.f32.mrf.mxu0
  %v2372 = vadd.f32 %v2259, %v2371
  %2373 = vmatmul.bf16.gmra.mxu0 %v2328
  %v2374 = vpop.f32.mrf.mxu0
  %v2375 = vadd.f32 %v2262, %v2374
  %v2376 = vpop.f32.mrf.mxu0
  %v2377 = vadd.f32 %v2264, %v2376
  %2378 = vdwg.mxu0
  %s2379 = scalar_lea.vmem %s7, 384
  %v2380 = vld [vmem:[%s2379] sm:$0xf]
  %v2381 = vld [vmem:[%s2379 + $0x4] sm:$0xf]
  %v2382 = vld [vmem:[%s2379 + $0x8] sm:$0xf]
  %v2383 = vld [vmem:[%s2379 + $0xc] sm:$0xf]
  %v2384 = vld [vmem:[%s2379 + $0x10] sm:$0xf]
  %v2385 = vld [vmem:[%s2379 + $0x14] sm:$0xf]
  %v2386 = vld [vmem:[%s2379 + $0x18] sm:$0xf]
  %v2387 = vld [vmem:[%s2379 + $0x1c] sm:$0xf]
  %v2388 = vld [vmem:[%s2379 + $0x20] sm:$0xf]
  %v2389 = vld [vmem:[%s2379 + $0x24] sm:$0xf]
  %v2390 = vld [vmem:[%s2379 + $0x28] sm:$0xf]
  %v2391 = vld [vmem:[%s2379 + $0x2c] sm:$0xf]
  %v2392 = vld [vmem:[%s2379 + $0x30] sm:$0xf]
  %v2393 = vld [vmem:[%s2379 + $0x34] sm:$0xf]
  %v2394 = vld [vmem:[%s2379 + $0x38] sm:$0xf]
  %v2395 = vld [vmem:[%s2379 + $0x3c] sm:$0xf]
  %v2412 = vunpack.c.l.b16 %v2380
  %v2413 = vunpack.c.l.b16 %v2381
  %v2414 = vunpack.c.l.b16 %v2382
  %v2415 = vunpack.c.l.b16 %v2383
  %v2416 = vunpack.c.l.b16 %v2384
  %v2417 = vunpack.c.l.b16 %v2385
  %v2418 = vunpack.c.l.b16 %v2386
  %v2419 = vunpack.c.l.b16 %v2387
  %v2420 = vunpack.c.l.b16 %v2388
  %v2421 = vunpack.c.l.b16 %v2389
  %v2422 = vunpack.c.l.b16 %v2390
  %v2423 = vunpack.c.l.b16 %v2391
  %v2424 = vunpack.c.l.b16 %v2392
  %v2425 = vunpack.c.l.b16 %v2393
  %v2426 = vunpack.c.l.b16 %v2394
  %v2427 = vunpack.c.l.b16 %v2395
  %v2428 = vpack.c.b16 %v2413, %v2412
  %v2429 = vpack.c.b16 %v2415, %v2414
  %v2430 = vpack.c.b16 %v2417, %v2416
  %v2431 = vpack.c.b16 %v2419, %v2418
  %v2432 = vpack.c.b16 %v2421, %v2420
  %v2433 = vpack.c.b16 %v2423, %v2422
  %v2434 = vpack.c.b16 %v2425, %v2424
  %v2435 = vpack.c.b16 %v2427, %v2426
  %v2437 = vsel %vm279, %v2428, 0
  %v2440 = vsel %vm279, %v2429, 0
  %v2443 = vsel %vm279, %v2430, 0
  %v2446 = vsel %vm279, %v2431, 0
  %v2449 = vsel %vm279, %v2432, 0
  %v2452 = vsel %vm279, %v2433, 0
  %v2455 = vsel %vm279, %v2434, 0
  %v2458 = vsel %vm279, %v2435, 0
  %2460 = vmatpush.bf16.msra.mxu0 0
  %2461 = vmatpush.bf16.msra.mxu0 0
  %2462 = vmatpush.bf16.msra.mxu0 0
  %2463 = vmatpush.bf16.msra.mxu0 0
  %2464 = vmatpush.bf16.msra.mxu0 0
  %2465 = vmatpush.bf16.msra.mxu0 0
  %2466 = vmatpush.bf16.msra.mxu0 %v1863
  %2467 = vmatpush.bf16.msra.mxu0 %v1861
  %2468 = vmatmul.bf16.gmra.mxu0 %v2437
  %v2469 = vpop.f32.mrf.mxu0
  %v2470 = vadd.f32 0.0, %v2469
  %v2471 = vpop.f32.mrf.mxu0
  %v2472 = vadd.f32 0.0, %v2471
  %2473 = vmatmul.bf16.gmra.mxu0 %v2440
  %v2474 = vpop.f32.mrf.mxu0
  %v2475 = vadd.f32 0.0, %v2474
  %v2476 = vpop.f32.mrf.mxu0
  %v2477 = vadd.f32 0.0, %v2476
  %2478 = vmatmul.bf16.gmra.mxu0 %v2443
  %v2479 = vpop.f32.mrf.mxu0
  %v2480 = vadd.f32 0.0, %v2479
  %v2481 = vpop.f32.mrf.mxu0
  %v2482 = vadd.f32 0.0, %v2481
  %2483 = vmatmul.bf16.gmra.mxu0 %v2446
  %v2484 = vpop.f32.mrf.mxu0
  %v2485 = vadd.f32 0.0, %v2484
  %v2486 = vpop.f32.mrf.mxu0
  %v2487 = vadd.f32 0.0, %v2486
  %2488 = vmatmul.bf16.gmra.mxu0 %v2449
  %v2489 = vpop.f32.mrf.mxu0
  %v2490 = vadd.f32 0.0, %v2489
  %v2491 = vpop.f32.mrf.mxu0
  %v2492 = vadd.f32 0.0, %v2491
  %2493 = vmatmul.bf16.gmra.mxu0 %v2452
  %v2494 = vpop.f32.mrf.mxu0
  %v2495 = vadd.f32 0.0, %v2494
  %v2496 = vpop.f32.mrf.mxu0
  %v2497 = vadd.f32 0.0, %v2496
  %2498 = vmatmul.bf16.gmra.mxu0 %v2455
  %v2499 = vpop.f32.mrf.mxu0
  %v2500 = vadd.f32 0.0, %v2499
  %v2501 = vpop.f32.mrf.mxu0
  %v2502 = vadd.f32 0.0, %v2501
  %2503 = vmatmul.bf16.gmra.mxu0 %v2458
  %v2504 = vpop.f32.mrf.mxu0
  %v2505 = vadd.f32 0.0, %v2504
  %v2506 = vpop.f32.mrf.mxu0
  %v2507 = vadd.f32 0.0, %v2506
  %2508 = vdwg.mxu0
  %v2509 = vadd.f32 %v2340, %v2470
  %v2510 = vadd.f32 %v2342, %v2472
  %v2511 = vadd.f32 %v2345, %v2475
  %v2512 = vadd.f32 %v2347, %v2477
  %v2513 = vadd.f32 %v2350, %v2480
  %v2514 = vadd.f32 %v2352, %v2482
  %v2515 = vadd.f32 %v2355, %v2485
  %v2516 = vadd.f32 %v2357, %v2487
  %v2517 = vadd.f32 %v2360, %v2490
  %v2518 = vadd.f32 %v2362, %v2492
  %v2519 = vadd.f32 %v2365, %v2495
  %v2520 = vadd.f32 %v2367, %v2497
  %v2521 = vadd.f32 %v2370, %v2500
  %v2522 = vadd.f32 %v2372, %v2502
  %v2523 = vadd.f32 %v2375, %v2505
  %v2524 = vadd.f32 %v2377, %v2507
  %s2525 = scalar_lea.vmem %s7, 448
  %v2526 = vld [vmem:[%s2525] sm:$0xf]
  %v2527 = vld [vmem:[%s2525 + $0x4] sm:$0xf]
  %v2528 = vld [vmem:[%s2525 + $0x8] sm:$0xf]
  %v2529 = vld [vmem:[%s2525 + $0xc] sm:$0xf]
  %v2530 = vld [vmem:[%s2525 + $0x10] sm:$0xf]
  %v2531 = vld [vmem:[%s2525 + $0x14] sm:$0xf]
  %v2532 = vld [vmem:[%s2525 + $0x18] sm:$0xf]
  %v2533 = vld [vmem:[%s2525 + $0x1c] sm:$0xf]
  %v2534 = vld [vmem:[%s2525 + $0x20] sm:$0xf]
  %v2535 = vld [vmem:[%s2525 + $0x24] sm:$0xf]
  %v2536 = vld [vmem:[%s2525 + $0x28] sm:$0xf]
  %v2537 = vld [vmem:[%s2525 + $0x2c] sm:$0xf]
  %v2538 = vld [vmem:[%s2525 + $0x30] sm:$0xf]
  %v2539 = vld [vmem:[%s2525 + $0x34] sm:$0xf]
  %v2540 = vld [vmem:[%s2525 + $0x38] sm:$0xf]
  %v2541 = vld [vmem:[%s2525 + $0x3c] sm:$0xf]
  %v2558 = vunpack.c.l.b16 %v2526
  %v2559 = vunpack.c.l.b16 %v2527
  %v2560 = vunpack.c.l.b16 %v2528
  %v2561 = vunpack.c.l.b16 %v2529
  %v2562 = vunpack.c.l.b16 %v2530
  %v2563 = vunpack.c.l.b16 %v2531
  %v2564 = vunpack.c.l.b16 %v2532
  %v2565 = vunpack.c.l.b16 %v2533
  %v2566 = vunpack.c.l.b16 %v2534
  %v2567 = vunpack.c.l.b16 %v2535
  %v2568 = vunpack.c.l.b16 %v2536
  %v2569 = vunpack.c.l.b16 %v2537
  %v2570 = vunpack.c.l.b16 %v2538
  %v2571 = vunpack.c.l.b16 %v2539
  %v2572 = vunpack.c.l.b16 %v2540
  %v2573 = vunpack.c.l.b16 %v2541
  %v2574 = vpack.c.b16 %v2559, %v2558
  %v2575 = vpack.c.b16 %v2561, %v2560
  %v2576 = vpack.c.b16 %v2563, %v2562
  %v2577 = vpack.c.b16 %v2565, %v2564
  %v2578 = vpack.c.b16 %v2567, %v2566
  %v2579 = vpack.c.b16 %v2569, %v2568
  %v2580 = vpack.c.b16 %v2571, %v2570
  %v2581 = vpack.c.b16 %v2573, %v2572
  %v2583 = vsel %vm279, %v2574, 0
  %v2586 = vsel %vm279, %v2575, 0
  %v2589 = vsel %vm279, %v2576, 0
  %v2592 = vsel %vm279, %v2577, 0
  %v2595 = vsel %vm279, %v2578, 0
  %v2598 = vsel %vm279, %v2579, 0
  %v2601 = vsel %vm279, %v2580, 0
  %v2604 = vsel %vm279, %v2581, 0
  %2606 = vmatpush.bf16.msra.mxu0 0
  %2607 = vmatpush.bf16.msra.mxu0 0
  %2608 = vmatpush.bf16.msra.mxu0 0
  %2609 = vmatpush.bf16.msra.mxu0 0
  %2610 = vmatpush.bf16.msra.mxu0 0
  %2611 = vmatpush.bf16.msra.mxu0 0
  %2612 = vmatpush.bf16.msra.mxu0 %v2015
  %2613 = vmatpush.bf16.msra.mxu0 %v2013
  %2614 = vmatmul.bf16.gmra.mxu0 %v2583
  %v2615 = vpop.f32.mrf.mxu0
  %v2616 = vadd.f32 0.0, %v2615
  %v2617 = vpop.f32.mrf.mxu0
  %v2618 = vadd.f32 0.0, %v2617
  %2619 = vmatmul.bf16.gmra.mxu0 %v2586
  %v2620 = vpop.f32.mrf.mxu0
  %v2621 = vadd.f32 0.0, %v2620
  %v2622 = vpop.f32.mrf.mxu0
  %v2623 = vadd.f32 0.0, %v2622
  %2624 = vmatmul.bf16.gmra.mxu0 %v2589
  %v2625 = vpop.f32.mrf.mxu0
  %v2626 = vadd.f32 0.0, %v2625
  %v2627 = vpop.f32.mrf.mxu0
  %v2628 = vadd.f32 0.0, %v2627
  %2629 = vmatmul.bf16.gmra.mxu0 %v2592
  %v2630 = vpop.f32.mrf.mxu0
  %v2631 = vadd.f32 0.0, %v2630
  %v2632 = vpop.f32.mrf.mxu0
  %v2633 = vadd.f32 0.0, %v2632
  %2634 = vmatmul.bf16.gmra.mxu0 %v2595
  %v2635 = vpop.f32.mrf.mxu0
  %v2636 = vadd.f32 0.0, %v2635
  %v2637 = vpop.f32.mrf.mxu0
  %v2638 = vadd.f32 0.0, %v2637
  %2639 = vmatmul.bf16.gmra.mxu0 %v2598
  %v2640 = vpop.f32.mrf.mxu0
  %v2641 = vadd.f32 0.0, %v2640
  %v2642 = vpop.f32.mrf.mxu0
  %v2643 = vadd.f32 0.0, %v2642
  %2644 = vmatmul.bf16.gmra.mxu0 %v2601
  %v2645 = vpop.f32.mrf.mxu0
  %v2646 = vadd.f32 0.0, %v2645
  %v2647 = vpop.f32.mrf.mxu0
  %v2648 = vadd.f32 0.0, %v2647
  %2649 = vmatmul.bf16.gmra.mxu0 %v2604
  %v2650 = vpop.f32.mrf.mxu0
  %v2651 = vadd.f32 0.0, %v2650
  %v2652 = vpop.f32.mrf.mxu0
  %v2653 = vadd.f32 0.0, %v2652
  %2654 = vdwg.mxu0
  %v2655 = vadd.f32 %v2509, %v2616
  %v2656 = vadd.f32 %v2510, %v2618
  %v2657 = vadd.f32 %v2511, %v2621
  %v2658 = vadd.f32 %v2512, %v2623
  %v2659 = vadd.f32 %v2513, %v2626
  %v2660 = vadd.f32 %v2514, %v2628
  %v2661 = vadd.f32 %v2515, %v2631
  %v2662 = vadd.f32 %v2516, %v2633
  %v2663 = vadd.f32 %v2517, %v2636
  %v2664 = vadd.f32 %v2518, %v2638
  %v2665 = vadd.f32 %v2519, %v2641
  %v2666 = vadd.f32 %v2520, %v2643
  %v2667 = vadd.f32 %v2521, %v2646
  %v2668 = vadd.f32 %v2522, %v2648
  %v2669 = vadd.f32 %v2523, %v2651
  %v2670 = vadd.f32 %v2524, %v2653
  %v2671 = vpack.c.bf16 %v2656, %v2655
  %v2672 = vpack.c.bf16 %v2658, %v2657
  %v2673 = vpack.c.bf16 %v2660, %v2659
  %v2674 = vpack.c.bf16 %v2662, %v2661
  %v2675 = vpack.c.bf16 %v2664, %v2663
  %v2676 = vpack.c.bf16 %v2666, %v2665
  %v2677 = vpack.c.bf16 %v2668, %v2667
  %v2678 = vpack.c.bf16 %v2670, %v2669
  %v2679 = vld [vmem:[%s8 + $0x10] sm:$0xf]
  %v2680 = vld [vmem:[%s8 + $0x14] sm:$0xf]
  %v2681 = vld [vmem:[%s8 + $0x18] sm:$0xf]
  %v2682 = vld [vmem:[%s8 + $0x1c] sm:$0xf]
  %v2687 = vunpack.c.l.b16 %v2679
  %v2688 = vunpack.c.l.b16 %v2680
  %v2689 = vunpack.c.l.b16 %v2681
  %v2690 = vunpack.c.l.b16 %v2682
  %v2691 = vpack.c.b16 %v2688, %v2687
  %v2692 = vpack.c.b16 %v2690, %v2689
  %v2696 = vsel %vm279, %v2671, 0
  %v2699 = vsel %vm279, %v2672, 0
  %v2702 = vsel %vm279, %v2673, 0
  %v2705 = vsel %vm279, %v2674, 0
  %v2708 = vsel %vm279, %v2675, 0
  %v2711 = vsel %vm279, %v2676, 0
  %v2714 = vsel %vm279, %v2677, 0
  %v2717 = vsel %vm279, %v2678, 0
  %2719 = vmatpush.bf16.msra.mxu0 0
  %2720 = vmatpush.bf16.msra.mxu0 0
  %2721 = vmatpush.bf16.msra.mxu0 0
  %2722 = vmatpush.bf16.msra.mxu0 0
  %2723 = vmatpush.bf16.msra.mxu0 0
  %2724 = vmatpush.bf16.msra.mxu0 0
  %2725 = vmatpush.bf16.msra.mxu0 %v2692
  %2726 = vmatpush.bf16.msra.mxu0 %v2691
  %2727 = vmatmul.bf16.gmra.mxu0 %v2696
  %v2728 = vpop.f32.mrf.mxu0
  %v2729 = vadd.f32 0.0, %v2728
  %v2730 = vpop.f32.mrf.mxu0
  %v2731 = vadd.f32 0.0, %v2730
  %2732 = vmatmul.bf16.gmra.mxu0 %v2699
  %v2733 = vpop.f32.mrf.mxu0
  %v2734 = vadd.f32 0.0, %v2733
  %v2735 = vpop.f32.mrf.mxu0
  %v2736 = vadd.f32 0.0, %v2735
  %2737 = vmatmul.bf16.gmra.mxu0 %v2702
  %v2738 = vpop.f32.mrf.mxu0
  %v2739 = vadd.f32 0.0, %v2738
  %v2740 = vpop.f32.mrf.mxu0
  %v2741 = vadd.f32 0.0, %v2740
  %2742 = vmatmul.bf16.gmra.mxu0 %v2705
  %v2743 = vpop.f32.mrf.mxu0
  %v2744 = vadd.f32 0.0, %v2743
  %v2745 = vpop.f32.mrf.mxu0
  %v2746 = vadd.f32 0.0, %v2745
  %2747 = vmatmul.bf16.gmra.mxu0 %v2708
  %v2748 = vpop.f32.mrf.mxu0
  %v2749 = vadd.f32 0.0, %v2748
  %v2750 = vpop.f32.mrf.mxu0
  %v2751 = vadd.f32 0.0, %v2750
  %2752 = vmatmul.bf16.gmra.mxu0 %v2711
  %v2753 = vpop.f32.mrf.mxu0
  %v2754 = vadd.f32 0.0, %v2753
  %v2755 = vpop.f32.mrf.mxu0
  %v2756 = vadd.f32 0.0, %v2755
  %2757 = vmatmul.bf16.gmra.mxu0 %v2714
  %v2758 = vpop.f32.mrf.mxu0
  %v2759 = vadd.f32 0.0, %v2758
  %v2760 = vpop.f32.mrf.mxu0
  %v2761 = vadd.f32 0.0, %v2760
  %2762 = vmatmul.bf16.gmra.mxu0 %v2717
  %v2763 = vpop.f32.mrf.mxu0
  %v2764 = vadd.f32 0.0, %v2763
  %v2765 = vpop.f32.mrf.mxu0
  %v2766 = vadd.f32 0.0, %v2765
  %2767 = vdwg.mxu0
  %v2772 = vunpack.c.l.b16 %v2115
  %v2773 = vunpack.c.l.b16 %v2116
  %v2774 = vunpack.c.l.b16 %v2117
  %v2775 = vunpack.c.l.b16 %v2118
  %v2776 = vpack.c.b16 %v2773, %v2772
  %v2777 = vpack.c.b16 %v2775, %v2774
  %v2781 = vsel %vm279, %v2107, 0
  %v2784 = vsel %vm279, %v2108, 0
  %v2787 = vsel %vm279, %v2109, 0
  %v2790 = vsel %vm279, %v2110, 0
  %v2793 = vsel %vm279, %v2111, 0
  %v2796 = vsel %vm279, %v2112, 0
  %v2799 = vsel %vm279, %v2113, 0
  %v2802 = vsel %vm279, %v2114, 0
  %2804 = vmatpush.bf16.msra.mxu0 0
  %2805 = vmatpush.bf16.msra.mxu0 0
  %2806 = vmatpush.bf16.msra.mxu0 0
  %2807 = vmatpush.bf16.msra.mxu0 0
  %2808 = vmatpush.bf16.msra.mxu0 0
  %2809 = vmatpush.bf16.msra.mxu0 0
  %2810 = vmatpush.bf16.msra.mxu0 %v2777
  %2811 = vmatpush.bf16.msra.mxu0 %v2776
  %2812 = vmatmul.bf16.gmra.mxu0 %v2781
  %v2813 = vpop.f32.mrf.mxu0
  %v2814 = vadd.f32 %v2729, %v2813
  %v2815 = vpop.f32.mrf.mxu0
  %v2816 = vadd.f32 %v2731, %v2815
  %2817 = vmatmul.bf16.gmra.mxu0 %v2784
  %v2818 = vpop.f32.mrf.mxu0
  %v2819 = vadd.f32 %v2734, %v2818
  %v2820 = vpop.f32.mrf.mxu0
  %v2821 = vadd.f32 %v2736, %v2820
  %2822 = vmatmul.bf16.gmra.mxu0 %v2787
  %v2823 = vpop.f32.mrf.mxu0
  %v2824 = vadd.f32 %v2739, %v2823
  %v2825 = vpop.f32.mrf.mxu0
  %v2826 = vadd.f32 %v2741, %v2825
  %2827 = vmatmul.bf16.gmra.mxu0 %v2790
  %v2828 = vpop.f32.mrf.mxu0
  %v2829 = vadd.f32 %v2744, %v2828
  %v2830 = vpop.f32.mrf.mxu0
  %v2831 = vadd.f32 %v2746, %v2830
  %2832 = vmatmul.bf16.gmra.mxu0 %v2793
  %v2833 = vpop.f32.mrf.mxu0
  %v2834 = vadd.f32 %v2749, %v2833
  %v2835 = vpop.f32.mrf.mxu0
  %v2836 = vadd.f32 %v2751, %v2835
  %2837 = vmatmul.bf16.gmra.mxu0 %v2796
  %v2838 = vpop.f32.mrf.mxu0
  %v2839 = vadd.f32 %v2754, %v2838
  %v2840 = vpop.f32.mrf.mxu0
  %v2841 = vadd.f32 %v2756, %v2840
  %2842 = vmatmul.bf16.gmra.mxu0 %v2799
  %v2843 = vpop.f32.mrf.mxu0
  %v2844 = vadd.f32 %v2759, %v2843
  %v2845 = vpop.f32.mrf.mxu0
  %v2846 = vadd.f32 %v2761, %v2845
  %2847 = vmatmul.bf16.gmra.mxu0 %v2802
  %v2848 = vpop.f32.mrf.mxu0
  %v2849 = vadd.f32 %v2764, %v2848
  %v2850 = vpop.f32.mrf.mxu0
  %v2851 = vadd.f32 %v2766, %v2850
  %2852 = vdwg.mxu0
  %s2853 = scalar_lea.vmem %s7, 512
  %v2854 = vld [vmem:[%s2853] sm:$0xf]
  %v2855 = vld [vmem:[%s2853 + $0x4] sm:$0xf]
  %v2856 = vld [vmem:[%s2853 + $0x8] sm:$0xf]
  %v2857 = vld [vmem:[%s2853 + $0xc] sm:$0xf]
  %v2858 = vld [vmem:[%s2853 + $0x10] sm:$0xf]
  %v2859 = vld [vmem:[%s2853 + $0x14] sm:$0xf]
  %v2860 = vld [vmem:[%s2853 + $0x18] sm:$0xf]
  %v2861 = vld [vmem:[%s2853 + $0x1c] sm:$0xf]
  %v2862 = vld [vmem:[%s2853 + $0x20] sm:$0xf]
  %v2863 = vld [vmem:[%s2853 + $0x24] sm:$0xf]
  %v2864 = vld [vmem:[%s2853 + $0x28] sm:$0xf]
  %v2865 = vld [vmem:[%s2853 + $0x2c] sm:$0xf]
  %v2866 = vld [vmem:[%s2853 + $0x30] sm:$0xf]
  %v2867 = vld [vmem:[%s2853 + $0x34] sm:$0xf]
  %v2868 = vld [vmem:[%s2853 + $0x38] sm:$0xf]
  %v2869 = vld [vmem:[%s2853 + $0x3c] sm:$0xf]
  %s2870 = scalar_lea.vmem %s7, 576
  %v2871 = vld [vmem:[%s2870] sm:$0xf]
  %v2872 = vld [vmem:[%s2870 + $0x4] sm:$0xf]
  %v2873 = vld [vmem:[%s2870 + $0x8] sm:$0xf]
  %v2874 = vld [vmem:[%s2870 + $0xc] sm:$0xf]
  %v2875 = vld [vmem:[%s2870 + $0x10] sm:$0xf]
  %v2876 = vld [vmem:[%s2870 + $0x14] sm:$0xf]
  %v2877 = vld [vmem:[%s2870 + $0x18] sm:$0xf]
  %v2878 = vld [vmem:[%s2870 + $0x1c] sm:$0xf]
  %v2879 = vld [vmem:[%s2870 + $0x20] sm:$0xf]
  %v2880 = vld [vmem:[%s2870 + $0x24] sm:$0xf]
  %v2881 = vld [vmem:[%s2870 + $0x28] sm:$0xf]
  %v2882 = vld [vmem:[%s2870 + $0x2c] sm:$0xf]
  %v2883 = vld [vmem:[%s2870 + $0x30] sm:$0xf]
  %v2884 = vld [vmem:[%s2870 + $0x34] sm:$0xf]
  %v2885 = vld [vmem:[%s2870 + $0x38] sm:$0xf]
  %v2886 = vld [vmem:[%s2870 + $0x3c] sm:$0xf]
  %v2903 = vunpack.c.l.b16 %v2871
  %v2904 = vunpack.c.l.b16 %v2872
  %v2905 = vunpack.c.l.b16 %v2873
  %v2906 = vunpack.c.l.b16 %v2874
  %v2907 = vunpack.c.l.b16 %v2875
  %v2908 = vunpack.c.l.b16 %v2876
  %v2909 = vunpack.c.l.b16 %v2877
  %v2910 = vunpack.c.l.b16 %v2878
  %v2911 = vunpack.c.l.b16 %v2879
  %v2912 = vunpack.c.l.b16 %v2880
  %v2913 = vunpack.c.l.b16 %v2881
  %v2914 = vunpack.c.l.b16 %v2882
  %v2915 = vunpack.c.l.b16 %v2883
  %v2916 = vunpack.c.l.b16 %v2884
  %v2917 = vunpack.c.l.b16 %v2885
  %v2918 = vunpack.c.l.b16 %v2886
  %v2919 = vpack.c.b16 %v2904, %v2903
  %v2920 = vpack.c.b16 %v2906, %v2905
  %v2921 = vpack.c.b16 %v2908, %v2907
  %v2922 = vpack.c.b16 %v2910, %v2909
  %v2923 = vpack.c.b16 %v2912, %v2911
  %v2924 = vpack.c.b16 %v2914, %v2913
  %v2925 = vpack.c.b16 %v2916, %v2915
  %v2926 = vpack.c.b16 %v2918, %v2917
  %v2928 = vsel %vm279, %v2919, 0
  %v2931 = vsel %vm279, %v2920, 0
  %v2934 = vsel %vm279, %v2921, 0
  %v2937 = vsel %vm279, %v2922, 0
  %v2940 = vsel %vm279, %v2923, 0
  %v2943 = vsel %vm279, %v2924, 0
  %v2946 = vsel %vm279, %v2925, 0
  %v2949 = vsel %vm279, %v2926, 0
  %2951 = vmatpush.bf16.msra.mxu0 0
  %2952 = vmatpush.bf16.msra.mxu0 0
  %2953 = vmatpush.bf16.msra.mxu0 0
  %2954 = vmatpush.bf16.msra.mxu0 0
  %2955 = vmatpush.bf16.msra.mxu0 0
  %2956 = vmatpush.bf16.msra.mxu0 0
  %2957 = vmatpush.bf16.msra.mxu0 %v1612
  %2958 = vmatpush.bf16.msra.mxu0 %v1610
  %2959 = vmatmul.bf16.gmra.mxu0 %v2928
  %v2960 = vpop.f32.mrf.mxu0
  %v2961 = vadd.f32 0.0, %v2960
  %v2962 = vpop.f32.mrf.mxu0
  %v2963 = vadd.f32 0.0, %v2962
  %2964 = vmatmul.bf16.gmra.mxu0 %v2931
  %v2965 = vpop.f32.mrf.mxu0
  %v2966 = vadd.f32 0.0, %v2965
  %v2967 = vpop.f32.mrf.mxu0
  %v2968 = vadd.f32 0.0, %v2967
  %2969 = vmatmul.bf16.gmra.mxu0 %v2934
  %v2970 = vpop.f32.mrf.mxu0
  %v2971 = vadd.f32 0.0, %v2970
  %v2972 = vpop.f32.mrf.mxu0
  %v2973 = vadd.f32 0.0, %v2972
  %2974 = vmatmul.bf16.gmra.mxu0 %v2937
  %v2975 = vpop.f32.mrf.mxu0
  %v2976 = vadd.f32 0.0, %v2975
  %v2977 = vpop.f32.mrf.mxu0
  %v2978 = vadd.f32 0.0, %v2977
  %2979 = vmatmul.bf16.gmra.mxu0 %v2940
  %v2980 = vpop.f32.mrf.mxu0
  %v2981 = vadd.f32 0.0, %v2980
  %v2982 = vpop.f32.mrf.mxu0
  %v2983 = vadd.f32 0.0, %v2982
  %2984 = vmatmul.bf16.gmra.mxu0 %v2943
  %v2985 = vpop.f32.mrf.mxu0
  %v2986 = vadd.f32 0.0, %v2985
  %v2987 = vpop.f32.mrf.mxu0
  %v2988 = vadd.f32 0.0, %v2987
  %2989 = vmatmul.bf16.gmra.mxu0 %v2946
  %v2990 = vpop.f32.mrf.mxu0
  %v2991 = vadd.f32 0.0, %v2990
  %v2992 = vpop.f32.mrf.mxu0
  %v2993 = vadd.f32 0.0, %v2992
  %2994 = vmatmul.bf16.gmra.mxu0 %v2949
  %v2995 = vpop.f32.mrf.mxu0
  %v2996 = vadd.f32 0.0, %v2995
  %v2997 = vpop.f32.mrf.mxu0
  %v2998 = vadd.f32 0.0, %v2997
  %2999 = vdwg.mxu0
  %v3016 = vunpack.c.l.b16 %v2854
  %v3017 = vunpack.c.l.b16 %v2855
  %v3018 = vunpack.c.l.b16 %v2856
  %v3019 = vunpack.c.l.b16 %v2857
  %v3020 = vunpack.c.l.b16 %v2858
  %v3021 = vunpack.c.l.b16 %v2859
  %v3022 = vunpack.c.l.b16 %v2860
  %v3023 = vunpack.c.l.b16 %v2861
  %v3024 = vunpack.c.l.b16 %v2862
  %v3025 = vunpack.c.l.b16 %v2863
  %v3026 = vunpack.c.l.b16 %v2864
  %v3027 = vunpack.c.l.b16 %v2865
  %v3028 = vunpack.c.l.b16 %v2866
  %v3029 = vunpack.c.l.b16 %v2867
  %v3030 = vunpack.c.l.b16 %v2868
  %v3031 = vunpack.c.l.b16 %v2869
  %v3032 = vpack.c.b16 %v3017, %v3016
  %v3033 = vpack.c.b16 %v3019, %v3018
  %v3034 = vpack.c.b16 %v3021, %v3020
  %v3035 = vpack.c.b16 %v3023, %v3022
  %v3036 = vpack.c.b16 %v3025, %v3024
  %v3037 = vpack.c.b16 %v3027, %v3026
  %v3038 = vpack.c.b16 %v3029, %v3028
  %v3039 = vpack.c.b16 %v3031, %v3030
  %v3041 = vsel %vm279, %v3032, 0
  %v3044 = vsel %vm279, %v3033, 0
  %v3047 = vsel %vm279, %v3034, 0
  %v3050 = vsel %vm279, %v3035, 0
  %v3053 = vsel %vm279, %v3036, 0
  %v3056 = vsel %vm279, %v3037, 0
  %v3059 = vsel %vm279, %v3038, 0
  %v3062 = vsel %vm279, %v3039, 0
  %3064 = vmatpush.bf16.msra.mxu0 0
  %3065 = vmatpush.bf16.msra.mxu0 0
  %3066 = vmatpush.bf16.msra.mxu0 0
  %3067 = vmatpush.bf16.msra.mxu0 0
  %3068 = vmatpush.bf16.msra.mxu0 0
  %3069 = vmatpush.bf16.msra.mxu0 0
  %3070 = vmatpush.bf16.msra.mxu0 %v1608
  %3071 = vmatpush.bf16.msra.mxu0 %v1607
  %3072 = vmatmul.bf16.gmra.mxu0 %v3041
  %v3073 = vpop.f32.mrf.mxu0
  %v3074 = vadd.f32 %v2961, %v3073
  %v3075 = vpop.f32.mrf.mxu0
  %v3076 = vadd.f32 %v2963, %v3075
  %3077 = vmatmul.bf16.gmra.mxu0 %v3044
  %v3078 = vpop.f32.mrf.mxu0
  %v3079 = vadd.f32 %v2966, %v3078
  %v3080 = vpop.f32.mrf.mxu0
  %v3081 = vadd.f32 %v2968, %v3080
  %3082 = vmatmul.bf16.gmra.mxu0 %v3047
  %v3083 = vpop.f32.mrf.mxu0
  %v3084 = vadd.f32 %v2971, %v3083
  %v3085 = vpop.f32.mrf.mxu0
  %v3086 = vadd.f32 %v2973, %v3085
  %3087 = vmatmul.bf16.gmra.mxu0 %v3050
  %v3088 = vpop.f32.mrf.mxu0
  %v3089 = vadd.f32 %v2976, %v3088
  %v3090 = vpop.f32.mrf.mxu0
  %v3091 = vadd.f32 %v2978, %v3090
  %3092 = vmatmul.bf16.gmra.mxu0 %v3053
  %v3093 = vpop.f32.mrf.mxu0
  %v3094 = vadd.f32 %v2981, %v3093
  %v3095 = vpop.f32.mrf.mxu0
  %v3096 = vadd.f32 %v2983, %v3095
  %3097 = vmatmul.bf16.gmra.mxu0 %v3056
  %v3098 = vpop.f32.mrf.mxu0
  %v3099 = vadd.f32 %v2986, %v3098
  %v3100 = vpop.f32.mrf.mxu0
  %v3101 = vadd.f32 %v2988, %v3100
  %3102 = vmatmul.bf16.gmra.mxu0 %v3059
  %v3103 = vpop.f32.mrf.mxu0
  %v3104 = vadd.f32 %v2991, %v3103
  %v3105 = vpop.f32.mrf.mxu0
  %v3106 = vadd.f32 %v2993, %v3105
  %3107 = vmatmul.bf16.gmra.mxu0 %v3062
  %v3108 = vpop.f32.mrf.mxu0
  %v3109 = vadd.f32 %v2996, %v3108
  %v3110 = vpop.f32.mrf.mxu0
  %v3111 = vadd.f32 %v2998, %v3110
  %3112 = vdwg.mxu0
  %s3113 = scalar_lea.vmem %s7, 640
  %v3114 = vld [vmem:[%s3113] sm:$0xf]
  %v3115 = vld [vmem:[%s3113 + $0x4] sm:$0xf]
  %v3116 = vld [vmem:[%s3113 + $0x8] sm:$0xf]
  %v3117 = vld [vmem:[%s3113 + $0xc] sm:$0xf]
  %v3118 = vld [vmem:[%s3113 + $0x10] sm:$0xf]
  %v3119 = vld [vmem:[%s3113 + $0x14] sm:$0xf]
  %v3120 = vld [vmem:[%s3113 + $0x18] sm:$0xf]
  %v3121 = vld [vmem:[%s3113 + $0x1c] sm:$0xf]
  %v3122 = vld [vmem:[%s3113 + $0x20] sm:$0xf]
  %v3123 = vld [vmem:[%s3113 + $0x24] sm:$0xf]
  %v3124 = vld [vmem:[%s3113 + $0x28] sm:$0xf]
  %v3125 = vld [vmem:[%s3113 + $0x2c] sm:$0xf]
  %v3126 = vld [vmem:[%s3113 + $0x30] sm:$0xf]
  %v3127 = vld [vmem:[%s3113 + $0x34] sm:$0xf]
  %v3128 = vld [vmem:[%s3113 + $0x38] sm:$0xf]
  %v3129 = vld [vmem:[%s3113 + $0x3c] sm:$0xf]
  %v3146 = vunpack.c.l.b16 %v3114
  %v3147 = vunpack.c.l.b16 %v3115
  %v3148 = vunpack.c.l.b16 %v3116
  %v3149 = vunpack.c.l.b16 %v3117
  %v3150 = vunpack.c.l.b16 %v3118
  %v3151 = vunpack.c.l.b16 %v3119
  %v3152 = vunpack.c.l.b16 %v3120
  %v3153 = vunpack.c.l.b16 %v3121
  %v3154 = vunpack.c.l.b16 %v3122
  %v3155 = vunpack.c.l.b16 %v3123
  %v3156 = vunpack.c.l.b16 %v3124
  %v3157 = vunpack.c.l.b16 %v3125
  %v3158 = vunpack.c.l.b16 %v3126
  %v3159 = vunpack.c.l.b16 %v3127
  %v3160 = vunpack.c.l.b16 %v3128
  %v3161 = vunpack.c.l.b16 %v3129
  %v3162 = vpack.c.b16 %v3147, %v3146
  %v3163 = vpack.c.b16 %v3149, %v3148
  %v3164 = vpack.c.b16 %v3151, %v3150
  %v3165 = vpack.c.b16 %v3153, %v3152
  %v3166 = vpack.c.b16 %v3155, %v3154
  %v3167 = vpack.c.b16 %v3157, %v3156
  %v3168 = vpack.c.b16 %v3159, %v3158
  %v3169 = vpack.c.b16 %v3161, %v3160
  %v3171 = vsel %vm279, %v3162, 0
  %v3174 = vsel %vm279, %v3163, 0
  %v3177 = vsel %vm279, %v3164, 0
  %v3180 = vsel %vm279, %v3165, 0
  %v3183 = vsel %vm279, %v3166, 0
  %v3186 = vsel %vm279, %v3167, 0
  %v3189 = vsel %vm279, %v3168, 0
  %v3192 = vsel %vm279, %v3169, 0
  %3194 = vmatpush.bf16.msra.mxu0 0
  %3195 = vmatpush.bf16.msra.mxu0 0
  %3196 = vmatpush.bf16.msra.mxu0 0
  %3197 = vmatpush.bf16.msra.mxu0 0
  %3198 = vmatpush.bf16.msra.mxu0 0
  %3199 = vmatpush.bf16.msra.mxu0 0
  %3200 = vmatpush.bf16.msra.mxu0 %v1863
  %3201 = vmatpush.bf16.msra.mxu0 %v1861
  %3202 = vmatmul.bf16.gmra.mxu0 %v3171
  %v3203 = vpop.f32.mrf.mxu0
  %v3204 = vadd.f32 0.0, %v3203
  %v3205 = vpop.f32.mrf.mxu0
  %v3206 = vadd.f32 0.0, %v3205
  %3207 = vmatmul.bf16.gmra.mxu0 %v3174
  %v3208 = vpop.f32.mrf.mxu0
  %v3209 = vadd.f32 0.0, %v3208
  %v3210 = vpop.f32.mrf.mxu0
  %v3211 = vadd.f32 0.0, %v3210
  %3212 = vmatmul.bf16.gmra.mxu0 %v3177
  %v3213 = vpop.f32.mrf.mxu0
  %v3214 = vadd.f32 0.0, %v3213
  %v3215 = vpop.f32.mrf.mxu0
  %v3216 = vadd.f32 0.0, %v3215
  %3217 = vmatmul.bf16.gmra.mxu0 %v3180
  %v3218 = vpop.f32.mrf.mxu0
  %v3219 = vadd.f32 0.0, %v3218
  %v3220 = vpop.f32.mrf.mxu0
  %v3221 = vadd.f32 0.0, %v3220
  %3222 = vmatmul.bf16.gmra.mxu0 %v3183
  %v3223 = vpop.f32.mrf.mxu0
  %v3224 = vadd.f32 0.0, %v3223
  %v3225 = vpop.f32.mrf.mxu0
  %v3226 = vadd.f32 0.0, %v3225
  %3227 = vmatmul.bf16.gmra.mxu0 %v3186
  %v3228 = vpop.f32.mrf.mxu0
  %v3229 = vadd.f32 0.0, %v3228
  %v3230 = vpop.f32.mrf.mxu0
  %v3231 = vadd.f32 0.0, %v3230
  %3232 = vmatmul.bf16.gmra.mxu0 %v3189
  %v3233 = vpop.f32.mrf.mxu0
  %v3234 = vadd.f32 0.0, %v3233
  %v3235 = vpop.f32.mrf.mxu0
  %v3236 = vadd.f32 0.0, %v3235
  %3237 = vmatmul.bf16.gmra.mxu0 %v3192
  %v3238 = vpop.f32.mrf.mxu0
  %v3239 = vadd.f32 0.0, %v3238
  %v3240 = vpop.f32.mrf.mxu0
  %v3241 = vadd.f32 0.0, %v3240
  %3242 = vdwg.mxu0
  %v3243 = vadd.f32 %v3074, %v3204
  %v3244 = vadd.f32 %v3076, %v3206
  %v3245 = vadd.f32 %v3079, %v3209
  %v3246 = vadd.f32 %v3081, %v3211
  %v3247 = vadd.f32 %v3084, %v3214
  %v3248 = vadd.f32 %v3086, %v3216
  %v3249 = vadd.f32 %v3089, %v3219
  %v3250 = vadd.f32 %v3091, %v3221
  %v3251 = vadd.f32 %v3094, %v3224
  %v3252 = vadd.f32 %v3096, %v3226
  %v3253 = vadd.f32 %v3099, %v3229
  %v3254 = vadd.f32 %v3101, %v3231
  %v3255 = vadd.f32 %v3104, %v3234
  %v3256 = vadd.f32 %v3106, %v3236
  %v3257 = vadd.f32 %v3109, %v3239
  %v3258 = vadd.f32 %v3111, %v3241
  %s3259 = scalar_lea.vmem %s7, 704
  %v3260 = vld [vmem:[%s3259] sm:$0xf]
  %v3261 = vld [vmem:[%s3259 + $0x4] sm:$0xf]
  %v3262 = vld [vmem:[%s3259 + $0x8] sm:$0xf]
  %v3263 = vld [vmem:[%s3259 + $0xc] sm:$0xf]
  %v3264 = vld [vmem:[%s3259 + $0x10] sm:$0xf]
  %v3265 = vld [vmem:[%s3259 + $0x14] sm:$0xf]
  %v3266 = vld [vmem:[%s3259 + $0x18] sm:$0xf]
  %v3267 = vld [vmem:[%s3259 + $0x1c] sm:$0xf]
  %v3268 = vld [vmem:[%s3259 + $0x20] sm:$0xf]
  %v3269 = vld [vmem:[%s3259 + $0x24] sm:$0xf]
  %v3270 = vld [vmem:[%s3259 + $0x28] sm:$0xf]
  %v3271 = vld [vmem:[%s3259 + $0x2c] sm:$0xf]
  %v3272 = vld [vmem:[%s3259 + $0x30] sm:$0xf]
  %v3273 = vld [vmem:[%s3259 + $0x34] sm:$0xf]
  %v3274 = vld [vmem:[%s3259 + $0x38] sm:$0xf]
  %v3275 = vld [vmem:[%s3259 + $0x3c] sm:$0xf]
  %v3292 = vunpack.c.l.b16 %v3260
  %v3293 = vunpack.c.l.b16 %v3261
  %v3294 = vunpack.c.l.b16 %v3262
  %v3295 = vunpack.c.l.b16 %v3263
  %v3296 = vunpack.c.l.b16 %v3264
  %v3297 = vunpack.c.l.b16 %v3265
  %v3298 = vunpack.c.l.b16 %v3266
  %v3299 = vunpack.c.l.b16 %v3267
  %v3300 = vunpack.c.l.b16 %v3268
  %v3301 = vunpack.c.l.b16 %v3269
  %v3302 = vunpack.c.l.b16 %v3270
  %v3303 = vunpack.c.l.b16 %v3271
  %v3304 = vunpack.c.l.b16 %v3272
  %v3305 = vunpack.c.l.b16 %v3273
  %v3306 = vunpack.c.l.b16 %v3274
  %v3307 = vunpack.c.l.b16 %v3275
  %v3308 = vpack.c.b16 %v3293, %v3292
  %v3309 = vpack.c.b16 %v3295, %v3294
  %v3310 = vpack.c.b16 %v3297, %v3296
  %v3311 = vpack.c.b16 %v3299, %v3298
  %v3312 = vpack.c.b16 %v3301, %v3300
  %v3313 = vpack.c.b16 %v3303, %v3302
  %v3314 = vpack.c.b16 %v3305, %v3304
  %v3315 = vpack.c.b16 %v3307, %v3306
  %v3317 = vsel %vm279, %v3308, 0
  %v3320 = vsel %vm279, %v3309, 0
  %v3323 = vsel %vm279, %v3310, 0
  %v3326 = vsel %vm279, %v3311, 0
  %v3329 = vsel %vm279, %v3312, 0
  %v3332 = vsel %vm279, %v3313, 0
  %v3335 = vsel %vm279, %v3314, 0
  %v3338 = vsel %vm279, %v3315, 0
  %3340 = vmatpush.bf16.msra.mxu0 0
  %3341 = vmatpush.bf16.msra.mxu0 0
  %3342 = vmatpush.bf16.msra.mxu0 0
  %3343 = vmatpush.bf16.msra.mxu0 0
  %3344 = vmatpush.bf16.msra.mxu0 0
  %3345 = vmatpush.bf16.msra.mxu0 0
  %3346 = vmatpush.bf16.msra.mxu0 %v2015
  %3347 = vmatpush.bf16.msra.mxu0 %v2013
  %3348 = vmatmul.bf16.gmra.mxu0 %v3317
  %v3349 = vpop.f32.mrf.mxu0
  %v3350 = vadd.f32 0.0, %v3349
  %v3351 = vpop.f32.mrf.mxu0
  %v3352 = vadd.f32 0.0, %v3351
  %3353 = vmatmul.bf16.gmra.mxu0 %v3320
  %v3354 = vpop.f32.mrf.mxu0
  %v3355 = vadd.f32 0.0, %v3354
  %v3356 = vpop.f32.mrf.mxu0
  %v3357 = vadd.f32 0.0, %v3356
  %3358 = vmatmul.bf16.gmra.mxu0 %v3323
  %v3359 = vpop.f32.mrf.mxu0
  %v3360 = vadd.f32 0.0, %v3359
  %v3361 = vpop.f32.mrf.mxu0
  %v3362 = vadd.f32 0.0, %v3361
  %3363 = vmatmul.bf16.gmra.mxu0 %v3326
  %v3364 = vpop.f32.mrf.mxu0
  %v3365 = vadd.f32 0.0, %v3364
  %v3366 = vpop.f32.mrf.mxu0
  %v3367 = vadd.f32 0.0, %v3366
  %3368 = vmatmul.bf16.gmra.mxu0 %v3329
  %v3369 = vpop.f32.mrf.mxu0
  %v3370 = vadd.f32 0.0, %v3369
  %v3371 = vpop.f32.mrf.mxu0
  %v3372 = vadd.f32 0.0, %v3371
  %3373 = vmatmul.bf16.gmra.mxu0 %v3332
  %v3374 = vpop.f32.mrf.mxu0
  %v3375 = vadd.f32 0.0, %v3374
  %v3376 = vpop.f32.mrf.mxu0
  %v3377 = vadd.f32 0.0, %v3376
  %3378 = vmatmul.bf16.gmra.mxu0 %v3335
  %v3379 = vpop.f32.mrf.mxu0
  %v3380 = vadd.f32 0.0, %v3379
  %v3381 = vpop.f32.mrf.mxu0
  %v3382 = vadd.f32 0.0, %v3381
  %3383 = vmatmul.bf16.gmra.mxu0 %v3338
  %v3384 = vpop.f32.mrf.mxu0
  %v3385 = vadd.f32 0.0, %v3384
  %v3386 = vpop.f32.mrf.mxu0
  %v3387 = vadd.f32 0.0, %v3386
  %3388 = vdwg.mxu0
  %v3389 = vadd.f32 %v3243, %v3350
  %v3390 = vadd.f32 %v3244, %v3352
  %v3391 = vadd.f32 %v3245, %v3355
  %v3392 = vadd.f32 %v3246, %v3357
  %v3393 = vadd.f32 %v3247, %v3360
  %v3394 = vadd.f32 %v3248, %v3362
  %v3395 = vadd.f32 %v3249, %v3365
  %v3396 = vadd.f32 %v3250, %v3367
  %v3397 = vadd.f32 %v3251, %v3370
  %v3398 = vadd.f32 %v3252, %v3372
  %v3399 = vadd.f32 %v3253, %v3375
  %v3400 = vadd.f32 %v3254, %v3377
  %v3401 = vadd.f32 %v3255, %v3380
  %v3402 = vadd.f32 %v3256, %v3382
  %v3403 = vadd.f32 %v3257, %v3385
  %v3404 = vadd.f32 %v3258, %v3387
  %v3405 = vpack.c.bf16 %v3390, %v3389
  %v3406 = vpack.c.bf16 %v3392, %v3391
  %v3407 = vpack.c.bf16 %v3394, %v3393
  %v3408 = vpack.c.bf16 %v3396, %v3395
  %v3409 = vpack.c.bf16 %v3398, %v3397
  %v3410 = vpack.c.bf16 %v3400, %v3399
  %v3411 = vpack.c.bf16 %v3402, %v3401
  %v3412 = vpack.c.bf16 %v3404, %v3403
  %v3413 = vld [vmem:[%s8 + $0x20] sm:$0xf]
  %v3414 = vld [vmem:[%s8 + $0x24] sm:$0xf]
  %v3415 = vld [vmem:[%s8 + $0x28] sm:$0xf]
  %v3416 = vld [vmem:[%s8 + $0x2c] sm:$0xf]
  %v3421 = vunpack.c.l.b16 %v3413
  %v3422 = vunpack.c.l.b16 %v3414
  %v3423 = vunpack.c.l.b16 %v3415
  %v3424 = vunpack.c.l.b16 %v3416
  %v3425 = vpack.c.b16 %v3422, %v3421
  %v3426 = vpack.c.b16 %v3424, %v3423
  %v3430 = vsel %vm279, %v3405, 0
  %v3433 = vsel %vm279, %v3406, 0
  %v3436 = vsel %vm279, %v3407, 0
  %v3439 = vsel %vm279, %v3408, 0
  %v3442 = vsel %vm279, %v3409, 0
  %v3445 = vsel %vm279, %v3410, 0
  %v3448 = vsel %vm279, %v3411, 0
  %v3451 = vsel %vm279, %v3412, 0
  %3453 = vmatpush.bf16.msra.mxu0 0
  %3454 = vmatpush.bf16.msra.mxu0 0
  %3455 = vmatpush.bf16.msra.mxu0 0
  %3456 = vmatpush.bf16.msra.mxu0 0
  %3457 = vmatpush.bf16.msra.mxu0 0
  %3458 = vmatpush.bf16.msra.mxu0 0
  %3459 = vmatpush.bf16.msra.mxu0 %v3426
  %3460 = vmatpush.bf16.msra.mxu0 %v3425
  %3461 = vmatmul.bf16.gmra.mxu0 %v3430
  %v3462 = vpop.f32.mrf.mxu0
  %v3463 = vadd.f32 0.0, %v3462
  %v3464 = vpop.f32.mrf.mxu0
  %v3465 = vadd.f32 0.0, %v3464
  %3466 = vmatmul.bf16.gmra.mxu0 %v3433
  %v3467 = vpop.f32.mrf.mxu0
  %v3468 = vadd.f32 0.0, %v3467
  %v3469 = vpop.f32.mrf.mxu0
  %v3470 = vadd.f32 0.0, %v3469
  %3471 = vmatmul.bf16.gmra.mxu0 %v3436
  %v3472 = vpop.f32.mrf.mxu0
  %v3473 = vadd.f32 0.0, %v3472
  %v3474 = vpop.f32.mrf.mxu0
  %v3475 = vadd.f32 0.0, %v3474
  %3476 = vmatmul.bf16.gmra.mxu0 %v3439
  %v3477 = vpop.f32.mrf.mxu0
  %v3478 = vadd.f32 0.0, %v3477
  %v3479 = vpop.f32.mrf.mxu0
  %v3480 = vadd.f32 0.0, %v3479
  %3481 = vmatmul.bf16.gmra.mxu0 %v3442
  %v3482 = vpop.f32.mrf.mxu0
  %v3483 = vadd.f32 0.0, %v3482
  %v3484 = vpop.f32.mrf.mxu0
  %v3485 = vadd.f32 0.0, %v3484
  %3486 = vmatmul.bf16.gmra.mxu0 %v3445
  %v3487 = vpop.f32.mrf.mxu0
  %v3488 = vadd.f32 0.0, %v3487
  %v3489 = vpop.f32.mrf.mxu0
  %v3490 = vadd.f32 0.0, %v3489
  %3491 = vmatmul.bf16.gmra.mxu0 %v3448
  %v3492 = vpop.f32.mrf.mxu0
  %v3493 = vadd.f32 0.0, %v3492
  %v3494 = vpop.f32.mrf.mxu0
  %v3495 = vadd.f32 0.0, %v3494
  %3496 = vmatmul.bf16.gmra.mxu0 %v3451
  %v3497 = vpop.f32.mrf.mxu0
  %v3498 = vadd.f32 0.0, %v3497
  %v3499 = vpop.f32.mrf.mxu0
  %v3500 = vadd.f32 0.0, %v3499
  %3501 = vdwg.mxu0
  %v3502 = vadd.f32 %v2814, %v3463
  %v3503 = vadd.f32 %v2816, %v3465
  %v3504 = vadd.f32 %v2819, %v3468
  %v3505 = vadd.f32 %v2821, %v3470
  %v3506 = vadd.f32 %v2824, %v3473
  %v3507 = vadd.f32 %v2826, %v3475
  %v3508 = vadd.f32 %v2829, %v3478
  %v3509 = vadd.f32 %v2831, %v3480
  %v3510 = vadd.f32 %v2834, %v3483
  %v3511 = vadd.f32 %v2836, %v3485
  %v3512 = vadd.f32 %v2839, %v3488
  %v3513 = vadd.f32 %v2841, %v3490
  %v3514 = vadd.f32 %v2844, %v3493
  %v3515 = vadd.f32 %v2846, %v3495
  %v3516 = vadd.f32 %v2849, %v3498
  %v3517 = vadd.f32 %v2851, %v3500
  %s3518 = scalar_lea.vmem %s7, 768
  %v3519 = vld [vmem:[%s3518] sm:$0xf]
  %v3520 = vld [vmem:[%s3518 + $0x4] sm:$0xf]
  %v3521 = vld [vmem:[%s3518 + $0x8] sm:$0xf]
  %v3522 = vld [vmem:[%s3518 + $0xc] sm:$0xf]
  %v3523 = vld [vmem:[%s3518 + $0x10] sm:$0xf]
  %v3524 = vld [vmem:[%s3518 + $0x14] sm:$0xf]
  %v3525 = vld [vmem:[%s3518 + $0x18] sm:$0xf]
  %v3526 = vld [vmem:[%s3518 + $0x1c] sm:$0xf]
  %v3527 = vld [vmem:[%s3518 + $0x20] sm:$0xf]
  %v3528 = vld [vmem:[%s3518 + $0x24] sm:$0xf]
  %v3529 = vld [vmem:[%s3518 + $0x28] sm:$0xf]
  %v3530 = vld [vmem:[%s3518 + $0x2c] sm:$0xf]
  %v3531 = vld [vmem:[%s3518 + $0x30] sm:$0xf]
  %v3532 = vld [vmem:[%s3518 + $0x34] sm:$0xf]
  %v3533 = vld [vmem:[%s3518 + $0x38] sm:$0xf]
  %v3534 = vld [vmem:[%s3518 + $0x3c] sm:$0xf]
  %s3535 = scalar_lea.vmem %s7, 832
  %v3536 = vld [vmem:[%s3535] sm:$0xf]
  %v3537 = vld [vmem:[%s3535 + $0x4] sm:$0xf]
  %v3538 = vld [vmem:[%s3535 + $0x8] sm:$0xf]
  %v3539 = vld [vmem:[%s3535 + $0xc] sm:$0xf]
  %v3540 = vld [vmem:[%s3535 + $0x10] sm:$0xf]
  %v3541 = vld [vmem:[%s3535 + $0x14] sm:$0xf]
  %v3542 = vld [vmem:[%s3535 + $0x18] sm:$0xf]
  %v3543 = vld [vmem:[%s3535 + $0x1c] sm:$0xf]
  %v3544 = vld [vmem:[%s3535 + $0x20] sm:$0xf]
  %v3545 = vld [vmem:[%s3535 + $0x24] sm:$0xf]
  %v3546 = vld [vmem:[%s3535 + $0x28] sm:$0xf]
  %v3547 = vld [vmem:[%s3535 + $0x2c] sm:$0xf]
  %v3548 = vld [vmem:[%s3535 + $0x30] sm:$0xf]
  %v3549 = vld [vmem:[%s3535 + $0x34] sm:$0xf]
  %v3550 = vld [vmem:[%s3535 + $0x38] sm:$0xf]
  %v3551 = vld [vmem:[%s3535 + $0x3c] sm:$0xf]
  %v3568 = vunpack.c.l.b16 %v3536
  %v3569 = vunpack.c.l.b16 %v3537
  %v3570 = vunpack.c.l.b16 %v3538
  %v3571 = vunpack.c.l.b16 %v3539
  %v3572 = vunpack.c.l.b16 %v3540
  %v3573 = vunpack.c.l.b16 %v3541
  %v3574 = vunpack.c.l.b16 %v3542
  %v3575 = vunpack.c.l.b16 %v3543
  %v3576 = vunpack.c.l.b16 %v3544
  %v3577 = vunpack.c.l.b16 %v3545
  %v3578 = vunpack.c.l.b16 %v3546
  %v3579 = vunpack.c.l.b16 %v3547
  %v3580 = vunpack.c.l.b16 %v3548
  %v3581 = vunpack.c.l.b16 %v3549
  %v3582 = vunpack.c.l.b16 %v3550
  %v3583 = vunpack.c.l.b16 %v3551
  %v3584 = vpack.c.b16 %v3569, %v3568
  %v3585 = vpack.c.b16 %v3571, %v3570
  %v3586 = vpack.c.b16 %v3573, %v3572
  %v3587 = vpack.c.b16 %v3575, %v3574
  %v3588 = vpack.c.b16 %v3577, %v3576
  %v3589 = vpack.c.b16 %v3579, %v3578
  %v3590 = vpack.c.b16 %v3581, %v3580
  %v3591 = vpack.c.b16 %v3583, %v3582
  %v3593 = vsel %vm279, %v3584, 0
  %v3596 = vsel %vm279, %v3585, 0
  %v3599 = vsel %vm279, %v3586, 0
  %v3602 = vsel %vm279, %v3587, 0
  %v3605 = vsel %vm279, %v3588, 0
  %v3608 = vsel %vm279, %v3589, 0
  %v3611 = vsel %vm279, %v3590, 0
  %v3614 = vsel %vm279, %v3591, 0
  %3616 = vmatpush.bf16.msra.mxu0 0
  %3617 = vmatpush.bf16.msra.mxu0 0
  %3618 = vmatpush.bf16.msra.mxu0 0
  %3619 = vmatpush.bf16.msra.mxu0 0
  %3620 = vmatpush.bf16.msra.mxu0 0
  %3621 = vmatpush.bf16.msra.mxu0 0
  %3622 = vmatpush.bf16.msra.mxu0 %v1612
  %3623 = vmatpush.bf16.msra.mxu0 %v1610
  %3624 = vmatmul.bf16.gmra.mxu0 %v3593
  %v3625 = vpop.f32.mrf.mxu0
  %v3626 = vadd.f32 0.0, %v3625
  %v3627 = vpop.f32.mrf.mxu0
  %v3628 = vadd.f32 0.0, %v3627
  %3629 = vmatmul.bf16.gmra.mxu0 %v3596
  %v3630 = vpop.f32.mrf.mxu0
  %v3631 = vadd.f32 0.0, %v3630
  %v3632 = vpop.f32.mrf.mxu0
  %v3633 = vadd.f32 0.0, %v3632
  %3634 = vmatmul.bf16.gmra.mxu0 %v3599
  %v3635 = vpop.f32.mrf.mxu0
  %v3636 = vadd.f32 0.0, %v3635
  %v3637 = vpop.f32.mrf.mxu0
  %v3638 = vadd.f32 0.0, %v3637
  %3639 = vmatmul.bf16.gmra.mxu0 %v3602
  %v3640 = vpop.f32.mrf.mxu0
  %v3641 = vadd.f32 0.0, %v3640
  %v3642 = vpop.f32.mrf.mxu0
  %v3643 = vadd.f32 0.0, %v3642
  %3644 = vmatmul.bf16.gmra.mxu0 %v3605
  %v3645 = vpop.f32.mrf.mxu0
  %v3646 = vadd.f32 0.0, %v3645
  %v3647 = vpop.f32.mrf.mxu0
  %v3648 = vadd.f32 0.0, %v3647
  %3649 = vmatmul.bf16.gmra.mxu0 %v3608
  %v3650 = vpop.f32.mrf.mxu0
  %v3651 = vadd.f32 0.0, %v3650
  %v3652 = vpop.f32.mrf.mxu0
  %v3653 = vadd.f32 0.0, %v3652
  %3654 = vmatmul.bf16.gmra.mxu0 %v3611
  %v3655 = vpop.f32.mrf.mxu0
  %v3656 = vadd.f32 0.0, %v3655
  %v3657 = vpop.f32.mrf.mxu0
  %v3658 = vadd.f32 0.0, %v3657
  %3659 = vmatmul.bf16.gmra.mxu0 %v3614
  %v3660 = vpop.f32.mrf.mxu0
  %v3661 = vadd.f32 0.0, %v3660
  %v3662 = vpop.f32.mrf.mxu0
  %v3663 = vadd.f32 0.0, %v3662
  %3664 = vdwg.mxu0
  %v3681 = vunpack.c.l.b16 %v3519
  %v3682 = vunpack.c.l.b16 %v3520
  %v3683 = vunpack.c.l.b16 %v3521
  %v3684 = vunpack.c.l.b16 %v3522
  %v3685 = vunpack.c.l.b16 %v3523
  %v3686 = vunpack.c.l.b16 %v3524
  %v3687 = vunpack.c.l.b16 %v3525
  %v3688 = vunpack.c.l.b16 %v3526
  %v3689 = vunpack.c.l.b16 %v3527
  %v3690 = vunpack.c.l.b16 %v3528
  %v3691 = vunpack.c.l.b16 %v3529
  %v3692 = vunpack.c.l.b16 %v3530
  %v3693 = vunpack.c.l.b16 %v3531
  %v3694 = vunpack.c.l.b16 %v3532
  %v3695 = vunpack.c.l.b16 %v3533
  %v3696 = vunpack.c.l.b16 %v3534
  %v3697 = vpack.c.b16 %v3682, %v3681
  %v3698 = vpack.c.b16 %v3684, %v3683
  %v3699 = vpack.c.b16 %v3686, %v3685
  %v3700 = vpack.c.b16 %v3688, %v3687
  %v3701 = vpack.c.b16 %v3690, %v3689
  %v3702 = vpack.c.b16 %v3692, %v3691
  %v3703 = vpack.c.b16 %v3694, %v3693
  %v3704 = vpack.c.b16 %v3696, %v3695
  %v3706 = vsel %vm279, %v3697, 0
  %v3709 = vsel %vm279, %v3698, 0
  %v3712 = vsel %vm279, %v3699, 0
  %v3715 = vsel %vm279, %v3700, 0
  %v3718 = vsel %vm279, %v3701, 0
  %v3721 = vsel %vm279, %v3702, 0
  %v3724 = vsel %vm279, %v3703, 0
  %v3727 = vsel %vm279, %v3704, 0
  %3729 = vmatpush.bf16.msra.mxu0 0
  %3730 = vmatpush.bf16.msra.mxu0 0
  %3731 = vmatpush.bf16.msra.mxu0 0
  %3732 = vmatpush.bf16.msra.mxu0 0
  %3733 = vmatpush.bf16.msra.mxu0 0
  %3734 = vmatpush.bf16.msra.mxu0 0
  %3735 = vmatpush.bf16.msra.mxu0 %v1608
  %3736 = vmatpush.bf16.msra.mxu0 %v1607
  %3737 = vmatmul.bf16.gmra.mxu0 %v3706
  %v3738 = vpop.f32.mrf.mxu0
  %v3739 = vadd.f32 %v3626, %v3738
  %v3740 = vpop.f32.mrf.mxu0
  %v3741 = vadd.f32 %v3628, %v3740
  %3742 = vmatmul.bf16.gmra.mxu0 %v3709
  %v3743 = vpop.f32.mrf.mxu0
  %v3744 = vadd.f32 %v3631, %v3743
  %v3745 = vpop.f32.mrf.mxu0
  %v3746 = vadd.f32 %v3633, %v3745
  %3747 = vmatmul.bf16.gmra.mxu0 %v3712
  %v3748 = vpop.f32.mrf.mxu0
  %v3749 = vadd.f32 %v3636, %v3748
  %v3750 = vpop.f32.mrf.mxu0
  %v3751 = vadd.f32 %v3638, %v3750
  %3752 = vmatmul.bf16.gmra.mxu0 %v3715
  %v3753 = vpop.f32.mrf.mxu0
  %v3754 = vadd.f32 %v3641, %v3753
  %v3755 = vpop.f32.mrf.mxu0
  %v3756 = vadd.f32 %v3643, %v3755
  %3757 = vmatmul.bf16.gmra.mxu0 %v3718
  %v3758 = vpop.f32.mrf.mxu0
  %v3759 = vadd.f32 %v3646, %v3758
  %v3760 = vpop.f32.mrf.mxu0
  %v3761 = vadd.f32 %v3648, %v3760
  %3762 = vmatmul.bf16.gmra.mxu0 %v3721
  %v3763 = vpop.f32.mrf.mxu0
  %v3764 = vadd.f32 %v3651, %v3763
  %v3765 = vpop.f32.mrf.mxu0
  %v3766 = vadd.f32 %v3653, %v3765
  %3767 = vmatmul.bf16.gmra.mxu0 %v3724
  %v3768 = vpop.f32.mrf.mxu0
  %v3769 = vadd.f32 %v3656, %v3768
  %v3770 = vpop.f32.mrf.mxu0
  %v3771 = vadd.f32 %v3658, %v3770
  %3772 = vmatmul.bf16.gmra.mxu0 %v3727
  %v3773 = vpop.f32.mrf.mxu0
  %v3774 = vadd.f32 %v3661, %v3773
  %v3775 = vpop.f32.mrf.mxu0
  %v3776 = vadd.f32 %v3663, %v3775
  %3777 = vdwg.mxu0
  %s3778 = scalar_lea.vmem %s7, 896
  %v3779 = vld [vmem:[%s3778] sm:$0xf]
  %v3780 = vld [vmem:[%s3778 + $0x4] sm:$0xf]
  %v3781 = vld [vmem:[%s3778 + $0x8] sm:$0xf]
  %v3782 = vld [vmem:[%s3778 + $0xc] sm:$0xf]
  %v3783 = vld [vmem:[%s3778 + $0x10] sm:$0xf]
  %v3784 = vld [vmem:[%s3778 + $0x14] sm:$0xf]
  %v3785 = vld [vmem:[%s3778 + $0x18] sm:$0xf]
  %v3786 = vld [vmem:[%s3778 + $0x1c] sm:$0xf]
  %v3787 = vld [vmem:[%s3778 + $0x20] sm:$0xf]
  %v3788 = vld [vmem:[%s3778 + $0x24] sm:$0xf]
  %v3789 = vld [vmem:[%s3778 + $0x28] sm:$0xf]
  %v3790 = vld [vmem:[%s3778 + $0x2c] sm:$0xf]
  %v3791 = vld [vmem:[%s3778 + $0x30] sm:$0xf]
  %v3792 = vld [vmem:[%s3778 + $0x34] sm:$0xf]
  %v3793 = vld [vmem:[%s3778 + $0x38] sm:$0xf]
  %v3794 = vld [vmem:[%s3778 + $0x3c] sm:$0xf]
  %v3811 = vunpack.c.l.b16 %v3779
  %v3812 = vunpack.c.l.b16 %v3780
  %v3813 = vunpack.c.l.b16 %v3781
  %v3814 = vunpack.c.l.b16 %v3782
  %v3815 = vunpack.c.l.b16 %v3783
  %v3816 = vunpack.c.l.b16 %v3784
  %v3817 = vunpack.c.l.b16 %v3785
  %v3818 = vunpack.c.l.b16 %v3786
  %v3819 = vunpack.c.l.b16 %v3787
  %v3820 = vunpack.c.l.b16 %v3788
  %v3821 = vunpack.c.l.b16 %v3789
  %v3822 = vunpack.c.l.b16 %v3790
  %v3823 = vunpack.c.l.b16 %v3791
  %v3824 = vunpack.c.l.b16 %v3792
  %v3825 = vunpack.c.l.b16 %v3793
  %v3826 = vunpack.c.l.b16 %v3794
  %v3827 = vpack.c.b16 %v3812, %v3811
  %v3828 = vpack.c.b16 %v3814, %v3813
  %v3829 = vpack.c.b16 %v3816, %v3815
  %v3830 = vpack.c.b16 %v3818, %v3817
  %v3831 = vpack.c.b16 %v3820, %v3819
  %v3832 = vpack.c.b16 %v3822, %v3821
  %v3833 = vpack.c.b16 %v3824, %v3823
  %v3834 = vpack.c.b16 %v3826, %v3825
  %v3836 = vsel %vm279, %v3827, 0
  %v3839 = vsel %vm279, %v3828, 0
  %v3842 = vsel %vm279, %v3829, 0
  %v3845 = vsel %vm279, %v3830, 0
  %v3848 = vsel %vm279, %v3831, 0
  %v3851 = vsel %vm279, %v3832, 0
  %v3854 = vsel %vm279, %v3833, 0
  %v3857 = vsel %vm279, %v3834, 0
  %3859 = vmatpush.bf16.msra.mxu0 0
  %3860 = vmatpush.bf16.msra.mxu0 0
  %3861 = vmatpush.bf16.msra.mxu0 0
  %3862 = vmatpush.bf16.msra.mxu0 0
  %3863 = vmatpush.bf16.msra.mxu0 0
  %3864 = vmatpush.bf16.msra.mxu0 0
  %3865 = vmatpush.bf16.msra.mxu0 %v1863
  %3866 = vmatpush.bf16.msra.mxu0 %v1861
  %3867 = vmatmul.bf16.gmra.mxu0 %v3836
  %v3868 = vpop.f32.mrf.mxu0
  %v3869 = vadd.f32 0.0, %v3868
  %v3870 = vpop.f32.mrf.mxu0
  %v3871 = vadd.f32 0.0, %v3870
  %3872 = vmatmul.bf16.gmra.mxu0 %v3839
  %v3873 = vpop.f32.mrf.mxu0
  %v3874 = vadd.f32 0.0, %v3873
  %v3875 = vpop.f32.mrf.mxu0
  %v3876 = vadd.f32 0.0, %v3875
  %3877 = vmatmul.bf16.gmra.mxu0 %v3842
  %v3878 = vpop.f32.mrf.mxu0
  %v3879 = vadd.f32 0.0, %v3878
  %v3880 = vpop.f32.mrf.mxu0
  %v3881 = vadd.f32 0.0, %v3880
  %3882 = vmatmul.bf16.gmra.mxu0 %v3845
  %v3883 = vpop.f32.mrf.mxu0
  %v3884 = vadd.f32 0.0, %v3883
  %v3885 = vpop.f32.mrf.mxu0
  %v3886 = vadd.f32 0.0, %v3885
  %3887 = vmatmul.bf16.gmra.mxu0 %v3848
  %v3888 = vpop.f32.mrf.mxu0
  %v3889 = vadd.f32 0.0, %v3888
  %v3890 = vpop.f32.mrf.mxu0
  %v3891 = vadd.f32 0.0, %v3890
  %3892 = vmatmul.bf16.gmra.mxu0 %v3851
  %v3893 = vpop.f32.mrf.mxu0
  %v3894 = vadd.f32 0.0, %v3893
  %v3895 = vpop.f32.mrf.mxu0
  %v3896 = vadd.f32 0.0, %v3895
  %3897 = vmatmul.bf16.gmra.mxu0 %v3854
  %v3898 = vpop.f32.mrf.mxu0
  %v3899 = vadd.f32 0.0, %v3898
  %v3900 = vpop.f32.mrf.mxu0
  %v3901 = vadd.f32 0.0, %v3900
  %3902 = vmatmul.bf16.gmra.mxu0 %v3857
  %v3903 = vpop.f32.mrf.mxu0
  %v3904 = vadd.f32 0.0, %v3903
  %v3905 = vpop.f32.mrf.mxu0
  %v3906 = vadd.f32 0.0, %v3905
  %3907 = vdwg.mxu0
  %v3908 = vadd.f32 %v3739, %v3869
  %v3909 = vadd.f32 %v3741, %v3871
  %v3910 = vadd.f32 %v3744, %v3874
  %v3911 = vadd.f32 %v3746, %v3876
  %v3912 = vadd.f32 %v3749, %v3879
  %v3913 = vadd.f32 %v3751, %v3881
  %v3914 = vadd.f32 %v3754, %v3884
  %v3915 = vadd.f32 %v3756, %v3886
  %v3916 = vadd.f32 %v3759, %v3889
  %v3917 = vadd.f32 %v3761, %v3891
  %v3918 = vadd.f32 %v3764, %v3894
  %v3919 = vadd.f32 %v3766, %v3896
  %v3920 = vadd.f32 %v3769, %v3899
  %v3921 = vadd.f32 %v3771, %v3901
  %v3922 = vadd.f32 %v3774, %v3904
  %v3923 = vadd.f32 %v3776, %v3906
  %s3924 = scalar_lea.vmem %s7, 960
  %v3925 = vld [vmem:[%s3924] sm:$0xf]
  %v3926 = vld [vmem:[%s3924 + $0x4] sm:$0xf]
  %v3927 = vld [vmem:[%s3924 + $0x8] sm:$0xf]
  %v3928 = vld [vmem:[%s3924 + $0xc] sm:$0xf]
  %v3929 = vld [vmem:[%s3924 + $0x10] sm:$0xf]
  %v3930 = vld [vmem:[%s3924 + $0x14] sm:$0xf]
  %v3931 = vld [vmem:[%s3924 + $0x18] sm:$0xf]
  %v3932 = vld [vmem:[%s3924 + $0x1c] sm:$0xf]
  %v3933 = vld [vmem:[%s3924 + $0x20] sm:$0xf]
  %v3934 = vld [vmem:[%s3924 + $0x24] sm:$0xf]
  %v3935 = vld [vmem:[%s3924 + $0x28] sm:$0xf]
  %v3936 = vld [vmem:[%s3924 + $0x2c] sm:$0xf]
  %v3937 = vld [vmem:[%s3924 + $0x30] sm:$0xf]
  %v3938 = vld [vmem:[%s3924 + $0x34] sm:$0xf]
  %v3939 = vld [vmem:[%s3924 + $0x38] sm:$0xf]
  %v3940 = vld [vmem:[%s3924 + $0x3c] sm:$0xf]
  %v3957 = vunpack.c.l.b16 %v3925
  %v3958 = vunpack.c.l.b16 %v3926
  %v3959 = vunpack.c.l.b16 %v3927
  %v3960 = vunpack.c.l.b16 %v3928
  %v3961 = vunpack.c.l.b16 %v3929
  %v3962 = vunpack.c.l.b16 %v3930
  %v3963 = vunpack.c.l.b16 %v3931
  %v3964 = vunpack.c.l.b16 %v3932
  %v3965 = vunpack.c.l.b16 %v3933
  %v3966 = vunpack.c.l.b16 %v3934
  %v3967 = vunpack.c.l.b16 %v3935
  %v3968 = vunpack.c.l.b16 %v3936
  %v3969 = vunpack.c.l.b16 %v3937
  %v3970 = vunpack.c.l.b16 %v3938
  %v3971 = vunpack.c.l.b16 %v3939
  %v3972 = vunpack.c.l.b16 %v3940
  %v3973 = vpack.c.b16 %v3958, %v3957
  %v3974 = vpack.c.b16 %v3960, %v3959
  %v3975 = vpack.c.b16 %v3962, %v3961
  %v3976 = vpack.c.b16 %v3964, %v3963
  %v3977 = vpack.c.b16 %v3966, %v3965
  %v3978 = vpack.c.b16 %v3968, %v3967
  %v3979 = vpack.c.b16 %v3970, %v3969
  %v3980 = vpack.c.b16 %v3972, %v3971
  %v3982 = vsel %vm279, %v3973, 0
  %v3985 = vsel %vm279, %v3974, 0
  %v3988 = vsel %vm279, %v3975, 0
  %v3991 = vsel %vm279, %v3976, 0
  %v3994 = vsel %vm279, %v3977, 0
  %v3997 = vsel %vm279, %v3978, 0
  %v4000 = vsel %vm279, %v3979, 0
  %v4003 = vsel %vm279, %v3980, 0
  %4005 = vmatpush.bf16.msra.mxu0 0
  %4006 = vmatpush.bf16.msra.mxu0 0
  %4007 = vmatpush.bf16.msra.mxu0 0
  %4008 = vmatpush.bf16.msra.mxu0 0
  %4009 = vmatpush.bf16.msra.mxu0 0
  %4010 = vmatpush.bf16.msra.mxu0 0
  %4011 = vmatpush.bf16.msra.mxu0 %v2015
  %4012 = vmatpush.bf16.msra.mxu0 %v2013
  %4013 = vmatmul.bf16.gmra.mxu0 %v3982
  %v4014 = vpop.f32.mrf.mxu0
  %v4015 = vadd.f32 0.0, %v4014
  %v4016 = vpop.f32.mrf.mxu0
  %v4017 = vadd.f32 0.0, %v4016
  %4018 = vmatmul.bf16.gmra.mxu0 %v3985
  %v4019 = vpop.f32.mrf.mxu0
  %v4020 = vadd.f32 0.0, %v4019
  %v4021 = vpop.f32.mrf.mxu0
  %v4022 = vadd.f32 0.0, %v4021
  %4023 = vmatmul.bf16.gmra.mxu0 %v3988
  %v4024 = vpop.f32.mrf.mxu0
  %v4025 = vadd.f32 0.0, %v4024
  %v4026 = vpop.f32.mrf.mxu0
  %v4027 = vadd.f32 0.0, %v4026
  %4028 = vmatmul.bf16.gmra.mxu0 %v3991
  %v4029 = vpop.f32.mrf.mxu0
  %v4030 = vadd.f32 0.0, %v4029
  %v4031 = vpop.f32.mrf.mxu0
  %v4032 = vadd.f32 0.0, %v4031
  %4033 = vmatmul.bf16.gmra.mxu0 %v3994
  %v4034 = vpop.f32.mrf.mxu0
  %v4035 = vadd.f32 0.0, %v4034
  %v4036 = vpop.f32.mrf.mxu0
  %v4037 = vadd.f32 0.0, %v4036
  %4038 = vmatmul.bf16.gmra.mxu0 %v3997
  %v4039 = vpop.f32.mrf.mxu0
  %v4040 = vadd.f32 0.0, %v4039
  %v4041 = vpop.f32.mrf.mxu0
  %v4042 = vadd.f32 0.0, %v4041
  %4043 = vmatmul.bf16.gmra.mxu0 %v4000
  %v4044 = vpop.f32.mrf.mxu0
  %v4045 = vadd.f32 0.0, %v4044
  %v4046 = vpop.f32.mrf.mxu0
  %v4047 = vadd.f32 0.0, %v4046
  %4048 = vmatmul.bf16.gmra.mxu0 %v4003
  %v4049 = vpop.f32.mrf.mxu0
  %v4050 = vadd.f32 0.0, %v4049
  %v4051 = vpop.f32.mrf.mxu0
  %v4052 = vadd.f32 0.0, %v4051
  %4053 = vdwg.mxu0
  %v4054 = vadd.f32 %v3908, %v4015
  %v4055 = vadd.f32 %v3909, %v4017
  %v4056 = vadd.f32 %v3910, %v4020
  %v4057 = vadd.f32 %v3911, %v4022
  %v4058 = vadd.f32 %v3912, %v4025
  %v4059 = vadd.f32 %v3913, %v4027
  %v4060 = vadd.f32 %v3914, %v4030
  %v4061 = vadd.f32 %v3915, %v4032
  %v4062 = vadd.f32 %v3916, %v4035
  %v4063 = vadd.f32 %v3917, %v4037
  %v4064 = vadd.f32 %v3918, %v4040
  %v4065 = vadd.f32 %v3919, %v4042
  %v4066 = vadd.f32 %v3920, %v4045
  %v4067 = vadd.f32 %v3921, %v4047
  %v4068 = vadd.f32 %v3922, %v4050
  %v4069 = vadd.f32 %v3923, %v4052
  %v4070 = vpack.c.bf16 %v4055, %v4054
  %v4071 = vpack.c.bf16 %v4057, %v4056
  %v4072 = vpack.c.bf16 %v4059, %v4058
  %v4073 = vpack.c.bf16 %v4061, %v4060
  %v4074 = vpack.c.bf16 %v4063, %v4062
  %v4075 = vpack.c.bf16 %v4065, %v4064
  %v4076 = vpack.c.bf16 %v4067, %v4066
  %v4077 = vpack.c.bf16 %v4069, %v4068
  %v4078 = vld [vmem:[%s8 + $0x30] sm:$0xf]
  %v4079 = vld [vmem:[%s8 + $0x34] sm:$0xf]
  %v4080 = vld [vmem:[%s8 + $0x38] sm:$0xf]
  %v4081 = vld [vmem:[%s8 + $0x3c] sm:$0xf]
  %v4086 = vunpack.c.l.b16 %v4078
  %v4087 = vunpack.c.l.b16 %v4079
  %v4088 = vunpack.c.l.b16 %v4080
  %v4089 = vunpack.c.l.b16 %v4081
  %v4090 = vpack.c.b16 %v4087, %v4086
  %v4091 = vpack.c.b16 %v4089, %v4088
  %v4095 = vsel %vm279, %v4070, 0
  %v4098 = vsel %vm279, %v4071, 0
  %v4101 = vsel %vm279, %v4072, 0
  %v4104 = vsel %vm279, %v4073, 0
  %v4107 = vsel %vm279, %v4074, 0
  %v4110 = vsel %vm279, %v4075, 0
  %v4113 = vsel %vm279, %v4076, 0
  %v4116 = vsel %vm279, %v4077, 0
  %4118 = vmatpush.bf16.msra.mxu0 0
  %4119 = vmatpush.bf16.msra.mxu0 0
  %4120 = vmatpush.bf16.msra.mxu0 0
  %4121 = vmatpush.bf16.msra.mxu0 0
  %4122 = vmatpush.bf16.msra.mxu0 0
  %4123 = vmatpush.bf16.msra.mxu0 0
  %4124 = vmatpush.bf16.msra.mxu0 %v4091
  %4125 = vmatpush.bf16.msra.mxu0 %v4090
  %4126 = vmatmul.bf16.gmra.mxu0 %v4095
  %v4127 = vpop.f32.mrf.mxu0
  %v4128 = vadd.f32 0.0, %v4127
  %v4129 = vpop.f32.mrf.mxu0
  %v4130 = vadd.f32 0.0, %v4129
  %4131 = vmatmul.bf16.gmra.mxu0 %v4098
  %v4132 = vpop.f32.mrf.mxu0
  %v4133 = vadd.f32 0.0, %v4132
  %v4134 = vpop.f32.mrf.mxu0
  %v4135 = vadd.f32 0.0, %v4134
  %4136 = vmatmul.bf16.gmra.mxu0 %v4101
  %v4137 = vpop.f32.mrf.mxu0
  %v4138 = vadd.f32 0.0, %v4137
  %v4139 = vpop.f32.mrf.mxu0
  %v4140 = vadd.f32 0.0, %v4139
  %4141 = vmatmul.bf16.gmra.mxu0 %v4104
  %v4142 = vpop.f32.mrf.mxu0
  %v4143 = vadd.f32 0.0, %v4142
  %v4144 = vpop.f32.mrf.mxu0
  %v4145 = vadd.f32 0.0, %v4144
  %4146 = vmatmul.bf16.gmra.mxu0 %v4107
  %v4147 = vpop.f32.mrf.mxu0
  %v4148 = vadd.f32 0.0, %v4147
  %v4149 = vpop.f32.mrf.mxu0
  %v4150 = vadd.f32 0.0, %v4149
  %4151 = vmatmul.bf16.gmra.mxu0 %v4110
  %v4152 = vpop.f32.mrf.mxu0
  %v4153 = vadd.f32 0.0, %v4152
  %v4154 = vpop.f32.mrf.mxu0
  %v4155 = vadd.f32 0.0, %v4154
  %4156 = vmatmul.bf16.gmra.mxu0 %v4113
  %v4157 = vpop.f32.mrf.mxu0
  %v4158 = vadd.f32 0.0, %v4157
  %v4159 = vpop.f32.mrf.mxu0
  %v4160 = vadd.f32 0.0, %v4159
  %4161 = vmatmul.bf16.gmra.mxu0 %v4116
  %v4162 = vpop.f32.mrf.mxu0
  %v4163 = vadd.f32 0.0, %v4162
  %v4164 = vpop.f32.mrf.mxu0
  %v4165 = vadd.f32 0.0, %v4164
  %4166 = vdwg.mxu0
  %v4167 = vadd.f32 %v3502, %v4128
  %v4168 = vadd.f32 %v3503, %v4130
  %v4169 = vadd.f32 %v3504, %v4133
  %v4170 = vadd.f32 %v3505, %v4135
  %v4171 = vadd.f32 %v3506, %v4138
  %v4172 = vadd.f32 %v3507, %v4140
  %v4173 = vadd.f32 %v3508, %v4143
  %v4174 = vadd.f32 %v3509, %v4145
  %v4175 = vadd.f32 %v3510, %v4148
  %v4176 = vadd.f32 %v3511, %v4150
  %v4177 = vadd.f32 %v3512, %v4153
  %v4178 = vadd.f32 %v3513, %v4155
  %v4179 = vadd.f32 %v3514, %v4158
  %v4180 = vadd.f32 %v3515, %v4160
  %v4181 = vadd.f32 %v3516, %v4163
  %v4182 = vadd.f32 %v3517, %v4165
  %v4183 = vld [vmem:[%s9] sm:$0x3]
  %v4184 = vadd.f32 %v4167, %v4168
  %v4185 = vadd.f32 %v4184, %v4169
  %v4186 = vadd.f32 %v4185, %v4170
  %v4187 = vadd.f32 %v4186, %v4171
  %v4188 = vadd.f32 %v4187, %v4172
  %v4189 = vadd.f32 %v4188, %v4173
  %v4190 = vadd.f32 %v4189, %v4174
  %v4191 = vadd.f32 %v4190, %v4175
  %v4192 = vadd.f32 %v4191, %v4176
  %v4193 = vadd.f32 %v4192, %v4177
  %v4194 = vadd.f32 %v4193, %v4178
  %v4195 = vadd.f32 %v4194, %v4179
  %v4196 = vadd.f32 %v4195, %v4180
  %v4197 = vadd.f32 %v4196, %v4181
  %v4198 = vadd.f32 %v4197, %v4182
  %v4199 = vrot.slane %v4198, 4
  %v4200 = vadd.f32 %v4198, %v4199
  %v4201 = vrot.slane %v4200, 2
  %v4202 = vadd.f32 %v4200, %v4201
  %v4203 = vrot.slane %v4202, 1
  %v4204 = vadd.f32 %v4202, %v4203
  %4206 = vrot.lane.b32.xlu0 %v4204, 96
  %v4207 = vpop.permute.xlu0 %4206
  %v4209 = vadd.f32 %v4204, %v4207
  %4210 = vrot.lane.b32.xlu0 %v4204, 64
  %v4211 = vpop.permute.xlu0 %4210
  %v4213 = vadd.f32 %v4209, %v4211
  %4214 = vrot.lane.b32.xlu0 %v4204, 32
  %v4215 = vpop.permute.xlu0 %4214
  %v4217 = vadd.f32 %v4213, %v4215
  %4219 = vrot.lane.b32.xlu0 %v4217, 32
  %v4220 = vpop.permute.xlu0 %4219
  %4222 = vrot.lane.b32.xlu0 %v4217, 64
  %v4223 = vpop.permute.xlu0 %4222
  %4225 = vrot.lane.b32.xlu0 %v4217, 96
  %v4226 = vpop.permute.xlu0 %4225
  %v4228 = vsel %vm279, %v4217, %v4220
  %v4229 = vsel %vm390, %v4228, %v4223
  %v4230 = vsel %vm1440, %v4229, %v4226
  %v4231 = vmul.f32 %v4230, 0.001953125
  %v4232 = vperm.slane %v4231, 0
  %v4233 = vsub.f32 %v4167, %v4232
  %v4234 = vsub.f32 %v4168, %v4232
  %v4235 = vsub.f32 %v4169, %v4232
  %v4236 = vsub.f32 %v4170, %v4232
  %v4237 = vsub.f32 %v4171, %v4232
  %v4238 = vsub.f32 %v4172, %v4232
  %v4239 = vsub.f32 %v4173, %v4232
  %v4240 = vsub.f32 %v4174, %v4232
  %v4241 = vsub.f32 %v4175, %v4232
  %v4242 = vsub.f32 %v4176, %v4232
  %v4243 = vsub.f32 %v4177, %v4232
  %v4244 = vsub.f32 %v4178, %v4232
  %v4245 = vsub.f32 %v4179, %v4232
  %v4246 = vsub.f32 %v4180, %v4232
  %v4247 = vsub.f32 %v4181, %v4232
  %v4248 = vsub.f32 %v4182, %v4232
  %v4249 = vmul.f32 %v4233, %v4233
  %v4250 = vmul.f32 %v4234, %v4234
  %v4251 = vmul.f32 %v4235, %v4235
  %v4252 = vmul.f32 %v4236, %v4236
  %v4253 = vmul.f32 %v4237, %v4237
  %v4254 = vmul.f32 %v4238, %v4238
  %v4255 = vmul.f32 %v4239, %v4239
  %v4256 = vmul.f32 %v4240, %v4240
  %v4257 = vmul.f32 %v4241, %v4241
  %v4258 = vmul.f32 %v4242, %v4242
  %v4259 = vmul.f32 %v4243, %v4243
  %v4260 = vmul.f32 %v4244, %v4244
  %v4261 = vmul.f32 %v4245, %v4245
  %v4262 = vmul.f32 %v4246, %v4246
  %v4263 = vmul.f32 %v4247, %v4247
  %v4264 = vmul.f32 %v4248, %v4248
  %v4265 = vadd.f32 %v4249, %v4250
  %v4266 = vadd.f32 %v4265, %v4251
  %v4267 = vadd.f32 %v4266, %v4252
  %v4268 = vadd.f32 %v4267, %v4253
  %v4269 = vadd.f32 %v4268, %v4254
  %v4270 = vadd.f32 %v4269, %v4255
  %v4271 = vadd.f32 %v4270, %v4256
  %v4272 = vadd.f32 %v4271, %v4257
  %v4273 = vadd.f32 %v4272, %v4258
  %v4274 = vadd.f32 %v4273, %v4259
  %v4275 = vadd.f32 %v4274, %v4260
  %v4276 = vadd.f32 %v4275, %v4261
  %v4277 = vadd.f32 %v4276, %v4262
  %v4278 = vadd.f32 %v4277, %v4263
  %v4279 = vadd.f32 %v4278, %v4264
  %v4280 = vrot.slane %v4279, 4
  %v4281 = vadd.f32 %v4279, %v4280
  %v4282 = vrot.slane %v4281, 2
  %v4283 = vadd.f32 %v4281, %v4282
  %v4284 = vrot.slane %v4283, 1
  %v4285 = vadd.f32 %v4283, %v4284
  %4287 = vrot.lane.b32.xlu0 %v4285, 96
  %v4288 = vpop.permute.xlu0 %4287
  %v4290 = vadd.f32 %v4285, %v4288
  %4291 = vrot.lane.b32.xlu0 %v4285, 64
  %v4292 = vpop.permute.xlu0 %4291
  %v4294 = vadd.f32 %v4290, %v4292
  %4295 = vrot.lane.b32.xlu0 %v4285, 32
  %v4296 = vpop.permute.xlu0 %4295
  %v4298 = vadd.f32 %v4294, %v4296
  %4300 = vrot.lane.b32.xlu0 %v4298, 32
  %v4301 = vpop.permute.xlu0 %4300
  %4303 = vrot.lane.b32.xlu0 %v4298, 64
  %v4304 = vpop.permute.xlu0 %4303
  %4306 = vrot.lane.b32.xlu0 %v4298, 96
  %v4307 = vpop.permute.xlu0 %4306
  %v4309 = vsel %vm279, %v4298, %v4301
  %v4310 = vsel %vm390, %v4309, %v4304
  %v4311 = vsel %vm1440, %v4310, %v4307
  %v4312 = vmul.f32 %v4311, 0.001953125
  %v4313 = vadd.f32 %v4312, 1e-05
  %v4314 = vrsqrt.pop %v4313
  %v4315 = vmul.f32 %v4314, %v4313
  %v4316 = vmul.f32 %v4315, %v4314
  %v4317 = vmul.f32 0.5, %v4316
  %v4318 = vsub.f32 1.5, %v4317
  %v4319 = vmul.f32 %v4314, %v4318
  %vm4320 = vweird.f32 %v4313
  %vm4321 = vweird.f32 %v4314
  %vm4322 = vmor %vm4320, %vm4321
  %v4323 = vsel %vm4322, %v4314, %v4319
  %v4324 = vmul.f32 %v4183, %v4323
  %v4325 = vperm.slane %v4324, 0
  %v4326 = vmul.f32 %v4233, %v4325
  %v4327 = vmul.f32 %v4234, %v4325
  %v4328 = vmul.f32 %v4235, %v4325
  %v4329 = vmul.f32 %v4236, %v4325
  %v4330 = vmul.f32 %v4237, %v4325
  %v4331 = vmul.f32 %v4238, %v4325
  %v4332 = vmul.f32 %v4239, %v4325
  %v4333 = vmul.f32 %v4240, %v4325
  %v4334 = vmul.f32 %v4241, %v4325
  %v4335 = vmul.f32 %v4242, %v4325
  %v4336 = vmul.f32 %v4243, %v4325
  %v4337 = vmul.f32 %v4244, %v4325
  %v4338 = vmul.f32 %v4245, %v4325
  %v4339 = vmul.f32 %v4246, %v4325
  %v4340 = vmul.f32 %v4247, %v4325
  %v4341 = vmul.f32 %v4248, %v4325
  %v4342 = vperm.slane %v4183, 1
  %v4343 = vadd.f32 %v4326, %v4342
  %v4344 = vadd.f32 %v4327, %v4342
  %v4345 = vadd.f32 %v4328, %v4342
  %v4346 = vadd.f32 %v4329, %v4342
  %v4347 = vadd.f32 %v4330, %v4342
  %v4348 = vadd.f32 %v4331, %v4342
  %v4349 = vadd.f32 %v4332, %v4342
  %v4350 = vadd.f32 %v4333, %v4342
  %v4351 = vadd.f32 %v4334, %v4342
  %v4352 = vadd.f32 %v4335, %v4342
  %v4353 = vadd.f32 %v4336, %v4342
  %v4354 = vadd.f32 %v4337, %v4342
  %v4355 = vadd.f32 %v4338, %v4342
  %v4356 = vadd.f32 %v4339, %v4342
  %v4357 = vadd.f32 %v4340, %v4342
  %v4358 = vadd.f32 %v4341, %v4342
  %vm4359 = vcmp.gt.f32.partialorder %v4343, 0.0
  %vm4360 = vcmp.gt.f32.partialorder %v4344, 0.0
  %vm4361 = vcmp.gt.f32.partialorder %v4345, 0.0
  %vm4362 = vcmp.gt.f32.partialorder %v4346, 0.0
  %vm4363 = vcmp.gt.f32.partialorder %v4347, 0.0
  %vm4364 = vcmp.gt.f32.partialorder %v4348, 0.0
  %vm4365 = vcmp.gt.f32.partialorder %v4349, 0.0
  %vm4366 = vcmp.gt.f32.partialorder %v4350, 0.0
  %vm4367 = vcmp.gt.f32.partialorder %v4351, 0.0
  %vm4368 = vcmp.gt.f32.partialorder %v4352, 0.0
  %vm4369 = vcmp.gt.f32.partialorder %v4353, 0.0
  %vm4370 = vcmp.gt.f32.partialorder %v4354, 0.0
  %vm4371 = vcmp.gt.f32.partialorder %v4355, 0.0
  %vm4372 = vcmp.gt.f32.partialorder %v4356, 0.0
  %vm4373 = vcmp.gt.f32.partialorder %v4357, 0.0
  %vm4374 = vcmp.gt.f32.partialorder %v4358, 0.0
  %v4375 = vmul.f32 %v4343, 0.01
  %v4376 = vmul.f32 %v4344, 0.01
  %v4377 = vmul.f32 %v4345, 0.01
  %v4378 = vmul.f32 %v4346, 0.01
  %v4379 = vmul.f32 %v4347, 0.01
  %v4380 = vmul.f32 %v4348, 0.01
  %v4381 = vmul.f32 %v4349, 0.01
  %v4382 = vmul.f32 %v4350, 0.01
  %v4383 = vmul.f32 %v4351, 0.01
  %v4384 = vmul.f32 %v4352, 0.01
  %v4385 = vmul.f32 %v4353, 0.01
  %v4386 = vmul.f32 %v4354, 0.01
  %v4387 = vmul.f32 %v4355, 0.01
  %v4388 = vmul.f32 %v4356, 0.01
  %v4389 = vmul.f32 %v4357, 0.01
  %v4390 = vmul.f32 %v4358, 0.01
  %v4391 = vsel %vm4359, %v4343, %v4375
  %v4392 = vsel %vm4360, %v4344, %v4376
  %v4393 = vsel %vm4361, %v4345, %v4377
  %v4394 = vsel %vm4362, %v4346, %v4378
  %v4395 = vsel %vm4363, %v4347, %v4379
  %v4396 = vsel %vm4364, %v4348, %v4380
  %v4397 = vsel %vm4365, %v4349, %v4381
  %v4398 = vsel %vm4366, %v4350, %v4382
  %v4399 = vsel %vm4367, %v4351, %v4383
  %v4400 = vsel %vm4368, %v4352, %v4384
  %v4401 = vsel %vm4369, %v4353, %v4385
  %v4402 = vsel %vm4370, %v4354, %v4386
  %v4403 = vsel %vm4371, %v4355, %v4387
  %v4404 = vsel %vm4372, %v4356, %v4388
  %v4405 = vsel %vm4373, %v4357, %v4389
  %v4406 = vsel %vm4374, %v4358, %v4390
  %4407 = vxpose.xlu0.b32.start [1/16] %v4391, 128
  %4408 = vxpose.xlu0.b32.cont [2/16] %v4392, 128
  %4409 = vxpose.xlu0.b32.cont [3/16] %v4393, 128
  %4410 = vxpose.xlu0.b32.cont [4/16] %v4394, 128
  %4411 = vxpose.xlu0.b32.cont [5/16] %v4395, 128
  %4412 = vxpose.xlu0.b32.cont [6/16] %v4396, 128
  %4413 = vxpose.xlu0.b32.cont [7/16] %v4397, 128
  %4414 = vxpose.xlu0.b32.cont [8/16] %v4398, 128
  %4415 = vxpose.xlu0.b32.cont [9/16] %v4399, 128
  %4416 = vxpose.xlu0.b32.cont [10/16] %v4400, 128
  %4417 = vxpose.xlu0.b32.cont [11/16] %v4401, 128
  %4418 = vxpose.xlu0.b32.cont [12/16] %v4402, 128
  %4419 = vxpose.xlu0.b32.cont [13/16] %v4403, 128
  %4420 = vxpose.xlu0.b32.cont [14/16] %v4404, 128
  %4421 = vxpose.xlu0.b32.cont [15/16] %v4405, 128
  %4422 = vxpose.xlu0.b32.end [16/16] %v4406, 128
  %v4423 = vpop.trf.xlu0
  %v4424 = vpop.trf.xlu0
  %v4425 = vpop.trf.xlu0
  %v4426 = vpop.trf.xlu0
  %v4427 = vpop.trf.xlu0
  %v4428 = vpop.trf.xlu0
  %v4429 = vpop.trf.xlu0
  %v4430 = vpop.trf.xlu0
  %v4431 = vpop.trf.xlu0
  %v4432 = vpop.trf.xlu0
  %v4433 = vpop.trf.xlu0
  %v4434 = vpop.trf.xlu0
  %v4435 = vpop.trf.xlu0
  %v4436 = vpop.trf.xlu0
  %v4437 = vpop.trf.xlu0
  %v4438 = vpop.trf.xlu0
  %v4439 = vpack.c.bf16 %v4423, %v4423
  %v4440 = vpack.c.bf16 %v4424, %v4424
  %v4441 = vpack.c.bf16 %v4425, %v4425
  %v4442 = vpack.c.bf16 %v4426, %v4426
  %v4443 = vpack.c.bf16 %v4427, %v4427
  %v4444 = vpack.c.bf16 %v4428, %v4428
  %v4445 = vpack.c.bf16 %v4429, %v4429
  %v4446 = vpack.c.bf16 %v4430, %v4430
  %v4447 = vpack.c.bf16 %v4431, %v4431
  %v4448 = vpack.c.bf16 %v4432, %v4432
  %v4449 = vpack.c.bf16 %v4433, %v4433
  %v4450 = vpack.c.bf16 %v4434, %v4434
  %v4451 = vpack.c.bf16 %v4435, %v4435
  %v4452 = vpack.c.bf16 %v4436, %v4436
  %v4453 = vpack.c.bf16 %v4437, %v4437
  %v4454 = vpack.c.bf16 %v4438, %v4438
  %v4455 = vld [vmem:[%s10] sm:$0xff]
  %v4456 = vld [vmem:[%s10 + $0x8] sm:$0xff]
  %v4457 = vld [vmem:[%s10 + $0x10] sm:$0xff]
  %v4458 = vld [vmem:[%s10 + $0x18] sm:$0xff]
  %v4459 = vld [vmem:[%s10 + $0x20] sm:$0xff]
  %v4460 = vld [vmem:[%s10 + $0x28] sm:$0xff]
  %v4461 = vld [vmem:[%s10 + $0x30] sm:$0xff]
  %v4462 = vld [vmem:[%s10 + $0x38] sm:$0xff]
  %v4463 = vld [vmem:[%s10 + $0x40] sm:$0xff]
  %v4464 = vld [vmem:[%s10 + $0x48] sm:$0xff]
  %v4465 = vld [vmem:[%s10 + $0x50] sm:$0xff]
  %v4466 = vld [vmem:[%s10 + $0x58] sm:$0xff]
  %v4467 = vld [vmem:[%s10 + $0x60] sm:$0xff]
  %v4468 = vld [vmem:[%s10 + $0x68] sm:$0xff]
  %v4469 = vld [vmem:[%s10 + $0x70] sm:$0xff]
  %v4470 = vld [vmem:[%s10 + $0x78] sm:$0xff]
  %v4471 = vld [vmem:[%s10 + $0x80] sm:$0xff]
  %v4472 = vld [vmem:[%s10 + $0x88] sm:$0xff]
  %v4473 = vld [vmem:[%s10 + $0x90] sm:$0xff]
  %v4474 = vld [vmem:[%s10 + $0x98] sm:$0xff]
  %v4475 = vld [vmem:[%s10 + $0xa0] sm:$0xff]
  %v4476 = vld [vmem:[%s10 + $0xa8] sm:$0xff]
  %v4477 = vld [vmem:[%s10 + $0xb0] sm:$0xff]
  %v4478 = vld [vmem:[%s10 + $0xb8] sm:$0xff]
  %v4479 = vld [vmem:[%s10 + $0xc0] sm:$0xff]
  %v4480 = vld [vmem:[%s10 + $0xc8] sm:$0xff]
  %v4481 = vld [vmem:[%s10 + $0xd0] sm:$0xff]
  %v4482 = vld [vmem:[%s10 + $0xd8] sm:$0xff]
  %v4483 = vld [vmem:[%s10 + $0xe0] sm:$0xff]
  %v4484 = vld [vmem:[%s10 + $0xe8] sm:$0xff]
  %v4485 = vld [vmem:[%s10 + $0xf0] sm:$0xff]
  %v4486 = vld [vmem:[%s10 + $0xf8] sm:$0xff]
  %s4487 = scalar_lea.vmem %s10, 256
  %v4488 = vld [vmem:[%s4487] sm:$0xff]
  %v4489 = vld [vmem:[%s4487 + $0x8] sm:$0xff]
  %v4490 = vld [vmem:[%s4487 + $0x10] sm:$0xff]
  %v4491 = vld [vmem:[%s4487 + $0x18] sm:$0xff]
  %v4492 = vld [vmem:[%s4487 + $0x20] sm:$0xff]
  %v4493 = vld [vmem:[%s4487 + $0x28] sm:$0xff]
  %v4494 = vld [vmem:[%s4487 + $0x30] sm:$0xff]
  %v4495 = vld [vmem:[%s4487 + $0x38] sm:$0xff]
  %v4496 = vld [vmem:[%s4487 + $0x40] sm:$0xff]
  %v4497 = vld [vmem:[%s4487 + $0x48] sm:$0xff]
  %v4498 = vld [vmem:[%s4487 + $0x50] sm:$0xff]
  %v4499 = vld [vmem:[%s4487 + $0x58] sm:$0xff]
  %v4500 = vld [vmem:[%s4487 + $0x60] sm:$0xff]
  %v4501 = vld [vmem:[%s4487 + $0x68] sm:$0xff]
  %v4502 = vld [vmem:[%s4487 + $0x70] sm:$0xff]
  %v4503 = vld [vmem:[%s4487 + $0x78] sm:$0xff]
  %v4504 = vld [vmem:[%s4487 + $0x80] sm:$0xff]
  %v4505 = vld [vmem:[%s4487 + $0x88] sm:$0xff]
  %v4506 = vld [vmem:[%s4487 + $0x90] sm:$0xff]
  %v4507 = vld [vmem:[%s4487 + $0x98] sm:$0xff]
  %v4508 = vld [vmem:[%s4487 + $0xa0] sm:$0xff]
  %v4509 = vld [vmem:[%s4487 + $0xa8] sm:$0xff]
  %v4510 = vld [vmem:[%s4487 + $0xb0] sm:$0xff]
  %v4511 = vld [vmem:[%s4487 + $0xb8] sm:$0xff]
  %v4512 = vld [vmem:[%s4487 + $0xc0] sm:$0xff]
  %v4513 = vld [vmem:[%s4487 + $0xc8] sm:$0xff]
  %v4514 = vld [vmem:[%s4487 + $0xd0] sm:$0xff]
  %v4515 = vld [vmem:[%s4487 + $0xd8] sm:$0xff]
  %v4516 = vld [vmem:[%s4487 + $0xe0] sm:$0xff]
  %v4517 = vld [vmem:[%s4487 + $0xe8] sm:$0xff]
  %v4518 = vld [vmem:[%s4487 + $0xf0] sm:$0xff]
  %v4519 = vld [vmem:[%s4487 + $0xf8] sm:$0xff]
  %v4524 = vunpack.c.l.b16 %v4443
  %v4525 = vunpack.c.l.b16 %v4444
  %v4526 = vunpack.c.l.b16 %v4445
  %v4527 = vunpack.c.l.b16 %v4446
  %v4528 = vpack.c.b16 %v4525, %v4524
  %v4529 = vpack.c.b16 %v4527, %v4526
  %v4564 = vunpack.c.l.b16 %v4488
  %v4565 = vunpack.c.h.b16 %v4488
  %v4566 = vunpack.c.l.b16 %v4489
  %v4567 = vunpack.c.h.b16 %v4489
  %v4568 = vunpack.c.l.b16 %v4490
  %v4569 = vunpack.c.h.b16 %v4490
  %v4570 = vunpack.c.l.b16 %v4491
  %v4571 = vunpack.c.h.b16 %v4491
  %v4572 = vunpack.c.l.b16 %v4492
  %v4573 = vunpack.c.h.b16 %v4492
  %v4574 = vunpack.c.l.b16 %v4493
  %v4575 = vunpack.c.h.b16 %v4493
  %v4576 = vunpack.c.l.b16 %v4494
  %v4577 = vunpack.c.h.b16 %v4494
  %v4578 = vunpack.c.l.b16 %v4495
  %v4579 = vunpack.c.h.b16 %v4495
  %v4580 = vunpack.c.l.b16 %v4496
  %v4581 = vunpack.c.h.b16 %v4496
  %v4582 = vunpack.c.l.b16 %v4497
  %v4583 = vunpack.c.h.b16 %v4497
  %v4584 = vunpack.c.l.b16 %v4498
  %v4585 = vunpack.c.h.b16 %v4498
  %v4586 = vunpack.c.l.b16 %v4499
  %v4587 = vunpack.c.h.b16 %v4499
  %v4588 = vunpack.c.l.b16 %v4500
  %v4589 = vunpack.c.h.b16 %v4500
  %v4590 = vunpack.c.l.b16 %v4501
  %v4591 = vunpack.c.h.b16 %v4501
  %v4592 = vunpack.c.l.b16 %v4502
  %v4593 = vunpack.c.h.b16 %v4502
  %v4594 = vunpack.c.l.b16 %v4503
  %v4595 = vunpack.c.h.b16 %v4503
  %v4596 = vunpack.c.l.b16 %v4504
  %v4597 = vunpack.c.h.b16 %v4504
  %v4598 = vunpack.c.l.b16 %v4505
  %v4599 = vunpack.c.h.b16 %v4505
  %v4600 = vunpack.c.l.b16 %v4506
  %v4601 = vunpack.c.h.b16 %v4506
  %v4602 = vunpack.c.l.b16 %v4507
  %v4603 = vunpack.c.h.b16 %v4507
  %v4604 = vunpack.c.l.b16 %v4508
  %v4605 = vunpack.c.h.b16 %v4508
  %v4606 = vunpack.c.l.b16 %v4509
  %v4607 = vunpack.c.h.b16 %v4509
  %v4608 = vunpack.c.l.b16 %v4510
  %v4609 = vunpack.c.h.b16 %v4510
  %v4610 = vunpack.c.l.b16 %v4511
  %v4611 = vunpack.c.h.b16 %v4511
  %v4612 = vunpack.c.l.b16 %v4512
  %v4613 = vunpack.c.h.b16 %v4512
  %v4614 = vunpack.c.l.b16 %v4513
  %v4615 = vunpack.c.h.b16 %v4513
  %v4616 = vunpack.c.l.b16 %v4514
  %v4617 = vunpack.c.h.b16 %v4514
  %v4618 = vunpack.c.l.b16 %v4515
  %v4619 = vunpack.c.h.b16 %v4515
  %v4620 = vunpack.c.l.b16 %v4516
  %v4621 = vunpack.c.h.b16 %v4516
  %v4622 = vunpack.c.l.b16 %v4517
  %v4623 = vunpack.c.h.b16 %v4517
  %v4624 = vunpack.c.l.b16 %v4518
  %v4625 = vunpack.c.h.b16 %v4518
  %v4626 = vunpack.c.l.b16 %v4519
  %v4627 = vunpack.c.h.b16 %v4519
  %v4628 = vpack.c.b16 %v4568, %v4564
  %v4629 = vpack.c.b16 %v4569, %v4565
  %v4630 = vpack.c.b16 %v4570, %v4566
  %v4631 = vpack.c.b16 %v4571, %v4567
  %v4632 = vpack.c.b16 %v4576, %v4572
  %v4633 = vpack.c.b16 %v4577, %v4573
  %v4634 = vpack.c.b16 %v4578, %v4574
  %v4635 = vpack.c.b16 %v4579, %v4575
  %v4636 = vpack.c.b16 %v4584, %v4580
  %v4637 = vpack.c.b16 %v4585, %v4581
  %v4638 = vpack.c.b16 %v4586, %v4582
  %v4639 = vpack.c.b16 %v4587, %v4583
  %v4640 = vpack.c.b16 %v4592, %v4588
  %v4641 = vpack.c.b16 %v4593, %v4589
  %v4642 = vpack.c.b16 %v4594, %v4590
  %v4643 = vpack.c.b16 %v4595, %v4591
  %v4644 = vpack.c.b16 %v4600, %v4596
  %v4645 = vpack.c.b16 %v4601, %v4597
  %v4646 = vpack.c.b16 %v4602, %v4598
  %v4647 = vpack.c.b16 %v4603, %v4599
  %v4648 = vpack.c.b16 %v4608, %v4604
  %v4649 = vpack.c.b16 %v4609, %v4605
  %v4650 = vpack.c.b16 %v4610, %v4606
  %v4651 = vpack.c.b16 %v4611, %v4607
  %v4652 = vpack.c.b16 %v4616, %v4612
  %v4653 = vpack.c.b16 %v4617, %v4613
  %v4654 = vpack.c.b16 %v4618, %v4614
  %v4655 = vpack.c.b16 %v4619, %v4615
  %v4656 = vpack.c.b16 %v4624, %v4620
  %v4657 = vpack.c.b16 %v4625, %v4621
  %v4658 = vpack.c.b16 %v4626, %v4622
  %v4659 = vpack.c.b16 %v4627, %v4623
  %4692 = vmatpush.bf16.msra.mxu0 %v4656
  %4693 = vmatpush.bf16.msra.mxu0 %v4652
  %4694 = vmatpush.bf16.msra.mxu0 %v4648
  %4695 = vmatpush.bf16.msra.mxu0 %v4644
  %4696 = vmatpush.bf16.msra.mxu0 %v4640
  %4697 = vmatpush.bf16.msra.mxu0 %v4636
  %4698 = vmatpush.bf16.msra.mxu0 %v4632
  %4699 = vmatpush.bf16.msra.mxu0 %v4628
  %4700 = vmatmul.bf16.gmra.mxu0 %v4528
  %v4701 = vpop.f32.mrf.mxu0
  %v4702 = vadd.f32 0.0, %v4701
  %v4703 = vpop.f32.mrf.mxu0
  %v4704 = vadd.f32 0.0, %v4703
  %4705 = vmatmul.bf16.gmra.mxu0 %v4529
  %v4706 = vpop.f32.mrf.mxu0
  %v4707 = vadd.f32 0.0, %v4706
  %v4708 = vpop.f32.mrf.mxu0
  %v4709 = vadd.f32 0.0, %v4708
  %4710 = vdwg.mxu0
  %4711 = vmatpush.bf16.msra.mxu0 %v4657
  %4712 = vmatpush.bf16.msra.mxu0 %v4653
  %4713 = vmatpush.bf16.msra.mxu0 %v4649
  %4714 = vmatpush.bf16.msra.mxu0 %v4645
  %4715 = vmatpush.bf16.msra.mxu0 %v4641
  %4716 = vmatpush.bf16.msra.mxu0 %v4637
  %4717 = vmatpush.bf16.msra.mxu0 %v4633
  %4718 = vmatpush.bf16.msra.mxu0 %v4629
  %4719 = vmatmul.bf16.gmra.mxu0 %v4528
  %v4720 = vpop.f32.mrf.mxu0
  %v4721 = vadd.f32 0.0, %v4720
  %v4722 = vpop.f32.mrf.mxu0
  %v4723 = vadd.f32 0.0, %v4722
  %4724 = vmatmul.bf16.gmra.mxu0 %v4529
  %v4725 = vpop.f32.mrf.mxu0
  %v4726 = vadd.f32 0.0, %v4725
  %v4727 = vpop.f32.mrf.mxu0
  %v4728 = vadd.f32 0.0, %v4727
  %4729 = vdwg.mxu0
  %4730 = vmatpush.bf16.msra.mxu0 %v4658
  %4731 = vmatpush.bf16.msra.mxu0 %v4654
  %4732 = vmatpush.bf16.msra.mxu0 %v4650
  %4733 = vmatpush.bf16.msra.mxu0 %v4646
  %4734 = vmatpush.bf16.msra.mxu0 %v4642
  %4735 = vmatpush.bf16.msra.mxu0 %v4638
  %4736 = vmatpush.bf16.msra.mxu0 %v4634
  %4737 = vmatpush.bf16.msra.mxu0 %v4630
  %4738 = vmatmul.bf16.gmra.mxu0 %v4528
  %v4739 = vpop.f32.mrf.mxu0
  %v4740 = vadd.f32 0.0, %v4739
  %v4741 = vpop.f32.mrf.mxu0
  %v4742 = vadd.f32 0.0, %v4741
  %4743 = vmatmul.bf16.gmra.mxu0 %v4529
  %v4744 = vpop.f32.mrf.mxu0
  %v4745 = vadd.f32 0.0, %v4744
  %v4746 = vpop.f32.mrf.mxu0
  %v4747 = vadd.f32 0.0, %v4746
  %4748 = vdwg.mxu0
  %4749 = vmatpush.bf16.msra.mxu0 %v4659
  %4750 = vmatpush.bf16.msra.mxu0 %v4655
  %4751 = vmatpush.bf16.msra.mxu0 %v4651
  %4752 = vmatpush.bf16.msra.mxu0 %v4647
  %4753 = vmatpush.bf16.msra.mxu0 %v4643
  %4754 = vmatpush.bf16.msra.mxu0 %v4639
  %4755 = vmatpush.bf16.msra.mxu0 %v4635
  %4756 = vmatpush.bf16.msra.mxu0 %v4631
  %4757 = vmatmul.bf16.gmra.mxu0 %v4528
  %v4758 = vpop.f32.mrf.mxu0
  %v4759 = vadd.f32 0.0, %v4758
  %v4760 = vpop.f32.mrf.mxu0
  %v4761 = vadd.f32 0.0, %v4760
  %4762 = vmatmul.bf16.gmra.mxu0 %v4529
  %v4763 = vpop.f32.mrf.mxu0
  %v4764 = vadd.f32 0.0, %v4763
  %v4765 = vpop.f32.mrf.mxu0
  %v4766 = vadd.f32 0.0, %v4765
  %4767 = vdwg.mxu0
  %v4772 = vunpack.c.l.b16 %v4439
  %v4773 = vunpack.c.l.b16 %v4440
  %v4774 = vunpack.c.l.b16 %v4441
  %v4775 = vunpack.c.l.b16 %v4442
  %v4776 = vpack.c.b16 %v4773, %v4772
  %v4777 = vpack.c.b16 %v4775, %v4774
  %v4812 = vunpack.c.l.b16 %v4455
  %v4813 = vunpack.c.h.b16 %v4455
  %v4814 = vunpack.c.l.b16 %v4456
  %v4815 = vunpack.c.h.b16 %v4456
  %v4816 = vunpack.c.l.b16 %v4457
  %v4817 = vunpack.c.h.b16 %v4457
  %v4818 = vunpack.c.l.b16 %v4458
  %v4819 = vunpack.c.h.b16 %v4458
  %v4820 = vunpack.c.l.b16 %v4459
  %v4821 = vunpack.c.h.b16 %v4459
  %v4822 = vunpack.c.l.b16 %v4460
  %v4823 = vunpack.c.h.b16 %v4460
  %v4824 = vunpack.c.l.b16 %v4461
  %v4825 = vunpack.c.h.b16 %v4461
  %v4826 = vunpack.c.l.b16 %v4462
  %v4827 = vunpack.c.h.b16 %v4462
  %v4828 = vunpack.c.l.b16 %v4463
  %v4829 = vunpack.c.h.b16 %v4463
  %v4830 = vunpack.c.l.b16 %v4464
  %v4831 = vunpack.c.h.b16 %v4464
  %v4832 = vunpack.c.l.b16 %v4465
  %v4833 = vunpack.c.h.b16 %v4465
  %v4834 = vunpack.c.l.b16 %v4466
  %v4835 = vunpack.c.h.b16 %v4466
  %v4836 = vunpack.c.l.b16 %v4467
  %v4837 = vunpack.c.h.b16 %v4467
  %v4838 = vunpack.c.l.b16 %v4468
  %v4839 = vunpack.c.h.b16 %v4468
  %v4840 = vunpack.c.l.b16 %v4469
  %v4841 = vunpack.c.h.b16 %v4469
  %v4842 = vunpack.c.l.b16 %v4470
  %v4843 = vunpack.c.h.b16 %v4470
  %v4844 = vunpack.c.l.b16 %v4471
  %v4845 = vunpack.c.h.b16 %v4471
  %v4846 = vunpack.c.l.b16 %v4472
  %v4847 = vunpack.c.h.b16 %v4472
  %v4848 = vunpack.c.l.b16 %v4473
  %v4849 = vunpack.c.h.b16 %v4473
  %v4850 = vunpack.c.l.b16 %v4474
  %v4851 = vunpack.c.h.b16 %v4474
  %v4852 = vunpack.c.l.b16 %v4475
  %v4853 = vunpack.c.h.b16 %v4475
  %v4854 = vunpack.c.l.b16 %v4476
  %v4855 = vunpack.c.h.b16 %v4476
  %v4856 = vunpack.c.l.b16 %v4477
  %v4857 = vunpack.c.h.b16 %v4477
  %v4858 = vunpack.c.l.b16 %v4478
  %v4859 = vunpack.c.h.b16 %v4478
  %v4860 = vunpack.c.l.b16 %v4479
  %v4861 = vunpack.c.h.b16 %v4479
  %v4862 = vunpack.c.l.b16 %v4480
  %v4863 = vunpack.c.h.b16 %v4480
  %v4864 = vunpack.c.l.b16 %v4481
  %v4865 = vunpack.c.h.b16 %v4481
  %v4866 = vunpack.c.l.b16 %v4482
  %v4867 = vunpack.c.h.b16 %v4482
  %v4868 = vunpack.c.l.b16 %v4483
  %v4869 = vunpack.c.h.b16 %v4483
  %v4870 = vunpack.c.l.b16 %v4484
  %v4871 = vunpack.c.h.b16 %v4484
  %v4872 = vunpack.c.l.b16 %v4485
  %v4873 = vunpack.c.h.b16 %v4485
  %v4874 = vunpack.c.l.b16 %v4486
  %v4875 = vunpack.c.h.b16 %v4486
  %v4876 = vpack.c.b16 %v4816, %v4812
  %v4877 = vpack.c.b16 %v4817, %v4813
  %v4878 = vpack.c.b16 %v4818, %v4814
  %v4879 = vpack.c.b16 %v4819, %v4815
  %v4880 = vpack.c.b16 %v4824, %v4820
  %v4881 = vpack.c.b16 %v4825, %v4821
  %v4882 = vpack.c.b16 %v4826, %v4822
  %v4883 = vpack.c.b16 %v4827, %v4823
  %v4884 = vpack.c.b16 %v4832, %v4828
  %v4885 = vpack.c.b16 %v4833, %v4829
  %v4886 = vpack.c.b16 %v4834, %v4830
  %v4887 = vpack.c.b16 %v4835, %v4831
  %v4888 = vpack.c.b16 %v4840, %v4836
  %v4889 = vpack.c.b16 %v4841, %v4837
  %v4890 = vpack.c.b16 %v4842, %v4838
  %v4891 = vpack.c.b16 %v4843, %v4839
  %v4892 = vpack.c.b16 %v4848, %v4844
  %v4893 = vpack.c.b16 %v4849, %v4845
  %v4894 = vpack.c.b16 %v4850, %v4846
  %v4895 = vpack.c.b16 %v4851, %v4847
  %v4896 = vpack.c.b16 %v4856, %v4852
  %v4897 = vpack.c.b16 %v4857, %v4853
  %v4898 = vpack.c.b16 %v4858, %v4854
  %v4899 = vpack.c.b16 %v4859, %v4855
  %v4900 = vpack.c.b16 %v4864, %v4860
  %v4901 = vpack.c.b16 %v4865, %v4861
  %v4902 = vpack.c.b16 %v4866, %v4862
  %v4903 = vpack.c.b16 %v4867, %v4863
  %v4904 = vpack.c.b16 %v4872, %v4868
  %v4905 = vpack.c.b16 %v4873, %v4869
  %v4906 = vpack.c.b16 %v4874, %v4870
  %v4907 = vpack.c.b16 %v4875, %v4871
  %4940 = vmatpush.bf16.msra.mxu0 %v4904
  %4941 = vmatpush.bf16.msra.mxu0 %v4900
  %4942 = vmatpush.bf16.msra.mxu0 %v4896
  %4943 = vmatpush.bf16.msra.mxu0 %v4892
  %4944 = vmatpush.bf16.msra.mxu0 %v4888
  %4945 = vmatpush.bf16.msra.mxu0 %v4884
  %4946 = vmatpush.bf16.msra.mxu0 %v4880
  %4947 = vmatpush.bf16.msra.mxu0 %v4876
  %4948 = vmatmul.bf16.gmra.mxu0 %v4776
  %v4949 = vpop.f32.mrf.mxu0
  %v4950 = vadd.f32 %v4702, %v4949
  %v4951 = vpop.f32.mrf.mxu0
  %v4952 = vadd.f32 %v4704, %v4951
  %4953 = vmatmul.bf16.gmra.mxu0 %v4777
  %v4954 = vpop.f32.mrf.mxu0
  %v4955 = vadd.f32 %v4707, %v4954
  %v4956 = vpop.f32.mrf.mxu0
  %v4957 = vadd.f32 %v4709, %v4956
  %4958 = vdwg.mxu0
  %4959 = vmatpush.bf16.msra.mxu0 %v4905
  %4960 = vmatpush.bf16.msra.mxu0 %v4901
  %4961 = vmatpush.bf16.msra.mxu0 %v4897
  %4962 = vmatpush.bf16.msra.mxu0 %v4893
  %4963 = vmatpush.bf16.msra.mxu0 %v4889
  %4964 = vmatpush.bf16.msra.mxu0 %v4885
  %4965 = vmatpush.bf16.msra.mxu0 %v4881
  %4966 = vmatpush.bf16.msra.mxu0 %v4877
  %4967 = vmatmul.bf16.gmra.mxu0 %v4776
  %v4968 = vpop.f32.mrf.mxu0
  %v4969 = vadd.f32 %v4721, %v4968
  %v4970 = vpop.f32.mrf.mxu0
  %v4971 = vadd.f32 %v4723, %v4970
  %4972 = vmatmul.bf16.gmra.mxu0 %v4777
  %v4973 = vpop.f32.mrf.mxu0
  %v4974 = vadd.f32 %v4726, %v4973
  %v4975 = vpop.f32.mrf.mxu0
  %v4976 = vadd.f32 %v4728, %v4975
  %4977 = vdwg.mxu0
  %4978 = vmatpush.bf16.msra.mxu0 %v4906
  %4979 = vmatpush.bf16.msra.mxu0 %v4902
  %4980 = vmatpush.bf16.msra.mxu0 %v4898
  %4981 = vmatpush.bf16.msra.mxu0 %v4894
  %4982 = vmatpush.bf16.msra.mxu0 %v4890
  %4983 = vmatpush.bf16.msra.mxu0 %v4886
  %4984 = vmatpush.bf16.msra.mxu0 %v4882
  %4985 = vmatpush.bf16.msra.mxu0 %v4878
  %4986 = vmatmul.bf16.gmra.mxu0 %v4776
  %v4987 = vpop.f32.mrf.mxu0
  %v4988 = vadd.f32 %v4740, %v4987
  %v4989 = vpop.f32.mrf.mxu0
  %v4990 = vadd.f32 %v4742, %v4989
  %4991 = vmatmul.bf16.gmra.mxu0 %v4777
  %v4992 = vpop.f32.mrf.mxu0
  %v4993 = vadd.f32 %v4745, %v4992
  %v4994 = vpop.f32.mrf.mxu0
  %v4995 = vadd.f32 %v4747, %v4994
  %4996 = vdwg.mxu0
  %4997 = vmatpush.bf16.msra.mxu0 %v4907
  %4998 = vmatpush.bf16.msra.mxu0 %v4903
  %4999 = vmatpush.bf16.msra.mxu0 %v4899
  %5000 = vmatpush.bf16.msra.mxu0 %v4895
  %5001 = vmatpush.bf16.msra.mxu0 %v4891
  %5002 = vmatpush.bf16.msra.mxu0 %v4887
  %5003 = vmatpush.bf16.msra.mxu0 %v4883
  %5004 = vmatpush.bf16.msra.mxu0 %v4879
  %5005 = vmatmul.bf16.gmra.mxu0 %v4776
  %v5006 = vpop.f32.mrf.mxu0
  %v5007 = vadd.f32 %v4759, %v5006
  %v5008 = vpop.f32.mrf.mxu0
  %v5009 = vadd.f32 %v4761, %v5008
  %5010 = vmatmul.bf16.gmra.mxu0 %v4777
  %v5011 = vpop.f32.mrf.mxu0
  %v5012 = vadd.f32 %v4764, %v5011
  %v5013 = vpop.f32.mrf.mxu0
  %v5014 = vadd.f32 %v4766, %v5013
  %5015 = vdwg.mxu0
  %s5016 = scalar_lea.vmem %s10, 512
  %v5017 = vld [vmem:[%s5016] sm:$0xff]
  %v5018 = vld [vmem:[%s5016 + $0x8] sm:$0xff]
  %v5019 = vld [vmem:[%s5016 + $0x10] sm:$0xff]
  %v5020 = vld [vmem:[%s5016 + $0x18] sm:$0xff]
  %v5021 = vld [vmem:[%s5016 + $0x20] sm:$0xff]
  %v5022 = vld [vmem:[%s5016 + $0x28] sm:$0xff]
  %v5023 = vld [vmem:[%s5016 + $0x30] sm:$0xff]
  %v5024 = vld [vmem:[%s5016 + $0x38] sm:$0xff]
  %v5025 = vld [vmem:[%s5016 + $0x40] sm:$0xff]
  %v5026 = vld [vmem:[%s5016 + $0x48] sm:$0xff]
  %v5027 = vld [vmem:[%s5016 + $0x50] sm:$0xff]
  %v5028 = vld [vmem:[%s5016 + $0x58] sm:$0xff]
  %v5029 = vld [vmem:[%s5016 + $0x60] sm:$0xff]
  %v5030 = vld [vmem:[%s5016 + $0x68] sm:$0xff]
  %v5031 = vld [vmem:[%s5016 + $0x70] sm:$0xff]
  %v5032 = vld [vmem:[%s5016 + $0x78] sm:$0xff]
  %v5033 = vld [vmem:[%s5016 + $0x80] sm:$0xff]
  %v5034 = vld [vmem:[%s5016 + $0x88] sm:$0xff]
  %v5035 = vld [vmem:[%s5016 + $0x90] sm:$0xff]
  %v5036 = vld [vmem:[%s5016 + $0x98] sm:$0xff]
  %v5037 = vld [vmem:[%s5016 + $0xa0] sm:$0xff]
  %v5038 = vld [vmem:[%s5016 + $0xa8] sm:$0xff]
  %v5039 = vld [vmem:[%s5016 + $0xb0] sm:$0xff]
  %v5040 = vld [vmem:[%s5016 + $0xb8] sm:$0xff]
  %v5041 = vld [vmem:[%s5016 + $0xc0] sm:$0xff]
  %v5042 = vld [vmem:[%s5016 + $0xc8] sm:$0xff]
  %v5043 = vld [vmem:[%s5016 + $0xd0] sm:$0xff]
  %v5044 = vld [vmem:[%s5016 + $0xd8] sm:$0xff]
  %v5045 = vld [vmem:[%s5016 + $0xe0] sm:$0xff]
  %v5046 = vld [vmem:[%s5016 + $0xe8] sm:$0xff]
  %v5047 = vld [vmem:[%s5016 + $0xf0] sm:$0xff]
  %v5048 = vld [vmem:[%s5016 + $0xf8] sm:$0xff]
  %v5053 = vunpack.c.l.b16 %v4447
  %v5054 = vunpack.c.l.b16 %v4448
  %v5055 = vunpack.c.l.b16 %v4449
  %v5056 = vunpack.c.l.b16 %v4450
  %v5057 = vpack.c.b16 %v5054, %v5053
  %v5058 = vpack.c.b16 %v5056, %v5055
  %v5093 = vunpack.c.l.b16 %v5017
  %v5094 = vunpack.c.h.b16 %v5017
  %v5095 = vunpack.c.l.b16 %v5018
  %v5096 = vunpack.c.h.b16 %v5018
  %v5097 = vunpack.c.l.b16 %v5019
  %v5098 = vunpack.c.h.b16 %v5019
  %v5099 = vunpack.c.l.b16 %v5020
  %v5100 = vunpack.c.h.b16 %v5020
  %v5101 = vunpack.c.l.b16 %v5021
  %v5102 = vunpack.c.h.b16 %v5021
  %v5103 = vunpack.c.l.b16 %v5022
  %v5104 = vunpack.c.h.b16 %v5022
  %v5105 = vunpack.c.l.b16 %v5023
  %v5106 = vunpack.c.h.b16 %v5023
  %v5107 = vunpack.c.l.b16 %v5024
  %v5108 = vunpack.c.h.b16 %v5024
  %v5109 = vunpack.c.l.b16 %v5025
  %v5110 = vunpack.c.h.b16 %v5025
  %v5111 = vunpack.c.l.b16 %v5026
  %v5112 = vunpack.c.h.b16 %v5026
  %v5113 = vunpack.c.l.b16 %v5027
  %v5114 = vunpack.c.h.b16 %v5027
  %v5115 = vunpack.c.l.b16 %v5028
  %v5116 = vunpack.c.h.b16 %v5028
  %v5117 = vunpack.c.l.b16 %v5029
  %v5118 = vunpack.c.h.b16 %v5029
  %v5119 = vunpack.c.l.b16 %v5030
  %v5120 = vunpack.c.h.b16 %v5030
  %v5121 = vunpack.c.l.b16 %v5031
  %v5122 = vunpack.c.h.b16 %v5031
  %v5123 = vunpack.c.l.b16 %v5032
  %v5124 = vunpack.c.h.b16 %v5032
  %v5125 = vunpack.c.l.b16 %v5033
  %v5126 = vunpack.c.h.b16 %v5033
  %v5127 = vunpack.c.l.b16 %v5034
  %v5128 = vunpack.c.h.b16 %v5034
  %v5129 = vunpack.c.l.b16 %v5035
  %v5130 = vunpack.c.h.b16 %v5035
  %v5131 = vunpack.c.l.b16 %v5036
  %v5132 = vunpack.c.h.b16 %v5036
  %v5133 = vunpack.c.l.b16 %v5037
  %v5134 = vunpack.c.h.b16 %v5037
  %v5135 = vunpack.c.l.b16 %v5038
  %v5136 = vunpack.c.h.b16 %v5038
  %v5137 = vunpack.c.l.b16 %v5039
  %v5138 = vunpack.c.h.b16 %v5039
  %v5139 = vunpack.c.l.b16 %v5040
  %v5140 = vunpack.c.h.b16 %v5040
  %v5141 = vunpack.c.l.b16 %v5041
  %v5142 = vunpack.c.h.b16 %v5041
  %v5143 = vunpack.c.l.b16 %v5042
  %v5144 = vunpack.c.h.b16 %v5042
  %v5145 = vunpack.c.l.b16 %v5043
  %v5146 = vunpack.c.h.b16 %v5043
  %v5147 = vunpack.c.l.b16 %v5044
  %v5148 = vunpack.c.h.b16 %v5044
  %v5149 = vunpack.c.l.b16 %v5045
  %v5150 = vunpack.c.h.b16 %v5045
  %v5151 = vunpack.c.l.b16 %v5046
  %v5152 = vunpack.c.h.b16 %v5046
  %v5153 = vunpack.c.l.b16 %v5047
  %v5154 = vunpack.c.h.b16 %v5047
  %v5155 = vunpack.c.l.b16 %v5048
  %v5156 = vunpack.c.h.b16 %v5048
  %v5157 = vpack.c.b16 %v5097, %v5093
  %v5158 = vpack.c.b16 %v5098, %v5094
  %v5159 = vpack.c.b16 %v5099, %v5095
  %v5160 = vpack.c.b16 %v5100, %v5096
  %v5161 = vpack.c.b16 %v5105, %v5101
  %v5162 = vpack.c.b16 %v5106, %v5102
  %v5163 = vpack.c.b16 %v5107, %v5103
  %v5164 = vpack.c.b16 %v5108, %v5104
  %v5165 = vpack.c.b16 %v5113, %v5109
  %v5166 = vpack.c.b16 %v5114, %v5110
  %v5167 = vpack.c.b16 %v5115, %v5111
  %v5168 = vpack.c.b16 %v5116, %v5112
  %v5169 = vpack.c.b16 %v5121, %v5117
  %v5170 = vpack.c.b16 %v5122, %v5118
  %v5171 = vpack.c.b16 %v5123, %v5119
  %v5172 = vpack.c.b16 %v5124, %v5120
  %v5173 = vpack.c.b16 %v5129, %v5125
  %v5174 = vpack.c.b16 %v5130, %v5126
  %v5175 = vpack.c.b16 %v5131, %v5127
  %v5176 = vpack.c.b16 %v5132, %v5128
  %v5177 = vpack.c.b16 %v5137, %v5133
  %v5178 = vpack.c.b16 %v5138, %v5134
  %v5179 = vpack.c.b16 %v5139, %v5135
  %v5180 = vpack.c.b16 %v5140, %v5136
  %v5181 = vpack.c.b16 %v5145, %v5141
  %v5182 = vpack.c.b16 %v5146, %v5142
  %v5183 = vpack.c.b16 %v5147, %v5143
  %v5184 = vpack.c.b16 %v5148, %v5144
  %v5185 = vpack.c.b16 %v5153, %v5149
  %v5186 = vpack.c.b16 %v5154, %v5150
  %v5187 = vpack.c.b16 %v5155, %v5151
  %v5188 = vpack.c.b16 %v5156, %v5152
  %5221 = vmatpush.bf16.msra.mxu0 %v5185
  %5222 = vmatpush.bf16.msra.mxu0 %v5181
  %5223 = vmatpush.bf16.msra.mxu0 %v5177
  %5224 = vmatpush.bf16.msra.mxu0 %v5173
  %5225 = vmatpush.bf16.msra.mxu0 %v5169
  %5226 = vmatpush.bf16.msra.mxu0 %v5165
  %5227 = vmatpush.bf16.msra.mxu0 %v5161
  %5228 = vmatpush.bf16.msra.mxu0 %v5157
  %5229 = vmatmul.bf16.gmra.mxu0 %v5057
  %v5230 = vpop.f32.mrf.mxu0
  %v5231 = vadd.f32 0.0, %v5230
  %v5232 = vpop.f32.mrf.mxu0
  %v5233 = vadd.f32 0.0, %v5232
  %5234 = vmatmul.bf16.gmra.mxu0 %v5058
  %v5235 = vpop.f32.mrf.mxu0
  %v5236 = vadd.f32 0.0, %v5235
  %v5237 = vpop.f32.mrf.mxu0
  %v5238 = vadd.f32 0.0, %v5237
  %5239 = vdwg.mxu0
  %5240 = vmatpush.bf16.msra.mxu0 %v5186
  %5241 = vmatpush.bf16.msra.mxu0 %v5182
  %5242 = vmatpush.bf16.msra.mxu0 %v5178
  %5243 = vmatpush.bf16.msra.mxu0 %v5174
  %5244 = vmatpush.bf16.msra.mxu0 %v5170
  %5245 = vmatpush.bf16.msra.mxu0 %v5166
  %5246 = vmatpush.bf16.msra.mxu0 %v5162
  %5247 = vmatpush.bf16.msra.mxu0 %v5158
  %5248 = vmatmul.bf16.gmra.mxu0 %v5057
  %v5249 = vpop.f32.mrf.mxu0
  %v5250 = vadd.f32 0.0, %v5249
  %v5251 = vpop.f32.mrf.mxu0
  %v5252 = vadd.f32 0.0, %v5251
  %5253 = vmatmul.bf16.gmra.mxu0 %v5058
  %v5254 = vpop.f32.mrf.mxu0
  %v5255 = vadd.f32 0.0, %v5254
  %v5256 = vpop.f32.mrf.mxu0
  %v5257 = vadd.f32 0.0, %v5256
  %5258 = vdwg.mxu0
  %5259 = vmatpush.bf16.msra.mxu0 %v5187
  %5260 = vmatpush.bf16.msra.mxu0 %v5183
  %5261 = vmatpush.bf16.msra.mxu0 %v5179
  %5262 = vmatpush.bf16.msra.mxu0 %v5175
  %5263 = vmatpush.bf16.msra.mxu0 %v5171
  %5264 = vmatpush.bf16.msra.mxu0 %v5167
  %5265 = vmatpush.bf16.msra.mxu0 %v5163
  %5266 = vmatpush.bf16.msra.mxu0 %v5159
  %5267 = vmatmul.bf16.gmra.mxu0 %v5057
  %v5268 = vpop.f32.mrf.mxu0
  %v5269 = vadd.f32 0.0, %v5268
  %v5270 = vpop.f32.mrf.mxu0
  %v5271 = vadd.f32 0.0, %v5270
  %5272 = vmatmul.bf16.gmra.mxu0 %v5058
  %v5273 = vpop.f32.mrf.mxu0
  %v5274 = vadd.f32 0.0, %v5273
  %v5275 = vpop.f32.mrf.mxu0
  %v5276 = vadd.f32 0.0, %v5275
  %5277 = vdwg.mxu0
  %5278 = vmatpush.bf16.msra.mxu0 %v5188
  %5279 = vmatpush.bf16.msra.mxu0 %v5184
  %5280 = vmatpush.bf16.msra.mxu0 %v5180
  %5281 = vmatpush.bf16.msra.mxu0 %v5176
  %5282 = vmatpush.bf16.msra.mxu0 %v5172
  %5283 = vmatpush.bf16.msra.mxu0 %v5168
  %5284 = vmatpush.bf16.msra.mxu0 %v5164
  %5285 = vmatpush.bf16.msra.mxu0 %v5160
  %5286 = vmatmul.bf16.gmra.mxu0 %v5057
  %v5287 = vpop.f32.mrf.mxu0
  %v5288 = vadd.f32 0.0, %v5287
  %v5289 = vpop.f32.mrf.mxu0
  %v5290 = vadd.f32 0.0, %v5289
  %5291 = vmatmul.bf16.gmra.mxu0 %v5058
  %v5292 = vpop.f32.mrf.mxu0
  %v5293 = vadd.f32 0.0, %v5292
  %v5294 = vpop.f32.mrf.mxu0
  %v5295 = vadd.f32 0.0, %v5294
  %5296 = vdwg.mxu0
  %v5297 = vadd.f32 %v4950, %v5231
  %v5298 = vadd.f32 %v4969, %v5250
  %v5299 = vadd.f32 %v4988, %v5269
  %v5300 = vadd.f32 %v5007, %v5288
  %v5301 = vadd.f32 %v4952, %v5233
  %v5302 = vadd.f32 %v4971, %v5252
  %v5303 = vadd.f32 %v4990, %v5271
  %v5304 = vadd.f32 %v5009, %v5290
  %v5305 = vadd.f32 %v4955, %v5236
  %v5306 = vadd.f32 %v4974, %v5255
  %v5307 = vadd.f32 %v4993, %v5274
  %v5308 = vadd.f32 %v5012, %v5293
  %v5309 = vadd.f32 %v4957, %v5238
  %v5310 = vadd.f32 %v4976, %v5257
  %v5311 = vadd.f32 %v4995, %v5276
  %v5312 = vadd.f32 %v5014, %v5295
  %s5313 = scalar_lea.vmem %s10, 768
  %v5314 = vld [vmem:[%s5313] sm:$0xff]
  %v5315 = vld [vmem:[%s5313 + $0x8] sm:$0xff]
  %v5316 = vld [vmem:[%s5313 + $0x10] sm:$0xff]
  %v5317 = vld [vmem:[%s5313 + $0x18] sm:$0xff]
  %v5318 = vld [vmem:[%s5313 + $0x20] sm:$0xff]
  %v5319 = vld [vmem:[%s5313 + $0x28] sm:$0xff]
  %v5320 = vld [vmem:[%s5313 + $0x30] sm:$0xff]
  %v5321 = vld [vmem:[%s5313 + $0x38] sm:$0xff]
  %v5322 = vld [vmem:[%s5313 + $0x40] sm:$0xff]
  %v5323 = vld [vmem:[%s5313 + $0x48] sm:$0xff]
  %v5324 = vld [vmem:[%s5313 + $0x50] sm:$0xff]
  %v5325 = vld [vmem:[%s5313 + $0x58] sm:$0xff]
  %v5326 = vld [vmem:[%s5313 + $0x60] sm:$0xff]
  %v5327 = vld [vmem:[%s5313 + $0x68] sm:$0xff]
  %v5328 = vld [vmem:[%s5313 + $0x70] sm:$0xff]
  %v5329 = vld [vmem:[%s5313 + $0x78] sm:$0xff]
  %v5330 = vld [vmem:[%s5313 + $0x80] sm:$0xff]
  %v5331 = vld [vmem:[%s5313 + $0x88] sm:$0xff]
  %v5332 = vld [vmem:[%s5313 + $0x90] sm:$0xff]
  %v5333 = vld [vmem:[%s5313 + $0x98] sm:$0xff]
  %v5334 = vld [vmem:[%s5313 + $0xa0] sm:$0xff]
  %v5335 = vld [vmem:[%s5313 + $0xa8] sm:$0xff]
  %v5336 = vld [vmem:[%s5313 + $0xb0] sm:$0xff]
  %v5337 = vld [vmem:[%s5313 + $0xb8] sm:$0xff]
  %v5338 = vld [vmem:[%s5313 + $0xc0] sm:$0xff]
  %v5339 = vld [vmem:[%s5313 + $0xc8] sm:$0xff]
  %v5340 = vld [vmem:[%s5313 + $0xd0] sm:$0xff]
  %v5341 = vld [vmem:[%s5313 + $0xd8] sm:$0xff]
  %v5342 = vld [vmem:[%s5313 + $0xe0] sm:$0xff]
  %v5343 = vld [vmem:[%s5313 + $0xe8] sm:$0xff]
  %v5344 = vld [vmem:[%s5313 + $0xf0] sm:$0xff]
  %v5345 = vld [vmem:[%s5313 + $0xf8] sm:$0xff]
  %v5350 = vunpack.c.l.b16 %v4451
  %v5351 = vunpack.c.l.b16 %v4452
  %v5352 = vunpack.c.l.b16 %v4453
  %v5353 = vunpack.c.l.b16 %v4454
  %v5354 = vpack.c.b16 %v5351, %v5350
  %v5355 = vpack.c.b16 %v5353, %v5352
  %v5390 = vunpack.c.l.b16 %v5314
  %v5391 = vunpack.c.h.b16 %v5314
  %v5392 = vunpack.c.l.b16 %v5315
  %v5393 = vunpack.c.h.b16 %v5315
  %v5394 = vunpack.c.l.b16 %v5316
  %v5395 = vunpack.c.h.b16 %v5316
  %v5396 = vunpack.c.l.b16 %v5317
  %v5397 = vunpack.c.h.b16 %v5317
  %v5398 = vunpack.c.l.b16 %v5318
  %v5399 = vunpack.c.h.b16 %v5318
  %v5400 = vunpack.c.l.b16 %v5319
  %v5401 = vunpack.c.h.b16 %v5319
  %v5402 = vunpack.c.l.b16 %v5320
  %v5403 = vunpack.c.h.b16 %v5320
  %v5404 = vunpack.c.l.b16 %v5321
  %v5405 = vunpack.c.h.b16 %v5321
  %v5406 = vunpack.c.l.b16 %v5322
  %v5407 = vunpack.c.h.b16 %v5322
  %v5408 = vunpack.c.l.b16 %v5323
  %v5409 = vunpack.c.h.b16 %v5323
  %v5410 = vunpack.c.l.b16 %v5324
  %v5411 = vunpack.c.h.b16 %v5324
  %v5412 = vunpack.c.l.b16 %v5325
  %v5413 = vunpack.c.h.b16 %v5325
  %v5414 = vunpack.c.l.b16 %v5326
  %v5415 = vunpack.c.h.b16 %v5326
  %v5416 = vunpack.c.l.b16 %v5327
  %v5417 = vunpack.c.h.b16 %v5327
  %v5418 = vunpack.c.l.b16 %v5328
  %v5419 = vunpack.c.h.b16 %v5328
  %v5420 = vunpack.c.l.b16 %v5329
  %v5421 = vunpack.c.h.b16 %v5329
  %v5422 = vunpack.c.l.b16 %v5330
  %v5423 = vunpack.c.h.b16 %v5330
  %v5424 = vunpack.c.l.b16 %v5331
  %v5425 = vunpack.c.h.b16 %v5331
  %v5426 = vunpack.c.l.b16 %v5332
  %v5427 = vunpack.c.h.b16 %v5332
  %v5428 = vunpack.c.l.b16 %v5333
  %v5429 = vunpack.c.h.b16 %v5333
  %v5430 = vunpack.c.l.b16 %v5334
  %v5431 = vunpack.c.h.b16 %v5334
  %v5432 = vunpack.c.l.b16 %v5335
  %v5433 = vunpack.c.h.b16 %v5335
  %v5434 = vunpack.c.l.b16 %v5336
  %v5435 = vunpack.c.h.b16 %v5336
  %v5436 = vunpack.c.l.b16 %v5337
  %v5437 = vunpack.c.h.b16 %v5337
  %v5438 = vunpack.c.l.b16 %v5338
  %v5439 = vunpack.c.h.b16 %v5338
  %v5440 = vunpack.c.l.b16 %v5339
  %v5441 = vunpack.c.h.b16 %v5339
  %v5442 = vunpack.c.l.b16 %v5340
  %v5443 = vunpack.c.h.b16 %v5340
  %v5444 = vunpack.c.l.b16 %v5341
  %v5445 = vunpack.c.h.b16 %v5341
  %v5446 = vunpack.c.l.b16 %v5342
  %v5447 = vunpack.c.h.b16 %v5342
  %v5448 = vunpack.c.l.b16 %v5343
  %v5449 = vunpack.c.h.b16 %v5343
  %v5450 = vunpack.c.l.b16 %v5344
  %v5451 = vunpack.c.h.b16 %v5344
  %v5452 = vunpack.c.l.b16 %v5345
  %v5453 = vunpack.c.h.b16 %v5345
  %v5454 = vpack.c.b16 %v5394, %v5390
  %v5455 = vpack.c.b16 %v5395, %v5391
  %v5456 = vpack.c.b16 %v5396, %v5392
  %v5457 = vpack.c.b16 %v5397, %v5393
  %v5458 = vpack.c.b16 %v5402, %v5398
  %v5459 = vpack.c.b16 %v5403, %v5399
  %v5460 = vpack.c.b16 %v5404, %v5400
  %v5461 = vpack.c.b16 %v5405, %v5401
  %v5462 = vpack.c.b16 %v5410, %v5406
  %v5463 = vpack.c.b16 %v5411, %v5407
  %v5464 = vpack.c.b16 %v5412, %v5408
  %v5465 = vpack.c.b16 %v5413, %v5409
  %v5466 = vpack.c.b16 %v5418, %v5414
  %v5467 = vpack.c.b16 %v5419, %v5415
  %v5468 = vpack.c.b16 %v5420, %v5416
  %v5469 = vpack.c.b16 %v5421, %v5417
  %v5470 = vpack.c.b16 %v5426, %v5422
  %v5471 = vpack.c.b16 %v5427, %v5423
  %v5472 = vpack.c.b16 %v5428, %v5424
  %v5473 = vpack.c.b16 %v5429, %v5425
  %v5474 = vpack.c.b16 %v5434, %v5430
  %v5475 = vpack.c.b16 %v5435, %v5431
  %v5476 = vpack.c.b16 %v5436, %v5432
  %v5477 = vpack.c.b16 %v5437, %v5433
  %v5478 = vpack.c.b16 %v5442, %v5438
  %v5479 = vpack.c.b16 %v5443, %v5439
  %v5480 = vpack.c.b16 %v5444, %v5440
  %v5481 = vpack.c.b16 %v5445, %v5441
  %v5482 = vpack.c.b16 %v5450, %v5446
  %v5483 = vpack.c.b16 %v5451, %v5447
  %v5484 = vpack.c.b16 %v5452, %v5448
  %v5485 = vpack.c.b16 %v5453, %v5449
  %5518 = vmatpush.bf16.msra.mxu0 %v5482
  %5519 = vmatpush.bf16.msra.mxu0 %v5478
  %5520 = vmatpush.bf16.msra.mxu0 %v5474
  %5521 = vmatpush.bf16.msra.mxu0 %v5470
  %5522 = vmatpush.bf16.msra.mxu0 %v5466
  %5523 = vmatpush.bf16.msra.mxu0 %v5462
  %5524 = vmatpush.bf16.msra.mxu0 %v5458
  %5525 = vmatpush.bf16.msra.mxu0 %v5454
  %5526 = vmatmul.bf16.gmra.mxu0 %v5354
  %v5527 = vpop.f32.mrf.mxu0
  %v5528 = vadd.f32 0.0, %v5527
  %v5529 = vpop.f32.mrf.mxu0
  %v5530 = vadd.f32 0.0, %v5529
  %5531 = vmatmul.bf16.gmra.mxu0 %v5355
  %v5532 = vpop.f32.mrf.mxu0
  %v5533 = vadd.f32 0.0, %v5532
  %v5534 = vpop.f32.mrf.mxu0
  %v5535 = vadd.f32 0.0, %v5534
  %5536 = vdwg.mxu0
  %5537 = vmatpush.bf16.msra.mxu0 %v5483
  %5538 = vmatpush.bf16.msra.mxu0 %v5479
  %5539 = vmatpush.bf16.msra.mxu0 %v5475
  %5540 = vmatpush.bf16.msra.mxu0 %v5471
  %5541 = vmatpush.bf16.msra.mxu0 %v5467
  %5542 = vmatpush.bf16.msra.mxu0 %v5463
  %5543 = vmatpush.bf16.msra.mxu0 %v5459
  %5544 = vmatpush.bf16.msra.mxu0 %v5455
  %5545 = vmatmul.bf16.gmra.mxu0 %v5354
  %v5546 = vpop.f32.mrf.mxu0
  %v5547 = vadd.f32 0.0, %v5546
  %v5548 = vpop.f32.mrf.mxu0
  %v5549 = vadd.f32 0.0, %v5548
  %5550 = vmatmul.bf16.gmra.mxu0 %v5355
  %v5551 = vpop.f32.mrf.mxu0
  %v5552 = vadd.f32 0.0, %v5551
  %v5553 = vpop.f32.mrf.mxu0
  %v5554 = vadd.f32 0.0, %v5553
  %5555 = vdwg.mxu0
  %5556 = vmatpush.bf16.msra.mxu0 %v5484
  %5557 = vmatpush.bf16.msra.mxu0 %v5480
  %5558 = vmatpush.bf16.msra.mxu0 %v5476
  %5559 = vmatpush.bf16.msra.mxu0 %v5472
  %5560 = vmatpush.bf16.msra.mxu0 %v5468
  %5561 = vmatpush.bf16.msra.mxu0 %v5464
  %5562 = vmatpush.bf16.msra.mxu0 %v5460
  %5563 = vmatpush.bf16.msra.mxu0 %v5456
  %5564 = vmatmul.bf16.gmra.mxu0 %v5354
  %v5565 = vpop.f32.mrf.mxu0
  %v5566 = vadd.f32 0.0, %v5565
  %v5567 = vpop.f32.mrf.mxu0
  %v5568 = vadd.f32 0.0, %v5567
  %5569 = vmatmul.bf16.gmra.mxu0 %v5355
  %v5570 = vpop.f32.mrf.mxu0
  %v5571 = vadd.f32 0.0, %v5570
  %v5572 = vpop.f32.mrf.mxu0
  %v5573 = vadd.f32 0.0, %v5572
  %5574 = vdwg.mxu0
  %5575 = vmatpush.bf16.msra.mxu0 %v5485
  %5576 = vmatpush.bf16.msra.mxu0 %v5481
  %5577 = vmatpush.bf16.msra.mxu0 %v5477
  %5578 = vmatpush.bf16.msra.mxu0 %v5473
  %5579 = vmatpush.bf16.msra.mxu0 %v5469
  %5580 = vmatpush.bf16.msra.mxu0 %v5465
  %5581 = vmatpush.bf16.msra.mxu0 %v5461
  %5582 = vmatpush.bf16.msra.mxu0 %v5457
  %5583 = vmatmul.bf16.gmra.mxu0 %v5354
  %v5584 = vpop.f32.mrf.mxu0
  %v5585 = vadd.f32 0.0, %v5584
  %v5586 = vpop.f32.mrf.mxu0
  %v5587 = vadd.f32 0.0, %v5586
  %5588 = vmatmul.bf16.gmra.mxu0 %v5355
  %v5589 = vpop.f32.mrf.mxu0
  %v5590 = vadd.f32 0.0, %v5589
  %v5591 = vpop.f32.mrf.mxu0
  %v5592 = vadd.f32 0.0, %v5591
  %5593 = vdwg.mxu0
  %v5594 = vadd.f32 %v5297, %v5528
  %v5595 = vadd.f32 %v5298, %v5547
  %v5596 = vadd.f32 %v5299, %v5566
  %v5597 = vadd.f32 %v5300, %v5585
  %v5598 = vadd.f32 %v5301, %v5530
  %v5599 = vadd.f32 %v5302, %v5549
  %v5600 = vadd.f32 %v5303, %v5568
  %v5601 = vadd.f32 %v5304, %v5587
  %v5602 = vadd.f32 %v5305, %v5533
  %v5603 = vadd.f32 %v5306, %v5552
  %v5604 = vadd.f32 %v5307, %v5571
  %v5605 = vadd.f32 %v5308, %v5590
  %v5606 = vadd.f32 %v5309, %v5535
  %v5607 = vadd.f32 %v5310, %v5554
  %v5608 = vadd.f32 %v5311, %v5573
  %v5609 = vadd.f32 %v5312, %v5592
  %v5610 = vld [vmem:[%s11] sm:$0xff]
  %v5611 = vld [vmem:[%s11 + $0x8] sm:$0xff]
  %v5612 = vld [vmem:[%s11 + $0x10] sm:$0xff]
  %v5613 = vld [vmem:[%s11 + $0x18] sm:$0xff]
  %v5614 = vld [vmem:[%s11 + $0x20] sm:$0x1]
  %v5615 = vld [vmem:[%s11 + $0x28] sm:$0x1]
  %v5616 = vld [vmem:[%s11 + $0x30] sm:$0x1]
  %v5617 = vld [vmem:[%s11 + $0x38] sm:$0x1]
  %5618 = vrot.lane.b32.xlu0 %v5594, 17
  %v5619 = vpop.permute.xlu0 %5618
  %5620 = vrot.lane.b32.xlu0 %v5598, 17
  %v5621 = vpop.permute.xlu0 %5620
  %5622 = vrot.lane.b32.xlu0 %v5602, 17
  %v5623 = vpop.permute.xlu0 %5622
  %5624 = vrot.lane.b32.xlu0 %v5606, 17
  %v5625 = vpop.permute.xlu0 %5624
  %5626 = vrot.lane.b32.xlu0 %v5595, 17
  %v5627 = vpop.permute.xlu0 %5626
  %5628 = vrot.lane.b32.xlu0 %v5599, 17
  %v5629 = vpop.permute.xlu0 %5628
  %5630 = vrot.lane.b32.xlu0 %v5603, 17
  %v5631 = vpop.permute.xlu0 %5630
  %5632 = vrot.lane.b32.xlu0 %v5607, 17
  %v5633 = vpop.permute.xlu0 %5632
  %5634 = vrot.lane.b32.xlu0 %v5596, 17
  %v5635 = vpop.permute.xlu0 %5634
  %5636 = vrot.lane.b32.xlu0 %v5600, 17
  %v5637 = vpop.permute.xlu0 %5636
  %5638 = vrot.lane.b32.xlu0 %v5604, 17
  %v5639 = vpop.permute.xlu0 %5638
  %5640 = vrot.lane.b32.xlu0 %v5608, 17
  %v5641 = vpop.permute.xlu0 %5640
  %5642 = vrot.lane.b32.xlu0 %v5597, 17
  %v5643 = vpop.permute.xlu0 %5642
  %5644 = vrot.lane.b32.xlu0 %v5601, 17
  %v5645 = vpop.permute.xlu0 %5644
  %5646 = vrot.lane.b32.xlu0 %v5605, 17
  %v5647 = vpop.permute.xlu0 %5646
  %5648 = vrot.lane.b32.xlu0 %v5609, 17
  %v5649 = vpop.permute.xlu0 %5648
  %v5650 = vlaneseq
  %v5651 = vand.u32 %v5650, 127
  %vm5652 = vcmp.lt.s32.totalorder %v5651, 17
  %v5653 = vsel %vm5652, %v5635, %v5643
  %v5654 = vsel %vm5652, %v5637, %v5645
  %v5655 = vsel %vm5652, %v5639, %v5647
  %v5656 = vsel %vm5652, %v5641, %v5649
  %v5657 = vsel %vm5652, %v5627, %v5635
  %v5658 = vsel %vm5652, %v5629, %v5637
  %v5659 = vsel %vm5652, %v5631, %v5639
  %v5660 = vsel %vm5652, %v5633, %v5641
  %v5661 = vsel %vm5652, %v5619, %v5627
  %v5662 = vsel %vm5652, %v5621, %v5629
  %v5663 = vsel %vm5652, %v5623, %v5631
  %v5664 = vsel %vm5652, %v5625, %v5633
  %v5665 = vsel %vm5652, %v5643, %v5619
  %v5666 = vsel %vm5652, %v5645, %v5621
  %v5667 = vsel %vm5652, %v5647, %v5623
  %v5668 = vsel %vm5652, %v5649, %v5625
  %v5669 = vperm.slane %v5610, 0
  %v5670 = vperm.slane %v5611, 0
  %v5671 = vperm.slane %v5612, 0
  %v5672 = vperm.slane %v5613, 0
  %v5673 = vmul.f32 %v5665, %v5669
  %v5674 = vmul.f32 %v5661, %v5670
  %v5675 = vmul.f32 %v5657, %v5671
  %v5676 = vmul.f32 %v5653, %v5672
  %v5677 = vmul.f32 %v5666, %v5669
  %v5678 = vmul.f32 %v5662, %v5670
  %v5679 = vmul.f32 %v5658, %v5671
  %v5680 = vmul.f32 %v5654, %v5672
  %v5681 = vmul.f32 %v5667, %v5669
  %v5682 = vmul.f32 %v5663, %v5670
  %v5683 = vmul.f32 %v5659, %v5671
  %v5684 = vmul.f32 %v5655, %v5672
  %v5685 = vmul.f32 %v5668, %v5669
  %v5686 = vmul.f32 %v5664, %v5670
  %v5687 = vmul.f32 %v5660, %v5671
  %v5688 = vmul.f32 %v5656, %v5672
  %v5689 = vpack.c.bf16 %v5674, %v5673
  %v5690 = vpack.c.bf16 %v5676, %v5675
  %v5691 = vpack.c.bf16 %v5678, %v5677
  %v5692 = vpack.c.bf16 %v5680, %v5679
  %v5693 = vpack.c.bf16 %v5682, %v5681
  %v5694 = vpack.c.bf16 %v5684, %v5683
  %v5695 = vpack.c.bf16 %v5686, %v5685
  %v5696 = vpack.c.bf16 %v5688, %v5687
  %5697 = vrot.lane.b32.xlu0 %v5594, 16
  %v5698 = vpop.permute.xlu0 %5697
  %5699 = vrot.lane.b32.xlu0 %v5598, 16
  %v5700 = vpop.permute.xlu0 %5699
  %5701 = vrot.lane.b32.xlu0 %v5602, 16
  %v5702 = vpop.permute.xlu0 %5701
  %5703 = vrot.lane.b32.xlu0 %v5606, 16
  %v5704 = vpop.permute.xlu0 %5703
  %5705 = vrot.lane.b32.xlu0 %v5595, 16
  %v5706 = vpop.permute.xlu0 %5705
  %5707 = vrot.lane.b32.xlu0 %v5599, 16
  %v5708 = vpop.permute.xlu0 %5707
  %5709 = vrot.lane.b32.xlu0 %v5603, 16
  %v5710 = vpop.permute.xlu0 %5709
  %5711 = vrot.lane.b32.xlu0 %v5607, 16
  %v5712 = vpop.permute.xlu0 %5711
  %5713 = vrot.lane.b32.xlu0 %v5596, 16
  %v5714 = vpop.permute.xlu0 %5713
  %5715 = vrot.lane.b32.xlu0 %v5600, 16
  %v5716 = vpop.permute.xlu0 %5715
  %5717 = vrot.lane.b32.xlu0 %v5604, 16
  %v5718 = vpop.permute.xlu0 %5717
  %5719 = vrot.lane.b32.xlu0 %v5608, 16
  %v5720 = vpop.permute.xlu0 %5719
  %5721 = vrot.lane.b32.xlu0 %v5597, 16
  %v5722 = vpop.permute.xlu0 %5721
  %5723 = vrot.lane.b32.xlu0 %v5601, 16
  %v5724 = vpop.permute.xlu0 %5723
  %5725 = vrot.lane.b32.xlu0 %v5605, 16
  %v5726 = vpop.permute.xlu0 %5725
  %5727 = vrot.lane.b32.xlu0 %v5609, 16
  %v5728 = vpop.permute.xlu0 %5727
  %vm5729 = vcmp.lt.s32.totalorder %v5651, 16
  %v5730 = vsel %vm5729, %v5714, %v5722
  %v5731 = vsel %vm5729, %v5716, %v5724
  %v5732 = vsel %vm5729, %v5718, %v5726
  %v5733 = vsel %vm5729, %v5720, %v5728
  %v5734 = vsel %vm5729, %v5706, %v5714
  %v5735 = vsel %vm5729, %v5708, %v5716
  %v5736 = vsel %vm5729, %v5710, %v5718
  %v5737 = vsel %vm5729, %v5712, %v5720
  %v5738 = vsel %vm5729, %v5698, %v5706
  %v5739 = vsel %vm5729, %v5700, %v5708
  %v5740 = vsel %vm5729, %v5702, %v5710
  %v5741 = vsel %vm5729, %v5704, %v5712
  %v5742 = vsel %vm5729, %v5722, %v5698
  %v5743 = vsel %vm5729, %v5724, %v5700
  %v5744 = vsel %vm5729, %v5726, %v5702
  %v5745 = vsel %vm5729, %v5728, %v5704
  %v5746 = vperm.slane %v5610, 1
  %v5747 = vperm.slane %v5611, 1
  %v5748 = vperm.slane %v5612, 1
  %v5749 = vperm.slane %v5613, 1
  %v5750 = vmul.f32 %v5742, %v5746
  %v5751 = vmul.f32 %v5738, %v5747
  %v5752 = vmul.f32 %v5734, %v5748
  %v5753 = vmul.f32 %v5730, %v5749
  %v5754 = vmul.f32 %v5743, %v5746
  %v5755 = vmul.f32 %v5739, %v5747
  %v5756 = vmul.f32 %v5735, %v5748
  %v5757 = vmul.f32 %v5731, %v5749
  %v5758 = vmul.f32 %v5744, %v5746
  %v5759 = vmul.f32 %v5740, %v5747
  %v5760 = vmul.f32 %v5736, %v5748
  %v5761 = vmul.f32 %v5732, %v5749
  %v5762 = vmul.f32 %v5745, %v5746
  %v5763 = vmul.f32 %v5741, %v5747
  %v5764 = vmul.f32 %v5737, %v5748
  %v5765 = vmul.f32 %v5733, %v5749
  %v5766 = vpack.c.bf16 %v5751, %v5750
  %v5767 = vpack.c.bf16 %v5753, %v5752
  %v5768 = vpack.c.bf16 %v5755, %v5754
  %v5769 = vpack.c.bf16 %v5757, %v5756
  %v5770 = vpack.c.bf16 %v5759, %v5758
  %v5771 = vpack.c.bf16 %v5761, %v5760
  %v5772 = vpack.c.bf16 %v5763, %v5762
  %v5773 = vpack.c.bf16 %v5765, %v5764
  %5774 = vrot.lane.b32.xlu0 %v5594, 15
  %v5775 = vpop.permute.xlu0 %5774
  %5776 = vrot.lane.b32.xlu0 %v5598, 15
  %v5777 = vpop.permute.xlu0 %5776
  %5778 = vrot.lane.b32.xlu0 %v5602, 15
  %v5779 = vpop.permute.xlu0 %5778
  %5780 = vrot.lane.b32.xlu0 %v5606, 15
  %v5781 = vpop.permute.xlu0 %5780
  %5782 = vrot.lane.b32.xlu0 %v5595, 15
  %v5783 = vpop.permute.xlu0 %5782
  %5784 = vrot.lane.b32.xlu0 %v5599, 15
  %v5785 = vpop.permute.xlu0 %5784
  %5786 = vrot.lane.b32.xlu0 %v5603, 15
  %v5787 = vpop.permute.xlu0 %5786
  %5788 = vrot.lane.b32.xlu0 %v5607, 15
  %v5789 = vpop.permute.xlu0 %5788
  %5790 = vrot.lane.b32.xlu0 %v5596, 15
  %v5791 = vpop.permute.xlu0 %5790
  %5792 = vrot.lane.b32.xlu0 %v5600, 15
  %v5793 = vpop.permute.xlu0 %5792
  %5794 = vrot.lane.b32.xlu0 %v5604, 15
  %v5795 = vpop.permute.xlu0 %5794
  %5796 = vrot.lane.b32.xlu0 %v5608, 15
  %v5797 = vpop.permute.xlu0 %5796
  %5798 = vrot.lane.b32.xlu0 %v5597, 15
  %v5799 = vpop.permute.xlu0 %5798
  %5800 = vrot.lane.b32.xlu0 %v5601, 15
  %v5801 = vpop.permute.xlu0 %5800
  %5802 = vrot.lane.b32.xlu0 %v5605, 15
  %v5803 = vpop.permute.xlu0 %5802
  %5804 = vrot.lane.b32.xlu0 %v5609, 15
  %v5805 = vpop.permute.xlu0 %5804
  %vm5806 = vcmp.lt.s32.totalorder %v5651, 15
  %v5807 = vsel %vm5806, %v5791, %v5799
  %v5808 = vsel %vm5806, %v5793, %v5801
  %v5809 = vsel %vm5806, %v5795, %v5803
  %v5810 = vsel %vm5806, %v5797, %v5805
  %v5811 = vsel %vm5806, %v5783, %v5791
  %v5812 = vsel %vm5806, %v5785, %v5793
  %v5813 = vsel %vm5806, %v5787, %v5795
  %v5814 = vsel %vm5806, %v5789, %v5797
  %v5815 = vsel %vm5806, %v5775, %v5783
  %v5816 = vsel %vm5806, %v5777, %v5785
  %v5817 = vsel %vm5806, %v5779, %v5787
  %v5818 = vsel %vm5806, %v5781, %v5789
  %v5819 = vsel %vm5806, %v5799, %v5775
  %v5820 = vsel %vm5806, %v5801, %v5777
  %v5821 = vsel %vm5806, %v5803, %v5779
  %v5822 = vsel %vm5806, %v5805, %v5781
  %v5823 = vperm.slane %v5610, 2
  %v5824 = vperm.slane %v5611, 2
  %v5825 = vperm.slane %v5612, 2
  %v5826 = vperm.slane %v5613, 2
  %v5827 = vmul.f32 %v5819, %v5823
  %v5828 = vmul.f32 %v5815, %v5824
  %v5829 = vmul.f32 %v5811, %v5825
  %v5830 = vmul.f32 %v5807, %v5826
  %v5831 = vmul.f32 %v5820, %v5823
  %v5832 = vmul.f32 %v5816, %v5824
  %v5833 = vmul.f32 %v5812, %v5825
  %v5834 = vmul.f32 %v5808, %v5826
  %v5835 = vmul.f32 %v5821, %v5823
  %v5836 = vmul.f32 %v5817, %v5824
  %v5837 = vmul.f32 %v5813, %v5825
  %v5838 = vmul.f32 %v5809, %v5826
  %v5839 = vmul.f32 %v5822, %v5823
  %v5840 = vmul.f32 %v5818, %v5824
  %v5841 = vmul.f32 %v5814, %v5825
  %v5842 = vmul.f32 %v5810, %v5826
  %v5843 = vpack.c.bf16 %v5828, %v5827
  %v5844 = vpack.c.bf16 %v5830, %v5829
  %v5845 = vpack.c.bf16 %v5832, %v5831
  %v5846 = vpack.c.bf16 %v5834, %v5833
  %v5847 = vpack.c.bf16 %v5836, %v5835
  %v5848 = vpack.c.bf16 %v5838, %v5837
  %v5849 = vpack.c.bf16 %v5840, %v5839
  %v5850 = vpack.c.bf16 %v5842, %v5841
  %5851 = vrot.lane.b32.xlu0 %v5594, 1
  %v5852 = vpop.permute.xlu0 %5851
  %5853 = vrot.lane.b32.xlu0 %v5598, 1
  %v5854 = vpop.permute.xlu0 %5853
  %5855 = vrot.lane.b32.xlu0 %v5602, 1
  %v5856 = vpop.permute.xlu0 %5855
  %5857 = vrot.lane.b32.xlu0 %v5606, 1
  %v5858 = vpop.permute.xlu0 %5857
  %5859 = vrot.lane.b32.xlu0 %v5595, 1
  %v5860 = vpop.permute.xlu0 %5859
  %5861 = vrot.lane.b32.xlu0 %v5599, 1
  %v5862 = vpop.permute.xlu0 %5861
  %5863 = vrot.lane.b32.xlu0 %v5603, 1
  %v5864 = vpop.permute.xlu0 %5863
  %5865 = vrot.lane.b32.xlu0 %v5607, 1
  %v5866 = vpop.permute.xlu0 %5865
  %5867 = vrot.lane.b32.xlu0 %v5596, 1
  %v5868 = vpop.permute.xlu0 %5867
  %5869 = vrot.lane.b32.xlu0 %v5600, 1
  %v5870 = vpop.permute.xlu0 %5869
  %5871 = vrot.lane.b32.xlu0 %v5604, 1
  %v5872 = vpop.permute.xlu0 %5871
  %5873 = vrot.lane.b32.xlu0 %v5608, 1
  %v5874 = vpop.permute.xlu0 %5873
  %5875 = vrot.lane.b32.xlu0 %v5597, 1
  %v5876 = vpop.permute.xlu0 %5875
  %5877 = vrot.lane.b32.xlu0 %v5601, 1
  %v5878 = vpop.permute.xlu0 %5877
  %5879 = vrot.lane.b32.xlu0 %v5605, 1
  %v5880 = vpop.permute.xlu0 %5879
  %5881 = vrot.lane.b32.xlu0 %v5609, 1
  %v5882 = vpop.permute.xlu0 %5881
  %vm5883 = vcmp.lt.s32.totalorder %v5651, 1
  %v5884 = vsel %vm5883, %v5868, %v5876
  %v5885 = vsel %vm5883, %v5870, %v5878
  %v5886 = vsel %vm5883, %v5872, %v5880
  %v5887 = vsel %vm5883, %v5874, %v5882
  %v5888 = vsel %vm5883, %v5860, %v5868
  %v5889 = vsel %vm5883, %v5862, %v5870
  %v5890 = vsel %vm5883, %v5864, %v5872
  %v5891 = vsel %vm5883, %v5866, %v5874
  %v5892 = vsel %vm5883, %v5852, %v5860
  %v5893 = vsel %vm5883, %v5854, %v5862
  %v5894 = vsel %vm5883, %v5856, %v5864
  %v5895 = vsel %vm5883, %v5858, %v5866
  %v5896 = vsel %vm5883, %v5876, %v5852
  %v5897 = vsel %vm5883, %v5878, %v5854
  %v5898 = vsel %vm5883, %v5880, %v5856
  %v5899 = vsel %vm5883, %v5882, %v5858
  %v5900 = vperm.slane %v5610, 3
  %v5901 = vperm.slane %v5611, 3
  %v5902 = vperm.slane %v5612, 3
  %v5903 = vperm.slane %v5613, 3
  %v5904 = vmul.f32 %v5896, %v5900
  %v5905 = vmul.f32 %v5892, %v5901
  %v5906 = vmul.f32 %v5888, %v5902
  %v5907 = vmul.f32 %v5884, %v5903
  %v5908 = vmul.f32 %v5897, %v5900
  %v5909 = vmul.f32 %v5893, %v5901
  %v5910 = vmul.f32 %v5889, %v5902
  %v5911 = vmul.f32 %v5885, %v5903
  %v5912 = vmul.f32 %v5898, %v5900
  %v5913 = vmul.f32 %v5894, %v5901
  %v5914 = vmul.f32 %v5890, %v5902
  %v5915 = vmul.f32 %v5886, %v5903
  %v5916 = vmul.f32 %v5899, %v5900
  %v5917 = vmul.f32 %v5895, %v5901
  %v5918 = vmul.f32 %v5891, %v5902
  %v5919 = vmul.f32 %v5887, %v5903
  %v5920 = vpack.c.bf16 %v5905, %v5904
  %v5921 = vpack.c.bf16 %v5907, %v5906
  %v5922 = vpack.c.bf16 %v5909, %v5908
  %v5923 = vpack.c.bf16 %v5911, %v5910
  %v5924 = vpack.c.bf16 %v5913, %v5912
  %v5925 = vpack.c.bf16 %v5915, %v5914
  %v5926 = vpack.c.bf16 %v5917, %v5916
  %v5927 = vpack.c.bf16 %v5919, %v5918
  %v5928 = vperm.slane %v5610, 4
  %v5929 = vperm.slane %v5611, 4
  %v5930 = vperm.slane %v5612, 4
  %v5931 = vperm.slane %v5613, 4
  %v5932 = vmul.f32 %v5594, %v5928
  %v5933 = vmul.f32 %v5595, %v5929
  %v5934 = vmul.f32 %v5596, %v5930
  %v5935 = vmul.f32 %v5597, %v5931
  %v5936 = vmul.f32 %v5598, %v5928
  %v5937 = vmul.f32 %v5599, %v5929
  %v5938 = vmul.f32 %v5600, %v5930
  %v5939 = vmul.f32 %v5601, %v5931
  %v5940 = vmul.f32 %v5602, %v5928
  %v5941 = vmul.f32 %v5603, %v5929
  %v5942 = vmul.f32 %v5604, %v5930
  %v5943 = vmul.f32 %v5605, %v5931
  %v5944 = vmul.f32 %v5606, %v5928
  %v5945 = vmul.f32 %v5607, %v5929
  %v5946 = vmul.f32 %v5608, %v5930
  %v5947 = vmul.f32 %v5609, %v5931
  %v5948 = vpack.c.bf16 %v5933, %v5932
  %v5949 = vpack.c.bf16 %v5935, %v5934
  %v5950 = vpack.c.bf16 %v5937, %v5936
  %v5951 = vpack.c.bf16 %v5939, %v5938
  %v5952 = vpack.c.bf16 %v5941, %v5940
  %v5953 = vpack.c.bf16 %v5943, %v5942
  %v5954 = vpack.c.bf16 %v5945, %v5944
  %v5955 = vpack.c.bf16 %v5947, %v5946
  %5956 = vrot.lane.b32.xlu0 %v5594, 127
  %v5957 = vpop.permute.xlu0 %5956
  %5958 = vrot.lane.b32.xlu0 %v5598, 127
  %v5959 = vpop.permute.xlu0 %5958
  %5960 = vrot.lane.b32.xlu0 %v5602, 127
  %v5961 = vpop.permute.xlu0 %5960
  %5962 = vrot.lane.b32.xlu0 %v5606, 127
  %v5963 = vpop.permute.xlu0 %5962
  %5964 = vrot.lane.b32.xlu0 %v5595, 127
  %v5965 = vpop.permute.xlu0 %5964
  %5966 = vrot.lane.b32.xlu0 %v5599, 127
  %v5967 = vpop.permute.xlu0 %5966
  %5968 = vrot.lane.b32.xlu0 %v5603, 127
  %v5969 = vpop.permute.xlu0 %5968
  %5970 = vrot.lane.b32.xlu0 %v5607, 127
  %v5971 = vpop.permute.xlu0 %5970
  %5972 = vrot.lane.b32.xlu0 %v5596, 127
  %v5973 = vpop.permute.xlu0 %5972
  %5974 = vrot.lane.b32.xlu0 %v5600, 127
  %v5975 = vpop.permute.xlu0 %5974
  %5976 = vrot.lane.b32.xlu0 %v5604, 127
  %v5977 = vpop.permute.xlu0 %5976
  %5978 = vrot.lane.b32.xlu0 %v5608, 127
  %v5979 = vpop.permute.xlu0 %5978
  %5980 = vrot.lane.b32.xlu0 %v5597, 127
  %v5981 = vpop.permute.xlu0 %5980
  %5982 = vrot.lane.b32.xlu0 %v5601, 127
  %v5983 = vpop.permute.xlu0 %5982
  %5984 = vrot.lane.b32.xlu0 %v5605, 127
  %v5985 = vpop.permute.xlu0 %5984
  %5986 = vrot.lane.b32.xlu0 %v5609, 127
  %v5987 = vpop.permute.xlu0 %5986
  %vm5988 = vcmp.lt.s32.totalorder %v5651, 127
  %v5989 = vsel %vm5988, %v5973, %v5981
  %v5990 = vsel %vm5988, %v5975, %v5983
  %v5991 = vsel %vm5988, %v5977, %v5985
  %v5992 = vsel %vm5988, %v5979, %v5987
  %v5993 = vsel %vm5988, %v5965, %v5973
  %v5994 = vsel %vm5988, %v5967, %v5975
  %v5995 = vsel %vm5988, %v5969, %v5977
  %v5996 = vsel %vm5988, %v5971, %v5979
  %v5997 = vsel %vm5988, %v5957, %v5965
  %v5998 = vsel %vm5988, %v5959, %v5967
  %v5999 = vsel %vm5988, %v5961, %v5969
  %v6000 = vsel %vm5988, %v5963, %v5971
  %v6001 = vsel %vm5988, %v5981, %v5957
  %v6002 = vsel %vm5988, %v5983, %v5959
  %v6003 = vsel %vm5988, %v5985, %v5961
  %v6004 = vsel %vm5988, %v5987, %v5963
  %v6005 = vperm.slane %v5610, 5
  %v6006 = vperm.slane %v5611, 5
  %v6007 = vperm.slane %v5612, 5
  %v6008 = vperm.slane %v5613, 5
  %v6009 = vmul.f32 %v5997, %v6005
  %v6010 = vmul.f32 %v5993, %v6006
  %v6011 = vmul.f32 %v5989, %v6007
  %v6012 = vmul.f32 %v6001, %v6008
  %v6013 = vmul.f32 %v5998, %v6005
  %v6014 = vmul.f32 %v5994, %v6006
  %v6015 = vmul.f32 %v5990, %v6007
  %v6016 = vmul.f32 %v6002, %v6008
  %v6017 = vmul.f32 %v5999, %v6005
  %v6018 = vmul.f32 %v5995, %v6006
  %v6019 = vmul.f32 %v5991, %v6007
  %v6020 = vmul.f32 %v6003, %v6008
  %v6021 = vmul.f32 %v6000, %v6005
  %v6022 = vmul.f32 %v5996, %v6006
  %v6023 = vmul.f32 %v5992, %v6007
  %v6024 = vmul.f32 %v6004, %v6008
  %v6025 = vpack.c.bf16 %v6010, %v6009
  %v6026 = vpack.c.bf16 %v6012, %v6011
  %v6027 = vpack.c.bf16 %v6014, %v6013
  %v6028 = vpack.c.bf16 %v6016, %v6015
  %v6029 = vpack.c.bf16 %v6018, %v6017
  %v6030 = vpack.c.bf16 %v6020, %v6019
  %v6031 = vpack.c.bf16 %v6022, %v6021
  %v6032 = vpack.c.bf16 %v6024, %v6023
  %6033 = vrot.lane.b32.xlu0 %v5594, 113
  %v6034 = vpop.permute.xlu0 %6033
  %6035 = vrot.lane.b32.xlu0 %v5598, 113
  %v6036 = vpop.permute.xlu0 %6035
  %6037 = vrot.lane.b32.xlu0 %v5602, 113
  %v6038 = vpop.permute.xlu0 %6037
  %6039 = vrot.lane.b32.xlu0 %v5606, 113
  %v6040 = vpop.permute.xlu0 %6039
  %6041 = vrot.lane.b32.xlu0 %v5595, 113
  %v6042 = vpop.permute.xlu0 %6041
  %6043 = vrot.lane.b32.xlu0 %v5599, 113
  %v6044 = vpop.permute.xlu0 %6043
  %6045 = vrot.lane.b32.xlu0 %v5603, 113
  %v6046 = vpop.permute.xlu0 %6045
  %6047 = vrot.lane.b32.xlu0 %v5607, 113
  %v6048 = vpop.permute.xlu0 %6047
  %6049 = vrot.lane.b32.xlu0 %v5596, 113
  %v6050 = vpop.permute.xlu0 %6049
  %6051 = vrot.lane.b32.xlu0 %v5600, 113
  %v6052 = vpop.permute.xlu0 %6051
  %6053 = vrot.lane.b32.xlu0 %v5604, 113
  %v6054 = vpop.permute.xlu0 %6053
  %6055 = vrot.lane.b32.xlu0 %v5608, 113
  %v6056 = vpop.permute.xlu0 %6055
  %6057 = vrot.lane.b32.xlu0 %v5597, 113
  %v6058 = vpop.permute.xlu0 %6057
  %6059 = vrot.lane.b32.xlu0 %v5601, 113
  %v6060 = vpop.permute.xlu0 %6059
  %6061 = vrot.lane.b32.xlu0 %v5605, 113
  %v6062 = vpop.permute.xlu0 %6061
  %6063 = vrot.lane.b32.xlu0 %v5609, 113
  %v6064 = vpop.permute.xlu0 %6063
  %vm6065 = vcmp.lt.s32.totalorder %v5651, 113
  %v6066 = vsel %vm6065, %v6050, %v6058
  %v6067 = vsel %vm6065, %v6052, %v6060
  %v6068 = vsel %vm6065, %v6054, %v6062
  %v6069 = vsel %vm6065, %v6056, %v6064
  %v6070 = vsel %vm6065, %v6042, %v6050
  %v6071 = vsel %vm6065, %v6044, %v6052
  %v6072 = vsel %vm6065, %v6046, %v6054
  %v6073 = vsel %vm6065, %v6048, %v6056
  %v6074 = vsel %vm6065, %v6034, %v6042
  %v6075 = vsel %vm6065, %v6036, %v6044
  %v6076 = vsel %vm6065, %v6038, %v6046
  %v6077 = vsel %vm6065, %v6040, %v6048
  %v6078 = vsel %vm6065, %v6058, %v6034
  %v6079 = vsel %vm6065, %v6060, %v6036
  %v6080 = vsel %vm6065, %v6062, %v6038
  %v6081 = vsel %vm6065, %v6064, %v6040
  %v6082 = vperm.slane %v5610, 6
  %v6083 = vperm.slane %v5611, 6
  %v6084 = vperm.slane %v5612, 6
  %v6085 = vperm.slane %v5613, 6
  %v6086 = vmul.f32 %v6074, %v6082
  %v6087 = vmul.f32 %v6070, %v6083
  %v6088 = vmul.f32 %v6066, %v6084
  %v6089 = vmul.f32 %v6078, %v6085
  %v6090 = vmul.f32 %v6075, %v6082
  %v6091 = vmul.f32 %v6071, %v6083
  %v6092 = vmul.f32 %v6067, %v6084
  %v6093 = vmul.f32 %v6079, %v6085
  %v6094 = vmul.f32 %v6076, %v6082
  %v6095 = vmul.f32 %v6072, %v6083
  %v6096 = vmul.f32 %v6068, %v6084
  %v6097 = vmul.f32 %v6080, %v6085
  %v6098 = vmul.f32 %v6077, %v6082
  %v6099 = vmul.f32 %v6073, %v6083
  %v6100 = vmul.f32 %v6069, %v6084
  %v6101 = vmul.f32 %v6081, %v6085
  %v6102 = vpack.c.bf16 %v6087, %v6086
  %v6103 = vpack.c.bf16 %v6089, %v6088
  %v6104 = vpack.c.bf16 %v6091, %v6090
  %v6105 = vpack.c.bf16 %v6093, %v6092
  %v6106 = vpack.c.bf16 %v6095, %v6094
  %v6107 = vpack.c.bf16 %v6097, %v6096
  %v6108 = vpack.c.bf16 %v6099, %v6098
  %v6109 = vpack.c.bf16 %v6101, %v6100
  %6110 = vrot.lane.b32.xlu0 %v5594, 112
  %v6111 = vpop.permute.xlu0 %6110
  %6112 = vrot.lane.b32.xlu0 %v5598, 112
  %v6113 = vpop.permute.xlu0 %6112
  %6114 = vrot.lane.b32.xlu0 %v5602, 112
  %v6115 = vpop.permute.xlu0 %6114
  %6116 = vrot.lane.b32.xlu0 %v5606, 112
  %v6117 = vpop.permute.xlu0 %6116
  %6118 = vrot.lane.b32.xlu0 %v5595, 112
  %v6119 = vpop.permute.xlu0 %6118
  %6120 = vrot.lane.b32.xlu0 %v5599, 112
  %v6121 = vpop.permute.xlu0 %6120
  %6122 = vrot.lane.b32.xlu0 %v5603, 112
  %v6123 = vpop.permute.xlu0 %6122
  %6124 = vrot.lane.b32.xlu0 %v5607, 112
  %v6125 = vpop.permute.xlu0 %6124
  %6126 = vrot.lane.b32.xlu0 %v5596, 112
  %v6127 = vpop.permute.xlu0 %6126
  %6128 = vrot.lane.b32.xlu0 %v5600, 112
  %v6129 = vpop.permute.xlu0 %6128
  %6130 = vrot.lane.b32.xlu0 %v5604, 112
  %v6131 = vpop.permute.xlu0 %6130
  %6132 = vrot.lane.b32.xlu0 %v5608, 112
  %v6133 = vpop.permute.xlu0 %6132
  %6134 = vrot.lane.b32.xlu0 %v5597, 112
  %v6135 = vpop.permute.xlu0 %6134
  %6136 = vrot.lane.b32.xlu0 %v5601, 112
  %v6137 = vpop.permute.xlu0 %6136
  %6138 = vrot.lane.b32.xlu0 %v5605, 112
  %v6139 = vpop.permute.xlu0 %6138
  %6140 = vrot.lane.b32.xlu0 %v5609, 112
  %v6141 = vpop.permute.xlu0 %6140
  %vm6142 = vcmp.lt.s32.totalorder %v5651, 112
  %v6143 = vsel %vm6142, %v6127, %v6135
  %v6144 = vsel %vm6142, %v6129, %v6137
  %v6145 = vsel %vm6142, %v6131, %v6139
  %v6146 = vsel %vm6142, %v6133, %v6141
  %v6147 = vsel %vm6142, %v6119, %v6127
  %v6148 = vsel %vm6142, %v6121, %v6129
  %v6149 = vsel %vm6142, %v6123, %v6131
  %v6150 = vsel %vm6142, %v6125, %v6133
  %v6151 = vsel %vm6142, %v6111, %v6119
  %v6152 = vsel %vm6142, %v6113, %v6121
  %v6153 = vsel %vm6142, %v6115, %v6123
  %v6154 = vsel %vm6142, %v6117, %v6125
  %v6155 = vsel %vm6142, %v6135, %v6111
  %v6156 = vsel %vm6142, %v6137, %v6113
  %v6157 = vsel %vm6142, %v6139, %v6115
  %v6158 = vsel %vm6142, %v6141, %v6117
  %v6159 = vperm.slane %v5610, 7
  %v6160 = vperm.slane %v5611, 7
  %v6161 = vperm.slane %v5612, 7
  %v6162 = vperm.slane %v5613, 7
  %v6163 = vmul.f32 %v6151, %v6159
  %v6164 = vmul.f32 %v6147, %v6160
  %v6165 = vmul.f32 %v6143, %v6161
  %v6166 = vmul.f32 %v6155, %v6162
  %v6167 = vmul.f32 %v6152, %v6159
  %v6168 = vmul.f32 %v6148, %v6160
  %v6169 = vmul.f32 %v6144, %v6161
  %v6170 = vmul.f32 %v6156, %v6162
  %v6171 = vmul.f32 %v6153, %v6159
  %v6172 = vmul.f32 %v6149, %v6160
  %v6173 = vmul.f32 %v6145, %v6161
  %v6174 = vmul.f32 %v6157, %v6162
  %v6175 = vmul.f32 %v6154, %v6159
  %v6176 = vmul.f32 %v6150, %v6160
  %v6177 = vmul.f32 %v6146, %v6161
  %v6178 = vmul.f32 %v6158, %v6162
  %v6179 = vpack.c.bf16 %v6164, %v6163
  %v6180 = vpack.c.bf16 %v6166, %v6165
  %v6181 = vpack.c.bf16 %v6168, %v6167
  %v6182 = vpack.c.bf16 %v6170, %v6169
  %v6183 = vpack.c.bf16 %v6172, %v6171
  %v6184 = vpack.c.bf16 %v6174, %v6173
  %v6185 = vpack.c.bf16 %v6176, %v6175
  %v6186 = vpack.c.bf16 %v6178, %v6177
  %6187 = vrot.lane.b32.xlu0 %v5594, 111
  %v6188 = vpop.permute.xlu0 %6187
  %6189 = vrot.lane.b32.xlu0 %v5598, 111
  %v6190 = vpop.permute.xlu0 %6189
  %6191 = vrot.lane.b32.xlu0 %v5602, 111
  %v6192 = vpop.permute.xlu0 %6191
  %6193 = vrot.lane.b32.xlu0 %v5606, 111
  %v6194 = vpop.permute.xlu0 %6193
  %6195 = vrot.lane.b32.xlu0 %v5595, 111
  %v6196 = vpop.permute.xlu0 %6195
  %6197 = vrot.lane.b32.xlu0 %v5599, 111
  %v6198 = vpop.permute.xlu0 %6197
  %6199 = vrot.lane.b32.xlu0 %v5603, 111
  %v6200 = vpop.permute.xlu0 %6199
  %6201 = vrot.lane.b32.xlu0 %v5607, 111
  %v6202 = vpop.permute.xlu0 %6201
  %6203 = vrot.lane.b32.xlu0 %v5596, 111
  %v6204 = vpop.permute.xlu0 %6203
  %6205 = vrot.lane.b32.xlu0 %v5600, 111
  %v6206 = vpop.permute.xlu0 %6205
  %6207 = vrot.lane.b32.xlu0 %v5604, 111
  %v6208 = vpop.permute.xlu0 %6207
  %6209 = vrot.lane.b32.xlu0 %v5608, 111
  %v6210 = vpop.permute.xlu0 %6209
  %6211 = vrot.lane.b32.xlu0 %v5597, 111
  %v6212 = vpop.permute.xlu0 %6211
  %6213 = vrot.lane.b32.xlu0 %v5601, 111
  %v6214 = vpop.permute.xlu0 %6213
  %6215 = vrot.lane.b32.xlu0 %v5605, 111
  %v6216 = vpop.permute.xlu0 %6215
  %6217 = vrot.lane.b32.xlu0 %v5609, 111
  %v6218 = vpop.permute.xlu0 %6217
  %vm6219 = vcmp.lt.s32.totalorder %v5651, 111
  %v6220 = vsel %vm6219, %v6204, %v6212
  %v6221 = vsel %vm6219, %v6206, %v6214
  %v6222 = vsel %vm6219, %v6208, %v6216
  %v6223 = vsel %vm6219, %v6210, %v6218
  %v6224 = vsel %vm6219, %v6196, %v6204
  %v6225 = vsel %vm6219, %v6198, %v6206
  %v6226 = vsel %vm6219, %v6200, %v6208
  %v6227 = vsel %vm6219, %v6202, %v6210
  %v6228 = vsel %vm6219, %v6188, %v6196
  %v6229 = vsel %vm6219, %v6190, %v6198
  %v6230 = vsel %vm6219, %v6192, %v6200
  %v6231 = vsel %vm6219, %v6194, %v6202
  %v6232 = vsel %vm6219, %v6212, %v6188
  %v6233 = vsel %vm6219, %v6214, %v6190
  %v6234 = vsel %vm6219, %v6216, %v6192
  %v6235 = vsel %vm6219, %v6218, %v6194
  %v6236 = vperm.slane %v5614, 0
  %v6237 = vperm.slane %v5615, 0
  %v6238 = vperm.slane %v5616, 0
  %v6239 = vperm.slane %v5617, 0
  %v6240 = vmul.f32 %v6228, %v6236
  %v6241 = vmul.f32 %v6224, %v6237
  %v6242 = vmul.f32 %v6220, %v6238
  %v6243 = vmul.f32 %v6232, %v6239
  %v6244 = vmul.f32 %v6229, %v6236
  %v6245 = vmul.f32 %v6225, %v6237
  %v6246 = vmul.f32 %v6221, %v6238
  %v6247 = vmul.f32 %v6233, %v6239
  %v6248 = vmul.f32 %v6230, %v6236
  %v6249 = vmul.f32 %v6226, %v6237
  %v6250 = vmul.f32 %v6222, %v6238
  %v6251 = vmul.f32 %v6234, %v6239
  %v6252 = vmul.f32 %v6231, %v6236
  %v6253 = vmul.f32 %v6227, %v6237
  %v6254 = vmul.f32 %v6223, %v6238
  %v6255 = vmul.f32 %v6235, %v6239
  %v6256 = vpack.c.bf16 %v6241, %v6240
  %v6257 = vpack.c.bf16 %v6243, %v6242
  %v6258 = vpack.c.bf16 %v6245, %v6244
  %v6259 = vpack.c.bf16 %v6247, %v6246
  %v6260 = vpack.c.bf16 %v6249, %v6248
  %v6261 = vpack.c.bf16 %v6251, %v6250
  %v6262 = vpack.c.bf16 %v6253, %v6252
  %v6263 = vpack.c.bf16 %v6255, %v6254
  %v6272 = vunpack.c.l.b16 %v5689
  %v6273 = vunpack.c.h.b16 %v5689
  %v6274 = vunpack.c.l.b16 %v5690
  %v6275 = vunpack.c.h.b16 %v5690
  %v6276 = vunpack.c.l.b16 %v5691
  %v6277 = vunpack.c.h.b16 %v5691
  %v6278 = vunpack.c.l.b16 %v5692
  %v6279 = vunpack.c.h.b16 %v5692
  %v6280 = vunpack.c.l.b16 %v5693
  %v6281 = vunpack.c.h.b16 %v5693
  %v6282 = vunpack.c.l.b16 %v5694
  %v6283 = vunpack.c.h.b16 %v5694
  %v6284 = vunpack.c.l.b16 %v5695
  %v6285 = vunpack.c.h.b16 %v5695
  %v6286 = vunpack.c.l.b16 %v5696
  %v6287 = vunpack.c.h.b16 %v5696
  %v6288 = vpack.c.b16 %v6276, %v6272
  %v6289 = vpack.c.b16 %v6277, %v6273
  %v6290 = vpack.c.b16 %v6278, %v6274
  %v6291 = vpack.c.b16 %v6279, %v6275
  %v6292 = vpack.c.b16 %v6284, %v6280
  %v6293 = vpack.c.b16 %v6285, %v6281
  %v6294 = vpack.c.b16 %v6286, %v6282
  %v6295 = vpack.c.b16 %v6287, %v6283
  %v6312 = vunpack.c.l.b16 %v5766
  %v6313 = vunpack.c.h.b16 %v5766
  %v6314 = vunpack.c.l.b16 %v5767
  %v6315 = vunpack.c.h.b16 %v5767
  %v6316 = vunpack.c.l.b16 %v5768
  %v6317 = vunpack.c.h.b16 %v5768
  %v6318 = vunpack.c.l.b16 %v5769
  %v6319 = vunpack.c.h.b16 %v5769
  %v6320 = vunpack.c.l.b16 %v5770
  %v6321 = vunpack.c.h.b16 %v5770
  %v6322 = vunpack.c.l.b16 %v5771
  %v6323 = vunpack.c.h.b16 %v5771
  %v6324 = vunpack.c.l.b16 %v5772
  %v6325 = vunpack.c.h.b16 %v5772
  %v6326 = vunpack.c.l.b16 %v5773
  %v6327 = vunpack.c.h.b16 %v5773
  %v6328 = vpack.c.b16 %v6316, %v6312
  %v6329 = vpack.c.b16 %v6317, %v6313
  %v6330 = vpack.c.b16 %v6318, %v6314
  %v6331 = vpack.c.b16 %v6319, %v6315
  %v6332 = vpack.c.b16 %v6324, %v6320
  %v6333 = vpack.c.b16 %v6325, %v6321
  %v6334 = vpack.c.b16 %v6326, %v6322
  %v6335 = vpack.c.b16 %v6327, %v6323
  %v6352 = vunpack.c.l.b16 %v5843
  %v6353 = vunpack.c.h.b16 %v5843
  %v6354 = vunpack.c.l.b16 %v5844
  %v6355 = vunpack.c.h.b16 %v5844
  %v6356 = vunpack.c.l.b16 %v5845
  %v6357 = vunpack.c.h.b16 %v5845
  %v6358 = vunpack.c.l.b16 %v5846
  %v6359 = vunpack.c.h.b16 %v5846
  %v6360 = vunpack.c.l.b16 %v5847
  %v6361 = vunpack.c.h.b16 %v5847
  %v6362 = vunpack.c.l.b16 %v5848
  %v6363 = vunpack.c.h.b16 %v5848
  %v6364 = vunpack.c.l.b16 %v5849
  %v6365 = vunpack.c.h.b16 %v5849
  %v6366 = vunpack.c.l.b16 %v5850
  %v6367 = vunpack.c.h.b16 %v5850
  %v6368 = vpack.c.b16 %v6356, %v6352
  %v6369 = vpack.c.b16 %v6357, %v6353
  %v6370 = vpack.c.b16 %v6358, %v6354
  %v6371 = vpack.c.b16 %v6359, %v6355
  %v6372 = vpack.c.b16 %v6364, %v6360
  %v6373 = vpack.c.b16 %v6365, %v6361
  %v6374 = vpack.c.b16 %v6366, %v6362
  %v6375 = vpack.c.b16 %v6367, %v6363
  %v6392 = vunpack.c.l.b16 %v5920
  %v6393 = vunpack.c.h.b16 %v5920
  %v6394 = vunpack.c.l.b16 %v5921
  %v6395 = vunpack.c.h.b16 %v5921
  %v6396 = vunpack.c.l.b16 %v5922
  %v6397 = vunpack.c.h.b16 %v5922
  %v6398 = vunpack.c.l.b16 %v5923
  %v6399 = vunpack.c.h.b16 %v5923
  %v6400 = vunpack.c.l.b16 %v5924
  %v6401 = vunpack.c.h.b16 %v5924
  %v6402 = vunpack.c.l.b16 %v5925
  %v6403 = vunpack.c.h.b16 %v5925
  %v6404 = vunpack.c.l.b16 %v5926
  %v6405 = vunpack.c.h.b16 %v5926
  %v6406 = vunpack.c.l.b16 %v5927
  %v6407 = vunpack.c.h.b16 %v5927
  %v6408 = vpack.c.b16 %v6396, %v6392
  %v6409 = vpack.c.b16 %v6397, %v6393
  %v6410 = vpack.c.b16 %v6398, %v6394
  %v6411 = vpack.c.b16 %v6399, %v6395
  %v6412 = vpack.c.b16 %v6404, %v6400
  %v6413 = vpack.c.b16 %v6405, %v6401
  %v6414 = vpack.c.b16 %v6406, %v6402
  %v6415 = vpack.c.b16 %v6407, %v6403
  %v6432 = vunpack.c.l.b16 %v5948
  %v6433 = vunpack.c.h.b16 %v5948
  %v6434 = vunpack.c.l.b16 %v5949
  %v6435 = vunpack.c.h.b16 %v5949
  %v6436 = vunpack.c.l.b16 %v5950
  %v6437 = vunpack.c.h.b16 %v5950
  %v6438 = vunpack.c.l.b16 %v5951
  %v6439 = vunpack.c.h.b16 %v5951
  %v6440 = vunpack.c.l.b16 %v5952
  %v6441 = vunpack.c.h.b16 %v5952
  %v6442 = vunpack.c.l.b16 %v5953
  %v6443 = vunpack.c.h.b16 %v5953
  %v6444 = vunpack.c.l.b16 %v5954
  %v6445 = vunpack.c.h.b16 %v5954
  %v6446 = vunpack.c.l.b16 %v5955
  %v6447 = vunpack.c.h.b16 %v5955
  %v6448 = vpack.c.b16 %v6436, %v6432
  %v6449 = vpack.c.b16 %v6437, %v6433
  %v6450 = vpack.c.b16 %v6438, %v6434
  %v6451 = vpack.c.b16 %v6439, %v6435
  %v6452 = vpack.c.b16 %v6444, %v6440
  %v6453 = vpack.c.b16 %v6445, %v6441
  %v6454 = vpack.c.b16 %v6446, %v6442
  %v6455 = vpack.c.b16 %v6447, %v6443
  %v6472 = vunpack.c.l.b16 %v6025
  %v6473 = vunpack.c.h.b16 %v6025
  %v6474 = vunpack.c.l.b16 %v6026
  %v6475 = vunpack.c.h.b16 %v6026
  %v6476 = vunpack.c.l.b16 %v6027
  %v6477 = vunpack.c.h.b16 %v6027
  %v6478 = vunpack.c.l.b16 %v6028
  %v6479 = vunpack.c.h.b16 %v6028
  %v6480 = vunpack.c.l.b16 %v6029
  %v6481 = vunpack.c.h.b16 %v6029
  %v6482 = vunpack.c.l.b16 %v6030
  %v6483 = vunpack.c.h.b16 %v6030
  %v6484 = vunpack.c.l.b16 %v6031
  %v6485 = vunpack.c.h.b16 %v6031
  %v6486 = vunpack.c.l.b16 %v6032
  %v6487 = vunpack.c.h.b16 %v6032
  %v6488 = vpack.c.b16 %v6476, %v6472
  %v6489 = vpack.c.b16 %v6477, %v6473
  %v6490 = vpack.c.b16 %v6478, %v6474
  %v6491 = vpack.c.b16 %v6479, %v6475
  %v6492 = vpack.c.b16 %v6484, %v6480
  %v6493 = vpack.c.b16 %v6485, %v6481
  %v6494 = vpack.c.b16 %v6486, %v6482
  %v6495 = vpack.c.b16 %v6487, %v6483
  %v6512 = vunpack.c.l.b16 %v6102
  %v6513 = vunpack.c.h.b16 %v6102
  %v6514 = vunpack.c.l.b16 %v6103
  %v6515 = vunpack.c.h.b16 %v6103
  %v6516 = vunpack.c.l.b16 %v6104
  %v6517 = vunpack.c.h.b16 %v6104
  %v6518 = vunpack.c.l.b16 %v6105
  %v6519 = vunpack.c.h.b16 %v6105
  %v6520 = vunpack.c.l.b16 %v6106
  %v6521 = vunpack.c.h.b16 %v6106
  %v6522 = vunpack.c.l.b16 %v6107
  %v6523 = vunpack.c.h.b16 %v6107
  %v6524 = vunpack.c.l.b16 %v6108
  %v6525 = vunpack.c.h.b16 %v6108
  %v6526 = vunpack.c.l.b16 %v6109
  %v6527 = vunpack.c.h.b16 %v6109
  %v6528 = vpack.c.b16 %v6516, %v6512
  %v6529 = vpack.c.b16 %v6517, %v6513
  %v6530 = vpack.c.b16 %v6518, %v6514
  %v6531 = vpack.c.b16 %v6519, %v6515
  %v6532 = vpack.c.b16 %v6524, %v6520
  %v6533 = vpack.c.b16 %v6525, %v6521
  %v6534 = vpack.c.b16 %v6526, %v6522
  %v6535 = vpack.c.b16 %v6527, %v6523
  %v6552 = vunpack.c.l.b16 %v6179
  %v6553 = vunpack.c.h.b16 %v6179
  %v6554 = vunpack.c.l.b16 %v6180
  %v6555 = vunpack.c.h.b16 %v6180
  %v6556 = vunpack.c.l.b16 %v6181
  %v6557 = vunpack.c.h.b16 %v6181
  %v6558 = vunpack.c.l.b16 %v6182
  %v6559 = vunpack.c.h.b16 %v6182
  %v6560 = vunpack.c.l.b16 %v6183
  %v6561 = vunpack.c.h.b16 %v6183
  %v6562 = vunpack.c.l.b16 %v6184
  %v6563 = vunpack.c.h.b16 %v6184
  %v6564 = vunpack.c.l.b16 %v6185
  %v6565 = vunpack.c.h.b16 %v6185
  %v6566 = vunpack.c.l.b16 %v6186
  %v6567 = vunpack.c.h.b16 %v6186
  %v6568 = vpack.c.b16 %v6556, %v6552
  %v6569 = vpack.c.b16 %v6557, %v6553
  %v6570 = vpack.c.b16 %v6558, %v6554
  %v6571 = vpack.c.b16 %v6559, %v6555
  %v6572 = vpack.c.b16 %v6564, %v6560
  %v6573 = vpack.c.b16 %v6565, %v6561
  %v6574 = vpack.c.b16 %v6566, %v6562
  %v6575 = vpack.c.b16 %v6567, %v6563
  %v6592 = vunpack.c.l.b16 %v6256
  %v6593 = vunpack.c.h.b16 %v6256
  %v6594 = vunpack.c.l.b16 %v6257
  %v6595 = vunpack.c.h.b16 %v6257
  %v6596 = vunpack.c.l.b16 %v6258
  %v6597 = vunpack.c.h.b16 %v6258
  %v6598 = vunpack.c.l.b16 %v6259
  %v6599 = vunpack.c.h.b16 %v6259
  %v6600 = vunpack.c.l.b16 %v6260
  %v6601 = vunpack.c.h.b16 %v6260
  %v6602 = vunpack.c.l.b16 %v6261
  %v6603 = vunpack.c.h.b16 %v6261
  %v6604 = vunpack.c.l.b16 %v6262
  %v6605 = vunpack.c.h.b16 %v6262
  %v6606 = vunpack.c.l.b16 %v6263
  %v6607 = vunpack.c.h.b16 %v6263
  %v6608 = vpack.c.b16 %v6596, %v6592
  %v6609 = vpack.c.b16 %v6597, %v6593
  %v6610 = vpack.c.b16 %v6598, %v6594
  %v6611 = vpack.c.b16 %v6599, %v6595
  %v6612 = vpack.c.b16 %v6604, %v6600
  %v6613 = vpack.c.b16 %v6605, %v6601
  %v6614 = vpack.c.b16 %v6606, %v6602
  %v6615 = vpack.c.b16 %v6607, %v6603
  %v6624 = vld [vmem:[%s12] sm:$0x7]
  %v6625 = vld [vmem:[%s13] sm:$0xf]
  %6627 = vst [vmem:[#allocation1] ss:$9 sm:$0xff] %v6624
  %v6628 = vld [vmem:[#allocation1] sm:$0xff]
  %v6629 = vld [vmem:[#allocation1 + $0x9] sm:$0xff]
  %v6630 = vld [vmem:[#allocation1 + $0x12] sm:$0xff]
  %v6634 = vperm.slane %v6625, 0
  %v6635 = vperm.slane %v6625, 1
  %v6636 = vperm.slane %v6625, 2
  %v6637 = vperm.slane %v6625, 3
  %v6642 = vsel %vm279, %v6630, 0
  %6644 = vmatpush.bf16.msra.mxu0 %v6412
  %6645 = vmatpush.bf16.msra.mxu0 %v6408
  %6646 = vmatpush.bf16.msra.mxu0 %v6372
  %6647 = vmatpush.bf16.msra.mxu0 %v6368
  %6648 = vmatpush.bf16.msra.mxu0 %v6332
  %6649 = vmatpush.bf16.msra.mxu0 %v6328
  %6650 = vmatpush.bf16.msra.mxu0 %v6292
  %6651 = vmatpush.bf16.msra.mxu0 %v6288
  %6652 = vmatmul.bf16.gmra.mxu0 %v6628
  %v6653 = vpop.f32.mrf.mxu0
  %v6654 = vadd.f32 %v6634, %v6653
  %v6655 = vpop.f32.mrf.mxu0
  %6656 = vdwg.mxu0
  %6657 = vmatpush.bf16.msra.mxu0 %v6572
  %6658 = vmatpush.bf16.msra.mxu0 %v6568
  %6659 = vmatpush.bf16.msra.mxu0 %v6532
  %6660 = vmatpush.bf16.msra.mxu0 %v6528
  %6661 = vmatpush.bf16.msra.mxu0 %v6492
  %6662 = vmatpush.bf16.msra.mxu0 %v6488
  %6663 = vmatpush.bf16.msra.mxu0 %v6452
  %6664 = vmatpush.bf16.msra.mxu0 %v6448
  %6665 = vmatmul.bf16.gmra.mxu0 %v6629
  %v6666 = vpop.f32.mrf.mxu0
  %v6667 = vadd.f32 %v6654, %v6666
  %v6668 = vpop.f32.mrf.mxu0
  %6669 = vdwg.mxu0
  %6670 = vmatpush.bf16.msra.mxu0 0
  %6671 = vmatpush.bf16.msra.mxu0 0
  %6672 = vmatpush.bf16.msra.mxu0 0
  %6673 = vmatpush.bf16.msra.mxu0 0
  %6674 = vmatpush.bf16.msra.mxu0 0
  %6675 = vmatpush.bf16.msra.mxu0 0
  %6676 = vmatpush.bf16.msra.mxu0 %v6612
  %6677 = vmatpush.bf16.msra.mxu0 %v6608
  %6678 = vmatmul.bf16.gmra.mxu0 %v6642
  %v6679 = vpop.f32.mrf.mxu0
  %v6680 = vadd.f32 %v6667, %v6679
  %v6681 = vpop.f32.mrf.mxu0
  %6682 = vdwg.mxu0
  %6683 = vmatpush.bf16.msra.mxu0 %v6413
  %6684 = vmatpush.bf16.msra.mxu0 %v6409
  %6685 = vmatpush.bf16.msra.mxu0 %v6373
  %6686 = vmatpush.bf16.msra.mxu0 %v6369
  %6687 = vmatpush.bf16.msra.mxu0 %v6333
  %6688 = vmatpush.bf16.msra.mxu0 %v6329
  %6689 = vmatpush.bf16.msra.mxu0 %v6293
  %6690 = vmatpush.bf16.msra.mxu0 %v6289
  %6691 = vmatmul.bf16.gmra.mxu0 %v6628
  %v6692 = vpop.f32.mrf.mxu0
  %v6693 = vadd.f32 %v6635, %v6692
  %v6694 = vpop.f32.mrf.mxu0
  %6695 = vdwg.mxu0
  %6696 = vmatpush.bf16.msra.mxu0 %v6573
  %6697 = vmatpush.bf16.msra.mxu0 %v6569
  %6698 = vmatpush.bf16.msra.mxu0 %v6533
  %6699 = vmatpush.bf16.msra.mxu0 %v6529
  %6700 = vmatpush.bf16.msra.mxu0 %v6493
  %6701 = vmatpush.bf16.msra.mxu0 %v6489
  %6702 = vmatpush.bf16.msra.mxu0 %v6453
  %6703 = vmatpush.bf16.msra.mxu0 %v6449
  %6704 = vmatmul.bf16.gmra.mxu0 %v6629
  %v6705 = vpop.f32.mrf.mxu0
  %v6706 = vadd.f32 %v6693, %v6705
  %v6707 = vpop.f32.mrf.mxu0
  %6708 = vdwg.mxu0
  %6709 = vmatpush.bf16.msra.mxu0 0
  %6710 = vmatpush.bf16.msra.mxu0 0
  %6711 = vmatpush.bf16.msra.mxu0 0
  %6712 = vmatpush.bf16.msra.mxu0 0
  %6713 = vmatpush.bf16.msra.mxu0 0
  %6714 = vmatpush.bf16.msra.mxu0 0
  %6715 = vmatpush.bf16.msra.mxu0 %v6613
  %6716 = vmatpush.bf16.msra.mxu0 %v6609
  %6717 = vmatmul.bf16.gmra.mxu0 %v6642
  %v6718 = vpop.f32.mrf.mxu0
  %v6719 = vadd.f32 %v6706, %v6718
  %v6720 = vpop.f32.mrf.mxu0
  %6721 = vdwg.mxu0
  %6722 = vmatpush.bf16.msra.mxu0 %v6414
  %6723 = vmatpush.bf16.msra.mxu0 %v6410
  %6724 = vmatpush.bf16.msra.mxu0 %v6374
  %6725 = vmatpush.bf16.msra.mxu0 %v6370
  %6726 = vmatpush.bf16.msra.mxu0 %v6334
  %6727 = vmatpush.bf16.msra.mxu0 %v6330
  %6728 = vmatpush.bf16.msra.mxu0 %v6294
  %6729 = vmatpush.bf16.msra.mxu0 %v6290
  %6730 = vmatmul.bf16.gmra.mxu0 %v6628
  %v6731 = vpop.f32.mrf.mxu0
  %v6732 = vadd.f32 %v6636, %v6731
  %v6733 = vpop.f32.mrf.mxu0
  %6734 = vdwg.mxu0
  %6735 = vmatpush.bf16.msra.mxu0 %v6574
  %6736 = vmatpush.bf16.msra.mxu0 %v6570
  %6737 = vmatpush.bf16.msra.mxu0 %v6534
  %6738 = vmatpush.bf16.msra.mxu0 %v6530
  %6739 = vmatpush.bf16.msra.mxu0 %v6494
  %6740 = vmatpush.bf16.msra.mxu0 %v6490
  %6741 = vmatpush.bf16.msra.mxu0 %v6454
  %6742 = vmatpush.bf16.msra.mxu0 %v6450
  %6743 = vmatmul.bf16.gmra.mxu0 %v6629
  %v6744 = vpop.f32.mrf.mxu0
  %v6745 = vadd.f32 %v6732, %v6744
  %v6746 = vpop.f32.mrf.mxu0
  %6747 = vdwg.mxu0
  %6748 = vmatpush.bf16.msra.mxu0 0
  %6749 = vmatpush.bf16.msra.mxu0 0
  %6750 = vmatpush.bf16.msra.mxu0 0
  %6751 = vmatpush.bf16.msra.mxu0 0
  %6752 = vmatpush.bf16.msra.mxu0 0
  %6753 = vmatpush.bf16.msra.mxu0 0
  %6754 = vmatpush.bf16.msra.mxu0 %v6614
  %6755 = vmatpush.bf16.msra.mxu0 %v6610
  %6756 = vmatmul.bf16.gmra.mxu0 %v6642
  %v6757 = vpop.f32.mrf.mxu0
  %v6758 = vadd.f32 %v6745, %v6757
  %v6759 = vpop.f32.mrf.mxu0
  %6760 = vdwg.mxu0
  %6761 = vmatpush.bf16.msra.mxu0 %v6415
  %6762 = vmatpush.bf16.msra.mxu0 %v6411
  %6763 = vmatpush.bf16.msra.mxu0 %v6375
  %6764 = vmatpush.bf16.msra.mxu0 %v6371
  %6765 = vmatpush.bf16.msra.mxu0 %v6335
  %6766 = vmatpush.bf16.msra.mxu0 %v6331
  %6767 = vmatpush.bf16.msra.mxu0 %v6295
  %6768 = vmatpush.bf16.msra.mxu0 %v6291
  %6769 = vmatmul.bf16.gmra.mxu0 %v6628
  %v6770 = vpop.f32.mrf.mxu0
  %v6771 = vadd.f32 %v6637, %v6770
  %v6772 = vpop.f32.mrf.mxu0
  %6773 = vdwg.mxu0
  %6774 = vmatpush.bf16.msra.mxu0 %v6575
  %6775 = vmatpush.bf16.msra.mxu0 %v6571
  %6776 = vmatpush.bf16.msra.mxu0 %v6535
  %6777 = vmatpush.bf16.msra.mxu0 %v6531
  %6778 = vmatpush.bf16.msra.mxu0 %v6495
  %6779 = vmatpush.bf16.msra.mxu0 %v6491
  %6780 = vmatpush.bf16.msra.mxu0 %v6455
  %6781 = vmatpush.bf16.msra.mxu0 %v6451
  %6782 = vmatmul.bf16.gmra.mxu0 %v6629
  %v6783 = vpop.f32.mrf.mxu0
  %v6784 = vadd.f32 %v6771, %v6783
  %v6785 = vpop.f32.mrf.mxu0
  %6786 = vdwg.mxu0
  %6787 = vmatpush.bf16.msra.mxu0 0
  %6788 = vmatpush.bf16.msra.mxu0 0
  %6789 = vmatpush.bf16.msra.mxu0 0
  %6790 = vmatpush.bf16.msra.mxu0 0
  %6791 = vmatpush.bf16.msra.mxu0 0
  %6792 = vmatpush.bf16.msra.mxu0 0
  %6793 = vmatpush.bf16.msra.mxu0 %v6615
  %6794 = vmatpush.bf16.msra.mxu0 %v6611
  %6795 = vmatmul.bf16.gmra.mxu0 %v6642
  %v6796 = vpop.f32.mrf.mxu0
  %v6797 = vadd.f32 %v6784, %v6796
  %v6798 = vpop.f32.mrf.mxu0
  %6799 = vdwg.mxu0
  %v6800 = vtanh.pop %v6680
  %v6801 = vtanh.pop %v6719
  %v6802 = vtanh.pop %v6758
  %v6803 = vtanh.pop %v6797
  %v6808 = vrot.slane %v6801, 7
  %v6809 = vrot.slane %v6802, 6
  %v6810 = vrot.slane %v6803, 5
  %v6811 = vsel %vm341, %v6800, %v6808
  %vm6812 = vcmask 1042434
  %v6813 = vsel %vm6812, %v6809, %v6810
  %v6814 = vsel %vm344, %v6811, %v6813
  %v6816 = vlaneseq
  %vm6817 = vcmp.ge.s32.totalorder %v6816, 0
  %vm6818 = vcmp.lt.s32.totalorder %v6816, 512
  %vm6819 = vmand %vm6817, %vm6818
  %6820 = vst.msk [vmem:[%s16] sm:$0xf] %vm6819, %v6814
  // Predicated region
  $region66: #{decoder_forward.1} parent=0 // pred_check
    _
  $region67: #{decoder_forward.1} parent=0 // pred_check_branch
    %6822 = sbr.rel (0) target = $region69
  $region68: #{decoder_forward.1} parent=0 // pred_region
    _
  $region69: #{decoder_forward.1} parent=0 // pred_fallthru
    _
  // Predicated region
  $region70: #{decoder_forward.1} parent=0 // pred_check
    _
  $region71: #{decoder_forward.1} parent=0 // pred_check_branch
    %6824 = sbr.rel (0) target = $region73
  $region72: #{decoder_forward.1} parent=0 // pred_region
    _
  $region73: #{decoder_forward.1} parent=0 // pred_fallthru
    _
  // Predicated region
  $region74: #{decoder_forward.1} parent=0 // pred_check
    _
  $region75: #{decoder_forward.1} parent=0 // pred_check_branch
    %6826 = sbr.rel (0) target = $region77
  $region76: #{decoder_forward.1} parent=0 // pred_region
    _
  $region77: #{decoder_forward.1} parent=0 // pred_fallthru
    _
  // Predicated region
  $region78: #{decoder_forward.1} parent=0 // pred_check
    _
  $region79: #{decoder_forward.1} parent=0 // pred_check_branch
    %6828 = sbr.rel (0) target = $region81
  $region80: #{decoder_forward.1} parent=0 // pred_region
    _
  $region81: #{decoder_forward.1} parent=0 // pred_fallthru
    _

</llo_original>
